<compile_context>
chip_gen: v7x
topology: tpu7x:2x2x1
jax: 0.10.0
libtpu: 0.0.40
codegen_flags: <defaults>
</compile_context>

<pallas_src>
import functools
import math

import jax
import jax.numpy as jnp
from jax.experimental import pallas as pl
from jax.experimental.pallas import tpu as pltpu


# ----------------------------------------------------------------------------
# Fused encoder kernel: one grid step == one batch item, everything in VMEM.
# ----------------------------------------------------------------------------
def _encoder_kernel(x_ref, mcol_ref, mrow_ref,
                    wq_ref, bq_ref, wk_ref, bk_ref, wv_ref, bv_ref, wo_ref, bo_ref,
                    rk_ref, rv_ref,
                    g1_ref, be1_ref,
                    f1w_ref, f1b_ref, f2w_ref, f2b_ref,
                    g2_ref, be2_ref,
                    pw_ref, pb_ref,
                    enc_ref, stats_ref,
                    *, n_layers, n_heads, k_channels, kernel_size, window_size,
                    seq_len, eps):
    T = seq_len
    Dk = k_channels
    K = kernel_size
    ws = window_size
    f32 = jnp.float32

    mc = mcol_ref[...]                          # (T, 1) time mask (column form)
    mr = mrow_ref[...]                          # (1, T) time mask (row form)
    x = x_ref[...] * mc                         # encoder input is x * x_mask

    mask2d = mc * mr                            # (T, T) attention mask
    row_ids = jax.lax.broadcasted_iota(jnp.int32, (T, T), 0)
    col_ids = jax.lax.broadcasted_iota(jnp.int32, (T, T), 1)
    rel_idx = col_ids - row_ids                 # j - i
    inv_sqrt_dk = 1.0 / math.sqrt(Dk)
    pad_l = (K - 1) // 2
    pad_r = K // 2

    def layer_norm(y, gamma, beta):
        mu = jnp.mean(y, axis=-1, keepdims=True)
        var = jnp.mean(jnp.square(y - mu), axis=-1, keepdims=True)
        return (y - mu) * jax.lax.rsqrt(var + eps) * gamma + beta

    def pad_time(a):
        parts = []
        if pad_l > 0:
            parts.append(jnp.zeros((pad_l, a.shape[-1]), f32))
        parts.append(a)
        if pad_r > 0:
            parts.append(jnp.zeros((pad_r, a.shape[-1]), f32))
        return jnp.concatenate(parts, axis=0) if len(parts) > 1 else a

    def conv1d(a, w3, b):
        # a: (T, Cin) already time-masked; w3: (K, Cin, Cout); "same" padding.
        ap = pad_time(a)
        out = jnp.dot(ap[0:T, :], w3[0], preferred_element_type=f32)
        for j in range(1, K):
            out = out + jnp.dot(ap[j:j + T, :], w3[j], preferred_element_type=f32)
        return out + b

    for layer in range(n_layers):
        # ---------------- multi-head self-attention with relative positions --
        q = jnp.dot(x, wq_ref[layer], preferred_element_type=f32) + bq_ref[layer]
        k = jnp.dot(x, wk_ref[layer], preferred_element_type=f32) + bk_ref[layer]
        v = jnp.dot(x, wv_ref[layer], preferred_element_type=f32) + bv_ref[layer]
        relk = rk_ref[layer]                    # (2*ws+1, Dk), shared across heads
        relv = rv_ref[layer]

        heads = []
        for h in range(n_heads):
            lo = h * Dk
            qh = q[:, lo:lo + Dk] * inv_sqrt_dk
            kh = k[:, lo:lo + Dk]
            vh = v[:, lo:lo + Dk]
            scores = jax.lax.dot_general(qh, kh, (((1,), (1,)), ((), ())),
                                         preferred_element_type=f32)      # (T, T)
            # relative-key bias: scores[i, j] += qh[i, :] . rel_k[(j - i) + ws, :]
            qr = jax.lax.dot_general(qh, relk, (((1,), (1,)), ((), ())),
                                     preferred_element_type=f32)          # (T, 2ws+1)
            for wi in range(2 * ws + 1):
                scores = scores + jnp.where(rel_idx == (wi - ws),
                                            qr[:, wi:wi + 1], 0.0)
            scores = jnp.where(mask2d > 0.0, scores, -1e4)
            smax = jnp.max(scores, axis=-1, keepdims=True)
            pexp = jnp.exp(scores - smax)
            p = pexp / jnp.sum(pexp, axis=-1, keepdims=True)
            # TODO(synk): attention dropout omitted (inference path).
            outh = jnp.dot(p, vh, preferred_element_type=f32)             # (T, Dk)
            # relative-value term: out[i, :] += sum_j p[i, j] * rel_v[(j - i) + ws, :]
            pr_cols = [jnp.sum(jnp.where(rel_idx == (wi - ws), p, 0.0),
                               axis=-1, keepdims=True)
                       for wi in range(2 * ws + 1)]
            pr = jnp.concatenate(pr_cols, axis=-1)                        # (T, 2ws+1)
            outh = outh + jnp.dot(pr, relv, preferred_element_type=f32)
            heads.append(outh)
        y = heads[0] if n_heads == 1 else jnp.concatenate(heads, axis=-1)  # (T, C)
        y = jnp.dot(y, wo_ref[layer], preferred_element_type=f32) + bo_ref[layer]
        # TODO(synk): residual dropout omitted (inference path).
        x = layer_norm(x + y, g1_ref[layer], be1_ref[layer])

        # ---------------- FFN: conv -> relu -> conv (all time-masked) --------
        hmid = conv1d(x * mc, f1w_ref[layer], f1b_ref[layer])
        hmid = jnp.maximum(hmid, 0.0)            # FFN activation=None -> relu
        y = conv1d(hmid * mc, f2w_ref[layer], f2b_ref[layer]) * mc
        x = layer_norm(x + y, g2_ref[layer], be2_ref[layer])

    x = x * mc                                   # Encoder epilogue: x * x_mask
    enc_ref[...] = x
    stats_ref[...] = (jnp.dot(x, pw_ref[...], preferred_element_type=f32)
                      + pb_ref[...]) * mc


# ----------------------------------------------------------------------------
# Wrapper: embedding lookup + mask construction + single fused pallas_call.
# ----------------------------------------------------------------------------
def make_text_encoder(*, n_vocab, out_channels, hidden_channels, filter_channels,
                      n_heads, n_layers, kernel_size, window_size=4):
    del n_vocab  # embedding table size is carried by params['emb']
    assert hidden_channels % n_heads == 0
    k_channels = hidden_channels // n_heads

    def forward(params, tokens, x_lengths):
        B, T = tokens.shape
        C = hidden_channels
        Fc = filter_channels
        K = kernel_size
        L = n_layers
        W = 2 * window_size + 1
        S = 2 * out_channels

        # embedding lookup kept in XLA (data-dependent gather); x = emb(x)*sqrt(C)
        x = jnp.take(params['emb'], tokens, axis=0) * math.sqrt(C)        # (B, T, C)
        mask = (jnp.arange(T)[None, :] < x_lengths[:, None]).astype(jnp.float32)
        m_col = mask[:, :, None]                                          # (B, T, 1)
        m_row = mask[:, None, :]                                          # (B, 1, T)

        kern = functools.partial(
            _encoder_kernel, n_layers=L, n_heads=n_heads, k_channels=k_channels,
            kernel_size=K, window_size=window_size, seq_len=T, eps=1e-5)

        def const(shape):
            # full-array block, fetched once (constant index map across grid steps)
            return pl.BlockSpec(shape, lambda b: (0,) * len(shape))

        enc, stats = pl.pallas_call(
            kern,
            out_shape=(jax.ShapeDtypeStruct((B, T, C), jnp.float32),
                       jax.ShapeDtypeStruct((B, T, S), jnp.float32)),
            grid=(B,),
            in_specs=[
                pl.BlockSpec((None, T, C), lambda b: (b, 0, 0)),   # x
                pl.BlockSpec((None, T, 1), lambda b: (b, 0, 0)),   # mask (col)
                pl.BlockSpec((None, 1, T), lambda b: (b, 0, 0)),   # mask (row)
                const((L, C, C)), const((L, 1, C)),                # conv_q w/b
                const((L, C, C)), const((L, 1, C)),                # conv_k w/b
                const((L, C, C)), const((L, 1, C)),                # conv_v w/b
                const((L, C, C)), const((L, 1, C)),                # conv_o w/b
                const((L, W, k_channels)), const((L, W, k_channels)),  # rel_k, rel_v
                const((L, 1, C)), const((L, 1, C)),                # norm1 gamma/beta
                const((L, K, C, Fc)), const((L, 1, Fc)),           # ffn conv1 w/b
                const((L, K, Fc, C)), const((L, 1, C)),            # ffn conv2 w/b
                const((L, 1, C)), const((L, 1, C)),                # norm2 gamma/beta
                const((C, S)), const((1, S)),                      # proj w/b
            ],
            out_specs=(pl.BlockSpec((None, T, C), lambda b: (b, 0, 0)),
                       pl.BlockSpec((None, T, S), lambda b: (b, 0, 0))),
            compiler_params=pltpu.CompilerParams(
                dimension_semantics=("parallel",)),
        )(x, m_col, m_row,
          params['wq'], params['bq'], params['wk'], params['bk'],
          params['wv'], params['bv'], params['wo'], params['bo'],
          params['rel_k'], params['rel_v'],
          params['ln1_g'], params['ln1_b'],
          params['ffn_w1'], params['ffn_b1'], params['ffn_w2'], params['ffn_b2'],
          params['ln2_g'], params['ln2_b'],
          params['proj_w'], params['proj_b'])

        m = stats[..., :out_channels]
        logs = stats[..., out_channels:]
        return enc, m, logs, m_col

    return forward


# ----------------------------------------------------------------------------
# Deterministic parameter init (shapes per TextEncoder.__init__; values synthetic)
# ----------------------------------------------------------------------------
def init_params(key, *, n_vocab, out_channels, hidden_channels, filter_channels,
                n_heads, n_layers, kernel_size, window_size=4):
    C = hidden_channels
    Fc = filter_channels
    K = kernel_size
    L = n_layers
    W = 2 * window_size + 1
    dk = C // n_heads
    keys = iter(jax.random.split(key, 32))

    def nrm(shape, scale=0.1):
        return scale * jax.random.normal(next(keys), shape, jnp.float32)

    return {
        'emb': jax.random.normal(next(keys), (n_vocab, C), jnp.float32) * C ** -0.5,
        'wq': nrm((L, C, C)), 'bq': nrm((L, 1, C)),
        'wk': nrm((L, C, C)), 'bk': nrm((L, 1, C)),
        'wv': nrm((L, C, C)), 'bv': nrm((L, 1, C)),
        'wo': nrm((L, C, C)), 'bo': nrm((L, 1, C)),
        'rel_k': nrm((L, W, dk), scale=dk ** -0.5),
        'rel_v': nrm((L, W, dk), scale=dk ** -0.5),
        'ln1_g': 1.0 + nrm((L, 1, C)), 'ln1_b': nrm((L, 1, C)),
        'ffn_w1': nrm((L, K, C, Fc)), 'ffn_b1': nrm((L, 1, Fc)),
        'ffn_w2': nrm((L, K, Fc, C)), 'ffn_b2': nrm((L, 1, C)),
        'ln2_g': 1.0 + nrm((L, 1, C)), 'ln2_b': nrm((L, 1, C)),
        'proj_w': nrm((C, 2 * out_channels)), 'proj_b': nrm((1, 2 * out_channels)),
    }


# ----------------------------------------------------------------------------
# Main
# ----------------------------------------------------------------------------
if __name__ == "__main__":
    cfg = dict(n_vocab=50, out_channels=4, hidden_channels=32, filter_channels=64,
               n_heads=2, n_layers=2, kernel_size=3, window_size=4)
    B, T = 2, 16

    key = jax.random.PRNGKey(0)
    k_params, k_tok = jax.random.split(key)
    params = init_params(k_params, **cfg)

    tokens = jax.random.randint(k_tok, (B, T), 0, cfg['n_vocab'], dtype=jnp.int32)
    lengths = jnp.array([T, 11], dtype=jnp.int32)

    forward = jax.jit(make_text_encoder(**cfg))
    enc, m, logs, x_mask = forward(params, tokens, lengths)
    enc, m, logs, x_mask = jax.block_until_ready((enc, m, logs, x_mask))

    assert enc.shape == (B, T, cfg['hidden_channels'])
    assert m.shape == (B, T, cfg['out_channels'])
    assert logs.shape == (B, T, cfg['out_channels'])
    assert x_mask.shape == (B, T, 1)
    for a in (enc, m, logs):
        assert bool(jnp.all(jnp.isfinite(a)))
    print("KERNEL_OK")
</pallas_src>

<mosaic_0001>
module attributes {stable_mosaic.version = 11 : i64} {
  func.func @_encoder_kernel(%arg0: i32, %arg1: memref<1x16x32xf32, #tpu.memory_space<vmem>>, %arg2: memref<1x16x1xf32, #tpu.memory_space<vmem>>, %arg3: memref<1x1x16xf32, #tpu.memory_space<vmem>>, %arg4: memref<2x32x32xf32, #tpu.memory_space<vmem>>, %arg5: memref<2x1x32xf32, #tpu.memory_space<vmem>>, %arg6: memref<2x32x32xf32, #tpu.memory_space<vmem>>, %arg7: memref<2x1x32xf32, #tpu.memory_space<vmem>>, %arg8: memref<2x32x32xf32, #tpu.memory_space<vmem>>, %arg9: memref<2x1x32xf32, #tpu.memory_space<vmem>>, %arg10: memref<2x32x32xf32, #tpu.memory_space<vmem>>, %arg11: memref<2x1x32xf32, #tpu.memory_space<vmem>>, %arg12: memref<2x9x16xf32, #tpu.memory_space<vmem>>, %arg13: memref<2x9x16xf32, #tpu.memory_space<vmem>>, %arg14: memref<2x1x32xf32, #tpu.memory_space<vmem>>, %arg15: memref<2x1x32xf32, #tpu.memory_space<vmem>>, %arg16: memref<2x3x32x64xf32, #tpu.memory_space<vmem>>, %arg17: memref<2x1x64xf32, #tpu.memory_space<vmem>>, %arg18: memref<2x3x64x32xf32, #tpu.memory_space<vmem>>, %arg19: memref<2x1x32xf32, #tpu.memory_space<vmem>>, %arg20: memref<2x1x32xf32, #tpu.memory_space<vmem>>, %arg21: memref<2x1x32xf32, #tpu.memory_space<vmem>>, %arg22: memref<32x8xf32, #tpu.memory_space<vmem>>, %arg23: memref<1x8xf32, #tpu.memory_space<vmem>>, %arg24: memref<1x16x32xf32, #tpu.memory_space<vmem>>, %arg25: memref<1x16x8xf32, #tpu.memory_space<vmem>>) attributes {dimension_semantics = [#tpu.dimension_semantics<parallel>], iteration_bounds = array<i64: 2>, scalar_prefetch = 0 : i64, scratch_operands = 0 : i64, tpu.core_type = #tpu.core_type<tc>, window_params = [{transform_indices = @transform_0, window_bounds = array<i64: 1, 16, 32>}, {transform_indices = @transform_1, window_bounds = array<i64: 1, 16, 1>}, {transform_indices = @transform_2, window_bounds = array<i64: 1, 1, 16>}, {pipeline_mode = #tpu.pipeline_mode<synchronous>, transform_indices = @transform_3, window_bounds = array<i64: 2, 32, 32>}, {pipeline_mode = #tpu.pipeline_mode<synchronous>, transform_indices = @transform_4, window_bounds = array<i64: 2, 1, 32>}, {pipeline_mode = #tpu.pipeline_mode<synchronous>, transform_indices = @transform_5, window_bounds = array<i64: 2, 32, 32>}, {pipeline_mode = #tpu.pipeline_mode<synchronous>, transform_indices = @transform_6, window_bounds = array<i64: 2, 1, 32>}, {pipeline_mode = #tpu.pipeline_mode<synchronous>, transform_indices = @transform_7, window_bounds = array<i64: 2, 32, 32>}, {pipeline_mode = #tpu.pipeline_mode<synchronous>, transform_indices = @transform_8, window_bounds = array<i64: 2, 1, 32>}, {pipeline_mode = #tpu.pipeline_mode<synchronous>, transform_indices = @transform_9, window_bounds = array<i64: 2, 32, 32>}, {pipeline_mode = #tpu.pipeline_mode<synchronous>, transform_indices = @transform_10, window_bounds = array<i64: 2, 1, 32>}, {pipeline_mode = #tpu.pipeline_mode<synchronous>, transform_indices = @transform_11, window_bounds = array<i64: 2, 9, 16>}, {pipeline_mode = #tpu.pipeline_mode<synchronous>, transform_indices = @transform_12, window_bounds = array<i64: 2, 9, 16>}, {pipeline_mode = #tpu.pipeline_mode<synchronous>, transform_indices = @transform_13, window_bounds = array<i64: 2, 1, 32>}, {pipeline_mode = #tpu.pipeline_mode<synchronous>, transform_indices = @transform_14, window_bounds = array<i64: 2, 1, 32>}, {pipeline_mode = #tpu.pipeline_mode<synchronous>, transform_indices = @transform_15, window_bounds = array<i64: 2, 3, 32, 64>}, {pipeline_mode = #tpu.pipeline_mode<synchronous>, transform_indices = @transform_16, window_bounds = array<i64: 2, 1, 64>}, {pipeline_mode = #tpu.pipeline_mode<synchronous>, transform_indices = @transform_17, window_bounds = array<i64: 2, 3, 64, 32>}, {pipeline_mode = #tpu.pipeline_mode<synchronous>, transform_indices = @transform_18, window_bounds = array<i64: 2, 1, 32>}, {pipeline_mode = #tpu.pipeline_mode<synchronous>, transform_indices = @transform_19, window_bounds = array<i64: 2, 1, 32>}, {pipeline_mode = #tpu.pipeline_mode<synchronous>, transform_indices = @transform_20, window_bounds = array<i64: 2, 1, 32>}, {pipeline_mode = #tpu.pipeline_mode<synchronous>, transform_indices = @transform_21, window_bounds = array<i64: 32, 8>}, {pipeline_mode = #tpu.pipeline_mode<synchronous>, transform_indices = @transform_22, window_bounds = array<i64: 1, 8>}, {transform_indices = @transform_23, window_bounds = array<i64: 1, 16, 32>}, {transform_indices = @transform_24, window_bounds = array<i64: 1, 16, 8>}]} {
    %c0 = arith.constant 0 : index
    %c0_0 = arith.constant 0 : index
    %c0_1 = arith.constant 0 : index
    %0 = vector.load %arg2[%c0, %c0_0, %c0_1] : memref<1x16x1xf32, #tpu.memory_space<vmem>>, vector<1x16x1xf32>
    %1 = vector.shape_cast %0 : vector<1x16x1xf32> to vector<16x1xf32>
    %c0_2 = arith.constant 0 : index
    %c0_3 = arith.constant 0 : index
    %c0_4 = arith.constant 0 : index
    %2 = vector.load %arg3[%c0_2, %c0_3, %c0_4] : memref<1x1x16xf32, #tpu.memory_space<vmem>>, vector<1x1x16xf32>
    %3 = vector.shape_cast %2 : vector<1x1x16xf32> to vector<1x16xf32>
    %c0_5 = arith.constant 0 : index
    %c0_6 = arith.constant 0 : index
    %c0_7 = arith.constant 0 : index
    %4 = vector.load %arg1[%c0_5, %c0_6, %c0_7] : memref<1x16x32xf32, #tpu.memory_space<vmem>>, vector<1x16x32xf32>
    %5 = vector.shape_cast %4 : vector<1x16x32xf32> to vector<16x32xf32>
    %6 = vector.broadcast %1 : vector<16x1xf32> to vector<16x32xf32>
    %7 = arith.mulf %5, %6 : vector<16x32xf32>
    %8 = vector.broadcast %1 : vector<16x1xf32> to vector<16x16xf32>
    %9 = vector.broadcast %3 : vector<1x16xf32> to vector<16x16xf32>
    %10 = arith.mulf %8, %9 : vector<16x16xf32>
    %11 = tpu.iota {dimensions = array<i32: 0>} : vector<16x16xi32>
    %12 = tpu.iota {dimensions = array<i32: 1>} : vector<16x16xi32>
    %13 = arith.subi %12, %11 : vector<16x16xi32>
    %c0_8 = arith.constant 0 : index
    %c0_9 = arith.constant 0 : index
    %c0_10 = arith.constant 0 : index
    %14 = vector.load %arg4[%c0_8, %c0_9, %c0_10] : memref<2x32x32xf32, #tpu.memory_space<vmem>>, vector<1x32x32xf32>
    %15 = vector.shape_cast %14 : vector<1x32x32xf32> to vector<32x32xf32>
    %cst = arith.constant dense<0.000000e+00> : vector<16x32xf32>
    %16 = tpu.matmul %7, %15, %cst {dimension_numbers = #tpu.dot_dimension_numbers<[1], [0], [0], [1], [0, 0, 1, 1], [], []>} : vector<16x32xf32>, vector<32x32xf32>, vector<16x32xf32> -> vector<16x32xf32>
    %c0_11 = arith.constant 0 : index
    %c0_12 = arith.constant 0 : index
    %c0_13 = arith.constant 0 : index
    %17 = vector.load %arg5[%c0_11, %c0_12, %c0_13] : memref<2x1x32xf32, #tpu.memory_space<vmem>>, vector<1x1x32xf32>
    %18 = vector.shape_cast %17 : vector<1x1x32xf32> to vector<1x32xf32>
    %19 = vector.broadcast %18 : vector<1x32xf32> to vector<16x32xf32>
    %20 = arith.addf %16, %19 : vector<16x32xf32>
    %c0_14 = arith.constant 0 : index
    %c0_15 = arith.constant 0 : index
    %c0_16 = arith.constant 0 : index
    %21 = vector.load %arg6[%c0_14, %c0_15, %c0_16] : memref<2x32x32xf32, #tpu.memory_space<vmem>>, vector<1x32x32xf32>
    %22 = vector.shape_cast %21 : vector<1x32x32xf32> to vector<32x32xf32>
    %cst_17 = arith.constant dense<0.000000e+00> : vector<16x32xf32>
    %23 = tpu.matmul %7, %22, %cst_17 {dimension_numbers = #tpu.dot_dimension_numbers<[1], [0], [0], [1], [0, 0, 1, 1], [], []>} : vector<16x32xf32>, vector<32x32xf32>, vector<16x32xf32> -> vector<16x32xf32>
    %c0_18 = arith.constant 0 : index
    %c0_19 = arith.constant 0 : index
    %c0_20 = arith.constant 0 : index
    %24 = vector.load %arg7[%c0_18, %c0_19, %c0_20] : memref<2x1x32xf32, #tpu.memory_space<vmem>>, vector<1x1x32xf32>
    %25 = vector.shape_cast %24 : vector<1x1x32xf32> to vector<1x32xf32>
    %26 = vector.broadcast %25 : vector<1x32xf32> to vector<16x32xf32>
    %27 = arith.addf %23, %26 : vector<16x32xf32>
    %c0_21 = arith.constant 0 : index
    %c0_22 = arith.constant 0 : index
    %c0_23 = arith.constant 0 : index
    %28 = vector.load %arg8[%c0_21, %c0_22, %c0_23] : memref<2x32x32xf32, #tpu.memory_space<vmem>>, vector<1x32x32xf32>
    %29 = vector.shape_cast %28 : vector<1x32x32xf32> to vector<32x32xf32>
    %cst_24 = arith.constant dense<0.000000e+00> : vector<16x32xf32>
    %30 = tpu.matmul %7, %29, %cst_24 {dimension_numbers = #tpu.dot_dimension_numbers<[1], [0], [0], [1], [0, 0, 1, 1], [], []>} : vector<16x32xf32>, vector<32x32xf32>, vector<16x32xf32> -> vector<16x32xf32>
    %c0_25 = arith.constant 0 : index
    %c0_26 = arith.constant 0 : index
    %c0_27 = arith.constant 0 : index
    %31 = vector.load %arg9[%c0_25, %c0_26, %c0_27] : memref<2x1x32xf32, #tpu.memory_space<vmem>>, vector<1x1x32xf32>
    %32 = vector.shape_cast %31 : vector<1x1x32xf32> to vector<1x32xf32>
    %33 = vector.broadcast %32 : vector<1x32xf32> to vector<16x32xf32>
    %34 = arith.addf %30, %33 : vector<16x32xf32>
    %c0_28 = arith.constant 0 : index
    %c0_29 = arith.constant 0 : index
    %c0_30 = arith.constant 0 : index
    %35 = vector.load %arg12[%c0_28, %c0_29, %c0_30] : memref<2x9x16xf32, #tpu.memory_space<vmem>>, vector<1x9x16xf32>
    %36 = vector.shape_cast %35 : vector<1x9x16xf32> to vector<9x16xf32>
    %c0_31 = arith.constant 0 : index
    %c0_32 = arith.constant 0 : index
    %c0_33 = arith.constant 0 : index
    %37 = vector.load %arg13[%c0_31, %c0_32, %c0_33] : memref<2x9x16xf32, #tpu.memory_space<vmem>>, vector<1x9x16xf32>
    %38 = vector.shape_cast %37 : vector<1x9x16xf32> to vector<9x16xf32>
    %39 = vector.extract_strided_slice %20 {offsets = [0, 0], sizes = [16, 16], strides = [1, 1]} : vector<16x32xf32> to vector<16x16xf32>
    %cst_34 = arith.constant 2.500000e-01 : f32
    %40 = vector.broadcast %cst_34 : f32 to vector<16x16xf32>
    %41 = arith.mulf %39, %40 : vector<16x16xf32>
    %42 = vector.extract_strided_slice %27 {offsets = [0, 0], sizes = [16, 16], strides = [1, 1]} : vector<16x32xf32> to vector<16x16xf32>
    %43 = vector.extract_strided_slice %34 {offsets = [0, 0], sizes = [16, 16], strides = [1, 1]} : vector<16x32xf32> to vector<16x16xf32>
    %cst_35 = arith.constant dense<0.000000e+00> : vector<16x16xf32>
    %44 = tpu.matmul %41, %42, %cst_35 {dimension_numbers = #tpu.dot_dimension_numbers<[1], [1], [0], [0], [0, 0, 1, 0], [], []>} : vector<16x16xf32>, vector<16x16xf32>, vector<16x16xf32> -> vector<16x16xf32>
    %cst_36 = arith.constant dense<0.000000e+00> : vector<16x9xf32>
    %45 = tpu.matmul %41, %36, %cst_36 {dimension_numbers = #tpu.dot_dimension_numbers<[1], [1], [0], [0], [0, 0, 1, 0], [], []>} : vector<16x16xf32>, vector<9x16xf32>, vector<16x9xf32> -> vector<16x9xf32>
    %c-4_i32 = arith.constant -4 : i32
    %46 = vector.broadcast %c-4_i32 : i32 to vector<16x16xi32>
    %47 = arith.cmpi eq, %13, %46 : vector<16x16xi32>
    %48 = vector.extract_strided_slice %45 {offsets = [0, 0], sizes = [16, 1], strides = [1, 1]} : vector<16x9xf32> to vector<16x1xf32>
    %cst_37 = arith.constant 0.000000e+00 : f32
    %49 = vector.shape_cast %48 : vector<16x1xf32> to vector<16x1xf32>
    %50 = vector.broadcast %49 : vector<16x1xf32> to vector<16x16xf32>
    %51 = vector.broadcast %cst_37 : f32 to vector<16x16xf32>
    %52 = arith.select %47, %50, %51 : vector<16x16xi1>, vector<16x16xf32>
    %53 = arith.addf %44, %52 : vector<16x16xf32>
    %c-3_i32 = arith.constant -3 : i32
    %54 = vector.broadcast %c-3_i32 : i32 to vector<16x16xi32>
    %55 = arith.cmpi eq, %13, %54 : vector<16x16xi32>
    %56 = vector.extract_strided_slice %45 {offsets = [0, 1], sizes = [16, 1], strides = [1, 1]} : vector<16x9xf32> to vector<16x1xf32>
    %cst_38 = arith.constant 0.000000e+00 : f32
    %57 = vector.shape_cast %56 : vector<16x1xf32> to vector<16x1xf32>
    %58 = vector.broadcast %57 : vector<16x1xf32> to vector<16x16xf32>
    %59 = vector.broadcast %cst_38 : f32 to vector<16x16xf32>
    %60 = arith.select %55, %58, %59 : vector<16x16xi1>, vector<16x16xf32>
    %61 = arith.addf %53, %60 : vector<16x16xf32>
    %c-2_i32 = arith.constant -2 : i32
    %62 = vector.broadcast %c-2_i32 : i32 to vector<16x16xi32>
    %63 = arith.cmpi eq, %13, %62 : vector<16x16xi32>
    %64 = vector.extract_strided_slice %45 {offsets = [0, 2], sizes = [16, 1], strides = [1, 1]} : vector<16x9xf32> to vector<16x1xf32>
    %cst_39 = arith.constant 0.000000e+00 : f32
    %65 = vector.shape_cast %64 : vector<16x1xf32> to vector<16x1xf32>
    %66 = vector.broadcast %65 : vector<16x1xf32> to vector<16x16xf32>
    %67 = vector.broadcast %cst_39 : f32 to vector<16x16xf32>
    %68 = arith.select %63, %66, %67 : vector<16x16xi1>, vector<16x16xf32>
    %69 = arith.addf %61, %68 : vector<16x16xf32>
    %c-1_i32 = arith.constant -1 : i32
    %70 = vector.broadcast %c-1_i32 : i32 to vector<16x16xi32>
    %71 = arith.cmpi eq, %13, %70 : vector<16x16xi32>
    %72 = vector.extract_strided_slice %45 {offsets = [0, 3], sizes = [16, 1], strides = [1, 1]} : vector<16x9xf32> to vector<16x1xf32>
    %cst_40 = arith.constant 0.000000e+00 : f32
    %73 = vector.shape_cast %72 : vector<16x1xf32> to vector<16x1xf32>
    %74 = vector.broadcast %73 : vector<16x1xf32> to vector<16x16xf32>
    %75 = vector.broadcast %cst_40 : f32 to vector<16x16xf32>
    %76 = arith.select %71, %74, %75 : vector<16x16xi1>, vector<16x16xf32>
    %77 = arith.addf %69, %76 : vector<16x16xf32>
    %c0_i32 = arith.constant 0 : i32
    %78 = vector.broadcast %c0_i32 : i32 to vector<16x16xi32>
    %79 = arith.cmpi eq, %13, %78 : vector<16x16xi32>
    %80 = vector.extract_strided_slice %45 {offsets = [0, 4], sizes = [16, 1], strides = [1, 1]} : vector<16x9xf32> to vector<16x1xf32>
    %cst_41 = arith.constant 0.000000e+00 : f32
    %81 = vector.shape_cast %80 : vector<16x1xf32> to vector<16x1xf32>
    %82 = vector.broadcast %81 : vector<16x1xf32> to vector<16x16xf32>
    %83 = vector.broadcast %cst_41 : f32 to vector<16x16xf32>
    %84 = arith.select %79, %82, %83 : vector<16x16xi1>, vector<16x16xf32>
    %85 = arith.addf %77, %84 : vector<16x16xf32>
    %c1_i32 = arith.constant 1 : i32
    %86 = vector.broadcast %c1_i32 : i32 to vector<16x16xi32>
    %87 = arith.cmpi eq, %13, %86 : vector<16x16xi32>
    %88 = vector.extract_strided_slice %45 {offsets = [0, 5], sizes = [16, 1], strides = [1, 1]} : vector<16x9xf32> to vector<16x1xf32>
    %cst_42 = arith.constant 0.000000e+00 : f32
    %89 = vector.shape_cast %88 : vector<16x1xf32> to vector<16x1xf32>
    %90 = vector.broadcast %89 : vector<16x1xf32> to vector<16x16xf32>
    %91 = vector.broadcast %cst_42 : f32 to vector<16x16xf32>
    %92 = arith.select %87, %90, %91 : vector<16x16xi1>, vector<16x16xf32>
    %93 = arith.addf %85, %92 : vector<16x16xf32>
    %c2_i32 = arith.constant 2 : i32
    %94 = vector.broadcast %c2_i32 : i32 to vector<16x16xi32>
    %95 = arith.cmpi eq, %13, %94 : vector<16x16xi32>
    %96 = vector.extract_strided_slice %45 {offsets = [0, 6], sizes = [16, 1], strides = [1, 1]} : vector<16x9xf32> to vector<16x1xf32>
    %cst_43 = arith.constant 0.000000e+00 : f32
    %97 = vector.shape_cast %96 : vector<16x1xf32> to vector<16x1xf32>
    %98 = vector.broadcast %97 : vector<16x1xf32> to vector<16x16xf32>
    %99 = vector.broadcast %cst_43 : f32 to vector<16x16xf32>
    %100 = arith.select %95, %98, %99 : vector<16x16xi1>, vector<16x16xf32>
    %101 = arith.addf %93, %100 : vector<16x16xf32>
    %c3_i32 = arith.constant 3 : i32
    %102 = vector.broadcast %c3_i32 : i32 to vector<16x16xi32>
    %103 = arith.cmpi eq, %13, %102 : vector<16x16xi32>
    %104 = vector.extract_strided_slice %45 {offsets = [0, 7], sizes = [16, 1], strides = [1, 1]} : vector<16x9xf32> to vector<16x1xf32>
    %cst_44 = arith.constant 0.000000e+00 : f32
    %105 = vector.shape_cast %104 : vector<16x1xf32> to vector<16x1xf32>
    %106 = vector.broadcast %105 : vector<16x1xf32> to vector<16x16xf32>
    %107 = vector.broadcast %cst_44 : f32 to vector<16x16xf32>
    %108 = arith.select %103, %106, %107 : vector<16x16xi1>, vector<16x16xf32>
    %109 = arith.addf %101, %108 : vector<16x16xf32>
    %c4_i32 = arith.constant 4 : i32
    %110 = vector.broadcast %c4_i32 : i32 to vector<16x16xi32>
    %111 = arith.cmpi eq, %13, %110 : vector<16x16xi32>
    %112 = vector.extract_strided_slice %45 {offsets = [0, 8], sizes = [16, 1], strides = [1, 1]} : vector<16x9xf32> to vector<16x1xf32>
    %cst_45 = arith.constant 0.000000e+00 : f32
    %113 = vector.shape_cast %112 : vector<16x1xf32> to vector<16x1xf32>
    %114 = vector.broadcast %113 : vector<16x1xf32> to vector<16x16xf32>
    %115 = vector.broadcast %cst_45 : f32 to vector<16x16xf32>
    %116 = arith.select %111, %114, %115 : vector<16x16xi1>, vector<16x16xf32>
    %117 = arith.addf %109, %116 : vector<16x16xf32>
    %cst_46 = arith.constant 0.000000e+00 : f32
    %118 = vector.broadcast %cst_46 : f32 to vector<16x16xf32>
    %119 = arith.cmpf ogt, %10, %118 : vector<16x16xf32>
    %cst_47 = arith.constant -1.000000e+04 : f32
    %120 = vector.broadcast %cst_47 : f32 to vector<16x16xf32>
    %121 = arith.select %119, %117, %120 : vector<16x16xi1>, vector<16x16xf32>
    %cst_48 = arith.constant dense<0xFF800000> : vector<16xf32>
    %122 = vector.multi_reduction <maximumf>, %121, %cst_48 [1] : vector<16x16xf32> to vector<16xf32>
    %123 = vector.shape_cast %122 : vector<16xf32> to vector<16x1xf32>
    %124 = vector.broadcast %123 : vector<16x1xf32> to vector<16x16xf32>
    %125 = arith.subf %121, %124 : vector<16x16xf32>
    %126 = math.exp %125 : vector<16x16xf32>
    %cst_49 = arith.constant dense<0.000000e+00> : vector<16xf32>
    %127 = vector.multi_reduction <add>, %126, %cst_49 [1] : vector<16x16xf32> to vector<16xf32>
    %128 = vector.shape_cast %127 : vector<16xf32> to vector<16x1xf32>
    %129 = vector.broadcast %128 : vector<16x1xf32> to vector<16x16xf32>
    %130 = arith.divf %126, %129 : vector<16x16xf32>
    %cst_50 = arith.constant dense<0.000000e+00> : vector<16x16xf32>
    %131 = tpu.matmul %130, %43, %cst_50 {dimension_numbers = #tpu.dot_dimension_numbers<[1], [0], [0], [1], [0, 0, 1, 1], [], []>} : vector<16x16xf32>, vector<16x16xf32>, vector<16x16xf32> -> vector<16x16xf32>
    %c-4_i32_51 = arith.constant -4 : i32
    %132 = vector.broadcast %c-4_i32_51 : i32 to vector<16x16xi32>
    %133 = arith.cmpi eq, %13, %132 : vector<16x16xi32>
    %cst_52 = arith.constant 0.000000e+00 : f32
    %134 = vector.broadcast %cst_52 : f32 to vector<16x16xf32>
    %135 = arith.select %133, %130, %134 : vector<16x16xi1>, vector<16x16xf32>
    %cst_53 = arith.constant dense<0.000000e+00> : vector<16xf32>
    %136 = vector.multi_reduction <add>, %135, %cst_53 [1] : vector<16x16xf32> to vector<16xf32>
    %137 = vector.shape_cast %136 : vector<16xf32> to vector<16x1xf32>
    %c-3_i32_54 = arith.constant -3 : i32
    %138 = vector.broadcast %c-3_i32_54 : i32 to vector<16x16xi32>
    %139 = arith.cmpi eq, %13, %138 : vector<16x16xi32>
    %cst_55 = arith.constant 0.000000e+00 : f32
    %140 = vector.broadcast %cst_55 : f32 to vector<16x16xf32>
    %141 = arith.select %139, %130, %140 : vector<16x16xi1>, vector<16x16xf32>
    %cst_56 = arith.constant dense<0.000000e+00> : vector<16xf32>
    %142 = vector.multi_reduction <add>, %141, %cst_56 [1] : vector<16x16xf32> to vector<16xf32>
    %143 = vector.shape_cast %142 : vector<16xf32> to vector<16x1xf32>
    %c-2_i32_57 = arith.constant -2 : i32
    %144 = vector.broadcast %c-2_i32_57 : i32 to vector<16x16xi32>
    %145 = arith.cmpi eq, %13, %144 : vector<16x16xi32>
    %cst_58 = arith.constant 0.000000e+00 : f32
    %146 = vector.broadcast %cst_58 : f32 to vector<16x16xf32>
    %147 = arith.select %145, %130, %146 : vector<16x16xi1>, vector<16x16xf32>
    %cst_59 = arith.constant dense<0.000000e+00> : vector<16xf32>
    %148 = vector.multi_reduction <add>, %147, %cst_59 [1] : vector<16x16xf32> to vector<16xf32>
    %149 = vector.shape_cast %148 : vector<16xf32> to vector<16x1xf32>
    %c-1_i32_60 = arith.constant -1 : i32
    %150 = vector.broadcast %c-1_i32_60 : i32 to vector<16x16xi32>
    %151 = arith.cmpi eq, %13, %150 : vector<16x16xi32>
    %cst_61 = arith.constant 0.000000e+00 : f32
    %152 = vector.broadcast %cst_61 : f32 to vector<16x16xf32>
    %153 = arith.select %151, %130, %152 : vector<16x16xi1>, vector<16x16xf32>
    %cst_62 = arith.constant dense<0.000000e+00> : vector<16xf32>
    %154 = vector.multi_reduction <add>, %153, %cst_62 [1] : vector<16x16xf32> to vector<16xf32>
    %155 = vector.shape_cast %154 : vector<16xf32> to vector<16x1xf32>
    %c0_i32_63 = arith.constant 0 : i32
    %156 = vector.broadcast %c0_i32_63 : i32 to vector<16x16xi32>
    %157 = arith.cmpi eq, %13, %156 : vector<16x16xi32>
    %cst_64 = arith.constant 0.000000e+00 : f32
    %158 = vector.broadcast %cst_64 : f32 to vector<16x16xf32>
    %159 = arith.select %157, %130, %158 : vector<16x16xi1>, vector<16x16xf32>
    %cst_65 = arith.constant dense<0.000000e+00> : vector<16xf32>
    %160 = vector.multi_reduction <add>, %159, %cst_65 [1] : vector<16x16xf32> to vector<16xf32>
    %161 = vector.shape_cast %160 : vector<16xf32> to vector<16x1xf32>
    %c1_i32_66 = arith.constant 1 : i32
    %162 = vector.broadcast %c1_i32_66 : i32 to vector<16x16xi32>
    %163 = arith.cmpi eq, %13, %162 : vector<16x16xi32>
    %cst_67 = arith.constant 0.000000e+00 : f32
    %164 = vector.broadcast %cst_67 : f32 to vector<16x16xf32>
    %165 = arith.select %163, %130, %164 : vector<16x16xi1>, vector<16x16xf32>
    %cst_68 = arith.constant dense<0.000000e+00> : vector<16xf32>
    %166 = vector.multi_reduction <add>, %165, %cst_68 [1] : vector<16x16xf32> to vector<16xf32>
    %167 = vector.shape_cast %166 : vector<16xf32> to vector<16x1xf32>
    %c2_i32_69 = arith.constant 2 : i32
    %168 = vector.broadcast %c2_i32_69 : i32 to vector<16x16xi32>
    %169 = arith.cmpi eq, %13, %168 : vector<16x16xi32>
    %cst_70 = arith.constant 0.000000e+00 : f32
    %170 = vector.broadcast %cst_70 : f32 to vector<16x16xf32>
    %171 = arith.select %169, %130, %170 : vector<16x16xi1>, vector<16x16xf32>
    %cst_71 = arith.constant dense<0.000000e+00> : vector<16xf32>
    %172 = vector.multi_reduction <add>, %171, %cst_71 [1] : vector<16x16xf32> to vector<16xf32>
    %173 = vector.shape_cast %172 : vector<16xf32> to vector<16x1xf32>
    %c3_i32_72 = arith.constant 3 : i32
    %174 = vector.broadcast %c3_i32_72 : i32 to vector<16x16xi32>
    %175 = arith.cmpi eq, %13, %174 : vector<16x16xi32>
    %cst_73 = arith.constant 0.000000e+00 : f32
    %176 = vector.broadcast %cst_73 : f32 to vector<16x16xf32>
    %177 = arith.select %175, %130, %176 : vector<16x16xi1>, vector<16x16xf32>
    %cst_74 = arith.constant dense<0.000000e+00> : vector<16xf32>
    %178 = vector.multi_reduction <add>, %177, %cst_74 [1] : vector<16x16xf32> to vector<16xf32>
    %179 = vector.shape_cast %178 : vector<16xf32> to vector<16x1xf32>
    %c4_i32_75 = arith.constant 4 : i32
    %180 = vector.broadcast %c4_i32_75 : i32 to vector<16x16xi32>
    %181 = arith.cmpi eq, %13, %180 : vector<16x16xi32>
    %cst_76 = arith.constant 0.000000e+00 : f32
    %182 = vector.broadcast %cst_76 : f32 to vector<16x16xf32>
    %183 = arith.select %181, %130, %182 : vector<16x16xi1>, vector<16x16xf32>
    %cst_77 = arith.constant dense<0.000000e+00> : vector<16xf32>
    %184 = vector.multi_reduction <add>, %183, %cst_77 [1] : vector<16x16xf32> to vector<16xf32>
    %185 = vector.shape_cast %184 : vector<16xf32> to vector<16x1xf32>
    %186 = tpu.concatenate %137, %143, %149, %155, %161, %167, %173, %179, %185 in 1 : vector<16x1xf32>, vector<16x1xf32>, vector<16x1xf32>, vector<16x1xf32>, vector<16x1xf32>, vector<16x1xf32>, vector<16x1xf32>, vector<16x1xf32>, vector<16x1xf32> -> vector<16x9xf32>
    %cst_78 = arith.constant dense<0.000000e+00> : vector<16x16xf32>
    %187 = tpu.matmul %186, %38, %cst_78 {dimension_numbers = #tpu.dot_dimension_numbers<[1], [0], [0], [1], [0, 0, 1, 1], [], []>} : vector<16x9xf32>, vector<9x16xf32>, vector<16x16xf32> -> vector<16x16xf32>
    %188 = arith.addf %131, %187 : vector<16x16xf32>
    %189 = vector.extract_strided_slice %20 {offsets = [0, 16], sizes = [16, 16], strides = [1, 1]} : vector<16x32xf32> to vector<16x16xf32>
    %cst_79 = arith.constant 2.500000e-01 : f32
    %190 = vector.broadcast %cst_79 : f32 to vector<16x16xf32>
    %191 = arith.mulf %189, %190 : vector<16x16xf32>
    %192 = vector.extract_strided_slice %27 {offsets = [0, 16], sizes = [16, 16], strides = [1, 1]} : vector<16x32xf32> to vector<16x16xf32>
    %193 = vector.extract_strided_slice %34 {offsets = [0, 16], sizes = [16, 16], strides = [1, 1]} : vector<16x32xf32> to vector<16x16xf32>
    %cst_80 = arith.constant dense<0.000000e+00> : vector<16x16xf32>
    %194 = tpu.matmul %191, %192, %cst_80 {dimension_numbers = #tpu.dot_dimension_numbers<[1], [1], [0], [0], [0, 0, 1, 0], [], []>} : vector<16x16xf32>, vector<16x16xf32>, vector<16x16xf32> -> vector<16x16xf32>
    %cst_81 = arith.constant dense<0.000000e+00> : vector<16x9xf32>
    %195 = tpu.matmul %191, %36, %cst_81 {dimension_numbers = #tpu.dot_dimension_numbers<[1], [1], [0], [0], [0, 0, 1, 0], [], []>} : vector<16x16xf32>, vector<9x16xf32>, vector<16x9xf32> -> vector<16x9xf32>
    %c-4_i32_82 = arith.constant -4 : i32
    %196 = vector.broadcast %c-4_i32_82 : i32 to vector<16x16xi32>
    %197 = arith.cmpi eq, %13, %196 : vector<16x16xi32>
    %198 = vector.extract_strided_slice %195 {offsets = [0, 0], sizes = [16, 1], strides = [1, 1]} : vector<16x9xf32> to vector<16x1xf32>
    %cst_83 = arith.constant 0.000000e+00 : f32
    %199 = vector.shape_cast %198 : vector<16x1xf32> to vector<16x1xf32>
    %200 = vector.broadcast %199 : vector<16x1xf32> to vector<16x16xf32>
    %201 = vector.broadcast %cst_83 : f32 to vector<16x16xf32>
    %202 = arith.select %197, %200, %201 : vector<16x16xi1>, vector<16x16xf32>
    %203 = arith.addf %194, %202 : vector<16x16xf32>
    %c-3_i32_84 = arith.constant -3 : i32
    %204 = vector.broadcast %c-3_i32_84 : i32 to vector<16x16xi32>
    %205 = arith.cmpi eq, %13, %204 : vector<16x16xi32>
    %206 = vector.extract_strided_slice %195 {offsets = [0, 1], sizes = [16, 1], strides = [1, 1]} : vector<16x9xf32> to vector<16x1xf32>
    %cst_85 = arith.constant 0.000000e+00 : f32
    %207 = vector.shape_cast %206 : vector<16x1xf32> to vector<16x1xf32>
    %208 = vector.broadcast %207 : vector<16x1xf32> to vector<16x16xf32>
    %209 = vector.broadcast %cst_85 : f32 to vector<16x16xf32>
    %210 = arith.select %205, %208, %209 : vector<16x16xi1>, vector<16x16xf32>
    %211 = arith.addf %203, %210 : vector<16x16xf32>
    %c-2_i32_86 = arith.constant -2 : i32
    %212 = vector.broadcast %c-2_i32_86 : i32 to vector<16x16xi32>
    %213 = arith.cmpi eq, %13, %212 : vector<16x16xi32>
    %214 = vector.extract_strided_slice %195 {offsets = [0, 2], sizes = [16, 1], strides = [1, 1]} : vector<16x9xf32> to vector<16x1xf32>
    %cst_87 = arith.constant 0.000000e+00 : f32
    %215 = vector.shape_cast %214 : vector<16x1xf32> to vector<16x1xf32>
    %216 = vector.broadcast %215 : vector<16x1xf32> to vector<16x16xf32>
    %217 = vector.broadcast %cst_87 : f32 to vector<16x16xf32>
    %218 = arith.select %213, %216, %217 : vector<16x16xi1>, vector<16x16xf32>
    %219 = arith.addf %211, %218 : vector<16x16xf32>
    %c-1_i32_88 = arith.constant -1 : i32
    %220 = vector.broadcast %c-1_i32_88 : i32 to vector<16x16xi32>
    %221 = arith.cmpi eq, %13, %220 : vector<16x16xi32>
    %222 = vector.extract_strided_slice %195 {offsets = [0, 3], sizes = [16, 1], strides = [1, 1]} : vector<16x9xf32> to vector<16x1xf32>
    %cst_89 = arith.constant 0.000000e+00 : f32
    %223 = vector.shape_cast %222 : vector<16x1xf32> to vector<16x1xf32>
    %224 = vector.broadcast %223 : vector<16x1xf32> to vector<16x16xf32>
    %225 = vector.broadcast %cst_89 : f32 to vector<16x16xf32>
    %226 = arith.select %221, %224, %225 : vector<16x16xi1>, vector<16x16xf32>
    %227 = arith.addf %219, %226 : vector<16x16xf32>
    %c0_i32_90 = arith.constant 0 : i32
    %228 = vector.broadcast %c0_i32_90 : i32 to vector<16x16xi32>
    %229 = arith.cmpi eq, %13, %228 : vector<16x16xi32>
    %230 = vector.extract_strided_slice %195 {offsets = [0, 4], sizes = [16, 1], strides = [1, 1]} : vector<16x9xf32> to vector<16x1xf32>
    %cst_91 = arith.constant 0.000000e+00 : f32
    %231 = vector.shape_cast %230 : vector<16x1xf32> to vector<16x1xf32>
    %232 = vector.broadcast %231 : vector<16x1xf32> to vector<16x16xf32>
    %233 = vector.broadcast %cst_91 : f32 to vector<16x16xf32>
    %234 = arith.select %229, %232, %233 : vector<16x16xi1>, vector<16x16xf32>
    %235 = arith.addf %227, %234 : vector<16x16xf32>
    %c1_i32_92 = arith.constant 1 : i32
    %236 = vector.broadcast %c1_i32_92 : i32 to vector<16x16xi32>
    %237 = arith.cmpi eq, %13, %236 : vector<16x16xi32>
    %238 = vector.extract_strided_slice %195 {offsets = [0, 5], sizes = [16, 1], strides = [1, 1]} : vector<16x9xf32> to vector<16x1xf32>
    %cst_93 = arith.constant 0.000000e+00 : f32
    %239 = vector.shape_cast %238 : vector<16x1xf32> to vector<16x1xf32>
    %240 = vector.broadcast %239 : vector<16x1xf32> to vector<16x16xf32>
    %241 = vector.broadcast %cst_93 : f32 to vector<16x16xf32>
    %242 = arith.select %237, %240, %241 : vector<16x16xi1>, vector<16x16xf32>
    %243 = arith.addf %235, %242 : vector<16x16xf32>
    %c2_i32_94 = arith.constant 2 : i32
    %244 = vector.broadcast %c2_i32_94 : i32 to vector<16x16xi32>
    %245 = arith.cmpi eq, %13, %244 : vector<16x16xi32>
    %246 = vector.extract_strided_slice %195 {offsets = [0, 6], sizes = [16, 1], strides = [1, 1]} : vector<16x9xf32> to vector<16x1xf32>
    %cst_95 = arith.constant 0.000000e+00 : f32
    %247 = vector.shape_cast %246 : vector<16x1xf32> to vector<16x1xf32>
    %248 = vector.broadcast %247 : vector<16x1xf32> to vector<16x16xf32>
    %249 = vector.broadcast %cst_95 : f32 to vector<16x16xf32>
    %250 = arith.select %245, %248, %249 : vector<16x16xi1>, vector<16x16xf32>
    %251 = arith.addf %243, %250 : vector<16x16xf32>
    %c3_i32_96 = arith.constant 3 : i32
    %252 = vector.broadcast %c3_i32_96 : i32 to vector<16x16xi32>
    %253 = arith.cmpi eq, %13, %252 : vector<16x16xi32>
    %254 = vector.extract_strided_slice %195 {offsets = [0, 7], sizes = [16, 1], strides = [1, 1]} : vector<16x9xf32> to vector<16x1xf32>
    %cst_97 = arith.constant 0.000000e+00 : f32
    %255 = vector.shape_cast %254 : vector<16x1xf32> to vector<16x1xf32>
    %256 = vector.broadcast %255 : vector<16x1xf32> to vector<16x16xf32>
    %257 = vector.broadcast %cst_97 : f32 to vector<16x16xf32>
    %258 = arith.select %253, %256, %257 : vector<16x16xi1>, vector<16x16xf32>
    %259 = arith.addf %251, %258 : vector<16x16xf32>
    %c4_i32_98 = arith.constant 4 : i32
    %260 = vector.broadcast %c4_i32_98 : i32 to vector<16x16xi32>
    %261 = arith.cmpi eq, %13, %260 : vector<16x16xi32>
    %262 = vector.extract_strided_slice %195 {offsets = [0, 8], sizes = [16, 1], strides = [1, 1]} : vector<16x9xf32> to vector<16x1xf32>
    %cst_99 = arith.constant 0.000000e+00 : f32
    %263 = vector.shape_cast %262 : vector<16x1xf32> to vector<16x1xf32>
    %264 = vector.broadcast %263 : vector<16x1xf32> to vector<16x16xf32>
    %265 = vector.broadcast %cst_99 : f32 to vector<16x16xf32>
    %266 = arith.select %261, %264, %265 : vector<16x16xi1>, vector<16x16xf32>
    %267 = arith.addf %259, %266 : vector<16x16xf32>
    %cst_100 = arith.constant 0.000000e+00 : f32
    %268 = vector.broadcast %cst_100 : f32 to vector<16x16xf32>
    %269 = arith.cmpf ogt, %10, %268 : vector<16x16xf32>
    %cst_101 = arith.constant -1.000000e+04 : f32
    %270 = vector.broadcast %cst_101 : f32 to vector<16x16xf32>
    %271 = arith.select %269, %267, %270 : vector<16x16xi1>, vector<16x16xf32>
    %cst_102 = arith.constant dense<0xFF800000> : vector<16xf32>
    %272 = vector.multi_reduction <maximumf>, %271, %cst_102 [1] : vector<16x16xf32> to vector<16xf32>
    %273 = vector.shape_cast %272 : vector<16xf32> to vector<16x1xf32>
    %274 = vector.broadcast %273 : vector<16x1xf32> to vector<16x16xf32>
    %275 = arith.subf %271, %274 : vector<16x16xf32>
    %276 = math.exp %275 : vector<16x16xf32>
    %cst_103 = arith.constant dense<0.000000e+00> : vector<16xf32>
    %277 = vector.multi_reduction <add>, %276, %cst_103 [1] : vector<16x16xf32> to vector<16xf32>
    %278 = vector.shape_cast %277 : vector<16xf32> to vector<16x1xf32>
    %279 = vector.broadcast %278 : vector<16x1xf32> to vector<16x16xf32>
    %280 = arith.divf %276, %279 : vector<16x16xf32>
    %cst_104 = arith.constant dense<0.000000e+00> : vector<16x16xf32>
    %281 = tpu.matmul %280, %193, %cst_104 {dimension_numbers = #tpu.dot_dimension_numbers<[1], [0], [0], [1], [0, 0, 1, 1], [], []>} : vector<16x16xf32>, vector<16x16xf32>, vector<16x16xf32> -> vector<16x16xf32>
    %c-4_i32_105 = arith.constant -4 : i32
    %282 = vector.broadcast %c-4_i32_105 : i32 to vector<16x16xi32>
    %283 = arith.cmpi eq, %13, %282 : vector<16x16xi32>
    %cst_106 = arith.constant 0.000000e+00 : f32
    %284 = vector.broadcast %cst_106 : f32 to vector<16x16xf32>
    %285 = arith.select %283, %280, %284 : vector<16x16xi1>, vector<16x16xf32>
    %cst_107 = arith.constant dense<0.000000e+00> : vector<16xf32>
    %286 = vector.multi_reduction <add>, %285, %cst_107 [1] : vector<16x16xf32> to vector<16xf32>
    %287 = vector.shape_cast %286 : vector<16xf32> to vector<16x1xf32>
    %c-3_i32_108 = arith.constant -3 : i32
    %288 = vector.broadcast %c-3_i32_108 : i32 to vector<16x16xi32>
    %289 = arith.cmpi eq, %13, %288 : vector<16x16xi32>
    %cst_109 = arith.constant 0.000000e+00 : f32
    %290 = vector.broadcast %cst_109 : f32 to vector<16x16xf32>
    %291 = arith.select %289, %280, %290 : vector<16x16xi1>, vector<16x16xf32>
    %cst_110 = arith.constant dense<0.000000e+00> : vector<16xf32>
    %292 = vector.multi_reduction <add>, %291, %cst_110 [1] : vector<16x16xf32> to vector<16xf32>
    %293 = vector.shape_cast %292 : vector<16xf32> to vector<16x1xf32>
    %c-2_i32_111 = arith.constant -2 : i32
    %294 = vector.broadcast %c-2_i32_111 : i32 to vector<16x16xi32>
    %295 = arith.cmpi eq, %13, %294 : vector<16x16xi32>
    %cst_112 = arith.constant 0.000000e+00 : f32
    %296 = vector.broadcast %cst_112 : f32 to vector<16x16xf32>
    %297 = arith.select %295, %280, %296 : vector<16x16xi1>, vector<16x16xf32>
    %cst_113 = arith.constant dense<0.000000e+00> : vector<16xf32>
    %298 = vector.multi_reduction <add>, %297, %cst_113 [1] : vector<16x16xf32> to vector<16xf32>
    %299 = vector.shape_cast %298 : vector<16xf32> to vector<16x1xf32>
    %c-1_i32_114 = arith.constant -1 : i32
    %300 = vector.broadcast %c-1_i32_114 : i32 to vector<16x16xi32>
    %301 = arith.cmpi eq, %13, %300 : vector<16x16xi32>
    %cst_115 = arith.constant 0.000000e+00 : f32
    %302 = vector.broadcast %cst_115 : f32 to vector<16x16xf32>
    %303 = arith.select %301, %280, %302 : vector<16x16xi1>, vector<16x16xf32>
    %cst_116 = arith.constant dense<0.000000e+00> : vector<16xf32>
    %304 = vector.multi_reduction <add>, %303, %cst_116 [1] : vector<16x16xf32> to vector<16xf32>
    %305 = vector.shape_cast %304 : vector<16xf32> to vector<16x1xf32>
    %c0_i32_117 = arith.constant 0 : i32
    %306 = vector.broadcast %c0_i32_117 : i32 to vector<16x16xi32>
    %307 = arith.cmpi eq, %13, %306 : vector<16x16xi32>
    %cst_118 = arith.constant 0.000000e+00 : f32
    %308 = vector.broadcast %cst_118 : f32 to vector<16x16xf32>
    %309 = arith.select %307, %280, %308 : vector<16x16xi1>, vector<16x16xf32>
    %cst_119 = arith.constant dense<0.000000e+00> : vector<16xf32>
    %310 = vector.multi_reduction <add>, %309, %cst_119 [1] : vector<16x16xf32> to vector<16xf32>
    %311 = vector.shape_cast %310 : vector<16xf32> to vector<16x1xf32>
    %c1_i32_120 = arith.constant 1 : i32
    %312 = vector.broadcast %c1_i32_120 : i32 to vector<16x16xi32>
    %313 = arith.cmpi eq, %13, %312 : vector<16x16xi32>
    %cst_121 = arith.constant 0.000000e+00 : f32
    %314 = vector.broadcast %cst_121 : f32 to vector<16x16xf32>
    %315 = arith.select %313, %280, %314 : vector<16x16xi1>, vector<16x16xf32>
    %cst_122 = arith.constant dense<0.000000e+00> : vector<16xf32>
    %316 = vector.multi_reduction <add>, %315, %cst_122 [1] : vector<16x16xf32> to vector<16xf32>
    %317 = vector.shape_cast %316 : vector<16xf32> to vector<16x1xf32>
    %c2_i32_123 = arith.constant 2 : i32
    %318 = vector.broadcast %c2_i32_123 : i32 to vector<16x16xi32>
    %319 = arith.cmpi eq, %13, %318 : vector<16x16xi32>
    %cst_124 = arith.constant 0.000000e+00 : f32
    %320 = vector.broadcast %cst_124 : f32 to vector<16x16xf32>
    %321 = arith.select %319, %280, %320 : vector<16x16xi1>, vector<16x16xf32>
    %cst_125 = arith.constant dense<0.000000e+00> : vector<16xf32>
    %322 = vector.multi_reduction <add>, %321, %cst_125 [1] : vector<16x16xf32> to vector<16xf32>
    %323 = vector.shape_cast %322 : vector<16xf32> to vector<16x1xf32>
    %c3_i32_126 = arith.constant 3 : i32
    %324 = vector.broadcast %c3_i32_126 : i32 to vector<16x16xi32>
    %325 = arith.cmpi eq, %13, %324 : vector<16x16xi32>
    %cst_127 = arith.constant 0.000000e+00 : f32
    %326 = vector.broadcast %cst_127 : f32 to vector<16x16xf32>
    %327 = arith.select %325, %280, %326 : vector<16x16xi1>, vector<16x16xf32>
    %cst_128 = arith.constant dense<0.000000e+00> : vector<16xf32>
    %328 = vector.multi_reduction <add>, %327, %cst_128 [1] : vector<16x16xf32> to vector<16xf32>
    %329 = vector.shape_cast %328 : vector<16xf32> to vector<16x1xf32>
    %c4_i32_129 = arith.constant 4 : i32
    %330 = vector.broadcast %c4_i32_129 : i32 to vector<16x16xi32>
    %331 = arith.cmpi eq, %13, %330 : vector<16x16xi32>
    %cst_130 = arith.constant 0.000000e+00 : f32
    %332 = vector.broadcast %cst_130 : f32 to vector<16x16xf32>
    %333 = arith.select %331, %280, %332 : vector<16x16xi1>, vector<16x16xf32>
    %cst_131 = arith.constant dense<0.000000e+00> : vector<16xf32>
    %334 = vector.multi_reduction <add>, %333, %cst_131 [1] : vector<16x16xf32> to vector<16xf32>
    %335 = vector.shape_cast %334 : vector<16xf32> to vector<16x1xf32>
    %336 = tpu.concatenate %287, %293, %299, %305, %311, %317, %323, %329, %335 in 1 : vector<16x1xf32>, vector<16x1xf32>, vector<16x1xf32>, vector<16x1xf32>, vector<16x1xf32>, vector<16x1xf32>, vector<16x1xf32>, vector<16x1xf32>, vector<16x1xf32> -> vector<16x9xf32>
    %cst_132 = arith.constant dense<0.000000e+00> : vector<16x16xf32>
    %337 = tpu.matmul %336, %38, %cst_132 {dimension_numbers = #tpu.dot_dimension_numbers<[1], [0], [0], [1], [0, 0, 1, 1], [], []>} : vector<16x9xf32>, vector<9x16xf32>, vector<16x16xf32> -> vector<16x16xf32>
    %338 = arith.addf %281, %337 : vector<16x16xf32>
    %339 = tpu.concatenate %188, %338 in 1 : vector<16x16xf32>, vector<16x16xf32> -> vector<16x32xf32>
    %c0_133 = arith.constant 0 : index
    %c0_134 = arith.constant 0 : index
    %c0_135 = arith.constant 0 : index
    %340 = vector.load %arg10[%c0_133, %c0_134, %c0_135] : memref<2x32x32xf32, #tpu.memory_space<vmem>>, vector<1x32x32xf32>
    %341 = vector.shape_cast %340 : vector<1x32x32xf32> to vector<32x32xf32>
    %cst_136 = arith.constant dense<0.000000e+00> : vector<16x32xf32>
    %342 = tpu.matmul %339, %341, %cst_136 {dimension_numbers = #tpu.dot_dimension_numbers<[1], [0], [0], [1], [0, 0, 1, 1], [], []>} : vector<16x32xf32>, vector<32x32xf32>, vector<16x32xf32> -> vector<16x32xf32>
    %c0_137 = arith.constant 0 : index
    %c0_138 = arith.constant 0 : index
    %c0_139 = arith.constant 0 : index
    %343 = vector.load %arg11[%c0_137, %c0_138, %c0_139] : memref<2x1x32xf32, #tpu.memory_space<vmem>>, vector<1x1x32xf32>
    %344 = vector.shape_cast %343 : vector<1x1x32xf32> to vector<1x32xf32>
    %345 = vector.broadcast %344 : vector<1x32xf32> to vector<16x32xf32>
    %346 = arith.addf %342, %345 : vector<16x32xf32>
    %347 = arith.addf %7, %346 : vector<16x32xf32>
    %c0_140 = arith.constant 0 : index
    %c0_141 = arith.constant 0 : index
    %c0_142 = arith.constant 0 : index
    %348 = vector.load %arg14[%c0_140, %c0_141, %c0_142] : memref<2x1x32xf32, #tpu.memory_space<vmem>>, vector<1x1x32xf32>
    %349 = vector.shape_cast %348 : vector<1x1x32xf32> to vector<1x32xf32>
    %c0_143 = arith.constant 0 : index
    %c0_144 = arith.constant 0 : index
    %c0_145 = arith.constant 0 : index
    %350 = vector.load %arg15[%c0_143, %c0_144, %c0_145] : memref<2x1x32xf32, #tpu.memory_space<vmem>>, vector<1x1x32xf32>
    %351 = vector.shape_cast %350 : vector<1x1x32xf32> to vector<1x32xf32>
    %cst_146 = arith.constant dense<0.000000e+00> : vector<16xf32>
    %352 = vector.multi_reduction <add>, %347, %cst_146 [1] : vector<16x32xf32> to vector<16xf32>
    %353 = vector.shape_cast %352 : vector<16xf32> to vector<16x1xf32>
    %cst_147 = arith.constant 3.200000e+01 : f32
    %354 = vector.broadcast %cst_147 : f32 to vector<16x1xf32>
    %355 = arith.divf %353, %354 : vector<16x1xf32>
    %356 = vector.broadcast %355 : vector<16x1xf32> to vector<16x32xf32>
    %357 = arith.subf %347, %356 : vector<16x32xf32>
    %358 = arith.mulf %357, %357 : vector<16x32xf32>
    %cst_148 = arith.constant dense<0.000000e+00> : vector<16xf32>
    %359 = vector.multi_reduction <add>, %358, %cst_148 [1] : vector<16x32xf32> to vector<16xf32>
    %360 = vector.shape_cast %359 : vector<16xf32> to vector<16x1xf32>
    %cst_149 = arith.constant 3.200000e+01 : f32
    %361 = vector.broadcast %cst_149 : f32 to vector<16x1xf32>
    %362 = arith.divf %360, %361 : vector<16x1xf32>
    %363 = vector.broadcast %355 : vector<16x1xf32> to vector<16x32xf32>
    %364 = arith.subf %347, %363 : vector<16x32xf32>
    %cst_150 = arith.constant 9.99999974E-6 : f32
    %365 = vector.broadcast %cst_150 : f32 to vector<16x1xf32>
    %366 = arith.addf %362, %365 : vector<16x1xf32>
    %367 = math.rsqrt %366 : vector<16x1xf32>
    %368 = vector.broadcast %367 : vector<16x1xf32> to vector<16x32xf32>
    %369 = arith.mulf %364, %368 : vector<16x32xf32>
    %370 = vector.broadcast %349 : vector<1x32xf32> to vector<16x32xf32>
    %371 = arith.mulf %369, %370 : vector<16x32xf32>
    %372 = vector.broadcast %351 : vector<1x32xf32> to vector<16x32xf32>
    %373 = arith.addf %371, %372 : vector<16x32xf32>
    %374 = vector.broadcast %1 : vector<16x1xf32> to vector<16x32xf32>
    %375 = arith.mulf %373, %374 : vector<16x32xf32>
    %c0_151 = arith.constant 0 : index
    %c0_152 = arith.constant 0 : index
    %c0_153 = arith.constant 0 : index
    %c0_154 = arith.constant 0 : index
    %376 = vector.load %arg16[%c0_151, %c0_152, %c0_153, %c0_154] : memref<2x3x32x64xf32, #tpu.memory_space<vmem>>, vector<1x3x32x64xf32>
    %377 = vector.shape_cast %376 : vector<1x3x32x64xf32> to vector<3x32x64xf32>
    %c0_155 = arith.constant 0 : index
    %c0_156 = arith.constant 0 : index
    %c0_157 = arith.constant 0 : index
    %378 = vector.load %arg17[%c0_155, %c0_156, %c0_157] : memref<2x1x64xf32, #tpu.memory_space<vmem>>, vector<1x1x64xf32>
    %379 = vector.shape_cast %378 : vector<1x1x64xf32> to vector<1x64xf32>
    %cst_158 = arith.constant 0.000000e+00 : f32
    %380 = vector.broadcast %cst_158 : f32 to vector<1x32xf32>
    %cst_159 = arith.constant 0.000000e+00 : f32
    %381 = vector.broadcast %cst_159 : f32 to vector<1x32xf32>
    %382 = tpu.concatenate %380, %375, %381 in 0 : vector<1x32xf32>, vector<16x32xf32>, vector<1x32xf32> -> vector<18x32xf32>
    %383 = vector.extract_strided_slice %382 {offsets = [0, 0], sizes = [16, 32], strides = [1, 1]} : vector<18x32xf32> to vector<16x32xf32>
    %384 = vector.extract_strided_slice %377 {offsets = [0, 0, 0], sizes = [1, 32, 64], strides = [1, 1, 1]} : vector<3x32x64xf32> to vector<1x32x64xf32>
    %385 = vector.shape_cast %384 : vector<1x32x64xf32> to vector<32x64xf32>
    %cst_160 = arith.constant dense<0.000000e+00> : vector<16x64xf32>
    %386 = tpu.matmul %383, %385, %cst_160 {dimension_numbers = #tpu.dot_dimension_numbers<[1], [0], [0], [1], [0, 0, 1, 1], [], []>} : vector<16x32xf32>, vector<32x64xf32>, vector<16x64xf32> -> vector<16x64xf32>
    %387 = vector.extract_strided_slice %382 {offsets = [1, 0], sizes = [16, 32], strides = [1, 1]} : vector<18x32xf32> to vector<16x32xf32>
    %388 = vector.extract_strided_slice %377 {offsets = [1, 0, 0], sizes = [1, 32, 64], strides = [1, 1, 1]} : vector<3x32x64xf32> to vector<1x32x64xf32>
    %389 = vector.shape_cast %388 : vector<1x32x64xf32> to vector<32x64xf32>
    %cst_161 = arith.constant dense<0.000000e+00> : vector<16x64xf32>
    %390 = tpu.matmul %387, %389, %cst_161 {dimension_numbers = #tpu.dot_dimension_numbers<[1], [0], [0], [1], [0, 0, 1, 1], [], []>} : vector<16x32xf32>, vector<32x64xf32>, vector<16x64xf32> -> vector<16x64xf32>
    %391 = arith.addf %386, %390 : vector<16x64xf32>
    %392 = vector.extract_strided_slice %382 {offsets = [2, 0], sizes = [16, 32], strides = [1, 1]} : vector<18x32xf32> to vector<16x32xf32>
    %393 = vector.extract_strided_slice %377 {offsets = [2, 0, 0], sizes = [1, 32, 64], strides = [1, 1, 1]} : vector<3x32x64xf32> to vector<1x32x64xf32>
    %394 = vector.shape_cast %393 : vector<1x32x64xf32> to vector<32x64xf32>
    %cst_162 = arith.constant dense<0.000000e+00> : vector<16x64xf32>
    %395 = tpu.matmul %392, %394, %cst_162 {dimension_numbers = #tpu.dot_dimension_numbers<[1], [0], [0], [1], [0, 0, 1, 1], [], []>} : vector<16x32xf32>, vector<32x64xf32>, vector<16x64xf32> -> vector<16x64xf32>
    %396 = arith.addf %391, %395 : vector<16x64xf32>
    %397 = vector.broadcast %379 : vector<1x64xf32> to vector<16x64xf32>
    %398 = arith.addf %396, %397 : vector<16x64xf32>
    %cst_163 = arith.constant 0.000000e+00 : f32
    %399 = vector.broadcast %cst_163 : f32 to vector<16x64xf32>
    %400 = arith.maximumf %398, %399 : vector<16x64xf32>
    %401 = vector.broadcast %1 : vector<16x1xf32> to vector<16x64xf32>
    %402 = arith.mulf %400, %401 : vector<16x64xf32>
    %c0_164 = arith.constant 0 : index
    %c0_165 = arith.constant 0 : index
    %c0_166 = arith.constant 0 : index
    %c0_167 = arith.constant 0 : index
    %403 = vector.load %arg18[%c0_164, %c0_165, %c0_166, %c0_167] : memref<2x3x64x32xf32, #tpu.memory_space<vmem>>, vector<1x3x64x32xf32>
    %404 = vector.shape_cast %403 : vector<1x3x64x32xf32> to vector<3x64x32xf32>
    %c0_168 = arith.constant 0 : index
    %c0_169 = arith.constant 0 : index
    %c0_170 = arith.constant 0 : index
    %405 = vector.load %arg19[%c0_168, %c0_169, %c0_170] : memref<2x1x32xf32, #tpu.memory_space<vmem>>, vector<1x1x32xf32>
    %406 = vector.shape_cast %405 : vector<1x1x32xf32> to vector<1x32xf32>
    %cst_171 = arith.constant 0.000000e+00 : f32
    %407 = vector.broadcast %cst_171 : f32 to vector<1x64xf32>
    %cst_172 = arith.constant 0.000000e+00 : f32
    %408 = vector.broadcast %cst_172 : f32 to vector<1x64xf32>
    %409 = tpu.concatenate %407, %402, %408 in 0 : vector<1x64xf32>, vector<16x64xf32>, vector<1x64xf32> -> vector<18x64xf32>
    %410 = vector.extract_strided_slice %409 {offsets = [0, 0], sizes = [16, 64], strides = [1, 1]} : vector<18x64xf32> to vector<16x64xf32>
    %411 = vector.extract_strided_slice %404 {offsets = [0, 0, 0], sizes = [1, 64, 32], strides = [1, 1, 1]} : vector<3x64x32xf32> to vector<1x64x32xf32>
    %412 = vector.shape_cast %411 : vector<1x64x32xf32> to vector<64x32xf32>
    %cst_173 = arith.constant dense<0.000000e+00> : vector<16x32xf32>
    %413 = tpu.matmul %410, %412, %cst_173 {dimension_numbers = #tpu.dot_dimension_numbers<[1], [0], [0], [1], [0, 0, 1, 1], [], []>} : vector<16x64xf32>, vector<64x32xf32>, vector<16x32xf32> -> vector<16x32xf32>
    %414 = vector.extract_strided_slice %409 {offsets = [1, 0], sizes = [16, 64], strides = [1, 1]} : vector<18x64xf32> to vector<16x64xf32>
    %415 = vector.extract_strided_slice %404 {offsets = [1, 0, 0], sizes = [1, 64, 32], strides = [1, 1, 1]} : vector<3x64x32xf32> to vector<1x64x32xf32>
    %416 = vector.shape_cast %415 : vector<1x64x32xf32> to vector<64x32xf32>
    %cst_174 = arith.constant dense<0.000000e+00> : vector<16x32xf32>
    %417 = tpu.matmul %414, %416, %cst_174 {dimension_numbers = #tpu.dot_dimension_numbers<[1], [0], [0], [1], [0, 0, 1, 1], [], []>} : vector<16x64xf32>, vector<64x32xf32>, vector<16x32xf32> -> vector<16x32xf32>
    %418 = arith.addf %413, %417 : vector<16x32xf32>
    %419 = vector.extract_strided_slice %409 {offsets = [2, 0], sizes = [16, 64], strides = [1, 1]} : vector<18x64xf32> to vector<16x64xf32>
    %420 = vector.extract_strided_slice %404 {offsets = [2, 0, 0], sizes = [1, 64, 32], strides = [1, 1, 1]} : vector<3x64x32xf32> to vector<1x64x32xf32>
    %421 = vector.shape_cast %420 : vector<1x64x32xf32> to vector<64x32xf32>
    %cst_175 = arith.constant dense<0.000000e+00> : vector<16x32xf32>
    %422 = tpu.matmul %419, %421, %cst_175 {dimension_numbers = #tpu.dot_dimension_numbers<[1], [0], [0], [1], [0, 0, 1, 1], [], []>} : vector<16x64xf32>, vector<64x32xf32>, vector<16x32xf32> -> vector<16x32xf32>
    %423 = arith.addf %418, %422 : vector<16x32xf32>
    %424 = vector.broadcast %406 : vector<1x32xf32> to vector<16x32xf32>
    %425 = arith.addf %423, %424 : vector<16x32xf32>
    %426 = vector.broadcast %1 : vector<16x1xf32> to vector<16x32xf32>
    %427 = arith.mulf %425, %426 : vector<16x32xf32>
    %428 = arith.addf %373, %427 : vector<16x32xf32>
    %c0_176 = arith.constant 0 : index
    %c0_177 = arith.constant 0 : index
    %c0_178 = arith.constant 0 : index
    %429 = vector.load %arg20[%c0_176, %c0_177, %c0_178] : memref<2x1x32xf32, #tpu.memory_space<vmem>>, vector<1x1x32xf32>
    %430 = vector.shape_cast %429 : vector<1x1x32xf32> to vector<1x32xf32>
    %c0_179 = arith.constant 0 : index
    %c0_180 = arith.constant 0 : index
    %c0_181 = arith.constant 0 : index
    %431 = vector.load %arg21[%c0_179, %c0_180, %c0_181] : memref<2x1x32xf32, #tpu.memory_space<vmem>>, vector<1x1x32xf32>
    %432 = vector.shape_cast %431 : vector<1x1x32xf32> to vector<1x32xf32>
    %cst_182 = arith.constant dense<0.000000e+00> : vector<16xf32>
    %433 = vector.multi_reduction <add>, %428, %cst_182 [1] : vector<16x32xf32> to vector<16xf32>
    %434 = vector.shape_cast %433 : vector<16xf32> to vector<16x1xf32>
    %cst_183 = arith.constant 3.200000e+01 : f32
    %435 = vector.broadcast %cst_183 : f32 to vector<16x1xf32>
    %436 = arith.divf %434, %435 : vector<16x1xf32>
    %437 = vector.broadcast %436 : vector<16x1xf32> to vector<16x32xf32>
    %438 = arith.subf %428, %437 : vector<16x32xf32>
    %439 = arith.mulf %438, %438 : vector<16x32xf32>
    %cst_184 = arith.constant dense<0.000000e+00> : vector<16xf32>
    %440 = vector.multi_reduction <add>, %439, %cst_184 [1] : vector<16x32xf32> to vector<16xf32>
    %441 = vector.shape_cast %440 : vector<16xf32> to vector<16x1xf32>
    %cst_185 = arith.constant 3.200000e+01 : f32
    %442 = vector.broadcast %cst_185 : f32 to vector<16x1xf32>
    %443 = arith.divf %441, %442 : vector<16x1xf32>
    %444 = vector.broadcast %436 : vector<16x1xf32> to vector<16x32xf32>
    %445 = arith.subf %428, %444 : vector<16x32xf32>
    %cst_186 = arith.constant 9.99999974E-6 : f32
    %446 = vector.broadcast %cst_186 : f32 to vector<16x1xf32>
    %447 = arith.addf %443, %446 : vector<16x1xf32>
    %448 = math.rsqrt %447 : vector<16x1xf32>
    %449 = vector.broadcast %448 : vector<16x1xf32> to vector<16x32xf32>
    %450 = arith.mulf %445, %449 : vector<16x32xf32>
    %451 = vector.broadcast %430 : vector<1x32xf32> to vector<16x32xf32>
    %452 = arith.mulf %450, %451 : vector<16x32xf32>
    %453 = vector.broadcast %432 : vector<1x32xf32> to vector<16x32xf32>
    %454 = arith.addf %452, %453 : vector<16x32xf32>
    %c1 = arith.constant 1 : index
    %c0_187 = arith.constant 0 : index
    %c0_188 = arith.constant 0 : index
    %455 = vector.load %arg4[%c1, %c0_187, %c0_188] : memref<2x32x32xf32, #tpu.memory_space<vmem>>, vector<1x32x32xf32>
    %456 = vector.shape_cast %455 : vector<1x32x32xf32> to vector<32x32xf32>
    %cst_189 = arith.constant dense<0.000000e+00> : vector<16x32xf32>
    %457 = tpu.matmul %454, %456, %cst_189 {dimension_numbers = #tpu.dot_dimension_numbers<[1], [0], [0], [1], [0, 0, 1, 1], [], []>} : vector<16x32xf32>, vector<32x32xf32>, vector<16x32xf32> -> vector<16x32xf32>
    %c1_190 = arith.constant 1 : index
    %c0_191 = arith.constant 0 : index
    %c0_192 = arith.constant 0 : index
    %458 = vector.load %arg5[%c1_190, %c0_191, %c0_192] : memref<2x1x32xf32, #tpu.memory_space<vmem>>, vector<1x1x32xf32>
    %459 = vector.shape_cast %458 : vector<1x1x32xf32> to vector<1x32xf32>
    %460 = vector.broadcast %459 : vector<1x32xf32> to vector<16x32xf32>
    %461 = arith.addf %457, %460 : vector<16x32xf32>
    %c1_193 = arith.constant 1 : index
    %c0_194 = arith.constant 0 : index
    %c0_195 = arith.constant 0 : index
    %462 = vector.load %arg6[%c1_193, %c0_194, %c0_195] : memref<2x32x32xf32, #tpu.memory_space<vmem>>, vector<1x32x32xf32>
    %463 = vector.shape_cast %462 : vector<1x32x32xf32> to vector<32x32xf32>
    %cst_196 = arith.constant dense<0.000000e+00> : vector<16x32xf32>
    %464 = tpu.matmul %454, %463, %cst_196 {dimension_numbers = #tpu.dot_dimension_numbers<[1], [0], [0], [1], [0, 0, 1, 1], [], []>} : vector<16x32xf32>, vector<32x32xf32>, vector<16x32xf32> -> vector<16x32xf32>
    %c1_197 = arith.constant 1 : index
    %c0_198 = arith.constant 0 : index
    %c0_199 = arith.constant 0 : index
    %465 = vector.load %arg7[%c1_197, %c0_198, %c0_199] : memref<2x1x32xf32, #tpu.memory_space<vmem>>, vector<1x1x32xf32>
    %466 = vector.shape_cast %465 : vector<1x1x32xf32> to vector<1x32xf32>
    %467 = vector.broadcast %466 : vector<1x32xf32> to vector<16x32xf32>
    %468 = arith.addf %464, %467 : vector<16x32xf32>
    %c1_200 = arith.constant 1 : index
    %c0_201 = arith.constant 0 : index
    %c0_202 = arith.constant 0 : index
    %469 = vector.load %arg8[%c1_200, %c0_201, %c0_202] : memref<2x32x32xf32, #tpu.memory_space<vmem>>, vector<1x32x32xf32>
    %470 = vector.shape_cast %469 : vector<1x32x32xf32> to vector<32x32xf32>
    %cst_203 = arith.constant dense<0.000000e+00> : vector<16x32xf32>
    %471 = tpu.matmul %454, %470, %cst_203 {dimension_numbers = #tpu.dot_dimension_numbers<[1], [0], [0], [1], [0, 0, 1, 1], [], []>} : vector<16x32xf32>, vector<32x32xf32>, vector<16x32xf32> -> vector<16x32xf32>
    %c1_204 = arith.constant 1 : index
    %c0_205 = arith.constant 0 : index
    %c0_206 = arith.constant 0 : index
    %472 = vector.load %arg9[%c1_204, %c0_205, %c0_206] : memref<2x1x32xf32, #tpu.memory_space<vmem>>, vector<1x1x32xf32>
    %473 = vector.shape_cast %472 : vector<1x1x32xf32> to vector<1x32xf32>
    %474 = vector.broadcast %473 : vector<1x32xf32> to vector<16x32xf32>
    %475 = arith.addf %471, %474 : vector<16x32xf32>
    %c1_207 = arith.constant 1 : index
    %c0_208 = arith.constant 0 : index
    %c0_209 = arith.constant 0 : index
    %476 = vector.load %arg12[%c1_207, %c0_208, %c0_209] : memref<2x9x16xf32, #tpu.memory_space<vmem>>, vector<1x9x16xf32>
    %477 = vector.shape_cast %476 : vector<1x9x16xf32> to vector<9x16xf32>
    %c1_210 = arith.constant 1 : index
    %c0_211 = arith.constant 0 : index
    %c0_212 = arith.constant 0 : index
    %478 = vector.load %arg13[%c1_210, %c0_211, %c0_212] : memref<2x9x16xf32, #tpu.memory_space<vmem>>, vector<1x9x16xf32>
    %479 = vector.shape_cast %478 : vector<1x9x16xf32> to vector<9x16xf32>
    %480 = vector.extract_strided_slice %461 {offsets = [0, 0], sizes = [16, 16], strides = [1, 1]} : vector<16x32xf32> to vector<16x16xf32>
    %cst_213 = arith.constant 2.500000e-01 : f32
    %481 = vector.broadcast %cst_213 : f32 to vector<16x16xf32>
    %482 = arith.mulf %480, %481 : vector<16x16xf32>
    %483 = vector.extract_strided_slice %468 {offsets = [0, 0], sizes = [16, 16], strides = [1, 1]} : vector<16x32xf32> to vector<16x16xf32>
    %484 = vector.extract_strided_slice %475 {offsets = [0, 0], sizes = [16, 16], strides = [1, 1]} : vector<16x32xf32> to vector<16x16xf32>
    %cst_214 = arith.constant dense<0.000000e+00> : vector<16x16xf32>
    %485 = tpu.matmul %482, %483, %cst_214 {dimension_numbers = #tpu.dot_dimension_numbers<[1], [1], [0], [0], [0, 0, 1, 0], [], []>} : vector<16x16xf32>, vector<16x16xf32>, vector<16x16xf32> -> vector<16x16xf32>
    %cst_215 = arith.constant dense<0.000000e+00> : vector<16x9xf32>
    %486 = tpu.matmul %482, %477, %cst_215 {dimension_numbers = #tpu.dot_dimension_numbers<[1], [1], [0], [0], [0, 0, 1, 0], [], []>} : vector<16x16xf32>, vector<9x16xf32>, vector<16x9xf32> -> vector<16x9xf32>
    %c-4_i32_216 = arith.constant -4 : i32
    %487 = vector.broadcast %c-4_i32_216 : i32 to vector<16x16xi32>
    %488 = arith.cmpi eq, %13, %487 : vector<16x16xi32>
    %489 = vector.extract_strided_slice %486 {offsets = [0, 0], sizes = [16, 1], strides = [1, 1]} : vector<16x9xf32> to vector<16x1xf32>
    %cst_217 = arith.constant 0.000000e+00 : f32
    %490 = vector.shape_cast %489 : vector<16x1xf32> to vector<16x1xf32>
    %491 = vector.broadcast %490 : vector<16x1xf32> to vector<16x16xf32>
    %492 = vector.broadcast %cst_217 : f32 to vector<16x16xf32>
    %493 = arith.select %488, %491, %492 : vector<16x16xi1>, vector<16x16xf32>
    %494 = arith.addf %485, %493 : vector<16x16xf32>
    %c-3_i32_218 = arith.constant -3 : i32
    %495 = vector.broadcast %c-3_i32_218 : i32 to vector<16x16xi32>
    %496 = arith.cmpi eq, %13, %495 : vector<16x16xi32>
    %497 = vector.extract_strided_slice %486 {offsets = [0, 1], sizes = [16, 1], strides = [1, 1]} : vector<16x9xf32> to vector<16x1xf32>
    %cst_219 = arith.constant 0.000000e+00 : f32
    %498 = vector.shape_cast %497 : vector<16x1xf32> to vector<16x1xf32>
    %499 = vector.broadcast %498 : vector<16x1xf32> to vector<16x16xf32>
    %500 = vector.broadcast %cst_219 : f32 to vector<16x16xf32>
    %501 = arith.select %496, %499, %500 : vector<16x16xi1>, vector<16x16xf32>
    %502 = arith.addf %494, %501 : vector<16x16xf32>
    %c-2_i32_220 = arith.constant -2 : i32
    %503 = vector.broadcast %c-2_i32_220 : i32 to vector<16x16xi32>
    %504 = arith.cmpi eq, %13, %503 : vector<16x16xi32>
    %505 = vector.extract_strided_slice %486 {offsets = [0, 2], sizes = [16, 1], strides = [1, 1]} : vector<16x9xf32> to vector<16x1xf32>
    %cst_221 = arith.constant 0.000000e+00 : f32
    %506 = vector.shape_cast %505 : vector<16x1xf32> to vector<16x1xf32>
    %507 = vector.broadcast %506 : vector<16x1xf32> to vector<16x16xf32>
    %508 = vector.broadcast %cst_221 : f32 to vector<16x16xf32>
    %509 = arith.select %504, %507, %508 : vector<16x16xi1>, vector<16x16xf32>
    %510 = arith.addf %502, %509 : vector<16x16xf32>
    %c-1_i32_222 = arith.constant -1 : i32
    %511 = vector.broadcast %c-1_i32_222 : i32 to vector<16x16xi32>
    %512 = arith.cmpi eq, %13, %511 : vector<16x16xi32>
    %513 = vector.extract_strided_slice %486 {offsets = [0, 3], sizes = [16, 1], strides = [1, 1]} : vector<16x9xf32> to vector<16x1xf32>
    %cst_223 = arith.constant 0.000000e+00 : f32
    %514 = vector.shape_cast %513 : vector<16x1xf32> to vector<16x1xf32>
    %515 = vector.broadcast %514 : vector<16x1xf32> to vector<16x16xf32>
    %516 = vector.broadcast %cst_223 : f32 to vector<16x16xf32>
    %517 = arith.select %512, %515, %516 : vector<16x16xi1>, vector<16x16xf32>
    %518 = arith.addf %510, %517 : vector<16x16xf32>
    %c0_i32_224 = arith.constant 0 : i32
    %519 = vector.broadcast %c0_i32_224 : i32 to vector<16x16xi32>
    %520 = arith.cmpi eq, %13, %519 : vector<16x16xi32>
    %521 = vector.extract_strided_slice %486 {offsets = [0, 4], sizes = [16, 1], strides = [1, 1]} : vector<16x9xf32> to vector<16x1xf32>
    %cst_225 = arith.constant 0.000000e+00 : f32
    %522 = vector.shape_cast %521 : vector<16x1xf32> to vector<16x1xf32>
    %523 = vector.broadcast %522 : vector<16x1xf32> to vector<16x16xf32>
    %524 = vector.broadcast %cst_225 : f32 to vector<16x16xf32>
    %525 = arith.select %520, %523, %524 : vector<16x16xi1>, vector<16x16xf32>
    %526 = arith.addf %518, %525 : vector<16x16xf32>
    %c1_i32_226 = arith.constant 1 : i32
    %527 = vector.broadcast %c1_i32_226 : i32 to vector<16x16xi32>
    %528 = arith.cmpi eq, %13, %527 : vector<16x16xi32>
    %529 = vector.extract_strided_slice %486 {offsets = [0, 5], sizes = [16, 1], strides = [1, 1]} : vector<16x9xf32> to vector<16x1xf32>
    %cst_227 = arith.constant 0.000000e+00 : f32
    %530 = vector.shape_cast %529 : vector<16x1xf32> to vector<16x1xf32>
    %531 = vector.broadcast %530 : vector<16x1xf32> to vector<16x16xf32>
    %532 = vector.broadcast %cst_227 : f32 to vector<16x16xf32>
    %533 = arith.select %528, %531, %532 : vector<16x16xi1>, vector<16x16xf32>
    %534 = arith.addf %526, %533 : vector<16x16xf32>
    %c2_i32_228 = arith.constant 2 : i32
    %535 = vector.broadcast %c2_i32_228 : i32 to vector<16x16xi32>
    %536 = arith.cmpi eq, %13, %535 : vector<16x16xi32>
    %537 = vector.extract_strided_slice %486 {offsets = [0, 6], sizes = [16, 1], strides = [1, 1]} : vector<16x9xf32> to vector<16x1xf32>
    %cst_229 = arith.constant 0.000000e+00 : f32
    %538 = vector.shape_cast %537 : vector<16x1xf32> to vector<16x1xf32>
    %539 = vector.broadcast %538 : vector<16x1xf32> to vector<16x16xf32>
    %540 = vector.broadcast %cst_229 : f32 to vector<16x16xf32>
    %541 = arith.select %536, %539, %540 : vector<16x16xi1>, vector<16x16xf32>
    %542 = arith.addf %534, %541 : vector<16x16xf32>
    %c3_i32_230 = arith.constant 3 : i32
    %543 = vector.broadcast %c3_i32_230 : i32 to vector<16x16xi32>
    %544 = arith.cmpi eq, %13, %543 : vector<16x16xi32>
    %545 = vector.extract_strided_slice %486 {offsets = [0, 7], sizes = [16, 1], strides = [1, 1]} : vector<16x9xf32> to vector<16x1xf32>
    %cst_231 = arith.constant 0.000000e+00 : f32
    %546 = vector.shape_cast %545 : vector<16x1xf32> to vector<16x1xf32>
    %547 = vector.broadcast %546 : vector<16x1xf32> to vector<16x16xf32>
    %548 = vector.broadcast %cst_231 : f32 to vector<16x16xf32>
    %549 = arith.select %544, %547, %548 : vector<16x16xi1>, vector<16x16xf32>
    %550 = arith.addf %542, %549 : vector<16x16xf32>
    %c4_i32_232 = arith.constant 4 : i32
    %551 = vector.broadcast %c4_i32_232 : i32 to vector<16x16xi32>
    %552 = arith.cmpi eq, %13, %551 : vector<16x16xi32>
    %553 = vector.extract_strided_slice %486 {offsets = [0, 8], sizes = [16, 1], strides = [1, 1]} : vector<16x9xf32> to vector<16x1xf32>
    %cst_233 = arith.constant 0.000000e+00 : f32
    %554 = vector.shape_cast %553 : vector<16x1xf32> to vector<16x1xf32>
    %555 = vector.broadcast %554 : vector<16x1xf32> to vector<16x16xf32>
    %556 = vector.broadcast %cst_233 : f32 to vector<16x16xf32>
    %557 = arith.select %552, %555, %556 : vector<16x16xi1>, vector<16x16xf32>
    %558 = arith.addf %550, %557 : vector<16x16xf32>
    %cst_234 = arith.constant 0.000000e+00 : f32
    %559 = vector.broadcast %cst_234 : f32 to vector<16x16xf32>
    %560 = arith.cmpf ogt, %10, %559 : vector<16x16xf32>
    %cst_235 = arith.constant -1.000000e+04 : f32
    %561 = vector.broadcast %cst_235 : f32 to vector<16x16xf32>
    %562 = arith.select %560, %558, %561 : vector<16x16xi1>, vector<16x16xf32>
    %cst_236 = arith.constant dense<0xFF800000> : vector<16xf32>
    %563 = vector.multi_reduction <maximumf>, %562, %cst_236 [1] : vector<16x16xf32> to vector<16xf32>
    %564 = vector.shape_cast %563 : vector<16xf32> to vector<16x1xf32>
    %565 = vector.broadcast %564 : vector<16x1xf32> to vector<16x16xf32>
    %566 = arith.subf %562, %565 : vector<16x16xf32>
    %567 = math.exp %566 : vector<16x16xf32>
    %cst_237 = arith.constant dense<0.000000e+00> : vector<16xf32>
    %568 = vector.multi_reduction <add>, %567, %cst_237 [1] : vector<16x16xf32> to vector<16xf32>
    %569 = vector.shape_cast %568 : vector<16xf32> to vector<16x1xf32>
    %570 = vector.broadcast %569 : vector<16x1xf32> to vector<16x16xf32>
    %571 = arith.divf %567, %570 : vector<16x16xf32>
    %cst_238 = arith.constant dense<0.000000e+00> : vector<16x16xf32>
    %572 = tpu.matmul %571, %484, %cst_238 {dimension_numbers = #tpu.dot_dimension_numbers<[1], [0], [0], [1], [0, 0, 1, 1], [], []>} : vector<16x16xf32>, vector<16x16xf32>, vector<16x16xf32> -> vector<16x16xf32>
    %c-4_i32_239 = arith.constant -4 : i32
    %573 = vector.broadcast %c-4_i32_239 : i32 to vector<16x16xi32>
    %574 = arith.cmpi eq, %13, %573 : vector<16x16xi32>
    %cst_240 = arith.constant 0.000000e+00 : f32
    %575 = vector.broadcast %cst_240 : f32 to vector<16x16xf32>
    %576 = arith.select %574, %571, %575 : vector<16x16xi1>, vector<16x16xf32>
    %cst_241 = arith.constant dense<0.000000e+00> : vector<16xf32>
    %577 = vector.multi_reduction <add>, %576, %cst_241 [1] : vector<16x16xf32> to vector<16xf32>
    %578 = vector.shape_cast %577 : vector<16xf32> to vector<16x1xf32>
    %c-3_i32_242 = arith.constant -3 : i32
    %579 = vector.broadcast %c-3_i32_242 : i32 to vector<16x16xi32>
    %580 = arith.cmpi eq, %13, %579 : vector<16x16xi32>
    %cst_243 = arith.constant 0.000000e+00 : f32
    %581 = vector.broadcast %cst_243 : f32 to vector<16x16xf32>
    %582 = arith.select %580, %571, %581 : vector<16x16xi1>, vector<16x16xf32>
    %cst_244 = arith.constant dense<0.000000e+00> : vector<16xf32>
    %583 = vector.multi_reduction <add>, %582, %cst_244 [1] : vector<16x16xf32> to vector<16xf32>
    %584 = vector.shape_cast %583 : vector<16xf32> to vector<16x1xf32>
    %c-2_i32_245 = arith.constant -2 : i32
    %585 = vector.broadcast %c-2_i32_245 : i32 to vector<16x16xi32>
    %586 = arith.cmpi eq, %13, %585 : vector<16x16xi32>
    %cst_246 = arith.constant 0.000000e+00 : f32
    %587 = vector.broadcast %cst_246 : f32 to vector<16x16xf32>
    %588 = arith.select %586, %571, %587 : vector<16x16xi1>, vector<16x16xf32>
    %cst_247 = arith.constant dense<0.000000e+00> : vector<16xf32>
    %589 = vector.multi_reduction <add>, %588, %cst_247 [1] : vector<16x16xf32> to vector<16xf32>
    %590 = vector.shape_cast %589 : vector<16xf32> to vector<16x1xf32>
    %c-1_i32_248 = arith.constant -1 : i32
    %591 = vector.broadcast %c-1_i32_248 : i32 to vector<16x16xi32>
    %592 = arith.cmpi eq, %13, %591 : vector<16x16xi32>
    %cst_249 = arith.constant 0.000000e+00 : f32
    %593 = vector.broadcast %cst_249 : f32 to vector<16x16xf32>
    %594 = arith.select %592, %571, %593 : vector<16x16xi1>, vector<16x16xf32>
    %cst_250 = arith.constant dense<0.000000e+00> : vector<16xf32>
    %595 = vector.multi_reduction <add>, %594, %cst_250 [1] : vector<16x16xf32> to vector<16xf32>
    %596 = vector.shape_cast %595 : vector<16xf32> to vector<16x1xf32>
    %c0_i32_251 = arith.constant 0 : i32
    %597 = vector.broadcast %c0_i32_251 : i32 to vector<16x16xi32>
    %598 = arith.cmpi eq, %13, %597 : vector<16x16xi32>
    %cst_252 = arith.constant 0.000000e+00 : f32
    %599 = vector.broadcast %cst_252 : f32 to vector<16x16xf32>
    %600 = arith.select %598, %571, %599 : vector<16x16xi1>, vector<16x16xf32>
    %cst_253 = arith.constant dense<0.000000e+00> : vector<16xf32>
    %601 = vector.multi_reduction <add>, %600, %cst_253 [1] : vector<16x16xf32> to vector<16xf32>
    %602 = vector.shape_cast %601 : vector<16xf32> to vector<16x1xf32>
    %c1_i32_254 = arith.constant 1 : i32
    %603 = vector.broadcast %c1_i32_254 : i32 to vector<16x16xi32>
    %604 = arith.cmpi eq, %13, %603 : vector<16x16xi32>
    %cst_255 = arith.constant 0.000000e+00 : f32
    %605 = vector.broadcast %cst_255 : f32 to vector<16x16xf32>
    %606 = arith.select %604, %571, %605 : vector<16x16xi1>, vector<16x16xf32>
    %cst_256 = arith.constant dense<0.000000e+00> : vector<16xf32>
    %607 = vector.multi_reduction <add>, %606, %cst_256 [1] : vector<16x16xf32> to vector<16xf32>
    %608 = vector.shape_cast %607 : vector<16xf32> to vector<16x1xf32>
    %c2_i32_257 = arith.constant 2 : i32
    %609 = vector.broadcast %c2_i32_257 : i32 to vector<16x16xi32>
    %610 = arith.cmpi eq, %13, %609 : vector<16x16xi32>
    %cst_258 = arith.constant 0.000000e+00 : f32
    %611 = vector.broadcast %cst_258 : f32 to vector<16x16xf32>
    %612 = arith.select %610, %571, %611 : vector<16x16xi1>, vector<16x16xf32>
    %cst_259 = arith.constant dense<0.000000e+00> : vector<16xf32>
    %613 = vector.multi_reduction <add>, %612, %cst_259 [1] : vector<16x16xf32> to vector<16xf32>
    %614 = vector.shape_cast %613 : vector<16xf32> to vector<16x1xf32>
    %c3_i32_260 = arith.constant 3 : i32
    %615 = vector.broadcast %c3_i32_260 : i32 to vector<16x16xi32>
    %616 = arith.cmpi eq, %13, %615 : vector<16x16xi32>
    %cst_261 = arith.constant 0.000000e+00 : f32
    %617 = vector.broadcast %cst_261 : f32 to vector<16x16xf32>
    %618 = arith.select %616, %571, %617 : vector<16x16xi1>, vector<16x16xf32>
    %cst_262 = arith.constant dense<0.000000e+00> : vector<16xf32>
    %619 = vector.multi_reduction <add>, %618, %cst_262 [1] : vector<16x16xf32> to vector<16xf32>
    %620 = vector.shape_cast %619 : vector<16xf32> to vector<16x1xf32>
    %c4_i32_263 = arith.constant 4 : i32
    %621 = vector.broadcast %c4_i32_263 : i32 to vector<16x16xi32>
    %622 = arith.cmpi eq, %13, %621 : vector<16x16xi32>
    %cst_264 = arith.constant 0.000000e+00 : f32
    %623 = vector.broadcast %cst_264 : f32 to vector<16x16xf32>
    %624 = arith.select %622, %571, %623 : vector<16x16xi1>, vector<16x16xf32>
    %cst_265 = arith.constant dense<0.000000e+00> : vector<16xf32>
    %625 = vector.multi_reduction <add>, %624, %cst_265 [1] : vector<16x16xf32> to vector<16xf32>
    %626 = vector.shape_cast %625 : vector<16xf32> to vector<16x1xf32>
    %627 = tpu.concatenate %578, %584, %590, %596, %602, %608, %614, %620, %626 in 1 : vector<16x1xf32>, vector<16x1xf32>, vector<16x1xf32>, vector<16x1xf32>, vector<16x1xf32>, vector<16x1xf32>, vector<16x1xf32>, vector<16x1xf32>, vector<16x1xf32> -> vector<16x9xf32>
    %cst_266 = arith.constant dense<0.000000e+00> : vector<16x16xf32>
    %628 = tpu.matmul %627, %479, %cst_266 {dimension_numbers = #tpu.dot_dimension_numbers<[1], [0], [0], [1], [0, 0, 1, 1], [], []>} : vector<16x9xf32>, vector<9x16xf32>, vector<16x16xf32> -> vector<16x16xf32>
    %629 = arith.addf %572, %628 : vector<16x16xf32>
    %630 = vector.extract_strided_slice %461 {offsets = [0, 16], sizes = [16, 16], strides = [1, 1]} : vector<16x32xf32> to vector<16x16xf32>
    %cst_267 = arith.constant 2.500000e-01 : f32
    %631 = vector.broadcast %cst_267 : f32 to vector<16x16xf32>
    %632 = arith.mulf %630, %631 : vector<16x16xf32>
    %633 = vector.extract_strided_slice %468 {offsets = [0, 16], sizes = [16, 16], strides = [1, 1]} : vector<16x32xf32> to vector<16x16xf32>
    %634 = vector.extract_strided_slice %475 {offsets = [0, 16], sizes = [16, 16], strides = [1, 1]} : vector<16x32xf32> to vector<16x16xf32>
    %cst_268 = arith.constant dense<0.000000e+00> : vector<16x16xf32>
    %635 = tpu.matmul %632, %633, %cst_268 {dimension_numbers = #tpu.dot_dimension_numbers<[1], [1], [0], [0], [0, 0, 1, 0], [], []>} : vector<16x16xf32>, vector<16x16xf32>, vector<16x16xf32> -> vector<16x16xf32>
    %cst_269 = arith.constant dense<0.000000e+00> : vector<16x9xf32>
    %636 = tpu.matmul %632, %477, %cst_269 {dimension_numbers = #tpu.dot_dimension_numbers<[1], [1], [0], [0], [0, 0, 1, 0], [], []>} : vector<16x16xf32>, vector<9x16xf32>, vector<16x9xf32> -> vector<16x9xf32>
    %c-4_i32_270 = arith.constant -4 : i32
    %637 = vector.broadcast %c-4_i32_270 : i32 to vector<16x16xi32>
    %638 = arith.cmpi eq, %13, %637 : vector<16x16xi32>
    %639 = vector.extract_strided_slice %636 {offsets = [0, 0], sizes = [16, 1], strides = [1, 1]} : vector<16x9xf32> to vector<16x1xf32>
    %cst_271 = arith.constant 0.000000e+00 : f32
    %640 = vector.shape_cast %639 : vector<16x1xf32> to vector<16x1xf32>
    %641 = vector.broadcast %640 : vector<16x1xf32> to vector<16x16xf32>
    %642 = vector.broadcast %cst_271 : f32 to vector<16x16xf32>
    %643 = arith.select %638, %641, %642 : vector<16x16xi1>, vector<16x16xf32>
    %644 = arith.addf %635, %643 : vector<16x16xf32>
    %c-3_i32_272 = arith.constant -3 : i32
    %645 = vector.broadcast %c-3_i32_272 : i32 to vector<16x16xi32>
    %646 = arith.cmpi eq, %13, %645 : vector<16x16xi32>
    %647 = vector.extract_strided_slice %636 {offsets = [0, 1], sizes = [16, 1], strides = [1, 1]} : vector<16x9xf32> to vector<16x1xf32>
    %cst_273 = arith.constant 0.000000e+00 : f32
    %648 = vector.shape_cast %647 : vector<16x1xf32> to vector<16x1xf32>
    %649 = vector.broadcast %648 : vector<16x1xf32> to vector<16x16xf32>
    %650 = vector.broadcast %cst_273 : f32 to vector<16x16xf32>
    %651 = arith.select %646, %649, %650 : vector<16x16xi1>, vector<16x16xf32>
    %652 = arith.addf %644, %651 : vector<16x16xf32>
    %c-2_i32_274 = arith.constant -2 : i32
    %653 = vector.broadcast %c-2_i32_274 : i32 to vector<16x16xi32>
    %654 = arith.cmpi eq, %13, %653 : vector<16x16xi32>
    %655 = vector.extract_strided_slice %636 {offsets = [0, 2], sizes = [16, 1], strides = [1, 1]} : vector<16x9xf32> to vector<16x1xf32>
    %cst_275 = arith.constant 0.000000e+00 : f32
    %656 = vector.shape_cast %655 : vector<16x1xf32> to vector<16x1xf32>
    %657 = vector.broadcast %656 : vector<16x1xf32> to vector<16x16xf32>
    %658 = vector.broadcast %cst_275 : f32 to vector<16x16xf32>
    %659 = arith.select %654, %657, %658 : vector<16x16xi1>, vector<16x16xf32>
    %660 = arith.addf %652, %659 : vector<16x16xf32>
    %c-1_i32_276 = arith.constant -1 : i32
    %661 = vector.broadcast %c-1_i32_276 : i32 to vector<16x16xi32>
    %662 = arith.cmpi eq, %13, %661 : vector<16x16xi32>
    %663 = vector.extract_strided_slice %636 {offsets = [0, 3], sizes = [16, 1], strides = [1, 1]} : vector<16x9xf32> to vector<16x1xf32>
    %cst_277 = arith.constant 0.000000e+00 : f32
    %664 = vector.shape_cast %663 : vector<16x1xf32> to vector<16x1xf32>
    %665 = vector.broadcast %664 : vector<16x1xf32> to vector<16x16xf32>
    %666 = vector.broadcast %cst_277 : f32 to vector<16x16xf32>
    %667 = arith.select %662, %665, %666 : vector<16x16xi1>, vector<16x16xf32>
    %668 = arith.addf %660, %667 : vector<16x16xf32>
    %c0_i32_278 = arith.constant 0 : i32
    %669 = vector.broadcast %c0_i32_278 : i32 to vector<16x16xi32>
    %670 = arith.cmpi eq, %13, %669 : vector<16x16xi32>
    %671 = vector.extract_strided_slice %636 {offsets = [0, 4], sizes = [16, 1], strides = [1, 1]} : vector<16x9xf32> to vector<16x1xf32>
    %cst_279 = arith.constant 0.000000e+00 : f32
    %672 = vector.shape_cast %671 : vector<16x1xf32> to vector<16x1xf32>
    %673 = vector.broadcast %672 : vector<16x1xf32> to vector<16x16xf32>
    %674 = vector.broadcast %cst_279 : f32 to vector<16x16xf32>
    %675 = arith.select %670, %673, %674 : vector<16x16xi1>, vector<16x16xf32>
    %676 = arith.addf %668, %675 : vector<16x16xf32>
    %c1_i32_280 = arith.constant 1 : i32
    %677 = vector.broadcast %c1_i32_280 : i32 to vector<16x16xi32>
    %678 = arith.cmpi eq, %13, %677 : vector<16x16xi32>
    %679 = vector.extract_strided_slice %636 {offsets = [0, 5], sizes = [16, 1], strides = [1, 1]} : vector<16x9xf32> to vector<16x1xf32>
    %cst_281 = arith.constant 0.000000e+00 : f32
    %680 = vector.shape_cast %679 : vector<16x1xf32> to vector<16x1xf32>
    %681 = vector.broadcast %680 : vector<16x1xf32> to vector<16x16xf32>
    %682 = vector.broadcast %cst_281 : f32 to vector<16x16xf32>
    %683 = arith.select %678, %681, %682 : vector<16x16xi1>, vector<16x16xf32>
    %684 = arith.addf %676, %683 : vector<16x16xf32>
    %c2_i32_282 = arith.constant 2 : i32
    %685 = vector.broadcast %c2_i32_282 : i32 to vector<16x16xi32>
    %686 = arith.cmpi eq, %13, %685 : vector<16x16xi32>
    %687 = vector.extract_strided_slice %636 {offsets = [0, 6], sizes = [16, 1], strides = [1, 1]} : vector<16x9xf32> to vector<16x1xf32>
    %cst_283 = arith.constant 0.000000e+00 : f32
    %688 = vector.shape_cast %687 : vector<16x1xf32> to vector<16x1xf32>
    %689 = vector.broadcast %688 : vector<16x1xf32> to vector<16x16xf32>
    %690 = vector.broadcast %cst_283 : f32 to vector<16x16xf32>
    %691 = arith.select %686, %689, %690 : vector<16x16xi1>, vector<16x16xf32>
    %692 = arith.addf %684, %691 : vector<16x16xf32>
    %c3_i32_284 = arith.constant 3 : i32
    %693 = vector.broadcast %c3_i32_284 : i32 to vector<16x16xi32>
    %694 = arith.cmpi eq, %13, %693 : vector<16x16xi32>
    %695 = vector.extract_strided_slice %636 {offsets = [0, 7], sizes = [16, 1], strides = [1, 1]} : vector<16x9xf32> to vector<16x1xf32>
    %cst_285 = arith.constant 0.000000e+00 : f32
    %696 = vector.shape_cast %695 : vector<16x1xf32> to vector<16x1xf32>
    %697 = vector.broadcast %696 : vector<16x1xf32> to vector<16x16xf32>
    %698 = vector.broadcast %cst_285 : f32 to vector<16x16xf32>
    %699 = arith.select %694, %697, %698 : vector<16x16xi1>, vector<16x16xf32>
    %700 = arith.addf %692, %699 : vector<16x16xf32>
    %c4_i32_286 = arith.constant 4 : i32
    %701 = vector.broadcast %c4_i32_286 : i32 to vector<16x16xi32>
    %702 = arith.cmpi eq, %13, %701 : vector<16x16xi32>
    %703 = vector.extract_strided_slice %636 {offsets = [0, 8], sizes = [16, 1], strides = [1, 1]} : vector<16x9xf32> to vector<16x1xf32>
    %cst_287 = arith.constant 0.000000e+00 : f32
    %704 = vector.shape_cast %703 : vector<16x1xf32> to vector<16x1xf32>
    %705 = vector.broadcast %704 : vector<16x1xf32> to vector<16x16xf32>
    %706 = vector.broadcast %cst_287 : f32 to vector<16x16xf32>
    %707 = arith.select %702, %705, %706 : vector<16x16xi1>, vector<16x16xf32>
    %708 = arith.addf %700, %707 : vector<16x16xf32>
    %cst_288 = arith.constant 0.000000e+00 : f32
    %709 = vector.broadcast %cst_288 : f32 to vector<16x16xf32>
    %710 = arith.cmpf ogt, %10, %709 : vector<16x16xf32>
    %cst_289 = arith.constant -1.000000e+04 : f32
    %711 = vector.broadcast %cst_289 : f32 to vector<16x16xf32>
    %712 = arith.select %710, %708, %711 : vector<16x16xi1>, vector<16x16xf32>
    %cst_290 = arith.constant dense<0xFF800000> : vector<16xf32>
    %713 = vector.multi_reduction <maximumf>, %712, %cst_290 [1] : vector<16x16xf32> to vector<16xf32>
    %714 = vector.shape_cast %713 : vector<16xf32> to vector<16x1xf32>
    %715 = vector.broadcast %714 : vector<16x1xf32> to vector<16x16xf32>
    %716 = arith.subf %712, %715 : vector<16x16xf32>
    %717 = math.exp %716 : vector<16x16xf32>
    %cst_291 = arith.constant dense<0.000000e+00> : vector<16xf32>
    %718 = vector.multi_reduction <add>, %717, %cst_291 [1] : vector<16x16xf32> to vector<16xf32>
    %719 = vector.shape_cast %718 : vector<16xf32> to vector<16x1xf32>
    %720 = vector.broadcast %719 : vector<16x1xf32> to vector<16x16xf32>
    %721 = arith.divf %717, %720 : vector<16x16xf32>
    %cst_292 = arith.constant dense<0.000000e+00> : vector<16x16xf32>
    %722 = tpu.matmul %721, %634, %cst_292 {dimension_numbers = #tpu.dot_dimension_numbers<[1], [0], [0], [1], [0, 0, 1, 1], [], []>} : vector<16x16xf32>, vector<16x16xf32>, vector<16x16xf32> -> vector<16x16xf32>
    %c-4_i32_293 = arith.constant -4 : i32
    %723 = vector.broadcast %c-4_i32_293 : i32 to vector<16x16xi32>
    %724 = arith.cmpi eq, %13, %723 : vector<16x16xi32>
    %cst_294 = arith.constant 0.000000e+00 : f32
    %725 = vector.broadcast %cst_294 : f32 to vector<16x16xf32>
    %726 = arith.select %724, %721, %725 : vector<16x16xi1>, vector<16x16xf32>
    %cst_295 = arith.constant dense<0.000000e+00> : vector<16xf32>
    %727 = vector.multi_reduction <add>, %726, %cst_295 [1] : vector<16x16xf32> to vector<16xf32>
    %728 = vector.shape_cast %727 : vector<16xf32> to vector<16x1xf32>
    %c-3_i32_296 = arith.constant -3 : i32
    %729 = vector.broadcast %c-3_i32_296 : i32 to vector<16x16xi32>
    %730 = arith.cmpi eq, %13, %729 : vector<16x16xi32>
    %cst_297 = arith.constant 0.000000e+00 : f32
    %731 = vector.broadcast %cst_297 : f32 to vector<16x16xf32>
    %732 = arith.select %730, %721, %731 : vector<16x16xi1>, vector<16x16xf32>
    %cst_298 = arith.constant dense<0.000000e+00> : vector<16xf32>
    %733 = vector.multi_reduction <add>, %732, %cst_298 [1] : vector<16x16xf32> to vector<16xf32>
    %734 = vector.shape_cast %733 : vector<16xf32> to vector<16x1xf32>
    %c-2_i32_299 = arith.constant -2 : i32
    %735 = vector.broadcast %c-2_i32_299 : i32 to vector<16x16xi32>
    %736 = arith.cmpi eq, %13, %735 : vector<16x16xi32>
    %cst_300 = arith.constant 0.000000e+00 : f32
    %737 = vector.broadcast %cst_300 : f32 to vector<16x16xf32>
    %738 = arith.select %736, %721, %737 : vector<16x16xi1>, vector<16x16xf32>
    %cst_301 = arith.constant dense<0.000000e+00> : vector<16xf32>
    %739 = vector.multi_reduction <add>, %738, %cst_301 [1] : vector<16x16xf32> to vector<16xf32>
    %740 = vector.shape_cast %739 : vector<16xf32> to vector<16x1xf32>
    %c-1_i32_302 = arith.constant -1 : i32
    %741 = vector.broadcast %c-1_i32_302 : i32 to vector<16x16xi32>
    %742 = arith.cmpi eq, %13, %741 : vector<16x16xi32>
    %cst_303 = arith.constant 0.000000e+00 : f32
    %743 = vector.broadcast %cst_303 : f32 to vector<16x16xf32>
    %744 = arith.select %742, %721, %743 : vector<16x16xi1>, vector<16x16xf32>
    %cst_304 = arith.constant dense<0.000000e+00> : vector<16xf32>
    %745 = vector.multi_reduction <add>, %744, %cst_304 [1] : vector<16x16xf32> to vector<16xf32>
    %746 = vector.shape_cast %745 : vector<16xf32> to vector<16x1xf32>
    %c0_i32_305 = arith.constant 0 : i32
    %747 = vector.broadcast %c0_i32_305 : i32 to vector<16x16xi32>
    %748 = arith.cmpi eq, %13, %747 : vector<16x16xi32>
    %cst_306 = arith.constant 0.000000e+00 : f32
    %749 = vector.broadcast %cst_306 : f32 to vector<16x16xf32>
    %750 = arith.select %748, %721, %749 : vector<16x16xi1>, vector<16x16xf32>
    %cst_307 = arith.constant dense<0.000000e+00> : vector<16xf32>
    %751 = vector.multi_reduction <add>, %750, %cst_307 [1] : vector<16x16xf32> to vector<16xf32>
    %752 = vector.shape_cast %751 : vector<16xf32> to vector<16x1xf32>
    %c1_i32_308 = arith.constant 1 : i32
    %753 = vector.broadcast %c1_i32_308 : i32 to vector<16x16xi32>
    %754 = arith.cmpi eq, %13, %753 : vector<16x16xi32>
    %cst_309 = arith.constant 0.000000e+00 : f32
    %755 = vector.broadcast %cst_309 : f32 to vector<16x16xf32>
    %756 = arith.select %754, %721, %755 : vector<16x16xi1>, vector<16x16xf32>
    %cst_310 = arith.constant dense<0.000000e+00> : vector<16xf32>
    %757 = vector.multi_reduction <add>, %756, %cst_310 [1] : vector<16x16xf32> to vector<16xf32>
    %758 = vector.shape_cast %757 : vector<16xf32> to vector<16x1xf32>
    %c2_i32_311 = arith.constant 2 : i32
    %759 = vector.broadcast %c2_i32_311 : i32 to vector<16x16xi32>
    %760 = arith.cmpi eq, %13, %759 : vector<16x16xi32>
    %cst_312 = arith.constant 0.000000e+00 : f32
    %761 = vector.broadcast %cst_312 : f32 to vector<16x16xf32>
    %762 = arith.select %760, %721, %761 : vector<16x16xi1>, vector<16x16xf32>
    %cst_313 = arith.constant dense<0.000000e+00> : vector<16xf32>
    %763 = vector.multi_reduction <add>, %762, %cst_313 [1] : vector<16x16xf32> to vector<16xf32>
    %764 = vector.shape_cast %763 : vector<16xf32> to vector<16x1xf32>
    %c3_i32_314 = arith.constant 3 : i32
    %765 = vector.broadcast %c3_i32_314 : i32 to vector<16x16xi32>
    %766 = arith.cmpi eq, %13, %765 : vector<16x16xi32>
    %cst_315 = arith.constant 0.000000e+00 : f32
    %767 = vector.broadcast %cst_315 : f32 to vector<16x16xf32>
    %768 = arith.select %766, %721, %767 : vector<16x16xi1>, vector<16x16xf32>
    %cst_316 = arith.constant dense<0.000000e+00> : vector<16xf32>
    %769 = vector.multi_reduction <add>, %768, %cst_316 [1] : vector<16x16xf32> to vector<16xf32>
    %770 = vector.shape_cast %769 : vector<16xf32> to vector<16x1xf32>
    %c4_i32_317 = arith.constant 4 : i32
    %771 = vector.broadcast %c4_i32_317 : i32 to vector<16x16xi32>
    %772 = arith.cmpi eq, %13, %771 : vector<16x16xi32>
    %cst_318 = arith.constant 0.000000e+00 : f32
    %773 = vector.broadcast %cst_318 : f32 to vector<16x16xf32>
    %774 = arith.select %772, %721, %773 : vector<16x16xi1>, vector<16x16xf32>
    %cst_319 = arith.constant dense<0.000000e+00> : vector<16xf32>
    %775 = vector.multi_reduction <add>, %774, %cst_319 [1] : vector<16x16xf32> to vector<16xf32>
    %776 = vector.shape_cast %775 : vector<16xf32> to vector<16x1xf32>
    %777 = tpu.concatenate %728, %734, %740, %746, %752, %758, %764, %770, %776 in 1 : vector<16x1xf32>, vector<16x1xf32>, vector<16x1xf32>, vector<16x1xf32>, vector<16x1xf32>, vector<16x1xf32>, vector<16x1xf32>, vector<16x1xf32>, vector<16x1xf32> -> vector<16x9xf32>
    %cst_320 = arith.constant dense<0.000000e+00> : vector<16x16xf32>
    %778 = tpu.matmul %777, %479, %cst_320 {dimension_numbers = #tpu.dot_dimension_numbers<[1], [0], [0], [1], [0, 0, 1, 1], [], []>} : vector<16x9xf32>, vector<9x16xf32>, vector<16x16xf32> -> vector<16x16xf32>
    %779 = arith.addf %722, %778 : vector<16x16xf32>
    %780 = tpu.concatenate %629, %779 in 1 : vector<16x16xf32>, vector<16x16xf32> -> vector<16x32xf32>
    %c1_321 = arith.constant 1 : index
    %c0_322 = arith.constant 0 : index
    %c0_323 = arith.constant 0 : index
    %781 = vector.load %arg10[%c1_321, %c0_322, %c0_323] : memref<2x32x32xf32, #tpu.memory_space<vmem>>, vector<1x32x32xf32>
    %782 = vector.shape_cast %781 : vector<1x32x32xf32> to vector<32x32xf32>
    %cst_324 = arith.constant dense<0.000000e+00> : vector<16x32xf32>
    %783 = tpu.matmul %780, %782, %cst_324 {dimension_numbers = #tpu.dot_dimension_numbers<[1], [0], [0], [1], [0, 0, 1, 1], [], []>} : vector<16x32xf32>, vector<32x32xf32>, vector<16x32xf32> -> vector<16x32xf32>
    %c1_325 = arith.constant 1 : index
    %c0_326 = arith.constant 0 : index
    %c0_327 = arith.constant 0 : index
    %784 = vector.load %arg11[%c1_325, %c0_326, %c0_327] : memref<2x1x32xf32, #tpu.memory_space<vmem>>, vector<1x1x32xf32>
    %785 = vector.shape_cast %784 : vector<1x1x32xf32> to vector<1x32xf32>
    %786 = vector.broadcast %785 : vector<1x32xf32> to vector<16x32xf32>
    %787 = arith.addf %783, %786 : vector<16x32xf32>
    %788 = arith.addf %454, %787 : vector<16x32xf32>
    %c1_328 = arith.constant 1 : index
    %c0_329 = arith.constant 0 : index
    %c0_330 = arith.constant 0 : index
    %789 = vector.load %arg14[%c1_328, %c0_329, %c0_330] : memref<2x1x32xf32, #tpu.memory_space<vmem>>, vector<1x1x32xf32>
    %790 = vector.shape_cast %789 : vector<1x1x32xf32> to vector<1x32xf32>
    %c1_331 = arith.constant 1 : index
    %c0_332 = arith.constant 0 : index
    %c0_333 = arith.constant 0 : index
    %791 = vector.load %arg15[%c1_331, %c0_332, %c0_333] : memref<2x1x32xf32, #tpu.memory_space<vmem>>, vector<1x1x32xf32>
    %792 = vector.shape_cast %791 : vector<1x1x32xf32> to vector<1x32xf32>
    %cst_334 = arith.constant dense<0.000000e+00> : vector<16xf32>
    %793 = vector.multi_reduction <add>, %788, %cst_334 [1] : vector<16x32xf32> to vector<16xf32>
    %794 = vector.shape_cast %793 : vector<16xf32> to vector<16x1xf32>
    %cst_335 = arith.constant 3.200000e+01 : f32
    %795 = vector.broadcast %cst_335 : f32 to vector<16x1xf32>
    %796 = arith.divf %794, %795 : vector<16x1xf32>
    %797 = vector.broadcast %796 : vector<16x1xf32> to vector<16x32xf32>
    %798 = arith.subf %788, %797 : vector<16x32xf32>
    %799 = arith.mulf %798, %798 : vector<16x32xf32>
    %cst_336 = arith.constant dense<0.000000e+00> : vector<16xf32>
    %800 = vector.multi_reduction <add>, %799, %cst_336 [1] : vector<16x32xf32> to vector<16xf32>
    %801 = vector.shape_cast %800 : vector<16xf32> to vector<16x1xf32>
    %cst_337 = arith.constant 3.200000e+01 : f32
    %802 = vector.broadcast %cst_337 : f32 to vector<16x1xf32>
    %803 = arith.divf %801, %802 : vector<16x1xf32>
    %804 = vector.broadcast %796 : vector<16x1xf32> to vector<16x32xf32>
    %805 = arith.subf %788, %804 : vector<16x32xf32>
    %cst_338 = arith.constant 9.99999974E-6 : f32
    %806 = vector.broadcast %cst_338 : f32 to vector<16x1xf32>
    %807 = arith.addf %803, %806 : vector<16x1xf32>
    %808 = math.rsqrt %807 : vector<16x1xf32>
    %809 = vector.broadcast %808 : vector<16x1xf32> to vector<16x32xf32>
    %810 = arith.mulf %805, %809 : vector<16x32xf32>
    %811 = vector.broadcast %790 : vector<1x32xf32> to vector<16x32xf32>
    %812 = arith.mulf %810, %811 : vector<16x32xf32>
    %813 = vector.broadcast %792 : vector<1x32xf32> to vector<16x32xf32>
    %814 = arith.addf %812, %813 : vector<16x32xf32>
    %815 = vector.broadcast %1 : vector<16x1xf32> to vector<16x32xf32>
    %816 = arith.mulf %814, %815 : vector<16x32xf32>
    %c1_339 = arith.constant 1 : index
    %c0_340 = arith.constant 0 : index
    %c0_341 = arith.constant 0 : index
    %c0_342 = arith.constant 0 : index
    %817 = vector.load %arg16[%c1_339, %c0_340, %c0_341, %c0_342] : memref<2x3x32x64xf32, #tpu.memory_space<vmem>>, vector<1x3x32x64xf32>
    %818 = vector.shape_cast %817 : vector<1x3x32x64xf32> to vector<3x32x64xf32>
    %c1_343 = arith.constant 1 : index
    %c0_344 = arith.constant 0 : index
    %c0_345 = arith.constant 0 : index
    %819 = vector.load %arg17[%c1_343, %c0_344, %c0_345] : memref<2x1x64xf32, #tpu.memory_space<vmem>>, vector<1x1x64xf32>
    %820 = vector.shape_cast %819 : vector<1x1x64xf32> to vector<1x64xf32>
    %cst_346 = arith.constant 0.000000e+00 : f32
    %821 = vector.broadcast %cst_346 : f32 to vector<1x32xf32>
    %cst_347 = arith.constant 0.000000e+00 : f32
    %822 = vector.broadcast %cst_347 : f32 to vector<1x32xf32>
    %823 = tpu.concatenate %821, %816, %822 in 0 : vector<1x32xf32>, vector<16x32xf32>, vector<1x32xf32> -> vector<18x32xf32>
    %824 = vector.extract_strided_slice %823 {offsets = [0, 0], sizes = [16, 32], strides = [1, 1]} : vector<18x32xf32> to vector<16x32xf32>
    %825 = vector.extract_strided_slice %818 {offsets = [0, 0, 0], sizes = [1, 32, 64], strides = [1, 1, 1]} : vector<3x32x64xf32> to vector<1x32x64xf32>
    %826 = vector.shape_cast %825 : vector<1x32x64xf32> to vector<32x64xf32>
    %cst_348 = arith.constant dense<0.000000e+00> : vector<16x64xf32>
    %827 = tpu.matmul %824, %826, %cst_348 {dimension_numbers = #tpu.dot_dimension_numbers<[1], [0], [0], [1], [0, 0, 1, 1], [], []>} : vector<16x32xf32>, vector<32x64xf32>, vector<16x64xf32> -> vector<16x64xf32>
    %828 = vector.extract_strided_slice %823 {offsets = [1, 0], sizes = [16, 32], strides = [1, 1]} : vector<18x32xf32> to vector<16x32xf32>
    %829 = vector.extract_strided_slice %818 {offsets = [1, 0, 0], sizes = [1, 32, 64], strides = [1, 1, 1]} : vector<3x32x64xf32> to vector<1x32x64xf32>
    %830 = vector.shape_cast %829 : vector<1x32x64xf32> to vector<32x64xf32>
    %cst_349 = arith.constant dense<0.000000e+00> : vector<16x64xf32>
    %831 = tpu.matmul %828, %830, %cst_349 {dimension_numbers = #tpu.dot_dimension_numbers<[1], [0], [0], [1], [0, 0, 1, 1], [], []>} : vector<16x32xf32>, vector<32x64xf32>, vector<16x64xf32> -> vector<16x64xf32>
    %832 = arith.addf %827, %831 : vector<16x64xf32>
    %833 = vector.extract_strided_slice %823 {offsets = [2, 0], sizes = [16, 32], strides = [1, 1]} : vector<18x32xf32> to vector<16x32xf32>
    %834 = vector.extract_strided_slice %818 {offsets = [2, 0, 0], sizes = [1, 32, 64], strides = [1, 1, 1]} : vector<3x32x64xf32> to vector<1x32x64xf32>
    %835 = vector.shape_cast %834 : vector<1x32x64xf32> to vector<32x64xf32>
    %cst_350 = arith.constant dense<0.000000e+00> : vector<16x64xf32>
    %836 = tpu.matmul %833, %835, %cst_350 {dimension_numbers = #tpu.dot_dimension_numbers<[1], [0], [0], [1], [0, 0, 1, 1], [], []>} : vector<16x32xf32>, vector<32x64xf32>, vector<16x64xf32> -> vector<16x64xf32>
    %837 = arith.addf %832, %836 : vector<16x64xf32>
    %838 = vector.broadcast %820 : vector<1x64xf32> to vector<16x64xf32>
    %839 = arith.addf %837, %838 : vector<16x64xf32>
    %cst_351 = arith.constant 0.000000e+00 : f32
    %840 = vector.broadcast %cst_351 : f32 to vector<16x64xf32>
    %841 = arith.maximumf %839, %840 : vector<16x64xf32>
    %842 = vector.broadcast %1 : vector<16x1xf32> to vector<16x64xf32>
    %843 = arith.mulf %841, %842 : vector<16x64xf32>
    %c1_352 = arith.constant 1 : index
    %c0_353 = arith.constant 0 : index
    %c0_354 = arith.constant 0 : index
    %c0_355 = arith.constant 0 : index
    %844 = vector.load %arg18[%c1_352, %c0_353, %c0_354, %c0_355] : memref<2x3x64x32xf32, #tpu.memory_space<vmem>>, vector<1x3x64x32xf32>
    %845 = vector.shape_cast %844 : vector<1x3x64x32xf32> to vector<3x64x32xf32>
    %c1_356 = arith.constant 1 : index
    %c0_357 = arith.constant 0 : index
    %c0_358 = arith.constant 0 : index
    %846 = vector.load %arg19[%c1_356, %c0_357, %c0_358] : memref<2x1x32xf32, #tpu.memory_space<vmem>>, vector<1x1x32xf32>
    %847 = vector.shape_cast %846 : vector<1x1x32xf32> to vector<1x32xf32>
    %cst_359 = arith.constant 0.000000e+00 : f32
    %848 = vector.broadcast %cst_359 : f32 to vector<1x64xf32>
    %cst_360 = arith.constant 0.000000e+00 : f32
    %849 = vector.broadcast %cst_360 : f32 to vector<1x64xf32>
    %850 = tpu.concatenate %848, %843, %849 in 0 : vector<1x64xf32>, vector<16x64xf32>, vector<1x64xf32> -> vector<18x64xf32>
    %851 = vector.extract_strided_slice %850 {offsets = [0, 0], sizes = [16, 64], strides = [1, 1]} : vector<18x64xf32> to vector<16x64xf32>
    %852 = vector.extract_strided_slice %845 {offsets = [0, 0, 0], sizes = [1, 64, 32], strides = [1, 1, 1]} : vector<3x64x32xf32> to vector<1x64x32xf32>
    %853 = vector.shape_cast %852 : vector<1x64x32xf32> to vector<64x32xf32>
    %cst_361 = arith.constant dense<0.000000e+00> : vector<16x32xf32>
    %854 = tpu.matmul %851, %853, %cst_361 {dimension_numbers = #tpu.dot_dimension_numbers<[1], [0], [0], [1], [0, 0, 1, 1], [], []>} : vector<16x64xf32>, vector<64x32xf32>, vector<16x32xf32> -> vector<16x32xf32>
    %855 = vector.extract_strided_slice %850 {offsets = [1, 0], sizes = [16, 64], strides = [1, 1]} : vector<18x64xf32> to vector<16x64xf32>
    %856 = vector.extract_strided_slice %845 {offsets = [1, 0, 0], sizes = [1, 64, 32], strides = [1, 1, 1]} : vector<3x64x32xf32> to vector<1x64x32xf32>
    %857 = vector.shape_cast %856 : vector<1x64x32xf32> to vector<64x32xf32>
    %cst_362 = arith.constant dense<0.000000e+00> : vector<16x32xf32>
    %858 = tpu.matmul %855, %857, %cst_362 {dimension_numbers = #tpu.dot_dimension_numbers<[1], [0], [0], [1], [0, 0, 1, 1], [], []>} : vector<16x64xf32>, vector<64x32xf32>, vector<16x32xf32> -> vector<16x32xf32>
    %859 = arith.addf %854, %858 : vector<16x32xf32>
    %860 = vector.extract_strided_slice %850 {offsets = [2, 0], sizes = [16, 64], strides = [1, 1]} : vector<18x64xf32> to vector<16x64xf32>
    %861 = vector.extract_strided_slice %845 {offsets = [2, 0, 0], sizes = [1, 64, 32], strides = [1, 1, 1]} : vector<3x64x32xf32> to vector<1x64x32xf32>
    %862 = vector.shape_cast %861 : vector<1x64x32xf32> to vector<64x32xf32>
    %cst_363 = arith.constant dense<0.000000e+00> : vector<16x32xf32>
    %863 = tpu.matmul %860, %862, %cst_363 {dimension_numbers = #tpu.dot_dimension_numbers<[1], [0], [0], [1], [0, 0, 1, 1], [], []>} : vector<16x64xf32>, vector<64x32xf32>, vector<16x32xf32> -> vector<16x32xf32>
    %864 = arith.addf %859, %863 : vector<16x32xf32>
    %865 = vector.broadcast %847 : vector<1x32xf32> to vector<16x32xf32>
    %866 = arith.addf %864, %865 : vector<16x32xf32>
    %867 = vector.broadcast %1 : vector<16x1xf32> to vector<16x32xf32>
    %868 = arith.mulf %866, %867 : vector<16x32xf32>
    %869 = arith.addf %814, %868 : vector<16x32xf32>
    %c1_364 = arith.constant 1 : index
    %c0_365 = arith.constant 0 : index
    %c0_366 = arith.constant 0 : index
    %870 = vector.load %arg20[%c1_364, %c0_365, %c0_366] : memref<2x1x32xf32, #tpu.memory_space<vmem>>, vector<1x1x32xf32>
    %871 = vector.shape_cast %870 : vector<1x1x32xf32> to vector<1x32xf32>
    %c1_367 = arith.constant 1 : index
    %c0_368 = arith.constant 0 : index
    %c0_369 = arith.constant 0 : index
    %872 = vector.load %arg21[%c1_367, %c0_368, %c0_369] : memref<2x1x32xf32, #tpu.memory_space<vmem>>, vector<1x1x32xf32>
    %873 = vector.shape_cast %872 : vector<1x1x32xf32> to vector<1x32xf32>
    %cst_370 = arith.constant dense<0.000000e+00> : vector<16xf32>
    %874 = vector.multi_reduction <add>, %869, %cst_370 [1] : vector<16x32xf32> to vector<16xf32>
    %875 = vector.shape_cast %874 : vector<16xf32> to vector<16x1xf32>
    %cst_371 = arith.constant 3.200000e+01 : f32
    %876 = vector.broadcast %cst_371 : f32 to vector<16x1xf32>
    %877 = arith.divf %875, %876 : vector<16x1xf32>
    %878 = vector.broadcast %877 : vector<16x1xf32> to vector<16x32xf32>
    %879 = arith.subf %869, %878 : vector<16x32xf32>
    %880 = arith.mulf %879, %879 : vector<16x32xf32>
    %cst_372 = arith.constant dense<0.000000e+00> : vector<16xf32>
    %881 = vector.multi_reduction <add>, %880, %cst_372 [1] : vector<16x32xf32> to vector<16xf32>
    %882 = vector.shape_cast %881 : vector<16xf32> to vector<16x1xf32>
    %cst_373 = arith.constant 3.200000e+01 : f32
    %883 = vector.broadcast %cst_373 : f32 to vector<16x1xf32>
    %884 = arith.divf %882, %883 : vector<16x1xf32>
    %885 = vector.broadcast %877 : vector<16x1xf32> to vector<16x32xf32>
    %886 = arith.subf %869, %885 : vector<16x32xf32>
    %cst_374 = arith.constant 9.99999974E-6 : f32
    %887 = vector.broadcast %cst_374 : f32 to vector<16x1xf32>
    %888 = arith.addf %884, %887 : vector<16x1xf32>
    %889 = math.rsqrt %888 : vector<16x1xf32>
    %890 = vector.broadcast %889 : vector<16x1xf32> to vector<16x32xf32>
    %891 = arith.mulf %886, %890 : vector<16x32xf32>
    %892 = vector.broadcast %871 : vector<1x32xf32> to vector<16x32xf32>
    %893 = arith.mulf %891, %892 : vector<16x32xf32>
    %894 = vector.broadcast %873 : vector<1x32xf32> to vector<16x32xf32>
    %895 = arith.addf %893, %894 : vector<16x32xf32>
    %896 = vector.broadcast %1 : vector<16x1xf32> to vector<16x32xf32>
    %897 = arith.mulf %895, %896 : vector<16x32xf32>
    %c0_375 = arith.constant 0 : index
    %c0_376 = arith.constant 0 : index
    %c0_377 = arith.constant 0 : index
    %898 = vector.load %arg24[%c0_375, %c0_376, %c0_377] : memref<1x16x32xf32, #tpu.memory_space<vmem>>, vector<1x16x32xf32>
    %899 = vector.shape_cast %898 : vector<1x16x32xf32> to vector<16x32xf32>
    %900 = vector.shape_cast %897 : vector<16x32xf32> to vector<1x16x32xf32>
    tpu.vector_store %arg24[%c0_375, %c0_376, %c0_377], %900 {strides = array<i32>} : memref<1x16x32xf32, #tpu.memory_space<vmem>>, vector<1x16x32xf32>,
    %c0_378 = arith.constant 0 : index
    %c0_379 = arith.constant 0 : index
    %901 = vector.load %arg22[%c0_378, %c0_379] : memref<32x8xf32, #tpu.memory_space<vmem>>, vector<32x8xf32>
    %cst_380 = arith.constant dense<0.000000e+00> : vector<16x8xf32>
    %902 = tpu.matmul %897, %901, %cst_380 {dimension_numbers = #tpu.dot_dimension_numbers<[1], [0], [0], [1], [0, 0, 1, 1], [], []>} : vector<16x32xf32>, vector<32x8xf32>, vector<16x8xf32> -> vector<16x8xf32>
    %c0_381 = arith.constant 0 : index
    %c0_382 = arith.constant 0 : index
    %903 = vector.load %arg23[%c0_381, %c0_382] : memref<1x8xf32, #tpu.memory_space<vmem>>, vector<1x8xf32>
    %904 = vector.broadcast %903 : vector<1x8xf32> to vector<16x8xf32>
    %905 = arith.addf %902, %904 : vector<16x8xf32>
    %906 = vector.broadcast %1 : vector<16x1xf32> to vector<16x8xf32>
    %907 = arith.mulf %905, %906 : vector<16x8xf32>
    %c0_383 = arith.constant 0 : index
    %c0_384 = arith.constant 0 : index
    %c0_385 = arith.constant 0 : index
    %908 = vector.load %arg25[%c0_383, %c0_384, %c0_385] : memref<1x16x8xf32, #tpu.memory_space<vmem>>, vector<1x16x8xf32>
    %909 = vector.shape_cast %908 : vector<1x16x8xf32> to vector<16x8xf32>
    %910 = vector.shape_cast %907 : vector<16x8xf32> to vector<1x16x8xf32>
    tpu.vector_store %arg25[%c0_383, %c0_384, %c0_385], %910 {strides = array<i32>} : memref<1x16x8xf32, #tpu.memory_space<vmem>>, vector<1x16x8xf32>,
    return
  }
  func.func @transform_0(%arg0: i32) -> (i32, i32, i32) {
    %c0_i32 = arith.constant 0 : i32
    %c0_i32_0 = arith.constant 0 : i32
    %c0_i32_1 = arith.constant 0 : i32
    return %arg0, %c0_i32, %c0_i32_0 : i32, i32, i32
  }
  func.func @transform_1(%arg0: i32) -> (i32, i32, i32) {
    %c0_i32 = arith.constant 0 : i32
    %c0_i32_0 = arith.constant 0 : i32
    %c0_i32_1 = arith.constant 0 : i32
    return %arg0, %c0_i32, %c0_i32_0 : i32, i32, i32
  }
  func.func @transform_2(%arg0: i32) -> (i32, i32, i32) {
    %c0_i32 = arith.constant 0 : i32
    %c0_i32_0 = arith.constant 0 : i32
    %c0_i32_1 = arith.constant 0 : i32
    return %arg0, %c0_i32, %c0_i32_0 : i32, i32, i32
  }
  func.func @transform_3(%arg0: i32) -> (i32, i32, i32) {
    %c0_i32 = arith.constant 0 : i32
    %c0_i32_0 = arith.constant 0 : i32
    %c0_i32_1 = arith.constant 0 : i32
    %c0_i32_2 = arith.constant 0 : i32
    return %c0_i32, %c0_i32_0, %c0_i32_1 : i32, i32, i32
  }
  func.func @transform_4(%arg0: i32) -> (i32, i32, i32) {
    %c0_i32 = arith.constant 0 : i32
    %c0_i32_0 = arith.constant 0 : i32
    %c0_i32_1 = arith.constant 0 : i32
    %c0_i32_2 = arith.constant 0 : i32
    return %c0_i32, %c0_i32_0, %c0_i32_1 : i32, i32, i32
  }
  func.func @transform_5(%arg0: i32) -> (i32, i32, i32) {
    %c0_i32 = arith.constant 0 : i32
    %c0_i32_0 = arith.constant 0 : i32
    %c0_i32_1 = arith.constant 0 : i32
    %c0_i32_2 = arith.constant 0 : i32
    return %c0_i32, %c0_i32_0, %c0_i32_1 : i32, i32, i32
  }
  func.func @transform_6(%arg0: i32) -> (i32, i32, i32) {
    %c0_i32 = arith.constant 0 : i32
    %c0_i32_0 = arith.constant 0 : i32
    %c0_i32_1 = arith.constant 0 : i32
    %c0_i32_2 = arith.constant 0 : i32
    return %c0_i32, %c0_i32_0, %c0_i32_1 : i32, i32, i32
  }
  func.func @transform_7(%arg0: i32) -> (i32, i32, i32) {
    %c0_i32 = arith.constant 0 : i32
    %c0_i32_0 = arith.constant 0 : i32
    %c0_i32_1 = arith.constant 0 : i32
    %c0_i32_2 = arith.constant 0 : i32
    return %c0_i32, %c0_i32_0, %c0_i32_1 : i32, i32, i32
  }
  func.func @transform_8(%arg0: i32) -> (i32, i32, i32) {
    %c0_i32 = arith.constant 0 : i32
    %c0_i32_0 = arith.constant 0 : i32
    %c0_i32_1 = arith.constant 0 : i32
    %c0_i32_2 = arith.constant 0 : i32
    return %c0_i32, %c0_i32_0, %c0_i32_1 : i32, i32, i32
  }
  func.func @transform_9(%arg0: i32) -> (i32, i32, i32) {
    %c0_i32 = arith.constant 0 : i32
    %c0_i32_0 = arith.constant 0 : i32
    %c0_i32_1 = arith.constant 0 : i32
    %c0_i32_2 = arith.constant 0 : i32
    return %c0_i32, %c0_i32_0, %c0_i32_1 : i32, i32, i32
  }
  func.func @transform_10(%arg0: i32) -> (i32, i32, i32) {
    %c0_i32 = arith.constant 0 : i32
    %c0_i32_0 = arith.constant 0 : i32
    %c0_i32_1 = arith.constant 0 : i32
    %c0_i32_2 = arith.constant 0 : i32
    return %c0_i32, %c0_i32_0, %c0_i32_1 : i32, i32, i32
  }
  func.func @transform_11(%arg0: i32) -> (i32, i32, i32) {
    %c0_i32 = arith.constant 0 : i32
    %c0_i32_0 = arith.constant 0 : i32
    %c0_i32_1 = arith.constant 0 : i32
    %c0_i32_2 = arith.constant 0 : i32
    return %c0_i32, %c0_i32_0, %c0_i32_1 : i32, i32, i32
  }
  func.func @transform_12(%arg0: i32) -> (i32, i32, i32) {
    %c0_i32 = arith.constant 0 : i32
    %c0_i32_0 = arith.constant 0 : i32
    %c0_i32_1 = arith.constant 0 : i32
    %c0_i32_2 = arith.constant 0 : i32
    return %c0_i32, %c0_i32_0, %c0_i32_1 : i32, i32, i32
  }
  func.func @transform_13(%arg0: i32) -> (i32, i32, i32) {
    %c0_i32 = arith.constant 0 : i32
    %c0_i32_0 = arith.constant 0 : i32
    %c0_i32_1 = arith.constant 0 : i32
    %c0_i32_2 = arith.constant 0 : i32
    return %c0_i32, %c0_i32_0, %c0_i32_1 : i32, i32, i32
  }
  func.func @transform_14(%arg0: i32) -> (i32, i32, i32) {
    %c0_i32 = arith.constant 0 : i32
    %c0_i32_0 = arith.constant 0 : i32
    %c0_i32_1 = arith.constant 0 : i32
    %c0_i32_2 = arith.constant 0 : i32
    return %c0_i32, %c0_i32_0, %c0_i32_1 : i32, i32, i32
  }
  func.func @transform_15(%arg0: i32) -> (i32, i32, i32, i32) {
    %c0_i32 = arith.constant 0 : i32
    %c0_i32_0 = arith.constant 0 : i32
    %c0_i32_1 = arith.constant 0 : i32
    %c0_i32_2 = arith.constant 0 : i32
    %c0_i32_3 = arith.constant 0 : i32
    return %c0_i32, %c0_i32_0, %c0_i32_1, %c0_i32_2 : i32, i32, i32, i32
  }
  func.func @transform_16(%arg0: i32) -> (i32, i32, i32) {
    %c0_i32 = arith.constant 0 : i32
    %c0_i32_0 = arith.constant 0 : i32
    %c0_i32_1 = arith.constant 0 : i32
    %c0_i32_2 = arith.constant 0 : i32
    return %c0_i32, %c0_i32_0, %c0_i32_1 : i32, i32, i32
  }
  func.func @transform_17(%arg0: i32) -> (i32, i32, i32, i32) {
    %c0_i32 = arith.constant 0 : i32
    %c0_i32_0 = arith.constant 0 : i32
    %c0_i32_1 = arith.constant 0 : i32
    %c0_i32_2 = arith.constant 0 : i32
    %c0_i32_3 = arith.constant 0 : i32
    return %c0_i32, %c0_i32_0, %c0_i32_1, %c0_i32_2 : i32, i32, i32, i32
  }
  func.func @transform_18(%arg0: i32) -> (i32, i32, i32) {
    %c0_i32 = arith.constant 0 : i32
    %c0_i32_0 = arith.constant 0 : i32
    %c0_i32_1 = arith.constant 0 : i32
    %c0_i32_2 = arith.constant 0 : i32
    return %c0_i32, %c0_i32_0, %c0_i32_1 : i32, i32, i32
  }
  func.func @transform_19(%arg0: i32) -> (i32, i32, i32) {
    %c0_i32 = arith.constant 0 : i32
    %c0_i32_0 = arith.constant 0 : i32
    %c0_i32_1 = arith.constant 0 : i32
    %c0_i32_2 = arith.constant 0 : i32
    return %c0_i32, %c0_i32_0, %c0_i32_1 : i32, i32, i32
  }
  func.func @transform_20(%arg0: i32) -> (i32, i32, i32) {
    %c0_i32 = arith.constant 0 : i32
    %c0_i32_0 = arith.constant 0 : i32
    %c0_i32_1 = arith.constant 0 : i32
    %c0_i32_2 = arith.constant 0 : i32
    return %c0_i32, %c0_i32_0, %c0_i32_1 : i32, i32, i32
  }
  func.func @transform_21(%arg0: i32) -> (i32, i32) {
    %c0_i32 = arith.constant 0 : i32
    %c0_i32_0 = arith.constant 0 : i32
    %c0_i32_1 = arith.constant 0 : i32
    return %c0_i32, %c0_i32_0 : i32, i32
  }
  func.func @transform_22(%arg0: i32) -> (i32, i32) {
    %c0_i32 = arith.constant 0 : i32
    %c0_i32_0 = arith.constant 0 : i32
    %c0_i32_1 = arith.constant 0 : i32
    return %c0_i32, %c0_i32_0 : i32, i32
  }
  func.func @transform_23(%arg0: i32) -> (i32, i32, i32) {
    %c0_i32 = arith.constant 0 : i32
    %c0_i32_0 = arith.constant 0 : i32
    %c0_i32_1 = arith.constant 0 : i32
    return %arg0, %c0_i32, %c0_i32_0 : i32, i32, i32
  }
  func.func @transform_24(%arg0: i32) -> (i32, i32, i32) {
    %c0_i32 = arith.constant 0 : i32
    %c0_i32_0 = arith.constant 0 : i32
    %c0_i32_1 = arith.constant 0 : i32
    return %arg0, %c0_i32, %c0_i32_0 : i32, i32, i32
  }
}

</mosaic_0001>

<llo_original>
// kernel: forward.1
$region0: #{forward.1}
  #allocation0 [shape = 'u32[]', space=smem, size = 0x4, offset = 0x4, fixed_abs, tag = 'smem constant byte address 0x4 - core index']
  #allocation1 [shape = 'u32[144,128]{1,0:T(1,128)}', space=vmem, size = 0x12000, scoped, tag = 'internal scratch']
  %s0 = inlined_call_operand.vmem [shape: f32[2,16,32], index: 0, kind: input, shape index: {}]
  %s1 = inlined_call_operand.vmem [shape: f32[2,16,1], index: 1, kind: input, shape index: {}]
  %s2 = inlined_call_operand.vmem [shape: f32[2,1,16], index: 2, kind: input, shape index: {}]
  %s3 = inlined_call_operand.vmem [shape: f32[2,32,32], index: 3, kind: input, shape index: {}]
  %s4 = inlined_call_operand.vmem [shape: f32[2,1,32], index: 4, kind: input, shape index: {}]
  %s5 = inlined_call_operand.vmem [shape: f32[2,32,32], index: 5, kind: input, shape index: {}]
  %s6 = inlined_call_operand.vmem [shape: f32[2,1,32], index: 6, kind: input, shape index: {}]
  %s7 = inlined_call_operand.vmem [shape: f32[2,32,32], index: 7, kind: input, shape index: {}]
  %s8 = inlined_call_operand.vmem [shape: f32[2,1,32], index: 8, kind: input, shape index: {}]
  %s9 = inlined_call_operand.vmem [shape: f32[2,32,32], index: 9, kind: input, shape index: {}]
  %s10 = inlined_call_operand.vmem [shape: f32[2,1,32], index: 10, kind: input, shape index: {}]
  %s11 = inlined_call_operand.vmem [shape: f32[2,9,16], index: 11, kind: input, shape index: {}]
  %s12 = inlined_call_operand.vmem [shape: f32[2,9,16], index: 12, kind: input, shape index: {}]
  %s13 = inlined_call_operand.vmem [shape: f32[2,1,32], index: 13, kind: input, shape index: {}]
  %s14 = inlined_call_operand.vmem [shape: f32[2,1,32], index: 14, kind: input, shape index: {}]
  %s15 = inlined_call_operand.vmem [shape: f32[2,3,32,64], index: 15, kind: input, shape index: {}]
  %s16 = inlined_call_operand.vmem [shape: f32[2,1,64], index: 16, kind: input, shape index: {}]
  %s17 = inlined_call_operand.vmem [shape: f32[2,3,64,32], index: 17, kind: input, shape index: {}]
  %s18 = inlined_call_operand.vmem [shape: f32[2,1,32], index: 18, kind: input, shape index: {}]
  %s19 = inlined_call_operand.vmem [shape: f32[2,1,32], index: 19, kind: input, shape index: {}]
  %s20 = inlined_call_operand.vmem [shape: f32[2,1,32], index: 20, kind: input, shape index: {}]
  %s21 = inlined_call_operand.vmem [shape: f32[32,8], index: 21, kind: input, shape index: {}]
  %s22 = inlined_call_operand.vmem [shape: f32[1,8], index: 22, kind: input, shape index: {}]
  %s23 = inlined_call_operand.hbm [shape: f32[2,16,32], index: 23, kind: output, shape index: {0}]
  %s24 = inlined_call_operand.vmem [shape: f32[2,16,8], index: 24, kind: output, shape index: {1}]
  %25 = xla_tuple %s23, %s24
  %s26 = sld [smem:[#allocation0]]
  $region133: #{forward.1} parent=0
    _
  %s28 = ssub.s32 1, %s26
  %s29 = scalar_select 0, %s28, %s26
  $region1: #{forward.1} parent=0
    #allocation2 [shape = 'u8[16384]{0}', space=vmem, size = 0x4000, scoped, tag = 'output window, operand 0']
    #allocation3 [shape = 's32[2]{0}', space=sflag, size = 0x8, scoped, tag = 'scoped memory for forward.1']
    %30 = vsyncpa [#allocation3], 0
    %s31 = scalar_lea.sflag [#allocation3], 1
    %32 = vsyncpa %s31, 0
    loop: start=0, step=1, limit=4
    $region2: #{forward.1} parent=1 // loop_pre_header
      _
    $region3: #{forward.1} parent=1 // loop_header
      %s34 = sphi 0, %s38
      %p35 = scmp.ge.s32.totalorder %s34, 4
      %s44 = sphi 0, %s46
      %s47 = sphi 0, %s44
      %s48 = sphi 0, %s47
      %s64 = sphi 0, %s48
      %s70 = sphi 0, %s72
      %s73 = sphi 0, %s70
      %s74 = sphi 0, %s73
      %s90 = sphi 0, %s74
      %s96 = sphi 0, %s98
      %s99 = sphi 0, %s96
      %s100 = sphi 0, %s99
      %s116 = sphi 0, %s100
      %s120 = sphi 0, %s120
      %s122 = sphi 0, %s120
      %s123 = sphi 0, %s122
      %s137 = sphi 0, %s123
      %s141 = sphi 0, %s141
      %s143 = sphi 0, %s141
      %s144 = sphi 0, %s143
      %s158 = sphi 0, %s144
      %s162 = sphi 0, %s162
      %s164 = sphi 0, %s162
      %s165 = sphi 0, %s164
      %s179 = sphi 0, %s165
      %s183 = sphi 0, %s183
      %s185 = sphi 0, %s183
      %s186 = sphi 0, %s185
      %s200 = sphi 0, %s186
      %s204 = sphi 0, %s204
      %s206 = sphi 0, %s204
      %s207 = sphi 0, %s206
      %s221 = sphi 0, %s207
      %s225 = sphi 0, %s225
      %s227 = sphi 0, %s225
      %s228 = sphi 0, %s227
      %s242 = sphi 0, %s228
      %s246 = sphi 0, %s246
      %s248 = sphi 0, %s246
      %s249 = sphi 0, %s248
      %s263 = sphi 0, %s249
      %s267 = sphi 0, %s267
      %s269 = sphi 0, %s267
      %s270 = sphi 0, %s269
      %s284 = sphi 0, %s270
      %s288 = sphi 0, %s288
      %s290 = sphi 0, %s288
      %s291 = sphi 0, %s290
      %s305 = sphi 0, %s291
      %s309 = sphi 0, %s309
      %s311 = sphi 0, %s309
      %s312 = sphi 0, %s311
      %s326 = sphi 0, %s312
      %s330 = sphi 0, %s330
      %s332 = sphi 0, %s330
      %s333 = sphi 0, %s332
      %s347 = sphi 0, %s333
      %s351 = sphi 0, %s351
      %s353 = sphi 0, %s351
      %s354 = sphi 0, %s353
      %s368 = sphi 0, %s354
      %s372 = sphi 0, %s372
      %s374 = sphi 0, %s372
      %s375 = sphi 0, %s374
      %s389 = sphi 0, %s375
      %s393 = sphi 0, %s393
      %s395 = sphi 0, %s393
      %s396 = sphi 0, %s395
      %s410 = sphi 0, %s396
      %s414 = sphi 0, %s414
      %s416 = sphi 0, %s414
      %s417 = sphi 0, %s416
      %s431 = sphi 0, %s417
      %s435 = sphi 0, %s435
      %s437 = sphi 0, %s435
      %s438 = sphi 0, %s437
      %s452 = sphi 0, %s438
      %s456 = sphi 0, %s456
      %s458 = sphi 0, %s456
      %s459 = sphi 0, %s458
      %s473 = sphi 0, %s459
      %s477 = sphi 0, %s477
      %s479 = sphi 0, %s477
      %s480 = sphi 0, %s479
      %s494 = sphi 0, %s480
      %s498 = sphi 0, %s498
      %s500 = sphi 0, %s498
      %s501 = sphi 0, %s500
      %s515 = sphi 0, %s501
      %s519 = sphi 0, %s519
      %s521 = sphi 0, %s519
      %s522 = sphi 0, %s521
      %s536 = sphi 0, %s522
      %s542 = sphi 0, %s544
      %s545 = sphi 0, %s542
      %s546 = sphi 0, %s545
      %s562 = sphi 0, %s546
      %s568 = sphi 0, %s570
      %s571 = sphi 0, %s568
      %s572 = sphi 0, %s571
      %s588 = sphi 0, %s572
    $region4: #{forward.1} parent=1 // loop_header_branch
      %37 = sbr.rel (%p35) target = $region8
    $region5: #{forward.1} parent=1 // loop_body
      %s39 = ssub.s32 %s34, 1
      %s40 = ssub.s32 %s34, 2
      %s41 = sadd.s32 %s34, 1
      %s42 = ssub.s32 %s34, %s41
      %p43 = scmp.eq.s32.totalorder %s42, 0
      %s45 = sadd.s32 %s44, 1
      %s46 = scalar_select %p43, %s44, %s45
      %p49 = pneg %p43
      %p50 = scmp.eq.s32.totalorder %s34, 1
      %p51 = por %p49, %p50
      %p52 = scmp.ne.s32.totalorder %s44, %s47
      %p53 = scmp.eq.s32.totalorder %s34, 0
      %p54 = por %p52, %p53
      %p55 = scmp.ne.s32.totalorder %s44, %s47
      %p56 = scmp.eq.s32.totalorder %s39, 1
      %p57 = por %p55, %p56
      %p58 = scmp.ne.s32.totalorder %s47, %s48
      %p59 = scmp.eq.s32.totalorder %s39, 0
      %p60 = por %p58, %p59
      %p61 = scmp.ne.s32.totalorder %s47, %s48
      %p62 = scmp.eq.s32.totalorder %s40, 1
      %p63 = por %p61, %p62
      %p65 = scmp.ne.s32.totalorder %s48, %s64
      %p66 = scmp.eq.s32.totalorder %s40, 0
      %p67 = por %p65, %p66
      %s68 = ssub.s32 %s34, %s41
      %p69 = scmp.eq.s32.totalorder %s68, 0
      %s71 = sadd.s32 %s70, 1
      %s72 = scalar_select %p69, %s70, %s71
      %p75 = pneg %p69
      %p76 = scmp.eq.s32.totalorder %s34, 1
      %p77 = por %p75, %p76
      %p78 = scmp.ne.s32.totalorder %s70, %s73
      %p79 = scmp.eq.s32.totalorder %s34, 0
      %p80 = por %p78, %p79
      %p81 = scmp.ne.s32.totalorder %s70, %s73
      %p82 = scmp.eq.s32.totalorder %s39, 1
      %p83 = por %p81, %p82
      %p84 = scmp.ne.s32.totalorder %s73, %s74
      %p85 = scmp.eq.s32.totalorder %s39, 0
      %p86 = por %p84, %p85
      %p87 = scmp.ne.s32.totalorder %s73, %s74
      %p88 = scmp.eq.s32.totalorder %s40, 1
      %p89 = por %p87, %p88
      %p91 = scmp.ne.s32.totalorder %s74, %s90
      %p92 = scmp.eq.s32.totalorder %s40, 0
      %p93 = por %p91, %p92
      %s94 = ssub.s32 %s34, %s41
      %p95 = scmp.eq.s32.totalorder %s94, 0
      %s97 = sadd.s32 %s96, 1
      %s98 = scalar_select %p95, %s96, %s97
      %p101 = pneg %p95
      %p102 = scmp.eq.s32.totalorder %s34, 1
      %p103 = por %p101, %p102
      %p104 = scmp.ne.s32.totalorder %s96, %s99
      %p105 = scmp.eq.s32.totalorder %s34, 0
      %p106 = por %p104, %p105
      %p107 = scmp.ne.s32.totalorder %s96, %s99
      %p108 = scmp.eq.s32.totalorder %s39, 1
      %p109 = por %p107, %p108
      %p110 = scmp.ne.s32.totalorder %s99, %s100
      %p111 = scmp.eq.s32.totalorder %s39, 0
      %p112 = por %p110, %p111
      %p113 = scmp.ne.s32.totalorder %s99, %s100
      %p114 = scmp.eq.s32.totalorder %s40, 1
      %p115 = por %p113, %p114
      %p117 = scmp.ne.s32.totalorder %s100, %s116
      %p118 = scmp.eq.s32.totalorder %s40, 0
      %p119 = por %p117, %p118
      %s121 = sadd.s32 %s120, 1
      %p124 = scmp.eq.s32.totalorder %s34, 1
      %p125 = scmp.ne.s32.totalorder %s120, %s122
      %p126 = scmp.eq.s32.totalorder %s34, 0
      %p127 = por %p125, %p126
      %p128 = scmp.ne.s32.totalorder %s120, %s122
      %p129 = scmp.eq.s32.totalorder %s39, 1
      %p130 = por %p128, %p129
      %p131 = scmp.ne.s32.totalorder %s122, %s123
      %p132 = scmp.eq.s32.totalorder %s39, 0
      %p133 = por %p131, %p132
      %p134 = scmp.ne.s32.totalorder %s122, %s123
      %p135 = scmp.eq.s32.totalorder %s40, 1
      %p136 = por %p134, %p135
      %p138 = scmp.ne.s32.totalorder %s123, %s137
      %p139 = scmp.eq.s32.totalorder %s40, 0
      %p140 = por %p138, %p139
      %s142 = sadd.s32 %s141, 1
      %p145 = scmp.eq.s32.totalorder %s34, 1
      %p146 = scmp.ne.s32.totalorder %s141, %s143
      %p147 = scmp.eq.s32.totalorder %s34, 0
      %p148 = por %p146, %p147
      %p149 = scmp.ne.s32.totalorder %s141, %s143
      %p150 = scmp.eq.s32.totalorder %s39, 1
      %p151 = por %p149, %p150
      %p152 = scmp.ne.s32.totalorder %s143, %s144
      %p153 = scmp.eq.s32.totalorder %s39, 0
      %p154 = por %p152, %p153
      %p155 = scmp.ne.s32.totalorder %s143, %s144
      %p156 = scmp.eq.s32.totalorder %s40, 1
      %p157 = por %p155, %p156
      %p159 = scmp.ne.s32.totalorder %s144, %s158
      %p160 = scmp.eq.s32.totalorder %s40, 0
      %p161 = por %p159, %p160
      %s163 = sadd.s32 %s162, 1
      %p166 = scmp.eq.s32.totalorder %s34, 1
      %p167 = scmp.ne.s32.totalorder %s162, %s164
      %p168 = scmp.eq.s32.totalorder %s34, 0
      %p169 = por %p167, %p168
      %p170 = scmp.ne.s32.totalorder %s162, %s164
      %p171 = scmp.eq.s32.totalorder %s39, 1
      %p172 = por %p170, %p171
      %p173 = scmp.ne.s32.totalorder %s164, %s165
      %p174 = scmp.eq.s32.totalorder %s39, 0
      %p175 = por %p173, %p174
      %p176 = scmp.ne.s32.totalorder %s164, %s165
      %p177 = scmp.eq.s32.totalorder %s40, 1
      %p178 = por %p176, %p177
      %p180 = scmp.ne.s32.totalorder %s165, %s179
      %p181 = scmp.eq.s32.totalorder %s40, 0
      %p182 = por %p180, %p181
      %s184 = sadd.s32 %s183, 1
      %p187 = scmp.eq.s32.totalorder %s34, 1
      %p188 = scmp.ne.s32.totalorder %s183, %s185
      %p189 = scmp.eq.s32.totalorder %s34, 0
      %p190 = por %p188, %p189
      %p191 = scmp.ne.s32.totalorder %s183, %s185
      %p192 = scmp.eq.s32.totalorder %s39, 1
      %p193 = por %p191, %p192
      %p194 = scmp.ne.s32.totalorder %s185, %s186
      %p195 = scmp.eq.s32.totalorder %s39, 0
      %p196 = por %p194, %p195
      %p197 = scmp.ne.s32.totalorder %s185, %s186
      %p198 = scmp.eq.s32.totalorder %s40, 1
      %p199 = por %p197, %p198
      %p201 = scmp.ne.s32.totalorder %s186, %s200
      %p202 = scmp.eq.s32.totalorder %s40, 0
      %p203 = por %p201, %p202
      %s205 = sadd.s32 %s204, 1
      %p208 = scmp.eq.s32.totalorder %s34, 1
      %p209 = scmp.ne.s32.totalorder %s204, %s206
      %p210 = scmp.eq.s32.totalorder %s34, 0
      %p211 = por %p209, %p210
      %p212 = scmp.ne.s32.totalorder %s204, %s206
      %p213 = scmp.eq.s32.totalorder %s39, 1
      %p214 = por %p212, %p213
      %p215 = scmp.ne.s32.totalorder %s206, %s207
      %p216 = scmp.eq.s32.totalorder %s39, 0
      %p217 = por %p215, %p216
      %p218 = scmp.ne.s32.totalorder %s206, %s207
      %p219 = scmp.eq.s32.totalorder %s40, 1
      %p220 = por %p218, %p219
      %p222 = scmp.ne.s32.totalorder %s207, %s221
      %p223 = scmp.eq.s32.totalorder %s40, 0
      %p224 = por %p222, %p223
      %s226 = sadd.s32 %s225, 1
      %p229 = scmp.eq.s32.totalorder %s34, 1
      %p230 = scmp.ne.s32.totalorder %s225, %s227
      %p231 = scmp.eq.s32.totalorder %s34, 0
      %p232 = por %p230, %p231
      %p233 = scmp.ne.s32.totalorder %s225, %s227
      %p234 = scmp.eq.s32.totalorder %s39, 1
      %p235 = por %p233, %p234
      %p236 = scmp.ne.s32.totalorder %s227, %s228
      %p237 = scmp.eq.s32.totalorder %s39, 0
      %p238 = por %p236, %p237
      %p239 = scmp.ne.s32.totalorder %s227, %s228
      %p240 = scmp.eq.s32.totalorder %s40, 1
      %p241 = por %p239, %p240
      %p243 = scmp.ne.s32.totalorder %s228, %s242
      %p244 = scmp.eq.s32.totalorder %s40, 0
      %p245 = por %p243, %p244
      %s247 = sadd.s32 %s246, 1
      %p250 = scmp.eq.s32.totalorder %s34, 1
      %p251 = scmp.ne.s32.totalorder %s246, %s248
      %p252 = scmp.eq.s32.totalorder %s34, 0
      %p253 = por %p251, %p252
      %p254 = scmp.ne.s32.totalorder %s246, %s248
      %p255 = scmp.eq.s32.totalorder %s39, 1
      %p256 = por %p254, %p255
      %p257 = scmp.ne.s32.totalorder %s248, %s249
      %p258 = scmp.eq.s32.totalorder %s39, 0
      %p259 = por %p257, %p258
      %p260 = scmp.ne.s32.totalorder %s248, %s249
      %p261 = scmp.eq.s32.totalorder %s40, 1
      %p262 = por %p260, %p261
      %p264 = scmp.ne.s32.totalorder %s249, %s263
      %p265 = scmp.eq.s32.totalorder %s40, 0
      %p266 = por %p264, %p265
      %s268 = sadd.s32 %s267, 1
      %p271 = scmp.eq.s32.totalorder %s34, 1
      %p272 = scmp.ne.s32.totalorder %s267, %s269
      %p273 = scmp.eq.s32.totalorder %s34, 0
      %p274 = por %p272, %p273
      %p275 = scmp.ne.s32.totalorder %s267, %s269
      %p276 = scmp.eq.s32.totalorder %s39, 1
      %p277 = por %p275, %p276
      %p278 = scmp.ne.s32.totalorder %s269, %s270
      %p279 = scmp.eq.s32.totalorder %s39, 0
      %p280 = por %p278, %p279
      %p281 = scmp.ne.s32.totalorder %s269, %s270
      %p282 = scmp.eq.s32.totalorder %s40, 1
      %p283 = por %p281, %p282
      %p285 = scmp.ne.s32.totalorder %s270, %s284
      %p286 = scmp.eq.s32.totalorder %s40, 0
      %p287 = por %p285, %p286
      %s289 = sadd.s32 %s288, 1
      %p292 = scmp.eq.s32.totalorder %s34, 1
      %p293 = scmp.ne.s32.totalorder %s288, %s290
      %p294 = scmp.eq.s32.totalorder %s34, 0
      %p295 = por %p293, %p294
      %p296 = scmp.ne.s32.totalorder %s288, %s290
      %p297 = scmp.eq.s32.totalorder %s39, 1
      %p298 = por %p296, %p297
      %p299 = scmp.ne.s32.totalorder %s290, %s291
      %p300 = scmp.eq.s32.totalorder %s39, 0
      %p301 = por %p299, %p300
      %p302 = scmp.ne.s32.totalorder %s290, %s291
      %p303 = scmp.eq.s32.totalorder %s40, 1
      %p304 = por %p302, %p303
      %p306 = scmp.ne.s32.totalorder %s291, %s305
      %p307 = scmp.eq.s32.totalorder %s40, 0
      %p308 = por %p306, %p307
      %s310 = sadd.s32 %s309, 1
      %p313 = scmp.eq.s32.totalorder %s34, 1
      %p314 = scmp.ne.s32.totalorder %s309, %s311
      %p315 = scmp.eq.s32.totalorder %s34, 0
      %p316 = por %p314, %p315
      %p317 = scmp.ne.s32.totalorder %s309, %s311
      %p318 = scmp.eq.s32.totalorder %s39, 1
      %p319 = por %p317, %p318
      %p320 = scmp.ne.s32.totalorder %s311, %s312
      %p321 = scmp.eq.s32.totalorder %s39, 0
      %p322 = por %p320, %p321
      %p323 = scmp.ne.s32.totalorder %s311, %s312
      %p324 = scmp.eq.s32.totalorder %s40, 1
      %p325 = por %p323, %p324
      %p327 = scmp.ne.s32.totalorder %s312, %s326
      %p328 = scmp.eq.s32.totalorder %s40, 0
      %p329 = por %p327, %p328
      %s331 = sadd.s32 %s330, 1
      %p334 = scmp.eq.s32.totalorder %s34, 1
      %p335 = scmp.ne.s32.totalorder %s330, %s332
      %p336 = scmp.eq.s32.totalorder %s34, 0
      %p337 = por %p335, %p336
      %p338 = scmp.ne.s32.totalorder %s330, %s332
      %p339 = scmp.eq.s32.totalorder %s39, 1
      %p340 = por %p338, %p339
      %p341 = scmp.ne.s32.totalorder %s332, %s333
      %p342 = scmp.eq.s32.totalorder %s39, 0
      %p343 = por %p341, %p342
      %p344 = scmp.ne.s32.totalorder %s332, %s333
      %p345 = scmp.eq.s32.totalorder %s40, 1
      %p346 = por %p344, %p345
      %p348 = scmp.ne.s32.totalorder %s333, %s347
      %p349 = scmp.eq.s32.totalorder %s40, 0
      %p350 = por %p348, %p349
      %s352 = sadd.s32 %s351, 1
      %p355 = scmp.eq.s32.totalorder %s34, 1
      %p356 = scmp.ne.s32.totalorder %s351, %s353
      %p357 = scmp.eq.s32.totalorder %s34, 0
      %p358 = por %p356, %p357
      %p359 = scmp.ne.s32.totalorder %s351, %s353
      %p360 = scmp.eq.s32.totalorder %s39, 1
      %p361 = por %p359, %p360
      %p362 = scmp.ne.s32.totalorder %s353, %s354
      %p363 = scmp.eq.s32.totalorder %s39, 0
      %p364 = por %p362, %p363
      %p365 = scmp.ne.s32.totalorder %s353, %s354
      %p366 = scmp.eq.s32.totalorder %s40, 1
      %p367 = por %p365, %p366
      %p369 = scmp.ne.s32.totalorder %s354, %s368
      %p370 = scmp.eq.s32.totalorder %s40, 0
      %p371 = por %p369, %p370
      %s373 = sadd.s32 %s372, 1
      %p376 = scmp.eq.s32.totalorder %s34, 1
      %p377 = scmp.ne.s32.totalorder %s372, %s374
      %p378 = scmp.eq.s32.totalorder %s34, 0
      %p379 = por %p377, %p378
      %p380 = scmp.ne.s32.totalorder %s372, %s374
      %p381 = scmp.eq.s32.totalorder %s39, 1
      %p382 = por %p380, %p381
      %p383 = scmp.ne.s32.totalorder %s374, %s375
      %p384 = scmp.eq.s32.totalorder %s39, 0
      %p385 = por %p383, %p384
      %p386 = scmp.ne.s32.totalorder %s374, %s375
      %p387 = scmp.eq.s32.totalorder %s40, 1
      %p388 = por %p386, %p387
      %p390 = scmp.ne.s32.totalorder %s375, %s389
      %p391 = scmp.eq.s32.totalorder %s40, 0
      %p392 = por %p390, %p391
      %s394 = sadd.s32 %s393, 1
      %p397 = scmp.eq.s32.totalorder %s34, 1
      %p398 = scmp.ne.s32.totalorder %s393, %s395
      %p399 = scmp.eq.s32.totalorder %s34, 0
      %p400 = por %p398, %p399
      %p401 = scmp.ne.s32.totalorder %s393, %s395
      %p402 = scmp.eq.s32.totalorder %s39, 1
      %p403 = por %p401, %p402
      %p404 = scmp.ne.s32.totalorder %s395, %s396
      %p405 = scmp.eq.s32.totalorder %s39, 0
      %p406 = por %p404, %p405
      %p407 = scmp.ne.s32.totalorder %s395, %s396
      %p408 = scmp.eq.s32.totalorder %s40, 1
      %p409 = por %p407, %p408
      %p411 = scmp.ne.s32.totalorder %s396, %s410
      %p412 = scmp.eq.s32.totalorder %s40, 0
      %p413 = por %p411, %p412
      %s415 = sadd.s32 %s414, 1
      %p418 = scmp.eq.s32.totalorder %s34, 1
      %p419 = scmp.ne.s32.totalorder %s414, %s416
      %p420 = scmp.eq.s32.totalorder %s34, 0
      %p421 = por %p419, %p420
      %p422 = scmp.ne.s32.totalorder %s414, %s416
      %p423 = scmp.eq.s32.totalorder %s39, 1
      %p424 = por %p422, %p423
      %p425 = scmp.ne.s32.totalorder %s416, %s417
      %p426 = scmp.eq.s32.totalorder %s39, 0
      %p427 = por %p425, %p426
      %p428 = scmp.ne.s32.totalorder %s416, %s417
      %p429 = scmp.eq.s32.totalorder %s40, 1
      %p430 = por %p428, %p429
      %p432 = scmp.ne.s32.totalorder %s417, %s431
      %p433 = scmp.eq.s32.totalorder %s40, 0
      %p434 = por %p432, %p433
      %s436 = sadd.s32 %s435, 1
      %p439 = scmp.eq.s32.totalorder %s34, 1
      %p440 = scmp.ne.s32.totalorder %s435, %s437
      %p441 = scmp.eq.s32.totalorder %s34, 0
      %p442 = por %p440, %p441
      %p443 = scmp.ne.s32.totalorder %s435, %s437
      %p444 = scmp.eq.s32.totalorder %s39, 1
      %p445 = por %p443, %p444
      %p446 = scmp.ne.s32.totalorder %s437, %s438
      %p447 = scmp.eq.s32.totalorder %s39, 0
      %p448 = por %p446, %p447
      %p449 = scmp.ne.s32.totalorder %s437, %s438
      %p450 = scmp.eq.s32.totalorder %s40, 1
      %p451 = por %p449, %p450
      %p453 = scmp.ne.s32.totalorder %s438, %s452
      %p454 = scmp.eq.s32.totalorder %s40, 0
      %p455 = por %p453, %p454
      %s457 = sadd.s32 %s456, 1
      %p460 = scmp.eq.s32.totalorder %s34, 1
      %p461 = scmp.ne.s32.totalorder %s456, %s458
      %p462 = scmp.eq.s32.totalorder %s34, 0
      %p463 = por %p461, %p462
      %p464 = scmp.ne.s32.totalorder %s456, %s458
      %p465 = scmp.eq.s32.totalorder %s39, 1
      %p466 = por %p464, %p465
      %p467 = scmp.ne.s32.totalorder %s458, %s459
      %p468 = scmp.eq.s32.totalorder %s39, 0
      %p469 = por %p467, %p468
      %p470 = scmp.ne.s32.totalorder %s458, %s459
      %p471 = scmp.eq.s32.totalorder %s40, 1
      %p472 = por %p470, %p471
      %p474 = scmp.ne.s32.totalorder %s459, %s473
      %p475 = scmp.eq.s32.totalorder %s40, 0
      %p476 = por %p474, %p475
      %s478 = sadd.s32 %s477, 1
      %p481 = scmp.eq.s32.totalorder %s34, 1
      %p482 = scmp.ne.s32.totalorder %s477, %s479
      %p483 = scmp.eq.s32.totalorder %s34, 0
      %p484 = por %p482, %p483
      %p485 = scmp.ne.s32.totalorder %s477, %s479
      %p486 = scmp.eq.s32.totalorder %s39, 1
      %p487 = por %p485, %p486
      %p488 = scmp.ne.s32.totalorder %s479, %s480
      %p489 = scmp.eq.s32.totalorder %s39, 0
      %p490 = por %p488, %p489
      %p491 = scmp.ne.s32.totalorder %s479, %s480
      %p492 = scmp.eq.s32.totalorder %s40, 1
      %p493 = por %p491, %p492
      %p495 = scmp.ne.s32.totalorder %s480, %s494
      %p496 = scmp.eq.s32.totalorder %s40, 0
      %p497 = por %p495, %p496
      %s499 = sadd.s32 %s498, 1
      %p502 = scmp.eq.s32.totalorder %s34, 1
      %p503 = scmp.ne.s32.totalorder %s498, %s500
      %p504 = scmp.eq.s32.totalorder %s34, 0
      %p505 = por %p503, %p504
      %p506 = scmp.ne.s32.totalorder %s498, %s500
      %p507 = scmp.eq.s32.totalorder %s39, 1
      %p508 = por %p506, %p507
      %p509 = scmp.ne.s32.totalorder %s500, %s501
      %p510 = scmp.eq.s32.totalorder %s39, 0
      %p511 = por %p509, %p510
      %p512 = scmp.ne.s32.totalorder %s500, %s501
      %p513 = scmp.eq.s32.totalorder %s40, 1
      %p514 = por %p512, %p513
      %p516 = scmp.ne.s32.totalorder %s501, %s515
      %p517 = scmp.eq.s32.totalorder %s40, 0
      %p518 = por %p516, %p517
      %s520 = sadd.s32 %s519, 1
      %p523 = scmp.eq.s32.totalorder %s34, 1
      %p524 = scmp.ne.s32.totalorder %s519, %s521
      %p525 = scmp.eq.s32.totalorder %s34, 0
      %p526 = por %p524, %p525
      %p527 = scmp.ne.s32.totalorder %s519, %s521
      %p528 = scmp.eq.s32.totalorder %s39, 1
      %p529 = por %p527, %p528
      %p530 = scmp.ne.s32.totalorder %s521, %s522
      %p531 = scmp.eq.s32.totalorder %s39, 0
      %p532 = por %p530, %p531
      %p533 = scmp.ne.s32.totalorder %s521, %s522
      %p534 = scmp.eq.s32.totalorder %s40, 1
      %p535 = por %p533, %p534
      %p537 = scmp.ne.s32.totalorder %s522, %s536
      %p538 = scmp.eq.s32.totalorder %s40, 0
      %p539 = por %p537, %p538
      %s540 = ssub.s32 %s34, %s41
      %p541 = scmp.eq.s32.totalorder %s540, 0
      %s543 = sadd.s32 %s542, 1
      %s544 = scalar_select %p541, %s542, %s543
      %p547 = pneg %p541
      %p548 = scmp.eq.s32.totalorder %s34, 1
      %p549 = por %p547, %p548
      %p550 = scmp.ne.s32.totalorder %s542, %s545
      %p551 = scmp.eq.s32.totalorder %s34, 0
      %p552 = por %p550, %p551
      %p553 = scmp.ne.s32.totalorder %s542, %s545
      %p554 = scmp.eq.s32.totalorder %s39, 1
      %p555 = por %p553, %p554
      %p556 = scmp.ne.s32.totalorder %s545, %s546
      %p557 = scmp.eq.s32.totalorder %s39, 0
      %p558 = por %p556, %p557
      %p559 = scmp.ne.s32.totalorder %s545, %s546
      %p560 = scmp.eq.s32.totalorder %s40, 1
      %p561 = por %p559, %p560
      %p563 = scmp.ne.s32.totalorder %s546, %s562
      %p564 = scmp.eq.s32.totalorder %s40, 0
      %p565 = por %p563, %p564
      %s566 = ssub.s32 %s34, %s41
      %p567 = scmp.eq.s32.totalorder %s566, 0
      %s569 = sadd.s32 %s568, 1
      %s570 = scalar_select %p567, %s568, %s569
      %p573 = pneg %p567
      %p574 = scmp.eq.s32.totalorder %s34, 1
      %p575 = por %p573, %p574
      %p576 = scmp.ne.s32.totalorder %s568, %s571
      %p577 = scmp.eq.s32.totalorder %s34, 0
      %p578 = por %p576, %p577
      %p579 = scmp.ne.s32.totalorder %s568, %s571
      %p580 = scmp.eq.s32.totalorder %s39, 1
      %p581 = por %p579, %p580
      %p582 = scmp.ne.s32.totalorder %s571, %s572
      %p583 = scmp.eq.s32.totalorder %s39, 0
      %p584 = por %p582, %p583
      %p585 = scmp.ne.s32.totalorder %s571, %s572
      %p586 = scmp.eq.s32.totalorder %s40, 1
      %p587 = por %p585, %p586
      %p589 = scmp.ne.s32.totalorder %s572, %s588
      %p590 = scmp.eq.s32.totalorder %s40, 0
      %p591 = por %p589, %p590
      %p592 = scmp.le.s32.totalorder 1, %s34
      %p593 = scmp.lt.s32.totalorder %s34, 3
      %p594 = pnand %p592, %p593
      %p595 = pneg %p594
      // Predicated region
      $region9: #{forward.1} parent=5 // pred_check
        _
      $region10: #{forward.1} parent=5 // pred_check_branch
        %597 = sbr.rel (%p594) target = $region12
      $region11: #{forward.1} parent=5 // pred_region
        %s598 = ssub.s32 %s34, 1
        // Predicated region
        $region13: #{forward.1} parent=11 // pred_check
          %p599 = pneg %p133
        $region14: #{forward.1} parent=11 // pred_check_branch
          %601 = sbr.rel (%p599) target = $region16
        $region15: #{forward.1} parent=11 // pred_region
          _
        $region16: #{forward.1} parent=11 // pred_fallthru
          _
        // Predicated region
        $region17: #{forward.1} parent=11 // pred_check
          %p602 = pneg %p154
        $region18: #{forward.1} parent=11 // pred_check_branch
          %604 = sbr.rel (%p602) target = $region20
        $region19: #{forward.1} parent=11 // pred_region
          _
        $region20: #{forward.1} parent=11 // pred_fallthru
          _
        // Predicated region
        $region21: #{forward.1} parent=11 // pred_check
          %p605 = pneg %p175
        $region22: #{forward.1} parent=11 // pred_check_branch
          %607 = sbr.rel (%p605) target = $region24
        $region23: #{forward.1} parent=11 // pred_region
          _
        $region24: #{forward.1} parent=11 // pred_fallthru
          _
        // Predicated region
        $region25: #{forward.1} parent=11 // pred_check
          %p608 = pneg %p196
        $region26: #{forward.1} parent=11 // pred_check_branch
          %610 = sbr.rel (%p608) target = $region28
        $region27: #{forward.1} parent=11 // pred_region
          _
        $region28: #{forward.1} parent=11 // pred_fallthru
          _
        // Predicated region
        $region29: #{forward.1} parent=11 // pred_check
          %p611 = pneg %p217
        $region30: #{forward.1} parent=11 // pred_check_branch
          %613 = sbr.rel (%p611) target = $region32
        $region31: #{forward.1} parent=11 // pred_region
          _
        $region32: #{forward.1} parent=11 // pred_fallthru
          _
        // Predicated region
        $region33: #{forward.1} parent=11 // pred_check
          %p614 = pneg %p238
        $region34: #{forward.1} parent=11 // pred_check_branch
          %616 = sbr.rel (%p614) target = $region36
        $region35: #{forward.1} parent=11 // pred_region
          _
        $region36: #{forward.1} parent=11 // pred_fallthru
          _
        // Predicated region
        $region37: #{forward.1} parent=11 // pred_check
          %p617 = pneg %p259
        $region38: #{forward.1} parent=11 // pred_check_branch
          %619 = sbr.rel (%p617) target = $region40
        $region39: #{forward.1} parent=11 // pred_region
          _
        $region40: #{forward.1} parent=11 // pred_fallthru
          _
        // Predicated region
        $region41: #{forward.1} parent=11 // pred_check
          %p620 = pneg %p280
        $region42: #{forward.1} parent=11 // pred_check_branch
          %622 = sbr.rel (%p620) target = $region44
        $region43: #{forward.1} parent=11 // pred_region
          _
        $region44: #{forward.1} parent=11 // pred_fallthru
          _
        // Predicated region
        $region45: #{forward.1} parent=11 // pred_check
          %p623 = pneg %p301
        $region46: #{forward.1} parent=11 // pred_check_branch
          %625 = sbr.rel (%p623) target = $region48
        $region47: #{forward.1} parent=11 // pred_region
          _
        $region48: #{forward.1} parent=11 // pred_fallthru
          _
        // Predicated region
        $region49: #{forward.1} parent=11 // pred_check
          %p626 = pneg %p322
        $region50: #{forward.1} parent=11 // pred_check_branch
          %628 = sbr.rel (%p626) target = $region52
        $region51: #{forward.1} parent=11 // pred_region
          _
        $region52: #{forward.1} parent=11 // pred_fallthru
          _
        // Predicated region
        $region53: #{forward.1} parent=11 // pred_check
          %p629 = pneg %p343
        $region54: #{forward.1} parent=11 // pred_check_branch
          %631 = sbr.rel (%p629) target = $region56
        $region55: #{forward.1} parent=11 // pred_region
          _
        $region56: #{forward.1} parent=11 // pred_fallthru
          _
        // Predicated region
        $region57: #{forward.1} parent=11 // pred_check
          %p632 = pneg %p364
        $region58: #{forward.1} parent=11 // pred_check_branch
          %634 = sbr.rel (%p632) target = $region60
        $region59: #{forward.1} parent=11 // pred_region
          _
        $region60: #{forward.1} parent=11 // pred_fallthru
          _
        // Predicated region
        $region61: #{forward.1} parent=11 // pred_check
          %p635 = pneg %p385
        $region62: #{forward.1} parent=11 // pred_check_branch
          %637 = sbr.rel (%p635) target = $region64
        $region63: #{forward.1} parent=11 // pred_region
          _
        $region64: #{forward.1} parent=11 // pred_fallthru
          _
        // Predicated region
        $region65: #{forward.1} parent=11 // pred_check
          %p638 = pneg %p406
        $region66: #{forward.1} parent=11 // pred_check_branch
          %640 = sbr.rel (%p638) target = $region68
        $region67: #{forward.1} parent=11 // pred_region
          _
        $region68: #{forward.1} parent=11 // pred_fallthru
          _
        // Predicated region
        $region69: #{forward.1} parent=11 // pred_check
          %p641 = pneg %p427
        $region70: #{forward.1} parent=11 // pred_check_branch
          %643 = sbr.rel (%p641) target = $region72
        $region71: #{forward.1} parent=11 // pred_region
          _
        $region72: #{forward.1} parent=11 // pred_fallthru
          _
        // Predicated region
        $region73: #{forward.1} parent=11 // pred_check
          %p644 = pneg %p448
        $region74: #{forward.1} parent=11 // pred_check_branch
          %646 = sbr.rel (%p644) target = $region76
        $region75: #{forward.1} parent=11 // pred_region
          _
        $region76: #{forward.1} parent=11 // pred_fallthru
          _
        // Predicated region
        $region77: #{forward.1} parent=11 // pred_check
          %p647 = pneg %p469
        $region78: #{forward.1} parent=11 // pred_check_branch
          %649 = sbr.rel (%p647) target = $region80
        $region79: #{forward.1} parent=11 // pred_region
          _
        $region80: #{forward.1} parent=11 // pred_fallthru
          _
        // Predicated region
        $region81: #{forward.1} parent=11 // pred_check
          %p650 = pneg %p490
        $region82: #{forward.1} parent=11 // pred_check_branch
          %652 = sbr.rel (%p650) target = $region84
        $region83: #{forward.1} parent=11 // pred_region
          _
        $region84: #{forward.1} parent=11 // pred_fallthru
          _
        // Predicated region
        $region85: #{forward.1} parent=11 // pred_check
          %p653 = pneg %p511
        $region86: #{forward.1} parent=11 // pred_check_branch
          %655 = sbr.rel (%p653) target = $region88
        $region87: #{forward.1} parent=11 // pred_region
          _
        $region88: #{forward.1} parent=11 // pred_fallthru
          _
        // Predicated region
        $region89: #{forward.1} parent=11 // pred_check
          %p656 = pneg %p532
        $region90: #{forward.1} parent=11 // pred_check_branch
          %658 = sbr.rel (%p656) target = $region92
        $region91: #{forward.1} parent=11 // pred_region
          _
        $region92: #{forward.1} parent=11 // pred_fallthru
          _
      $region12: #{forward.1} parent=5 // pred_fallthru
        _
      %p659 = scmp.lt.s32.totalorder %s34, 2
      // Predicated region
      $region93: #{forward.1} parent=5 // pred_check
        %p660 = pneg %p659
      $region94: #{forward.1} parent=5 // pred_check_branch
        %662 = sbr.rel (%p660) target = $region96
      $region95: #{forward.1} parent=5 // pred_region
        // Predicated region
        $region97: #{forward.1} parent=95 // pred_check
          %p663 = pneg %p54
        $region98: #{forward.1} parent=95 // pred_check_branch
          %665 = sbr.rel (%p663) target = $region100
        $region99: #{forward.1} parent=95 // pred_region
          %p666 = scmp.lt.s32.totalorder %s34, 1
          %s667 = scalar_select %p666, %s34, 1
          %s668 = smul.addr %s667, 2
          %s669 = smul.addr %s668, 8
          %s670 = scalar_lea.vmem %s0, %s669
        $region100: #{forward.1} parent=95 // pred_fallthru
          _
        // Predicated region
        $region101: #{forward.1} parent=95 // pred_check
          %p671 = pneg %p80
        $region102: #{forward.1} parent=95 // pred_check_branch
          %673 = sbr.rel (%p671) target = $region104
        $region103: #{forward.1} parent=95 // pred_region
          %p674 = scmp.lt.s32.totalorder %s34, 1
          %s675 = scalar_select %p674, %s34, 1
          %s676 = smul.addr %s675, 2
          %s677 = smul.addr %s676, 8
          %s678 = scalar_lea.vmem %s1, %s677
        $region104: #{forward.1} parent=95 // pred_fallthru
          _
        // Predicated region
        $region105: #{forward.1} parent=95 // pred_check
          %p679 = pneg %p106
        $region106: #{forward.1} parent=95 // pred_check_branch
          %681 = sbr.rel (%p679) target = $region108
        $region107: #{forward.1} parent=95 // pred_region
          %p682 = scmp.lt.s32.totalorder %s34, 1
          %s683 = scalar_select %p682, %s34, 1
          %s684 = scalar_lea.vmem %s2, %s683
        $region108: #{forward.1} parent=95 // pred_fallthru
          _
      $region96: #{forward.1} parent=5 // pred_fallthru
        _
      %p685 = scmp.le.s32.totalorder 1, %s34
      %p686 = scmp.lt.s32.totalorder %s34, 3
      %p687 = pnand %p685, %p686
      %p688 = pneg %p687
      // Predicated region
      $region109: #{forward.1} parent=5 // pred_check
        _
      $region110: #{forward.1} parent=5 // pred_check_branch
        %690 = sbr.rel (%p687) target = $region112
      $region111: #{forward.1} parent=5 // pred_region
        %s691 = ssub.s32 %s34, 1
        %p692 = scmp.lt.s32.totalorder %s39, 1
        %s693 = scalar_select %p692, %s39, 1
        %s694 = smul.addr %s693, 2
        %s695 = smul.addr %s694, 8
        %s696 = scalar_lea.vmem %s0, %s695
        %p697 = pneg %p60
        %p698 = pneg %p57
        %p699 = scmp.lt.s32.totalorder %s39, 1
        %s700 = scalar_select %p699, %s39, 1
        %s701 = smul.addr %s700, 2
        %s702 = smul.addr %s701, 8
        %s703 = scalar_lea.vmem %s1, %s702
        %p704 = pneg %p86
        %p705 = pneg %p83
        %p706 = scmp.lt.s32.totalorder %s39, 1
        %s707 = scalar_select %p706, %s39, 1
        %s708 = scalar_lea.vmem %s2, %s707
        %p709 = pneg %p112
        %p710 = pneg %p109
        %p711 = pneg %p133
        %p712 = pneg %p130
        %p713 = pneg %p154
        %p714 = pneg %p151
        %p715 = pneg %p175
        %p716 = pneg %p172
        %p717 = pneg %p196
        %p718 = pneg %p193
        %p719 = pneg %p217
        %p720 = pneg %p214
        %p721 = pneg %p238
        %p722 = pneg %p235
        %p723 = pneg %p259
        %p724 = pneg %p256
        %p725 = pneg %p280
        %p726 = pneg %p277
        %p727 = pneg %p301
        %p728 = pneg %p298
        %p729 = pneg %p322
        %p730 = pneg %p319
        %p731 = pneg %p343
        %p732 = pneg %p340
        %p733 = pneg %p364
        %p734 = pneg %p361
        %p735 = pneg %p385
        %p736 = pneg %p382
        %p737 = pneg %p406
        %p738 = pneg %p403
        %p739 = pneg %p427
        %p740 = pneg %p424
        %p741 = pneg %p448
        %p742 = pneg %p445
        %p743 = pneg %p469
        %p744 = pneg %p466
        %p745 = pneg %p490
        %p746 = pneg %p487
        %p747 = pneg %p511
        %p748 = pneg %p508
        %p749 = pneg %p532
        %p750 = pneg %p529
        %p751 = pneg %p558
        %p752 = pneg %p555
        %s753 = sand.u32 %s545, 1
        %s754 = scalar_lea.sflag [#allocation3], %s753
        %s755 = sand.u32 %s545, 1
        %s756 = smul.addr %s755, 16
        %s757 = scalar_lea.vmem [#allocation2], %s756
        %p758 = pneg %p584
        %p759 = pneg %p581
        %p760 = scmp.lt.s32.totalorder %s39, 1
        %s761 = scalar_select %p760, %s39, 1
        %s762 = smul.addr %s761, 2
        %s763 = smul.addr %s762, 8
        %s764 = scalar_lea.vmem %s24, %s763
        %p765 = scmp.lt.s32.totalorder %s39, 1
        %s766 = scalar_select %p765, %s39, 1
        %s767 = smul.addr %s766, 2
        %s768 = smul.addr %s767, 8
        %s769 = scalar_lea.vmem %s0, %s768
        %p770 = scmp.lt.s32.totalorder %s39, 1
        %s771 = scalar_select %p770, %s39, 1
        %s772 = smul.addr %s771, 2
        %s773 = smul.addr %s772, 8
        %s774 = scalar_lea.vmem %s1, %s773
        %p775 = scmp.lt.s32.totalorder %s39, 1
        %s776 = scalar_select %p775, %s39, 1
        %s777 = scalar_lea.vmem %s2, %s776
        %p778 = scmp.lt.s32.totalorder %s39, 1
        %s779 = scalar_select %p778, %s39, 1
        %s780 = smul.addr %s779, 2
        %s781 = smul.addr %s780, 8
        %s782 = scalar_lea.vmem %s24, %s781
        %v783 = vld [vmem:[%s774] sm:$0xff]
        %v784 = vld [vmem:[%s774 + $0x8] sm:$0xff]
        %v785 = vld [vmem:[%s777] sm:$0x1]
        %v786 = vld [vmem:[%s769] sm:$0xff]
        %v787 = vld [vmem:[%s769 + $0x8] sm:$0xff]
        %789 = vset.pattern.permute.xlu0 0
        %790 = vperm.xlu0 %789, %v783
        %v791 = vpop.permute.xlu0 %790
        %794 = vset.pattern.permute.xlu0 0
        %795 = vperm.xlu0 %794, %v784
        %v796 = vpop.permute.xlu0 %795
        %v798 = vmul.f32 %v786, %v791
        %v799 = vmul.f32 %v787, %v796
        %v801 = vlaneseq
        %v802 = vshrl.u32 %v801, 7
        %v803 = vsub.s32 0, %v802
        %v804 = vrot.slane %v785, %v803
        %v806 = vmul.f32 %v791, %v804
        %v807 = vmul.f32 %v796, %v804
        %v808 = vlaneseq
        %v809 = vshrl.u32 %v808, 7
        %v810 = vadd.s32 %v809, 8
        %v811 = vlaneseq
        %v812 = vand.u32 %v811, 127
        %v813 = vsub.s32 %v812, %v809
        %v814 = vsub.s32 %v812, %v810
        %v815 = vld [vmem:[%s3] sm:$0xff]
        %v816 = vld [vmem:[%s3 + $0x8] sm:$0xff]
        %v817 = vld [vmem:[%s3 + $0x10] sm:$0xff]
        %v818 = vld [vmem:[%s3 + $0x18] sm:$0xff]
        %v819 = vld [vmem:[%s4] sm:$0x1]
        %v821 = vlaneseq
        %v822 = vshrl.u32 %v821, 7
        %v823 = vsub.s32 0, %v822
        %v824 = vrot.slane %v819, %v823
        %vm826 = vcmask 261120
        %v828 = vsel %vm826, %v798, 0
        %v831 = vsel %vm826, %v799, 0
        %833 = vmatprep.subr.mxu0 0.0
        %834 = vmatpush1.msra.mxu0 %v815
        %835 = vmatprep.subr.mxu0 0.0
        %836 = vmatpush1.msra.mxu0 %v816
        %837 = vmatprep.subr.mxu0 0.0
        %838 = vmatpush1.msra.mxu0 %v817
        %839 = vmatprep.subr.mxu0 0.0
        %840 = vmatpush1.msra.mxu0 %v818
        %841 = vmatprep.subr.mxu0 0.0
        %842 = vmatpush1.msra.mxu0 0.0
        %843 = vmatprep.subr.mxu0 0.0
        %844 = vmatpush1.msra.mxu0 0.0
        %845 = vmatprep.subr.mxu0 0.0
        %846 = vmatpush1.msra.mxu0 0.0
        %847 = vmatprep.subr.mxu0 0.0
        %848 = vmatpush1.msra.mxu0 0.0
        %849 = vmatprep.subr.mxu0 0.0
        %850 = vmatpush1.msra.mxu0 0.0
        %851 = vmatprep.subr.mxu0 0.0
        %852 = vmatpush1.msra.mxu0 0.0
        %853 = vmatprep.subr.mxu0 0.0
        %854 = vmatpush1.msra.mxu0 0.0
        %855 = vmatprep.subr.mxu0 0.0
        %856 = vmatpush1.msra.mxu0 0.0
        %857 = vmatprep.subr.mxu0 0.0
        %858 = vmatpush1.msra.mxu0 0.0
        %859 = vmatprep.subr.mxu0 0.0
        %860 = vmatpush1.msra.mxu0 0.0
        %861 = vmatprep.subr.mxu0 0.0
        %862 = vmatpush1.msra.mxu0 0.0
        %863 = vmatprep.subr.mxu0 0.0
        %864 = vmatpush1.msra.mxu0 0.0
        %865 = vmatprep.subr.mxu0 0.0
        %866 = vmatpush1.msra.mxu0 0.0
        %867 = vmatprep.subr.mxu0 0.0
        %868 = vmatpush1.msra.mxu0 0.0
        %869 = vmatprep.subr.mxu0 0.0
        %870 = vmatpush1.msra.mxu0 0.0
        %871 = vmatprep.subr.mxu0 0.0
        %872 = vmatpush1.msra.mxu0 0.0
        %873 = vmatprep.subr.mxu0 0.0
        %874 = vmatpush1.msra.mxu0 0.0
        %875 = vmatprep.subr.mxu0 0.0
        %876 = vmatpush1.msra.mxu0 0.0
        %877 = vmatprep.subr.mxu0 0.0
        %878 = vmatpush1.msra.mxu0 0.0
        %879 = vmatprep.subr.mxu0 0.0
        %880 = vmatpush1.msra.mxu0 0.0
        %881 = vmatprep.subr.mxu0 0.0
        %882 = vmatpush1.msra.mxu0 0.0
        %883 = vmatprep.subr.mxu0 0.0
        %884 = vmatpush1.msra.mxu0 0.0
        %885 = vmatprep.subr.mxu0 0.0
        %886 = vmatpush1.msra.mxu0 0.0
        %887 = vmatprep.subr.mxu0 0.0
        %888 = vmatpush1.msra.mxu0 0.0
        %889 = vmatprep.subr.mxu0 0.0
        %890 = vmatpush1.msra.mxu0 0.0
        %891 = vmatprep.subr.mxu0 0.0
        %892 = vmatpush1.msra.mxu0 0.0
        %893 = vmatprep.subr.mxu0 0.0
        %894 = vmatpush1.msra.mxu0 0.0
        %895 = vmatprep.subr.mxu0 0.0
        %896 = vmatpush1.msra.mxu0 0.0
        %897 = vmatprep.mubr.f32.mxu0 0.0
        %898 = vmatmul.mubr.f32.gmra.mrb[0].mxu0 %v828
        %v899 = vpop.f32.mrb[0].mxu0
        %v900 = vadd.f32 %v824, %v899
        %v901 = vpop.f32.mrb[0].mxu0
        %902 = vmatprep.mubr.f32.mxu0 0.0
        %903 = vmatmul.mubr.f32.gmra.mrb[0].mxu0 %v831
        %v904 = vpop.f32.mrb[0].mxu0
        %v905 = vadd.f32 %v824, %v904
        %v906 = vpop.f32.mrb[0].mxu0
        %907 = vdwg.mxu0
        %v908 = vld [vmem:[%s5] sm:$0xff]
        %v909 = vld [vmem:[%s5 + $0x8] sm:$0xff]
        %v910 = vld [vmem:[%s5 + $0x10] sm:$0xff]
        %v911 = vld [vmem:[%s5 + $0x18] sm:$0xff]
        %v912 = vld [vmem:[%s6] sm:$0x1]
        %v914 = vlaneseq
        %v915 = vshrl.u32 %v914, 7
        %v916 = vsub.s32 0, %v915
        %v917 = vrot.slane %v912, %v916
        %919 = vmatprep.subr.mxu0 0.0
        %920 = vmatpush1.msra.mxu0 %v908
        %921 = vmatprep.subr.mxu0 0.0
        %922 = vmatpush1.msra.mxu0 %v909
        %923 = vmatprep.subr.mxu0 0.0
        %924 = vmatpush1.msra.mxu0 %v910
        %925 = vmatprep.subr.mxu0 0.0
        %926 = vmatpush1.msra.mxu0 %v911
        %927 = vmatprep.subr.mxu0 0.0
        %928 = vmatpush1.msra.mxu0 0.0
        %929 = vmatprep.subr.mxu0 0.0
        %930 = vmatpush1.msra.mxu0 0.0
        %931 = vmatprep.subr.mxu0 0.0
        %932 = vmatpush1.msra.mxu0 0.0
        %933 = vmatprep.subr.mxu0 0.0
        %934 = vmatpush1.msra.mxu0 0.0
        %935 = vmatprep.subr.mxu0 0.0
        %936 = vmatpush1.msra.mxu0 0.0
        %937 = vmatprep.subr.mxu0 0.0
        %938 = vmatpush1.msra.mxu0 0.0
        %939 = vmatprep.subr.mxu0 0.0
        %940 = vmatpush1.msra.mxu0 0.0
        %941 = vmatprep.subr.mxu0 0.0
        %942 = vmatpush1.msra.mxu0 0.0
        %943 = vmatprep.subr.mxu0 0.0
        %944 = vmatpush1.msra.mxu0 0.0
        %945 = vmatprep.subr.mxu0 0.0
        %946 = vmatpush1.msra.mxu0 0.0
        %947 = vmatprep.subr.mxu0 0.0
        %948 = vmatpush1.msra.mxu0 0.0
        %949 = vmatprep.subr.mxu0 0.0
        %950 = vmatpush1.msra.mxu0 0.0
        %951 = vmatprep.subr.mxu0 0.0
        %952 = vmatpush1.msra.mxu0 0.0
        %953 = vmatprep.subr.mxu0 0.0
        %954 = vmatpush1.msra.mxu0 0.0
        %955 = vmatprep.subr.mxu0 0.0
        %956 = vmatpush1.msra.mxu0 0.0
        %957 = vmatprep.subr.mxu0 0.0
        %958 = vmatpush1.msra.mxu0 0.0
        %959 = vmatprep.subr.mxu0 0.0
        %960 = vmatpush1.msra.mxu0 0.0
        %961 = vmatprep.subr.mxu0 0.0
        %962 = vmatpush1.msra.mxu0 0.0
        %963 = vmatprep.subr.mxu0 0.0
        %964 = vmatpush1.msra.mxu0 0.0
        %965 = vmatprep.subr.mxu0 0.0
        %966 = vmatpush1.msra.mxu0 0.0
        %967 = vmatprep.subr.mxu0 0.0
        %968 = vmatpush1.msra.mxu0 0.0
        %969 = vmatprep.subr.mxu0 0.0
        %970 = vmatpush1.msra.mxu0 0.0
        %971 = vmatprep.subr.mxu0 0.0
        %972 = vmatpush1.msra.mxu0 0.0
        %973 = vmatprep.subr.mxu0 0.0
        %974 = vmatpush1.msra.mxu0 0.0
        %975 = vmatprep.subr.mxu0 0.0
        %976 = vmatpush1.msra.mxu0 0.0
        %977 = vmatprep.subr.mxu0 0.0
        %978 = vmatpush1.msra.mxu0 0.0
        %979 = vmatprep.subr.mxu0 0.0
        %980 = vmatpush1.msra.mxu0 0.0
        %981 = vmatprep.subr.mxu0 0.0
        %982 = vmatpush1.msra.mxu0 0.0
        %983 = vmatprep.mubr.f32.mxu0 0.0
        %984 = vmatmul.mubr.f32.gmra.mrb[0].mxu0 %v828
        %v985 = vpop.f32.mrb[0].mxu0
        %v986 = vadd.f32 %v917, %v985
        %v987 = vpop.f32.mrb[0].mxu0
        %988 = vmatprep.mubr.f32.mxu0 0.0
        %989 = vmatmul.mubr.f32.gmra.mrb[0].mxu0 %v831
        %v990 = vpop.f32.mrb[0].mxu0
        %v991 = vadd.f32 %v917, %v990
        %v992 = vpop.f32.mrb[0].mxu0
        %993 = vdwg.mxu0
        %v994 = vld [vmem:[%s7] sm:$0xff]
        %v995 = vld [vmem:[%s7 + $0x8] sm:$0xff]
        %v996 = vld [vmem:[%s7 + $0x10] sm:$0xff]
        %v997 = vld [vmem:[%s7 + $0x18] sm:$0xff]
        %v998 = vld [vmem:[%s8] sm:$0x1]
        %v1000 = vlaneseq
        %v1001 = vshrl.u32 %v1000, 7
        %v1002 = vsub.s32 0, %v1001
        %v1003 = vrot.slane %v998, %v1002
        %1005 = vmatprep.subr.mxu0 0.0
        %1006 = vmatpush1.msra.mxu0 %v994
        %1007 = vmatprep.subr.mxu0 0.0
        %1008 = vmatpush1.msra.mxu0 %v995
        %1009 = vmatprep.subr.mxu0 0.0
        %1010 = vmatpush1.msra.mxu0 %v996
        %1011 = vmatprep.subr.mxu0 0.0
        %1012 = vmatpush1.msra.mxu0 %v997
        %1013 = vmatprep.subr.mxu0 0.0
        %1014 = vmatpush1.msra.mxu0 0.0
        %1015 = vmatprep.subr.mxu0 0.0
        %1016 = vmatpush1.msra.mxu0 0.0
        %1017 = vmatprep.subr.mxu0 0.0
        %1018 = vmatpush1.msra.mxu0 0.0
        %1019 = vmatprep.subr.mxu0 0.0
        %1020 = vmatpush1.msra.mxu0 0.0
        %1021 = vmatprep.subr.mxu0 0.0
        %1022 = vmatpush1.msra.mxu0 0.0
        %1023 = vmatprep.subr.mxu0 0.0
        %1024 = vmatpush1.msra.mxu0 0.0
        %1025 = vmatprep.subr.mxu0 0.0
        %1026 = vmatpush1.msra.mxu0 0.0
        %1027 = vmatprep.subr.mxu0 0.0
        %1028 = vmatpush1.msra.mxu0 0.0
        %1029 = vmatprep.subr.mxu0 0.0
        %1030 = vmatpush1.msra.mxu0 0.0
        %1031 = vmatprep.subr.mxu0 0.0
        %1032 = vmatpush1.msra.mxu0 0.0
        %1033 = vmatprep.subr.mxu0 0.0
        %1034 = vmatpush1.msra.mxu0 0.0
        %1035 = vmatprep.subr.mxu0 0.0
        %1036 = vmatpush1.msra.mxu0 0.0
        %1037 = vmatprep.subr.mxu0 0.0
        %1038 = vmatpush1.msra.mxu0 0.0
        %1039 = vmatprep.subr.mxu0 0.0
        %1040 = vmatpush1.msra.mxu0 0.0
        %1041 = vmatprep.subr.mxu0 0.0
        %1042 = vmatpush1.msra.mxu0 0.0
        %1043 = vmatprep.subr.mxu0 0.0
        %1044 = vmatpush1.msra.mxu0 0.0
        %1045 = vmatprep.subr.mxu0 0.0
        %1046 = vmatpush1.msra.mxu0 0.0
        %1047 = vmatprep.subr.mxu0 0.0
        %1048 = vmatpush1.msra.mxu0 0.0
        %1049 = vmatprep.subr.mxu0 0.0
        %1050 = vmatpush1.msra.mxu0 0.0
        %1051 = vmatprep.subr.mxu0 0.0
        %1052 = vmatpush1.msra.mxu0 0.0
        %1053 = vmatprep.subr.mxu0 0.0
        %1054 = vmatpush1.msra.mxu0 0.0
        %1055 = vmatprep.subr.mxu0 0.0
        %1056 = vmatpush1.msra.mxu0 0.0
        %1057 = vmatprep.subr.mxu0 0.0
        %1058 = vmatpush1.msra.mxu0 0.0
        %1059 = vmatprep.subr.mxu0 0.0
        %1060 = vmatpush1.msra.mxu0 0.0
        %1061 = vmatprep.subr.mxu0 0.0
        %1062 = vmatpush1.msra.mxu0 0.0
        %1063 = vmatprep.subr.mxu0 0.0
        %1064 = vmatpush1.msra.mxu0 0.0
        %1065 = vmatprep.subr.mxu0 0.0
        %1066 = vmatpush1.msra.mxu0 0.0
        %1067 = vmatprep.subr.mxu0 0.0
        %1068 = vmatpush1.msra.mxu0 0.0
        %1069 = vmatprep.mubr.f32.mxu0 0.0
        %1070 = vmatmul.mubr.f32.gmra.mrb[0].mxu0 %v828
        %v1071 = vpop.f32.mrb[0].mxu0
        %v1072 = vadd.f32 %v1003, %v1071
        %v1073 = vpop.f32.mrb[0].mxu0
        %1074 = vmatprep.mubr.f32.mxu0 0.0
        %1075 = vmatmul.mubr.f32.gmra.mrb[0].mxu0 %v831
        %v1076 = vpop.f32.mrb[0].mxu0
        %v1077 = vadd.f32 %v1003, %v1076
        %v1078 = vpop.f32.mrb[0].mxu0
        %1079 = vdwg.mxu0
        %v1080 = vld [vmem:[%s11] sm:$0xff]
        %v1081 = vld [vmem:[%s11 + $0x8] sm:$0x1]
        %v1082 = vld [vmem:[%s12] sm:$0xff]
        %v1083 = vld [vmem:[%s12 + $0x8] sm:$0x1]
        %v1084 = vmul.f32 %v900, 0.25
        %v1085 = vmul.f32 %v905, 0.25
        %vm1086 = vcmask 130048
        %v1088 = vsel %vm1086, %v1084, 0
        %v1091 = vsel %vm1086, %v1085, 0
        %v1094 = vsel %vm1086, %v1080, 0
        %v1097 = vsel %vm1086, %v1081, 0
        %1099 = vmatprep.subr.mxu0 0.0
        %1100 = vmatpush1.xpose.msra.mxu0 %v1094
        %1101 = vmatprep.subr.mxu0 0.0
        %1102 = vmatpush1.xpose.msra.mxu0 %v1097
        %1103 = vmatprep.subr.mxu0 0.0
        %1104 = vmatpush1.xpose.msra.mxu0 0.0
        %1105 = vmatprep.subr.mxu0 0.0
        %1106 = vmatpush1.xpose.msra.mxu0 0.0
        %1107 = vmatprep.subr.mxu0 0.0
        %1108 = vmatpush1.xpose.msra.mxu0 0.0
        %1109 = vmatprep.subr.mxu0 0.0
        %1110 = vmatpush1.xpose.msra.mxu0 0.0
        %1111 = vmatprep.subr.mxu0 0.0
        %1112 = vmatpush1.xpose.msra.mxu0 0.0
        %1113 = vmatprep.subr.mxu0 0.0
        %1114 = vmatpush1.xpose.msra.mxu0 0.0
        %1115 = vmatprep.subr.mxu0 0.0
        %1116 = vmatpush1.xpose.msra.mxu0 0.0
        %1117 = vmatprep.subr.mxu0 0.0
        %1118 = vmatpush1.xpose.msra.mxu0 0.0
        %1119 = vmatprep.subr.mxu0 0.0
        %1120 = vmatpush1.xpose.msra.mxu0 0.0
        %1121 = vmatprep.subr.mxu0 0.0
        %1122 = vmatpush1.xpose.msra.mxu0 0.0
        %1123 = vmatprep.subr.mxu0 0.0
        %1124 = vmatpush1.xpose.msra.mxu0 0.0
        %1125 = vmatprep.subr.mxu0 0.0
        %1126 = vmatpush1.xpose.msra.mxu0 0.0
        %1127 = vmatprep.subr.mxu0 0.0
        %1128 = vmatpush1.xpose.msra.mxu0 0.0
        %1129 = vmatprep.subr.mxu0 0.0
        %1130 = vmatpush1.xpose.msra.mxu0 0.0
        %1131 = vmatprep.subr.mxu0 0.0
        %1132 = vmatpush1.xpose.msra.mxu0 0.0
        %1133 = vmatprep.subr.mxu0 0.0
        %1134 = vmatpush1.xpose.msra.mxu0 0.0
        %1135 = vmatprep.subr.mxu0 0.0
        %1136 = vmatpush1.xpose.msra.mxu0 0.0
        %1137 = vmatprep.subr.mxu0 0.0
        %1138 = vmatpush1.xpose.msra.mxu0 0.0
        %1139 = vmatprep.subr.mxu0 0.0
        %1140 = vmatpush1.xpose.msra.mxu0 0.0
        %1141 = vmatprep.subr.mxu0 0.0
        %1142 = vmatpush1.xpose.msra.mxu0 0.0
        %1143 = vmatprep.subr.mxu0 0.0
        %1144 = vmatpush1.xpose.msra.mxu0 0.0
        %1145 = vmatprep.subr.mxu0 0.0
        %1146 = vmatpush1.xpose.msra.mxu0 0.0
        %1147 = vmatprep.subr.mxu0 0.0
        %1148 = vmatpush1.xpose.msra.mxu0 0.0
        %1149 = vmatprep.subr.mxu0 0.0
        %1150 = vmatpush1.xpose.msra.mxu0 0.0
        %1151 = vmatprep.subr.mxu0 0.0
        %1152 = vmatpush1.xpose.msra.mxu0 0.0
        %1153 = vmatprep.subr.mxu0 0.0
        %1154 = vmatpush1.xpose.msra.mxu0 0.0
        %1155 = vmatprep.subr.mxu0 0.0
        %1156 = vmatpush1.xpose.msra.mxu0 0.0
        %1157 = vmatprep.subr.mxu0 0.0
        %1158 = vmatpush1.xpose.msra.mxu0 0.0
        %1159 = vmatprep.subr.mxu0 0.0
        %1160 = vmatpush1.xpose.msra.mxu0 0.0
        %1161 = vmatprep.subr.mxu0 0.0
        %1162 = vmatpush1.xpose.msra.mxu0 0.0
        %1163 = vmatprep.mubr.f32.mxu0 0.0
        %1164 = vmatmul.mubr.f32.gmra.mrb[0].mxu0 %v1088
        %v1165 = vpop.f32.mrb[0].mxu0
        %v1166 = vadd.f32 0.0, %v1165
        %v1167 = vpop.f32.mrb[0].mxu0
        %1168 = vmatprep.mubr.f32.mxu0 0.0
        %1169 = vmatmul.mubr.f32.gmra.mrb[0].mxu0 %v1091
        %v1170 = vpop.f32.mrb[0].mxu0
        %v1171 = vadd.f32 0.0, %v1170
        %v1172 = vpop.f32.mrb[0].mxu0
        %1173 = vdwg.mxu0
        %vm1174 = vcmp.eq.s32.totalorder %v813, 4294967292
        %vm1175 = vcmp.eq.s32.totalorder %v814, 4294967292
        %1177 = vset.pattern.permute.xlu0 0
        %1178 = vperm.xlu0 %1177, %v1166
        %v1179 = vpop.permute.xlu0 %1178
        %1182 = vset.pattern.permute.xlu0 0
        %1183 = vperm.xlu0 %1182, %v1171
        %v1184 = vpop.permute.xlu0 %1183
        %v1186 = vsel %vm1174, %v1179, 0.0
        %v1187 = vsel %vm1175, %v1184, 0.0
        %v1189 = vsel %vm1086, %v986, 0
        %v1192 = vsel %vm1086, %v991, 0
        %1194 = vmatprep.subr.mxu0 0.0
        %1195 = vmatpush1.xpose.msra.mxu0 %v1189
        %1196 = vmatprep.subr.mxu0 0.0
        %1197 = vmatpush1.xpose.msra.mxu0 %v1192
        %1198 = vmatprep.subr.mxu0 0.0
        %1199 = vmatpush1.xpose.msra.mxu0 0.0
        %1200 = vmatprep.subr.mxu0 0.0
        %1201 = vmatpush1.xpose.msra.mxu0 0.0
        %1202 = vmatprep.subr.mxu0 0.0
        %1203 = vmatpush1.xpose.msra.mxu0 0.0
        %1204 = vmatprep.subr.mxu0 0.0
        %1205 = vmatpush1.xpose.msra.mxu0 0.0
        %1206 = vmatprep.subr.mxu0 0.0
        %1207 = vmatpush1.xpose.msra.mxu0 0.0
        %1208 = vmatprep.subr.mxu0 0.0
        %1209 = vmatpush1.xpose.msra.mxu0 0.0
        %1210 = vmatprep.subr.mxu0 0.0
        %1211 = vmatpush1.xpose.msra.mxu0 0.0
        %1212 = vmatprep.subr.mxu0 0.0
        %1213 = vmatpush1.xpose.msra.mxu0 0.0
        %1214 = vmatprep.subr.mxu0 0.0
        %1215 = vmatpush1.xpose.msra.mxu0 0.0
        %1216 = vmatprep.subr.mxu0 0.0
        %1217 = vmatpush1.xpose.msra.mxu0 0.0
        %1218 = vmatprep.subr.mxu0 0.0
        %1219 = vmatpush1.xpose.msra.mxu0 0.0
        %1220 = vmatprep.subr.mxu0 0.0
        %1221 = vmatpush1.xpose.msra.mxu0 0.0
        %1222 = vmatprep.subr.mxu0 0.0
        %1223 = vmatpush1.xpose.msra.mxu0 0.0
        %1224 = vmatprep.subr.mxu0 0.0
        %1225 = vmatpush1.xpose.msra.mxu0 0.0
        %1226 = vmatprep.subr.mxu0 0.0
        %1227 = vmatpush1.xpose.msra.mxu0 0.0
        %1228 = vmatprep.subr.mxu0 0.0
        %1229 = vmatpush1.xpose.msra.mxu0 0.0
        %1230 = vmatprep.subr.mxu0 0.0
        %1231 = vmatpush1.xpose.msra.mxu0 0.0
        %1232 = vmatprep.subr.mxu0 0.0
        %1233 = vmatpush1.xpose.msra.mxu0 0.0
        %1234 = vmatprep.subr.mxu0 0.0
        %1235 = vmatpush1.xpose.msra.mxu0 0.0
        %1236 = vmatprep.subr.mxu0 0.0
        %1237 = vmatpush1.xpose.msra.mxu0 0.0
        %1238 = vmatprep.subr.mxu0 0.0
        %1239 = vmatpush1.xpose.msra.mxu0 0.0
        %1240 = vmatprep.subr.mxu0 0.0
        %1241 = vmatpush1.xpose.msra.mxu0 0.0
        %1242 = vmatprep.subr.mxu0 0.0
        %1243 = vmatpush1.xpose.msra.mxu0 0.0
        %1244 = vmatprep.subr.mxu0 0.0
        %1245 = vmatpush1.xpose.msra.mxu0 0.0
        %1246 = vmatprep.subr.mxu0 0.0
        %1247 = vmatpush1.xpose.msra.mxu0 0.0
        %1248 = vmatprep.subr.mxu0 0.0
        %1249 = vmatpush1.xpose.msra.mxu0 0.0
        %1250 = vmatprep.subr.mxu0 0.0
        %1251 = vmatpush1.xpose.msra.mxu0 0.0
        %1252 = vmatprep.subr.mxu0 0.0
        %1253 = vmatpush1.xpose.msra.mxu0 0.0
        %1254 = vmatprep.subr.mxu0 0.0
        %1255 = vmatpush1.xpose.msra.mxu0 0.0
        %1256 = vmatprep.subr.mxu0 0.0
        %1257 = vmatpush1.xpose.msra.mxu0 0.0
        %1258 = vmatprep.mubr.f32.mxu0 0.0
        %1259 = vmatmul.mubr.f32.gmra.mrb[0].mxu0 %v1088
        %v1260 = vpop.f32.mrb[0].mxu0
        %v1261 = vadd.f32 %v1186, %v1260
        %v1262 = vpop.f32.mrb[0].mxu0
        %1263 = vmatprep.mubr.f32.mxu0 0.0
        %1264 = vmatmul.mubr.f32.gmra.mrb[0].mxu0 %v1091
        %v1265 = vpop.f32.mrb[0].mxu0
        %v1266 = vadd.f32 %v1187, %v1265
        %v1267 = vpop.f32.mrb[0].mxu0
        %1268 = vdwg.mxu0
        %vm1269 = vcmp.eq.s32.totalorder %v813, 4294967293
        %vm1270 = vcmp.eq.s32.totalorder %v814, 4294967293
        %1271 = vset.pattern.permute.xlu0 1
        %1272 = vperm.xlu0 %1271, %v1166
        %v1273 = vpop.permute.xlu0 %1272
        %1275 = vset.pattern.permute.xlu0 1
        %1276 = vperm.xlu0 %1275, %v1171
        %v1277 = vpop.permute.xlu0 %1276
        %v1279 = vsel %vm1269, %v1273, 0.0
        %v1280 = vsel %vm1270, %v1277, 0.0
        %v1281 = vadd.f32 %v1261, %v1279
        %v1282 = vadd.f32 %v1266, %v1280
        %vm1283 = vcmp.eq.s32.totalorder %v813, 4294967294
        %vm1284 = vcmp.eq.s32.totalorder %v814, 4294967294
        %1285 = vset.pattern.permute.xlu0 2
        %1286 = vperm.xlu0 %1285, %v1166
        %v1287 = vpop.permute.xlu0 %1286
        %1289 = vset.pattern.permute.xlu0 2
        %1290 = vperm.xlu0 %1289, %v1171
        %v1291 = vpop.permute.xlu0 %1290
        %v1293 = vsel %vm1283, %v1287, 0.0
        %v1294 = vsel %vm1284, %v1291, 0.0
        %v1295 = vadd.f32 %v1281, %v1293
        %v1296 = vadd.f32 %v1282, %v1294
        %vm1297 = vcmp.eq.s32.totalorder %v813, 4294967295
        %vm1298 = vcmp.eq.s32.totalorder %v814, 4294967295
        %1299 = vset.pattern.permute.xlu0 3
        %1300 = vperm.xlu0 %1299, %v1166
        %v1301 = vpop.permute.xlu0 %1300
        %1303 = vset.pattern.permute.xlu0 3
        %1304 = vperm.xlu0 %1303, %v1171
        %v1305 = vpop.permute.xlu0 %1304
        %v1307 = vsel %vm1297, %v1301, 0.0
        %v1308 = vsel %vm1298, %v1305, 0.0
        %v1309 = vadd.f32 %v1295, %v1307
        %v1310 = vadd.f32 %v1296, %v1308
        %vm1311 = vcmp.eq.s32.totalorder %v813, 0
        %vm1312 = vcmp.eq.s32.totalorder %v814, 0
        %1313 = vset.pattern.permute.xlu0 4
        %1314 = vperm.xlu0 %1313, %v1166
        %v1315 = vpop.permute.xlu0 %1314
        %1317 = vset.pattern.permute.xlu0 4
        %1318 = vperm.xlu0 %1317, %v1171
        %v1319 = vpop.permute.xlu0 %1318
        %v1321 = vsel %vm1311, %v1315, 0.0
        %v1322 = vsel %vm1312, %v1319, 0.0
        %v1323 = vadd.f32 %v1309, %v1321
        %v1324 = vadd.f32 %v1310, %v1322
        %vm1325 = vcmp.eq.s32.totalorder %v813, 1
        %vm1326 = vcmp.eq.s32.totalorder %v814, 1
        %1327 = vset.pattern.permute.xlu0 5
        %1328 = vperm.xlu0 %1327, %v1166
        %v1329 = vpop.permute.xlu0 %1328
        %1331 = vset.pattern.permute.xlu0 5
        %1332 = vperm.xlu0 %1331, %v1171
        %v1333 = vpop.permute.xlu0 %1332
        %v1335 = vsel %vm1325, %v1329, 0.0
        %v1336 = vsel %vm1326, %v1333, 0.0
        %v1337 = vadd.f32 %v1323, %v1335
        %v1338 = vadd.f32 %v1324, %v1336
        %vm1339 = vcmp.eq.s32.totalorder %v813, 2
        %vm1340 = vcmp.eq.s32.totalorder %v814, 2
        %1341 = vset.pattern.permute.xlu0 6
        %1342 = vperm.xlu0 %1341, %v1166
        %v1343 = vpop.permute.xlu0 %1342
        %1345 = vset.pattern.permute.xlu0 6
        %1346 = vperm.xlu0 %1345, %v1171
        %v1347 = vpop.permute.xlu0 %1346
        %v1349 = vsel %vm1339, %v1343, 0.0
        %v1350 = vsel %vm1340, %v1347, 0.0
        %v1351 = vadd.f32 %v1337, %v1349
        %v1352 = vadd.f32 %v1338, %v1350
        %vm1353 = vcmp.eq.s32.totalorder %v813, 3
        %vm1354 = vcmp.eq.s32.totalorder %v814, 3
        %1355 = vset.pattern.permute.xlu0 7
        %1356 = vperm.xlu0 %1355, %v1166
        %v1357 = vpop.permute.xlu0 %1356
        %1359 = vset.pattern.permute.xlu0 7
        %1360 = vperm.xlu0 %1359, %v1171
        %v1361 = vpop.permute.xlu0 %1360
        %v1363 = vsel %vm1353, %v1357, 0.0
        %v1364 = vsel %vm1354, %v1361, 0.0
        %v1365 = vadd.f32 %v1351, %v1363
        %v1366 = vadd.f32 %v1352, %v1364
        %vm1367 = vcmp.eq.s32.totalorder %v813, 4
        %vm1368 = vcmp.eq.s32.totalorder %v814, 4
        %1369 = vset.pattern.permute.xlu0 8
        %1370 = vperm.xlu0 %1369, %v1166
        %v1371 = vpop.permute.xlu0 %1370
        %1373 = vset.pattern.permute.xlu0 8
        %1374 = vperm.xlu0 %1373, %v1171
        %v1375 = vpop.permute.xlu0 %1374
        %v1377 = vsel %vm1367, %v1371, 0.0
        %v1378 = vsel %vm1368, %v1375, 0.0
        %v1379 = vadd.f32 %v1365, %v1377
        %v1380 = vadd.f32 %v1366, %v1378
        %vm1381 = vcmp.gt.f32.partialorder %v806, 0.0
        %vm1382 = vcmp.gt.f32.partialorder %v807, 0.0
        %v1383 = vsel %vm1381, %v1379, -10000.0
        %v1384 = vsel %vm1382, %v1380, -10000.0
        %v1385 = vsel %vm1086, %v1383, -inf
        %1386 = vmax.xlane.f32.xlu0 %v1385
        %v1387 = vpop.xlane.xlu0 %1386
        %v1388 = vsel %vm1086, %v1384, -inf
        %1389 = vmax.xlane.f32.xlu0 %v1388
        %v1390 = vpop.xlane.xlu0 %1389
        %v1391 = vsub.f32 %v1383, %v1387
        %v1392 = vsub.f32 %v1384, %v1390
        %v1393 = vmul.f32 %v1391, 1.442695
        %v1394 = vpow.pop %v1393
        %v1395 = vmul.f32 %v1392, 1.442695
        %v1396 = vpow.pop %v1395
        %v1397 = vsel %vm1086, %v1394, 0.0
        %1398 = vadd.xlane.f32.xlu0 %v1397
        %v1399 = vpop.xlane.xlu0 %1398
        %v1400 = vsel %vm1086, %v1396, 0.0
        %1401 = vadd.xlane.f32.xlu0 %v1400
        %v1402 = vpop.xlane.xlu0 %1401
        %v1403 = vrcp.pop %v1399
        %v1404 = vmul.f32 %v1394, %v1403
        %v1405 = vrcp.pop %v1402
        %v1406 = vmul.f32 %v1396, %v1405
        %v1407 = vsel %vm1174, %v1404, 0.0
        %v1408 = vsel %vm1175, %v1406, 0.0
        %v1409 = vsel %vm1086, %v1407, 0.0
        %1410 = vadd.xlane.f32.xlu0 %v1409
        %v1411 = vpop.xlane.xlu0 %1410
        %v1412 = vsel %vm1086, %v1408, 0.0
        %1413 = vadd.xlane.f32.xlu0 %v1412
        %v1414 = vpop.xlane.xlu0 %1413
        %v1415 = vsel %vm1269, %v1404, 0.0
        %v1416 = vsel %vm1270, %v1406, 0.0
        %v1417 = vsel %vm1086, %v1415, 0.0
        %1418 = vadd.xlane.f32.xlu0 %v1417
        %v1419 = vpop.xlane.xlu0 %1418
        %v1420 = vsel %vm1086, %v1416, 0.0
        %1421 = vadd.xlane.f32.xlu0 %v1420
        %v1422 = vpop.xlane.xlu0 %1421
        %v1423 = vsel %vm1283, %v1404, 0.0
        %v1424 = vsel %vm1284, %v1406, 0.0
        %v1425 = vsel %vm1086, %v1423, 0.0
        %1426 = vadd.xlane.f32.xlu0 %v1425
        %v1427 = vpop.xlane.xlu0 %1426
        %v1428 = vsel %vm1086, %v1424, 0.0
        %1429 = vadd.xlane.f32.xlu0 %v1428
        %v1430 = vpop.xlane.xlu0 %1429
        %v1431 = vsel %vm1297, %v1404, 0.0
        %v1432 = vsel %vm1298, %v1406, 0.0
        %v1433 = vsel %vm1086, %v1431, 0.0
        %1434 = vadd.xlane.f32.xlu0 %v1433
        %v1435 = vpop.xlane.xlu0 %1434
        %v1436 = vsel %vm1086, %v1432, 0.0
        %1437 = vadd.xlane.f32.xlu0 %v1436
        %v1438 = vpop.xlane.xlu0 %1437
        %v1439 = vsel %vm1311, %v1404, 0.0
        %v1440 = vsel %vm1312, %v1406, 0.0
        %v1441 = vsel %vm1086, %v1439, 0.0
        %1442 = vadd.xlane.f32.xlu0 %v1441
        %v1443 = vpop.xlane.xlu0 %1442
        %v1444 = vsel %vm1086, %v1440, 0.0
        %1445 = vadd.xlane.f32.xlu0 %v1444
        %v1446 = vpop.xlane.xlu0 %1445
        %v1447 = vsel %vm1325, %v1404, 0.0
        %v1448 = vsel %vm1326, %v1406, 0.0
        %v1449 = vsel %vm1086, %v1447, 0.0
        %1450 = vadd.xlane.f32.xlu0 %v1449
        %v1451 = vpop.xlane.xlu0 %1450
        %v1452 = vsel %vm1086, %v1448, 0.0
        %1453 = vadd.xlane.f32.xlu0 %v1452
        %v1454 = vpop.xlane.xlu0 %1453
        %v1455 = vsel %vm1339, %v1404, 0.0
        %v1456 = vsel %vm1340, %v1406, 0.0
        %v1457 = vsel %vm1086, %v1455, 0.0
        %1458 = vadd.xlane.f32.xlu0 %v1457
        %v1459 = vpop.xlane.xlu0 %1458
        %v1460 = vsel %vm1086, %v1456, 0.0
        %1461 = vadd.xlane.f32.xlu0 %v1460
        %v1462 = vpop.xlane.xlu0 %1461
        %v1463 = vsel %vm1353, %v1404, 0.0
        %v1464 = vsel %vm1354, %v1406, 0.0
        %v1465 = vsel %vm1086, %v1463, 0.0
        %1466 = vadd.xlane.f32.xlu0 %v1465
        %v1467 = vpop.xlane.xlu0 %1466
        %v1468 = vsel %vm1086, %v1464, 0.0
        %1469 = vadd.xlane.f32.xlu0 %v1468
        %v1470 = vpop.xlane.xlu0 %1469
        %v1471 = vsel %vm1367, %v1404, 0.0
        %v1472 = vsel %vm1368, %v1406, 0.0
        %v1473 = vsel %vm1086, %v1471, 0.0
        %1474 = vadd.xlane.f32.xlu0 %v1473
        %v1475 = vpop.xlane.xlu0 %1474
        %v1476 = vsel %vm1086, %v1472, 0.0
        %1477 = vadd.xlane.f32.xlu0 %v1476
        %v1478 = vpop.xlane.xlu0 %1477
        %vm1479 = vcmask 7168
        %v1480 = vsel %vm1479, %v1411, %v1419
        %v1481 = vsel %vm1479, %v1414, %v1422
        %vm1482 = vcmask 15360
        %v1483 = vsel %vm1482, %v1480, %v1427
        %v1484 = vsel %vm1482, %v1481, %v1430
        %vm1485 = vcmask 23552
        %v1486 = vsel %vm1485, %v1483, %v1435
        %v1487 = vsel %vm1485, %v1484, %v1438
        %vm1488 = vcmask 31744
        %v1489 = vsel %vm1488, %v1486, %v1443
        %v1490 = vsel %vm1488, %v1487, %v1446
        %vm1491 = vcmask 39936
        %v1492 = vsel %vm1491, %v1489, %v1451
        %v1493 = vsel %vm1491, %v1490, %v1454
        %vm1494 = vcmask 48128
        %v1495 = vsel %vm1494, %v1492, %v1459
        %v1496 = vsel %vm1494, %v1493, %v1462
        %vm1497 = vcmask 56320
        %v1498 = vsel %vm1497, %v1495, %v1467
        %v1499 = vsel %vm1497, %v1496, %v1470
        %vm1500 = vcmask 64512
        %v1501 = vsel %vm1500, %v1498, %v1475
        %v1502 = vsel %vm1500, %v1499, %v1478
        %vm1503 = vcmask 72704
        %v1505 = vsel %vm1503, %v1501, 0
        %v1508 = vsel %vm1503, %v1502, 0
        %vm1510 = vcmask 1040384
        %v1512 = vsel %vm1510, %v1083, 0
        %1514 = vmatprep.subr.mxu0 0.0
        %1515 = vmatpush1.msra.mxu0 %v1082
        %1516 = vmatprep.subr.mxu0 0.0
        %1517 = vmatpush1.msra.mxu0 %v1512
        %1518 = vmatprep.subr.mxu0 0.0
        %1519 = vmatpush1.msra.mxu0 0.0
        %1520 = vmatprep.subr.mxu0 0.0
        %1521 = vmatpush1.msra.mxu0 0.0
        %1522 = vmatprep.subr.mxu0 0.0
        %1523 = vmatpush1.msra.mxu0 0.0
        %1524 = vmatprep.subr.mxu0 0.0
        %1525 = vmatpush1.msra.mxu0 0.0
        %1526 = vmatprep.subr.mxu0 0.0
        %1527 = vmatpush1.msra.mxu0 0.0
        %1528 = vmatprep.subr.mxu0 0.0
        %1529 = vmatpush1.msra.mxu0 0.0
        %1530 = vmatprep.subr.mxu0 0.0
        %1531 = vmatpush1.msra.mxu0 0.0
        %1532 = vmatprep.subr.mxu0 0.0
        %1533 = vmatpush1.msra.mxu0 0.0
        %1534 = vmatprep.subr.mxu0 0.0
        %1535 = vmatpush1.msra.mxu0 0.0
        %1536 = vmatprep.subr.mxu0 0.0
        %1537 = vmatpush1.msra.mxu0 0.0
        %1538 = vmatprep.subr.mxu0 0.0
        %1539 = vmatpush1.msra.mxu0 0.0
        %1540 = vmatprep.subr.mxu0 0.0
        %1541 = vmatpush1.msra.mxu0 0.0
        %1542 = vmatprep.subr.mxu0 0.0
        %1543 = vmatpush1.msra.mxu0 0.0
        %1544 = vmatprep.subr.mxu0 0.0
        %1545 = vmatpush1.msra.mxu0 0.0
        %1546 = vmatprep.subr.mxu0 0.0
        %1547 = vmatpush1.msra.mxu0 0.0
        %1548 = vmatprep.subr.mxu0 0.0
        %1549 = vmatpush1.msra.mxu0 0.0
        %1550 = vmatprep.subr.mxu0 0.0
        %1551 = vmatpush1.msra.mxu0 0.0
        %1552 = vmatprep.subr.mxu0 0.0
        %1553 = vmatpush1.msra.mxu0 0.0
        %1554 = vmatprep.subr.mxu0 0.0
        %1555 = vmatpush1.msra.mxu0 0.0
        %1556 = vmatprep.subr.mxu0 0.0
        %1557 = vmatpush1.msra.mxu0 0.0
        %1558 = vmatprep.subr.mxu0 0.0
        %1559 = vmatpush1.msra.mxu0 0.0
        %1560 = vmatprep.subr.mxu0 0.0
        %1561 = vmatpush1.msra.mxu0 0.0
        %1562 = vmatprep.subr.mxu0 0.0
        %1563 = vmatpush1.msra.mxu0 0.0
        %1564 = vmatprep.subr.mxu0 0.0
        %1565 = vmatpush1.msra.mxu0 0.0
        %1566 = vmatprep.subr.mxu0 0.0
        %1567 = vmatpush1.msra.mxu0 0.0
        %1568 = vmatprep.subr.mxu0 0.0
        %1569 = vmatpush1.msra.mxu0 0.0
        %1570 = vmatprep.subr.mxu0 0.0
        %1571 = vmatpush1.msra.mxu0 0.0
        %1572 = vmatprep.subr.mxu0 0.0
        %1573 = vmatpush1.msra.mxu0 0.0
        %1574 = vmatprep.subr.mxu0 0.0
        %1575 = vmatpush1.msra.mxu0 0.0
        %1576 = vmatprep.subr.mxu0 0.0
        %1577 = vmatpush1.msra.mxu0 0.0
        %1578 = vmatprep.mubr.f32.mxu0 0.0
        %1579 = vmatmul.mubr.f32.gmra.mrb[0].mxu0 %v1505
        %v1580 = vpop.f32.mrb[0].mxu0
        %v1581 = vadd.f32 0.0, %v1580
        %v1582 = vpop.f32.mrb[0].mxu0
        %1583 = vmatprep.mubr.f32.mxu0 0.0
        %1584 = vmatmul.mubr.f32.gmra.mrb[0].mxu0 %v1508
        %v1585 = vpop.f32.mrb[0].mxu0
        %v1586 = vadd.f32 0.0, %v1585
        %v1587 = vpop.f32.mrb[0].mxu0
        %1588 = vdwg.mxu0
        %v1590 = vsel %vm1086, %v1404, 0
        %v1593 = vsel %vm1086, %v1406, 0
        %1595 = vmatprep.subr.mxu0 0.0
        %1596 = vmatpush1.msra.mxu0 %v1072
        %1597 = vmatprep.subr.mxu0 0.0
        %1598 = vmatpush1.msra.mxu0 %v1077
        %1599 = vmatprep.subr.mxu0 0.0
        %1600 = vmatpush1.msra.mxu0 0.0
        %1601 = vmatprep.subr.mxu0 0.0
        %1602 = vmatpush1.msra.mxu0 0.0
        %1603 = vmatprep.subr.mxu0 0.0
        %1604 = vmatpush1.msra.mxu0 0.0
        %1605 = vmatprep.subr.mxu0 0.0
        %1606 = vmatpush1.msra.mxu0 0.0
        %1607 = vmatprep.subr.mxu0 0.0
        %1608 = vmatpush1.msra.mxu0 0.0
        %1609 = vmatprep.subr.mxu0 0.0
        %1610 = vmatpush1.msra.mxu0 0.0
        %1611 = vmatprep.subr.mxu0 0.0
        %1612 = vmatpush1.msra.mxu0 0.0
        %1613 = vmatprep.subr.mxu0 0.0
        %1614 = vmatpush1.msra.mxu0 0.0
        %1615 = vmatprep.subr.mxu0 0.0
        %1616 = vmatpush1.msra.mxu0 0.0
        %1617 = vmatprep.subr.mxu0 0.0
        %1618 = vmatpush1.msra.mxu0 0.0
        %1619 = vmatprep.subr.mxu0 0.0
        %1620 = vmatpush1.msra.mxu0 0.0
        %1621 = vmatprep.subr.mxu0 0.0
        %1622 = vmatpush1.msra.mxu0 0.0
        %1623 = vmatprep.subr.mxu0 0.0
        %1624 = vmatpush1.msra.mxu0 0.0
        %1625 = vmatprep.subr.mxu0 0.0
        %1626 = vmatpush1.msra.mxu0 0.0
        %1627 = vmatprep.subr.mxu0 0.0
        %1628 = vmatpush1.msra.mxu0 0.0
        %1629 = vmatprep.subr.mxu0 0.0
        %1630 = vmatpush1.msra.mxu0 0.0
        %1631 = vmatprep.subr.mxu0 0.0
        %1632 = vmatpush1.msra.mxu0 0.0
        %1633 = vmatprep.subr.mxu0 0.0
        %1634 = vmatpush1.msra.mxu0 0.0
        %1635 = vmatprep.subr.mxu0 0.0
        %1636 = vmatpush1.msra.mxu0 0.0
        %1637 = vmatprep.subr.mxu0 0.0
        %1638 = vmatpush1.msra.mxu0 0.0
        %1639 = vmatprep.subr.mxu0 0.0
        %1640 = vmatpush1.msra.mxu0 0.0
        %1641 = vmatprep.subr.mxu0 0.0
        %1642 = vmatpush1.msra.mxu0 0.0
        %1643 = vmatprep.subr.mxu0 0.0
        %1644 = vmatpush1.msra.mxu0 0.0
        %1645 = vmatprep.subr.mxu0 0.0
        %1646 = vmatpush1.msra.mxu0 0.0
        %1647 = vmatprep.subr.mxu0 0.0
        %1648 = vmatpush1.msra.mxu0 0.0
        %1649 = vmatprep.subr.mxu0 0.0
        %1650 = vmatpush1.msra.mxu0 0.0
        %1651 = vmatprep.subr.mxu0 0.0
        %1652 = vmatpush1.msra.mxu0 0.0
        %1653 = vmatprep.subr.mxu0 0.0
        %1654 = vmatpush1.msra.mxu0 0.0
        %1655 = vmatprep.subr.mxu0 0.0
        %1656 = vmatpush1.msra.mxu0 0.0
        %1657 = vmatprep.subr.mxu0 0.0
        %1658 = vmatpush1.msra.mxu0 0.0
        %1659 = vmatprep.mubr.f32.mxu0 0.0
        %1660 = vmatmul.mubr.f32.gmra.mrb[0].mxu0 %v1590
        %v1661 = vpop.f32.mrb[0].mxu0
        %v1662 = vadd.f32 %v1581, %v1661
        %v1663 = vpop.f32.mrb[0].mxu0
        %1664 = vmatprep.mubr.f32.mxu0 0.0
        %1665 = vmatmul.mubr.f32.gmra.mrb[0].mxu0 %v1593
        %v1666 = vpop.f32.mrb[0].mxu0
        %v1667 = vadd.f32 %v1586, %v1666
        %v1668 = vpop.f32.mrb[0].mxu0
        %1669 = vdwg.mxu0
        %1670 = vrot.lane.b32.xlu0 %v1084, 112
        %v1671 = vpop.permute.xlu0 %1670
        %1672 = vrot.lane.b32.xlu0 %v1085, 112
        %v1673 = vpop.permute.xlu0 %1672
        %v1674 = vsel %vm1086, %v1671, 0
        %v1676 = vsel %vm1086, %v1673, 0
        %1678 = vmatprep.subr.mxu0 0.0
        %1679 = vmatpush1.xpose.msra.mxu0 %v1094
        %1680 = vmatprep.subr.mxu0 0.0
        %1681 = vmatpush1.xpose.msra.mxu0 %v1097
        %1682 = vmatprep.subr.mxu0 0.0
        %1683 = vmatpush1.xpose.msra.mxu0 0.0
        %1684 = vmatprep.subr.mxu0 0.0
        %1685 = vmatpush1.xpose.msra.mxu0 0.0
        %1686 = vmatprep.subr.mxu0 0.0
        %1687 = vmatpush1.xpose.msra.mxu0 0.0
        %1688 = vmatprep.subr.mxu0 0.0
        %1689 = vmatpush1.xpose.msra.mxu0 0.0
        %1690 = vmatprep.subr.mxu0 0.0
        %1691 = vmatpush1.xpose.msra.mxu0 0.0
        %1692 = vmatprep.subr.mxu0 0.0
        %1693 = vmatpush1.xpose.msra.mxu0 0.0
        %1694 = vmatprep.subr.mxu0 0.0
        %1695 = vmatpush1.xpose.msra.mxu0 0.0
        %1696 = vmatprep.subr.mxu0 0.0
        %1697 = vmatpush1.xpose.msra.mxu0 0.0
        %1698 = vmatprep.subr.mxu0 0.0
        %1699 = vmatpush1.xpose.msra.mxu0 0.0
        %1700 = vmatprep.subr.mxu0 0.0
        %1701 = vmatpush1.xpose.msra.mxu0 0.0
        %1702 = vmatprep.subr.mxu0 0.0
        %1703 = vmatpush1.xpose.msra.mxu0 0.0
        %1704 = vmatprep.subr.mxu0 0.0
        %1705 = vmatpush1.xpose.msra.mxu0 0.0
        %1706 = vmatprep.subr.mxu0 0.0
        %1707 = vmatpush1.xpose.msra.mxu0 0.0
        %1708 = vmatprep.subr.mxu0 0.0
        %1709 = vmatpush1.xpose.msra.mxu0 0.0
        %1710 = vmatprep.subr.mxu0 0.0
        %1711 = vmatpush1.xpose.msra.mxu0 0.0
        %1712 = vmatprep.subr.mxu0 0.0
        %1713 = vmatpush1.xpose.msra.mxu0 0.0
        %1714 = vmatprep.subr.mxu0 0.0
        %1715 = vmatpush1.xpose.msra.mxu0 0.0
        %1716 = vmatprep.subr.mxu0 0.0
        %1717 = vmatpush1.xpose.msra.mxu0 0.0
        %1718 = vmatprep.subr.mxu0 0.0
        %1719 = vmatpush1.xpose.msra.mxu0 0.0
        %1720 = vmatprep.subr.mxu0 0.0
        %1721 = vmatpush1.xpose.msra.mxu0 0.0
        %1722 = vmatprep.subr.mxu0 0.0
        %1723 = vmatpush1.xpose.msra.mxu0 0.0
        %1724 = vmatprep.subr.mxu0 0.0
        %1725 = vmatpush1.xpose.msra.mxu0 0.0
        %1726 = vmatprep.subr.mxu0 0.0
        %1727 = vmatpush1.xpose.msra.mxu0 0.0
        %1728 = vmatprep.subr.mxu0 0.0
        %1729 = vmatpush1.xpose.msra.mxu0 0.0
        %1730 = vmatprep.subr.mxu0 0.0
        %1731 = vmatpush1.xpose.msra.mxu0 0.0
        %1732 = vmatprep.subr.mxu0 0.0
        %1733 = vmatpush1.xpose.msra.mxu0 0.0
        %1734 = vmatprep.subr.mxu0 0.0
        %1735 = vmatpush1.xpose.msra.mxu0 0.0
        %1736 = vmatprep.subr.mxu0 0.0
        %1737 = vmatpush1.xpose.msra.mxu0 0.0
        %1738 = vmatprep.subr.mxu0 0.0
        %1739 = vmatpush1.xpose.msra.mxu0 0.0
        %1740 = vmatprep.subr.mxu0 0.0
        %1741 = vmatpush1.xpose.msra.mxu0 0.0
        %1742 = vmatprep.mubr.f32.mxu0 0.0
        %1743 = vmatmul.mubr.f32.gmra.mrb[0].mxu0 %v1674
        %v1744 = vpop.f32.mrb[0].mxu0
        %v1745 = vadd.f32 0.0, %v1744
        %v1746 = vpop.f32.mrb[0].mxu0
        %1747 = vmatprep.mubr.f32.mxu0 0.0
        %1748 = vmatmul.mubr.f32.gmra.mrb[0].mxu0 %v1676
        %v1749 = vpop.f32.mrb[0].mxu0
        %v1750 = vadd.f32 0.0, %v1749
        %v1751 = vpop.f32.mrb[0].mxu0
        %1752 = vdwg.mxu0
        %1754 = vset.pattern.permute.xlu0 0
        %1755 = vperm.xlu0 %1754, %v1745
        %v1756 = vpop.permute.xlu0 %1755
        %1759 = vset.pattern.permute.xlu0 0
        %1760 = vperm.xlu0 %1759, %v1750
        %v1761 = vpop.permute.xlu0 %1760
        %v1763 = vsel %vm1174, %v1756, 0.0
        %v1764 = vsel %vm1175, %v1761, 0.0
        %1765 = vrot.lane.b32.xlu0 %v986, 112
        %v1766 = vpop.permute.xlu0 %1765
        %1767 = vrot.lane.b32.xlu0 %v991, 112
        %v1768 = vpop.permute.xlu0 %1767
        %v1769 = vsel %vm1086, %v1766, 0
        %v1771 = vsel %vm1086, %v1768, 0
        %1773 = vmatprep.subr.mxu0 0.0
        %1774 = vmatpush1.xpose.msra.mxu0 %v1769
        %1775 = vmatprep.subr.mxu0 0.0
        %1776 = vmatpush1.xpose.msra.mxu0 %v1771
        %1777 = vmatprep.subr.mxu0 0.0
        %1778 = vmatpush1.xpose.msra.mxu0 0.0
        %1779 = vmatprep.subr.mxu0 0.0
        %1780 = vmatpush1.xpose.msra.mxu0 0.0
        %1781 = vmatprep.subr.mxu0 0.0
        %1782 = vmatpush1.xpose.msra.mxu0 0.0
        %1783 = vmatprep.subr.mxu0 0.0
        %1784 = vmatpush1.xpose.msra.mxu0 0.0
        %1785 = vmatprep.subr.mxu0 0.0
        %1786 = vmatpush1.xpose.msra.mxu0 0.0
        %1787 = vmatprep.subr.mxu0 0.0
        %1788 = vmatpush1.xpose.msra.mxu0 0.0
        %1789 = vmatprep.subr.mxu0 0.0
        %1790 = vmatpush1.xpose.msra.mxu0 0.0
        %1791 = vmatprep.subr.mxu0 0.0
        %1792 = vmatpush1.xpose.msra.mxu0 0.0
        %1793 = vmatprep.subr.mxu0 0.0
        %1794 = vmatpush1.xpose.msra.mxu0 0.0
        %1795 = vmatprep.subr.mxu0 0.0
        %1796 = vmatpush1.xpose.msra.mxu0 0.0
        %1797 = vmatprep.subr.mxu0 0.0
        %1798 = vmatpush1.xpose.msra.mxu0 0.0
        %1799 = vmatprep.subr.mxu0 0.0
        %1800 = vmatpush1.xpose.msra.mxu0 0.0
        %1801 = vmatprep.subr.mxu0 0.0
        %1802 = vmatpush1.xpose.msra.mxu0 0.0
        %1803 = vmatprep.subr.mxu0 0.0
        %1804 = vmatpush1.xpose.msra.mxu0 0.0
        %1805 = vmatprep.subr.mxu0 0.0
        %1806 = vmatpush1.xpose.msra.mxu0 0.0
        %1807 = vmatprep.subr.mxu0 0.0
        %1808 = vmatpush1.xpose.msra.mxu0 0.0
        %1809 = vmatprep.subr.mxu0 0.0
        %1810 = vmatpush1.xpose.msra.mxu0 0.0
        %1811 = vmatprep.subr.mxu0 0.0
        %1812 = vmatpush1.xpose.msra.mxu0 0.0
        %1813 = vmatprep.subr.mxu0 0.0
        %1814 = vmatpush1.xpose.msra.mxu0 0.0
        %1815 = vmatprep.subr.mxu0 0.0
        %1816 = vmatpush1.xpose.msra.mxu0 0.0
        %1817 = vmatprep.subr.mxu0 0.0
        %1818 = vmatpush1.xpose.msra.mxu0 0.0
        %1819 = vmatprep.subr.mxu0 0.0
        %1820 = vmatpush1.xpose.msra.mxu0 0.0
        %1821 = vmatprep.subr.mxu0 0.0
        %1822 = vmatpush1.xpose.msra.mxu0 0.0
        %1823 = vmatprep.subr.mxu0 0.0
        %1824 = vmatpush1.xpose.msra.mxu0 0.0
        %1825 = vmatprep.subr.mxu0 0.0
        %1826 = vmatpush1.xpose.msra.mxu0 0.0
        %1827 = vmatprep.subr.mxu0 0.0
        %1828 = vmatpush1.xpose.msra.mxu0 0.0
        %1829 = vmatprep.subr.mxu0 0.0
        %1830 = vmatpush1.xpose.msra.mxu0 0.0
        %1831 = vmatprep.subr.mxu0 0.0
        %1832 = vmatpush1.xpose.msra.mxu0 0.0
        %1833 = vmatprep.subr.mxu0 0.0
        %1834 = vmatpush1.xpose.msra.mxu0 0.0
        %1835 = vmatprep.subr.mxu0 0.0
        %1836 = vmatpush1.xpose.msra.mxu0 0.0
        %1837 = vmatprep.mubr.f32.mxu0 0.0
        %1838 = vmatmul.mubr.f32.gmra.mrb[0].mxu0 %v1674
        %v1839 = vpop.f32.mrb[0].mxu0
        %v1840 = vadd.f32 %v1763, %v1839
        %v1841 = vpop.f32.mrb[0].mxu0
        %1842 = vmatprep.mubr.f32.mxu0 0.0
        %1843 = vmatmul.mubr.f32.gmra.mrb[0].mxu0 %v1676
        %v1844 = vpop.f32.mrb[0].mxu0
        %v1845 = vadd.f32 %v1764, %v1844
        %v1846 = vpop.f32.mrb[0].mxu0
        %1847 = vdwg.mxu0
        %1848 = vset.pattern.permute.xlu0 1
        %1849 = vperm.xlu0 %1848, %v1745
        %v1850 = vpop.permute.xlu0 %1849
        %1852 = vset.pattern.permute.xlu0 1
        %1853 = vperm.xlu0 %1852, %v1750
        %v1854 = vpop.permute.xlu0 %1853
        %v1856 = vsel %vm1269, %v1850, 0.0
        %v1857 = vsel %vm1270, %v1854, 0.0
        %v1858 = vadd.f32 %v1840, %v1856
        %v1859 = vadd.f32 %v1845, %v1857
        %1860 = vset.pattern.permute.xlu0 2
        %1861 = vperm.xlu0 %1860, %v1745
        %v1862 = vpop.permute.xlu0 %1861
        %1864 = vset.pattern.permute.xlu0 2
        %1865 = vperm.xlu0 %1864, %v1750
        %v1866 = vpop.permute.xlu0 %1865
        %v1868 = vsel %vm1283, %v1862, 0.0
        %v1869 = vsel %vm1284, %v1866, 0.0
        %v1870 = vadd.f32 %v1858, %v1868
        %v1871 = vadd.f32 %v1859, %v1869
        %1872 = vset.pattern.permute.xlu0 3
        %1873 = vperm.xlu0 %1872, %v1745
        %v1874 = vpop.permute.xlu0 %1873
        %1876 = vset.pattern.permute.xlu0 3
        %1877 = vperm.xlu0 %1876, %v1750
        %v1878 = vpop.permute.xlu0 %1877
        %v1880 = vsel %vm1297, %v1874, 0.0
        %v1881 = vsel %vm1298, %v1878, 0.0
        %v1882 = vadd.f32 %v1870, %v1880
        %v1883 = vadd.f32 %v1871, %v1881
        %1884 = vset.pattern.permute.xlu0 4
        %1885 = vperm.xlu0 %1884, %v1745
        %v1886 = vpop.permute.xlu0 %1885
        %1888 = vset.pattern.permute.xlu0 4
        %1889 = vperm.xlu0 %1888, %v1750
        %v1890 = vpop.permute.xlu0 %1889
        %v1892 = vsel %vm1311, %v1886, 0.0
        %v1893 = vsel %vm1312, %v1890, 0.0
        %v1894 = vadd.f32 %v1882, %v1892
        %v1895 = vadd.f32 %v1883, %v1893
        %1896 = vset.pattern.permute.xlu0 5
        %1897 = vperm.xlu0 %1896, %v1745
        %v1898 = vpop.permute.xlu0 %1897
        %1900 = vset.pattern.permute.xlu0 5
        %1901 = vperm.xlu0 %1900, %v1750
        %v1902 = vpop.permute.xlu0 %1901
        %v1904 = vsel %vm1325, %v1898, 0.0
        %v1905 = vsel %vm1326, %v1902, 0.0
        %v1906 = vadd.f32 %v1894, %v1904
        %v1907 = vadd.f32 %v1895, %v1905
        %1908 = vset.pattern.permute.xlu0 6
        %1909 = vperm.xlu0 %1908, %v1745
        %v1910 = vpop.permute.xlu0 %1909
        %1912 = vset.pattern.permute.xlu0 6
        %1913 = vperm.xlu0 %1912, %v1750
        %v1914 = vpop.permute.xlu0 %1913
        %v1916 = vsel %vm1339, %v1910, 0.0
        %v1917 = vsel %vm1340, %v1914, 0.0
        %v1918 = vadd.f32 %v1906, %v1916
        %v1919 = vadd.f32 %v1907, %v1917
        %1920 = vset.pattern.permute.xlu0 7
        %1921 = vperm.xlu0 %1920, %v1745
        %v1922 = vpop.permute.xlu0 %1921
        %1924 = vset.pattern.permute.xlu0 7
        %1925 = vperm.xlu0 %1924, %v1750
        %v1926 = vpop.permute.xlu0 %1925
        %v1928 = vsel %vm1353, %v1922, 0.0
        %v1929 = vsel %vm1354, %v1926, 0.0
        %v1930 = vadd.f32 %v1918, %v1928
        %v1931 = vadd.f32 %v1919, %v1929
        %1932 = vset.pattern.permute.xlu0 8
        %1933 = vperm.xlu0 %1932, %v1745
        %v1934 = vpop.permute.xlu0 %1933
        %1936 = vset.pattern.permute.xlu0 8
        %1937 = vperm.xlu0 %1936, %v1750
        %v1938 = vpop.permute.xlu0 %1937
        %v1940 = vsel %vm1367, %v1934, 0.0
        %v1941 = vsel %vm1368, %v1938, 0.0
        %v1942 = vadd.f32 %v1930, %v1940
        %v1943 = vadd.f32 %v1931, %v1941
        %v1944 = vsel %vm1381, %v1942, -10000.0
        %v1945 = vsel %vm1382, %v1943, -10000.0
        %v1946 = vsel %vm1086, %v1944, -inf
        %1947 = vmax.xlane.f32.xlu0 %v1946
        %v1948 = vpop.xlane.xlu0 %1947
        %v1949 = vsel %vm1086, %v1945, -inf
        %1950 = vmax.xlane.f32.xlu0 %v1949
        %v1951 = vpop.xlane.xlu0 %1950
        %v1952 = vsub.f32 %v1944, %v1948
        %v1953 = vsub.f32 %v1945, %v1951
        %v1954 = vmul.f32 %v1952, 1.442695
        %v1955 = vpow.pop %v1954
        %v1956 = vmul.f32 %v1953, 1.442695
        %v1957 = vpow.pop %v1956
        %v1958 = vsel %vm1086, %v1955, 0.0
        %1959 = vadd.xlane.f32.xlu0 %v1958
        %v1960 = vpop.xlane.xlu0 %1959
        %v1961 = vsel %vm1086, %v1957, 0.0
        %1962 = vadd.xlane.f32.xlu0 %v1961
        %v1963 = vpop.xlane.xlu0 %1962
        %v1964 = vrcp.pop %v1960
        %v1965 = vmul.f32 %v1955, %v1964
        %v1966 = vrcp.pop %v1963
        %v1967 = vmul.f32 %v1957, %v1966
        %v1968 = vsel %vm1174, %v1965, 0.0
        %v1969 = vsel %vm1175, %v1967, 0.0
        %v1970 = vsel %vm1086, %v1968, 0.0
        %1971 = vadd.xlane.f32.xlu0 %v1970
        %v1972 = vpop.xlane.xlu0 %1971
        %v1973 = vsel %vm1086, %v1969, 0.0
        %1974 = vadd.xlane.f32.xlu0 %v1973
        %v1975 = vpop.xlane.xlu0 %1974
        %v1976 = vsel %vm1269, %v1965, 0.0
        %v1977 = vsel %vm1270, %v1967, 0.0
        %v1978 = vsel %vm1086, %v1976, 0.0
        %1979 = vadd.xlane.f32.xlu0 %v1978
        %v1980 = vpop.xlane.xlu0 %1979
        %v1981 = vsel %vm1086, %v1977, 0.0
        %1982 = vadd.xlane.f32.xlu0 %v1981
        %v1983 = vpop.xlane.xlu0 %1982
        %v1984 = vsel %vm1283, %v1965, 0.0
        %v1985 = vsel %vm1284, %v1967, 0.0
        %v1986 = vsel %vm1086, %v1984, 0.0
        %1987 = vadd.xlane.f32.xlu0 %v1986
        %v1988 = vpop.xlane.xlu0 %1987
        %v1989 = vsel %vm1086, %v1985, 0.0
        %1990 = vadd.xlane.f32.xlu0 %v1989
        %v1991 = vpop.xlane.xlu0 %1990
        %v1992 = vsel %vm1297, %v1965, 0.0
        %v1993 = vsel %vm1298, %v1967, 0.0
        %v1994 = vsel %vm1086, %v1992, 0.0
        %1995 = vadd.xlane.f32.xlu0 %v1994
        %v1996 = vpop.xlane.xlu0 %1995
        %v1997 = vsel %vm1086, %v1993, 0.0
        %1998 = vadd.xlane.f32.xlu0 %v1997
        %v1999 = vpop.xlane.xlu0 %1998
        %v2000 = vsel %vm1311, %v1965, 0.0
        %v2001 = vsel %vm1312, %v1967, 0.0
        %v2002 = vsel %vm1086, %v2000, 0.0
        %2003 = vadd.xlane.f32.xlu0 %v2002
        %v2004 = vpop.xlane.xlu0 %2003
        %v2005 = vsel %vm1086, %v2001, 0.0
        %2006 = vadd.xlane.f32.xlu0 %v2005
        %v2007 = vpop.xlane.xlu0 %2006
        %v2008 = vsel %vm1325, %v1965, 0.0
        %v2009 = vsel %vm1326, %v1967, 0.0
        %v2010 = vsel %vm1086, %v2008, 0.0
        %2011 = vadd.xlane.f32.xlu0 %v2010
        %v2012 = vpop.xlane.xlu0 %2011
        %v2013 = vsel %vm1086, %v2009, 0.0
        %2014 = vadd.xlane.f32.xlu0 %v2013
        %v2015 = vpop.xlane.xlu0 %2014
        %v2016 = vsel %vm1339, %v1965, 0.0
        %v2017 = vsel %vm1340, %v1967, 0.0
        %v2018 = vsel %vm1086, %v2016, 0.0
        %2019 = vadd.xlane.f32.xlu0 %v2018
        %v2020 = vpop.xlane.xlu0 %2019
        %v2021 = vsel %vm1086, %v2017, 0.0
        %2022 = vadd.xlane.f32.xlu0 %v2021
        %v2023 = vpop.xlane.xlu0 %2022
        %v2024 = vsel %vm1353, %v1965, 0.0
        %v2025 = vsel %vm1354, %v1967, 0.0
        %v2026 = vsel %vm1086, %v2024, 0.0
        %2027 = vadd.xlane.f32.xlu0 %v2026
        %v2028 = vpop.xlane.xlu0 %2027
        %v2029 = vsel %vm1086, %v2025, 0.0
        %2030 = vadd.xlane.f32.xlu0 %v2029
        %v2031 = vpop.xlane.xlu0 %2030
        %v2032 = vsel %vm1367, %v1965, 0.0
        %v2033 = vsel %vm1368, %v1967, 0.0
        %v2034 = vsel %vm1086, %v2032, 0.0
        %2035 = vadd.xlane.f32.xlu0 %v2034
        %v2036 = vpop.xlane.xlu0 %2035
        %v2037 = vsel %vm1086, %v2033, 0.0
        %2038 = vadd.xlane.f32.xlu0 %v2037
        %v2039 = vpop.xlane.xlu0 %2038
        %v2040 = vsel %vm1479, %v1972, %v1980
        %v2041 = vsel %vm1479, %v1975, %v1983
        %v2042 = vsel %vm1482, %v2040, %v1988
        %v2043 = vsel %vm1482, %v2041, %v1991
        %v2044 = vsel %vm1485, %v2042, %v1996
        %v2045 = vsel %vm1485, %v2043, %v1999
        %v2046 = vsel %vm1488, %v2044, %v2004
        %v2047 = vsel %vm1488, %v2045, %v2007
        %v2048 = vsel %vm1491, %v2046, %v2012
        %v2049 = vsel %vm1491, %v2047, %v2015
        %v2050 = vsel %vm1494, %v2048, %v2020
        %v2051 = vsel %vm1494, %v2049, %v2023
        %v2052 = vsel %vm1497, %v2050, %v2028
        %v2053 = vsel %vm1497, %v2051, %v2031
        %v2054 = vsel %vm1500, %v2052, %v2036
        %v2055 = vsel %vm1500, %v2053, %v2039
        %v2057 = vsel %vm1503, %v2054, 0
        %v2060 = vsel %vm1503, %v2055, 0
        %2062 = vmatprep.subr.mxu0 0.0
        %2063 = vmatpush1.msra.mxu0 %v1082
        %2064 = vmatprep.subr.mxu0 0.0
        %2065 = vmatpush1.msra.mxu0 %v1512
        %2066 = vmatprep.subr.mxu0 0.0
        %2067 = vmatpush1.msra.mxu0 0.0
        %2068 = vmatprep.subr.mxu0 0.0
        %2069 = vmatpush1.msra.mxu0 0.0
        %2070 = vmatprep.subr.mxu0 0.0
        %2071 = vmatpush1.msra.mxu0 0.0
        %2072 = vmatprep.subr.mxu0 0.0
        %2073 = vmatpush1.msra.mxu0 0.0
        %2074 = vmatprep.subr.mxu0 0.0
        %2075 = vmatpush1.msra.mxu0 0.0
        %2076 = vmatprep.subr.mxu0 0.0
        %2077 = vmatpush1.msra.mxu0 0.0
        %2078 = vmatprep.subr.mxu0 0.0
        %2079 = vmatpush1.msra.mxu0 0.0
        %2080 = vmatprep.subr.mxu0 0.0
        %2081 = vmatpush1.msra.mxu0 0.0
        %2082 = vmatprep.subr.mxu0 0.0
        %2083 = vmatpush1.msra.mxu0 0.0
        %2084 = vmatprep.subr.mxu0 0.0
        %2085 = vmatpush1.msra.mxu0 0.0
        %2086 = vmatprep.subr.mxu0 0.0
        %2087 = vmatpush1.msra.mxu0 0.0
        %2088 = vmatprep.subr.mxu0 0.0
        %2089 = vmatpush1.msra.mxu0 0.0
        %2090 = vmatprep.subr.mxu0 0.0
        %2091 = vmatpush1.msra.mxu0 0.0
        %2092 = vmatprep.subr.mxu0 0.0
        %2093 = vmatpush1.msra.mxu0 0.0
        %2094 = vmatprep.subr.mxu0 0.0
        %2095 = vmatpush1.msra.mxu0 0.0
        %2096 = vmatprep.subr.mxu0 0.0
        %2097 = vmatpush1.msra.mxu0 0.0
        %2098 = vmatprep.subr.mxu0 0.0
        %2099 = vmatpush1.msra.mxu0 0.0
        %2100 = vmatprep.subr.mxu0 0.0
        %2101 = vmatpush1.msra.mxu0 0.0
        %2102 = vmatprep.subr.mxu0 0.0
        %2103 = vmatpush1.msra.mxu0 0.0
        %2104 = vmatprep.subr.mxu0 0.0
        %2105 = vmatpush1.msra.mxu0 0.0
        %2106 = vmatprep.subr.mxu0 0.0
        %2107 = vmatpush1.msra.mxu0 0.0
        %2108 = vmatprep.subr.mxu0 0.0
        %2109 = vmatpush1.msra.mxu0 0.0
        %2110 = vmatprep.subr.mxu0 0.0
        %2111 = vmatpush1.msra.mxu0 0.0
        %2112 = vmatprep.subr.mxu0 0.0
        %2113 = vmatpush1.msra.mxu0 0.0
        %2114 = vmatprep.subr.mxu0 0.0
        %2115 = vmatpush1.msra.mxu0 0.0
        %2116 = vmatprep.subr.mxu0 0.0
        %2117 = vmatpush1.msra.mxu0 0.0
        %2118 = vmatprep.subr.mxu0 0.0
        %2119 = vmatpush1.msra.mxu0 0.0
        %2120 = vmatprep.subr.mxu0 0.0
        %2121 = vmatpush1.msra.mxu0 0.0
        %2122 = vmatprep.subr.mxu0 0.0
        %2123 = vmatpush1.msra.mxu0 0.0
        %2124 = vmatprep.subr.mxu0 0.0
        %2125 = vmatpush1.msra.mxu0 0.0
        %2126 = vmatprep.mubr.f32.mxu0 0.0
        %2127 = vmatmul.mubr.f32.gmra.mrb[0].mxu0 %v2057
        %v2128 = vpop.f32.mrb[0].mxu0
        %v2129 = vadd.f32 0.0, %v2128
        %v2130 = vpop.f32.mrb[0].mxu0
        %2131 = vmatprep.mubr.f32.mxu0 0.0
        %2132 = vmatmul.mubr.f32.gmra.mrb[0].mxu0 %v2060
        %v2133 = vpop.f32.mrb[0].mxu0
        %v2134 = vadd.f32 0.0, %v2133
        %v2135 = vpop.f32.mrb[0].mxu0
        %2136 = vdwg.mxu0
        %2139 = vrot.lane.b32.xlu0 %v1072, 112
        %v2140 = vpop.permute.xlu0 %2139
        %2141 = vrot.lane.b32.xlu0 %v1077, 112
        %v2142 = vpop.permute.xlu0 %2141
        %v2146 = vsel %vm1086, %v1965, 0
        %v2149 = vsel %vm1086, %v1967, 0
        %2151 = vmatprep.subr.mxu0 0.0
        %2152 = vmatpush1.msra.mxu0 %v2140
        %2153 = vmatprep.subr.mxu0 0.0
        %2154 = vmatpush1.msra.mxu0 %v2142
        %2155 = vmatprep.subr.mxu0 0.0
        %2156 = vmatpush1.msra.mxu0 0.0
        %2157 = vmatprep.subr.mxu0 0.0
        %2158 = vmatpush1.msra.mxu0 0.0
        %2159 = vmatprep.subr.mxu0 0.0
        %2160 = vmatpush1.msra.mxu0 0.0
        %2161 = vmatprep.subr.mxu0 0.0
        %2162 = vmatpush1.msra.mxu0 0.0
        %2163 = vmatprep.subr.mxu0 0.0
        %2164 = vmatpush1.msra.mxu0 0.0
        %2165 = vmatprep.subr.mxu0 0.0
        %2166 = vmatpush1.msra.mxu0 0.0
        %2167 = vmatprep.subr.mxu0 0.0
        %2168 = vmatpush1.msra.mxu0 0.0
        %2169 = vmatprep.subr.mxu0 0.0
        %2170 = vmatpush1.msra.mxu0 0.0
        %2171 = vmatprep.subr.mxu0 0.0
        %2172 = vmatpush1.msra.mxu0 0.0
        %2173 = vmatprep.subr.mxu0 0.0
        %2174 = vmatpush1.msra.mxu0 0.0
        %2175 = vmatprep.subr.mxu0 0.0
        %2176 = vmatpush1.msra.mxu0 0.0
        %2177 = vmatprep.subr.mxu0 0.0
        %2178 = vmatpush1.msra.mxu0 0.0
        %2179 = vmatprep.subr.mxu0 0.0
        %2180 = vmatpush1.msra.mxu0 0.0
        %2181 = vmatprep.subr.mxu0 0.0
        %2182 = vmatpush1.msra.mxu0 0.0
        %2183 = vmatprep.subr.mxu0 0.0
        %2184 = vmatpush1.msra.mxu0 0.0
        %2185 = vmatprep.subr.mxu0 0.0
        %2186 = vmatpush1.msra.mxu0 0.0
        %2187 = vmatprep.subr.mxu0 0.0
        %2188 = vmatpush1.msra.mxu0 0.0
        %2189 = vmatprep.subr.mxu0 0.0
        %2190 = vmatpush1.msra.mxu0 0.0
        %2191 = vmatprep.subr.mxu0 0.0
        %2192 = vmatpush1.msra.mxu0 0.0
        %2193 = vmatprep.subr.mxu0 0.0
        %2194 = vmatpush1.msra.mxu0 0.0
        %2195 = vmatprep.subr.mxu0 0.0
        %2196 = vmatpush1.msra.mxu0 0.0
        %2197 = vmatprep.subr.mxu0 0.0
        %2198 = vmatpush1.msra.mxu0 0.0
        %2199 = vmatprep.subr.mxu0 0.0
        %2200 = vmatpush1.msra.mxu0 0.0
        %2201 = vmatprep.subr.mxu0 0.0
        %2202 = vmatpush1.msra.mxu0 0.0
        %2203 = vmatprep.subr.mxu0 0.0
        %2204 = vmatpush1.msra.mxu0 0.0
        %2205 = vmatprep.subr.mxu0 0.0
        %2206 = vmatpush1.msra.mxu0 0.0
        %2207 = vmatprep.subr.mxu0 0.0
        %2208 = vmatpush1.msra.mxu0 0.0
        %2209 = vmatprep.subr.mxu0 0.0
        %2210 = vmatpush1.msra.mxu0 0.0
        %2211 = vmatprep.subr.mxu0 0.0
        %2212 = vmatpush1.msra.mxu0 0.0
        %2213 = vmatprep.subr.mxu0 0.0
        %2214 = vmatpush1.msra.mxu0 0.0
        %2215 = vmatprep.mubr.f32.mxu0 0.0
        %2216 = vmatmul.mubr.f32.gmra.mrb[0].mxu0 %v2146
        %v2217 = vpop.f32.mrb[0].mxu0
        %v2218 = vadd.f32 %v2129, %v2217
        %v2219 = vpop.f32.mrb[0].mxu0
        %2220 = vmatprep.mubr.f32.mxu0 0.0
        %2221 = vmatmul.mubr.f32.gmra.mrb[0].mxu0 %v2149
        %v2222 = vpop.f32.mrb[0].mxu0
        %v2223 = vadd.f32 %v2134, %v2222
        %v2224 = vpop.f32.mrb[0].mxu0
        %2225 = vdwg.mxu0
        %2228 = vrot.lane.b32.xlu0 %v2218, 16
        %v2229 = vpop.permute.xlu0 %2228
        %2230 = vrot.lane.b32.xlu0 %v2223, 16
        %v2231 = vpop.permute.xlu0 %2230
        %v2234 = vsel %vm1086, %v1662, %v2229
        %v2235 = vsel %vm1086, %v1667, %v2231
        %v2236 = vld [vmem:[%s9] sm:$0xff]
        %v2237 = vld [vmem:[%s9 + $0x8] sm:$0xff]
        %v2238 = vld [vmem:[%s9 + $0x10] sm:$0xff]
        %v2239 = vld [vmem:[%s9 + $0x18] sm:$0xff]
        %v2240 = vld [vmem:[%s10] sm:$0x1]
        %v2242 = vlaneseq
        %v2243 = vshrl.u32 %v2242, 7
        %v2244 = vsub.s32 0, %v2243
        %v2245 = vrot.slane %v2240, %v2244
        %v2248 = vsel %vm826, %v2234, 0
        %v2251 = vsel %vm826, %v2235, 0
        %2253 = vmatprep.subr.mxu0 0.0
        %2254 = vmatpush1.msra.mxu0 %v2236
        %2255 = vmatprep.subr.mxu0 0.0
        %2256 = vmatpush1.msra.mxu0 %v2237
        %2257 = vmatprep.subr.mxu0 0.0
        %2258 = vmatpush1.msra.mxu0 %v2238
        %2259 = vmatprep.subr.mxu0 0.0
        %2260 = vmatpush1.msra.mxu0 %v2239
        %2261 = vmatprep.subr.mxu0 0.0
        %2262 = vmatpush1.msra.mxu0 0.0
        %2263 = vmatprep.subr.mxu0 0.0
        %2264 = vmatpush1.msra.mxu0 0.0
        %2265 = vmatprep.subr.mxu0 0.0
        %2266 = vmatpush1.msra.mxu0 0.0
        %2267 = vmatprep.subr.mxu0 0.0
        %2268 = vmatpush1.msra.mxu0 0.0
        %2269 = vmatprep.subr.mxu0 0.0
        %2270 = vmatpush1.msra.mxu0 0.0
        %2271 = vmatprep.subr.mxu0 0.0
        %2272 = vmatpush1.msra.mxu0 0.0
        %2273 = vmatprep.subr.mxu0 0.0
        %2274 = vmatpush1.msra.mxu0 0.0
        %2275 = vmatprep.subr.mxu0 0.0
        %2276 = vmatpush1.msra.mxu0 0.0
        %2277 = vmatprep.subr.mxu0 0.0
        %2278 = vmatpush1.msra.mxu0 0.0
        %2279 = vmatprep.subr.mxu0 0.0
        %2280 = vmatpush1.msra.mxu0 0.0
        %2281 = vmatprep.subr.mxu0 0.0
        %2282 = vmatpush1.msra.mxu0 0.0
        %2283 = vmatprep.subr.mxu0 0.0
        %2284 = vmatpush1.msra.mxu0 0.0
        %2285 = vmatprep.subr.mxu0 0.0
        %2286 = vmatpush1.msra.mxu0 0.0
        %2287 = vmatprep.subr.mxu0 0.0
        %2288 = vmatpush1.msra.mxu0 0.0
        %2289 = vmatprep.subr.mxu0 0.0
        %2290 = vmatpush1.msra.mxu0 0.0
        %2291 = vmatprep.subr.mxu0 0.0
        %2292 = vmatpush1.msra.mxu0 0.0
        %2293 = vmatprep.subr.mxu0 0.0
        %2294 = vmatpush1.msra.mxu0 0.0
        %2295 = vmatprep.subr.mxu0 0.0
        %2296 = vmatpush1.msra.mxu0 0.0
        %2297 = vmatprep.subr.mxu0 0.0
        %2298 = vmatpush1.msra.mxu0 0.0
        %2299 = vmatprep.subr.mxu0 0.0
        %2300 = vmatpush1.msra.mxu0 0.0
        %2301 = vmatprep.subr.mxu0 0.0
        %2302 = vmatpush1.msra.mxu0 0.0
        %2303 = vmatprep.subr.mxu0 0.0
        %2304 = vmatpush1.msra.mxu0 0.0
        %2305 = vmatprep.subr.mxu0 0.0
        %2306 = vmatpush1.msra.mxu0 0.0
        %2307 = vmatprep.subr.mxu0 0.0
        %2308 = vmatpush1.msra.mxu0 0.0
        %2309 = vmatprep.subr.mxu0 0.0
        %2310 = vmatpush1.msra.mxu0 0.0
        %2311 = vmatprep.subr.mxu0 0.0
        %2312 = vmatpush1.msra.mxu0 0.0
        %2313 = vmatprep.subr.mxu0 0.0
        %2314 = vmatpush1.msra.mxu0 0.0
        %2315 = vmatprep.subr.mxu0 0.0
        %2316 = vmatpush1.msra.mxu0 0.0
        %2317 = vmatprep.mubr.f32.mxu0 0.0
        %2318 = vmatmul.mubr.f32.gmra.mrb[0].mxu0 %v2248
        %v2319 = vpop.f32.mrb[0].mxu0
        %v2320 = vadd.f32 %v2245, %v2319
        %v2321 = vpop.f32.mrb[0].mxu0
        %2322 = vmatprep.mubr.f32.mxu0 0.0
        %2323 = vmatmul.mubr.f32.gmra.mrb[0].mxu0 %v2251
        %v2324 = vpop.f32.mrb[0].mxu0
        %v2325 = vadd.f32 %v2245, %v2324
        %v2326 = vpop.f32.mrb[0].mxu0
        %2327 = vdwg.mxu0
        %v2328 = vadd.f32 %v798, %v2320
        %v2329 = vadd.f32 %v799, %v2325
        %v2330 = vld [vmem:[%s13] sm:$0x1]
        %v2331 = vld [vmem:[%s14] sm:$0x1]
        %v2332 = vsel %vm826, %v2328, 0.0
        %2333 = vadd.xlane.f32.xlu0 %v2332
        %v2334 = vpop.xlane.xlu0 %2333
        %v2335 = vsel %vm826, %v2329, 0.0
        %2336 = vadd.xlane.f32.xlu0 %v2335
        %v2337 = vpop.xlane.xlu0 %2336
        %v2338 = vrcp.pop 32.0
        %v2339 = vmul.f32 %v2334, %v2338
        %v2340 = vmul.f32 %v2337, %v2338
        %v2341 = vsub.f32 %v2328, %v2339
        %v2342 = vsub.f32 %v2329, %v2340
        %v2343 = vmul.f32 %v2341, %v2341
        %v2344 = vmul.f32 %v2342, %v2342
        %v2345 = vsel %vm826, %v2343, 0.0
        %2346 = vadd.xlane.f32.xlu0 %v2345
        %v2347 = vpop.xlane.xlu0 %2346
        %v2348 = vsel %vm826, %v2344, 0.0
        %2349 = vadd.xlane.f32.xlu0 %v2348
        %v2350 = vpop.xlane.xlu0 %2349
        %v2351 = vmul.f32 %v2347, %v2338
        %v2352 = vmul.f32 %v2350, %v2338
        %v2353 = vadd.f32 %v2351, 1e-05
        %v2354 = vadd.f32 %v2352, 1e-05
        %v2355 = vrsqrt.pop %v2353
        %v2356 = vrsqrt.pop %v2354
        %v2357 = vmul.f32 %v2341, %v2355
        %v2358 = vmul.f32 %v2342, %v2356
        %v2360 = vlaneseq
        %v2361 = vshrl.u32 %v2360, 7
        %v2362 = vsub.s32 0, %v2361
        %v2363 = vrot.slane %v2330, %v2362
        %v2365 = vmul.f32 %v2357, %v2363
        %v2366 = vmul.f32 %v2358, %v2363
        %v2368 = vlaneseq
        %v2369 = vshrl.u32 %v2368, 7
        %v2370 = vsub.s32 0, %v2369
        %v2371 = vrot.slane %v2331, %v2370
        %v2373 = vadd.f32 %v2365, %v2371
        %v2374 = vadd.f32 %v2366, %v2371
        %v2375 = vmul.f32 %v2373, %v791
        %v2376 = vmul.f32 %v2374, %v796
        %v2377 = vld [vmem:[%s15] sm:$0xff]
        %v2378 = vld [vmem:[%s15 + $0x8] sm:$0xff]
        %v2379 = vld [vmem:[%s15 + $0x10] sm:$0xff]
        %v2380 = vld [vmem:[%s15 + $0x18] sm:$0xff]
        %v2381 = vld [vmem:[%s15 + $0x20] sm:$0xff]
        %v2382 = vld [vmem:[%s15 + $0x28] sm:$0xff]
        %v2383 = vld [vmem:[%s15 + $0x30] sm:$0xff]
        %v2384 = vld [vmem:[%s15 + $0x38] sm:$0xff]
        %v2385 = vld [vmem:[%s15 + $0x40] sm:$0xff]
        %v2386 = vld [vmem:[%s15 + $0x48] sm:$0xff]
        %v2387 = vld [vmem:[%s15 + $0x50] sm:$0xff]
        %v2388 = vld [vmem:[%s15 + $0x58] sm:$0xff]
        %v2389 = vld [vmem:[%s16] sm:$0x1]
        %v2392 = vrot.slane %v2375, 7
        %v2393 = vrot.slane %v2376, 7
        %v2394 = vsel %vm1510, %v2392, %v2393
        %v2397 = vsel %vm1510, 0.0, %v2392
        %v2398 = vsel %vm1510, %v2393, 0.0
        %vm2401 = vcmask 1046528
        %v2402 = vrot.slane %v2397, 1
        %v2403 = vrot.slane %v2394, 1
        %v2404 = vsel %vm2401, %v2402, %v2403
        %v2405 = vrot.slane %v2398, 1
        %v2406 = vsel %vm2401, %v2403, %v2405
        %v2407 = vsel %vm826, %v2404, 0
        %v2409 = vsel %vm826, %v2406, 0
        %2411 = vmatprep.subr.mxu0 0.0
        %2412 = vmatpush1.msra.mxu0 %v2381
        %2413 = vmatprep.subr.mxu0 0.0
        %2414 = vmatpush1.msra.mxu0 %v2382
        %2415 = vmatprep.subr.mxu0 0.0
        %2416 = vmatpush1.msra.mxu0 %v2383
        %2417 = vmatprep.subr.mxu0 0.0
        %2418 = vmatpush1.msra.mxu0 %v2384
        %2419 = vmatprep.subr.mxu0 0.0
        %2420 = vmatpush1.msra.mxu0 0.0
        %2421 = vmatprep.subr.mxu0 0.0
        %2422 = vmatpush1.msra.mxu0 0.0
        %2423 = vmatprep.subr.mxu0 0.0
        %2424 = vmatpush1.msra.mxu0 0.0
        %2425 = vmatprep.subr.mxu0 0.0
        %2426 = vmatpush1.msra.mxu0 0.0
        %2427 = vmatprep.subr.mxu0 0.0
        %2428 = vmatpush1.msra.mxu0 0.0
        %2429 = vmatprep.subr.mxu0 0.0
        %2430 = vmatpush1.msra.mxu0 0.0
        %2431 = vmatprep.subr.mxu0 0.0
        %2432 = vmatpush1.msra.mxu0 0.0
        %2433 = vmatprep.subr.mxu0 0.0
        %2434 = vmatpush1.msra.mxu0 0.0
        %2435 = vmatprep.subr.mxu0 0.0
        %2436 = vmatpush1.msra.mxu0 0.0
        %2437 = vmatprep.subr.mxu0 0.0
        %2438 = vmatpush1.msra.mxu0 0.0
        %2439 = vmatprep.subr.mxu0 0.0
        %2440 = vmatpush1.msra.mxu0 0.0
        %2441 = vmatprep.subr.mxu0 0.0
        %2442 = vmatpush1.msra.mxu0 0.0
        %2443 = vmatprep.subr.mxu0 0.0
        %2444 = vmatpush1.msra.mxu0 0.0
        %2445 = vmatprep.subr.mxu0 0.0
        %2446 = vmatpush1.msra.mxu0 0.0
        %2447 = vmatprep.subr.mxu0 0.0
        %2448 = vmatpush1.msra.mxu0 0.0
        %2449 = vmatprep.subr.mxu0 0.0
        %2450 = vmatpush1.msra.mxu0 0.0
        %2451 = vmatprep.subr.mxu0 0.0
        %2452 = vmatpush1.msra.mxu0 0.0
        %2453 = vmatprep.subr.mxu0 0.0
        %2454 = vmatpush1.msra.mxu0 0.0
        %2455 = vmatprep.subr.mxu0 0.0
        %2456 = vmatpush1.msra.mxu0 0.0
        %2457 = vmatprep.subr.mxu0 0.0
        %2458 = vmatpush1.msra.mxu0 0.0
        %2459 = vmatprep.subr.mxu0 0.0
        %2460 = vmatpush1.msra.mxu0 0.0
        %2461 = vmatprep.subr.mxu0 0.0
        %2462 = vmatpush1.msra.mxu0 0.0
        %2463 = vmatprep.subr.mxu0 0.0
        %2464 = vmatpush1.msra.mxu0 0.0
        %2465 = vmatprep.subr.mxu0 0.0
        %2466 = vmatpush1.msra.mxu0 0.0
        %2467 = vmatprep.subr.mxu0 0.0
        %2468 = vmatpush1.msra.mxu0 0.0
        %2469 = vmatprep.subr.mxu0 0.0
        %2470 = vmatpush1.msra.mxu0 0.0
        %2471 = vmatprep.subr.mxu0 0.0
        %2472 = vmatpush1.msra.mxu0 0.0
        %2473 = vmatprep.subr.mxu0 0.0
        %2474 = vmatpush1.msra.mxu0 0.0
        %2475 = vmatprep.mubr.f32.mxu0 0.0
        %2476 = vmatmul.mubr.f32.gmra.mrb[0].mxu0 %v2407
        %v2477 = vpop.f32.mrb[0].mxu0
        %v2478 = vadd.f32 0.0, %v2477
        %v2479 = vpop.f32.mrb[0].mxu0
        %2480 = vmatprep.mubr.f32.mxu0 0.0
        %2481 = vmatmul.mubr.f32.gmra.mrb[0].mxu0 %v2409
        %v2482 = vpop.f32.mrb[0].mxu0
        %v2483 = vadd.f32 0.0, %v2482
        %v2484 = vpop.f32.mrb[0].mxu0
        %2485 = vdwg.mxu0
        %v2486 = vsel %vm826, %v2397, 0
        %v2488 = vsel %vm826, %v2394, 0
        %2490 = vmatprep.subr.mxu0 0.0
        %2491 = vmatpush1.msra.mxu0 %v2377
        %2492 = vmatprep.subr.mxu0 0.0
        %2493 = vmatpush1.msra.mxu0 %v2378
        %2494 = vmatprep.subr.mxu0 0.0
        %2495 = vmatpush1.msra.mxu0 %v2379
        %2496 = vmatprep.subr.mxu0 0.0
        %2497 = vmatpush1.msra.mxu0 %v2380
        %2498 = vmatprep.subr.mxu0 0.0
        %2499 = vmatpush1.msra.mxu0 0.0
        %2500 = vmatprep.subr.mxu0 0.0
        %2501 = vmatpush1.msra.mxu0 0.0
        %2502 = vmatprep.subr.mxu0 0.0
        %2503 = vmatpush1.msra.mxu0 0.0
        %2504 = vmatprep.subr.mxu0 0.0
        %2505 = vmatpush1.msra.mxu0 0.0
        %2506 = vmatprep.subr.mxu0 0.0
        %2507 = vmatpush1.msra.mxu0 0.0
        %2508 = vmatprep.subr.mxu0 0.0
        %2509 = vmatpush1.msra.mxu0 0.0
        %2510 = vmatprep.subr.mxu0 0.0
        %2511 = vmatpush1.msra.mxu0 0.0
        %2512 = vmatprep.subr.mxu0 0.0
        %2513 = vmatpush1.msra.mxu0 0.0
        %2514 = vmatprep.subr.mxu0 0.0
        %2515 = vmatpush1.msra.mxu0 0.0
        %2516 = vmatprep.subr.mxu0 0.0
        %2517 = vmatpush1.msra.mxu0 0.0
        %2518 = vmatprep.subr.mxu0 0.0
        %2519 = vmatpush1.msra.mxu0 0.0
        %2520 = vmatprep.subr.mxu0 0.0
        %2521 = vmatpush1.msra.mxu0 0.0
        %2522 = vmatprep.subr.mxu0 0.0
        %2523 = vmatpush1.msra.mxu0 0.0
        %2524 = vmatprep.subr.mxu0 0.0
        %2525 = vmatpush1.msra.mxu0 0.0
        %2526 = vmatprep.subr.mxu0 0.0
        %2527 = vmatpush1.msra.mxu0 0.0
        %2528 = vmatprep.subr.mxu0 0.0
        %2529 = vmatpush1.msra.mxu0 0.0
        %2530 = vmatprep.subr.mxu0 0.0
        %2531 = vmatpush1.msra.mxu0 0.0
        %2532 = vmatprep.subr.mxu0 0.0
        %2533 = vmatpush1.msra.mxu0 0.0
        %2534 = vmatprep.subr.mxu0 0.0
        %2535 = vmatpush1.msra.mxu0 0.0
        %2536 = vmatprep.subr.mxu0 0.0
        %2537 = vmatpush1.msra.mxu0 0.0
        %2538 = vmatprep.subr.mxu0 0.0
        %2539 = vmatpush1.msra.mxu0 0.0
        %2540 = vmatprep.subr.mxu0 0.0
        %2541 = vmatpush1.msra.mxu0 0.0
        %2542 = vmatprep.subr.mxu0 0.0
        %2543 = vmatpush1.msra.mxu0 0.0
        %2544 = vmatprep.subr.mxu0 0.0
        %2545 = vmatpush1.msra.mxu0 0.0
        %2546 = vmatprep.subr.mxu0 0.0
        %2547 = vmatpush1.msra.mxu0 0.0
        %2548 = vmatprep.subr.mxu0 0.0
        %2549 = vmatpush1.msra.mxu0 0.0
        %2550 = vmatprep.subr.mxu0 0.0
        %2551 = vmatpush1.msra.mxu0 0.0
        %2552 = vmatprep.subr.mxu0 0.0
        %2553 = vmatpush1.msra.mxu0 0.0
        %2554 = vmatprep.mubr.f32.mxu0 0.0
        %2555 = vmatmul.mubr.f32.gmra.mrb[0].mxu0 %v2486
        %v2556 = vpop.f32.mrb[0].mxu0
        %v2557 = vadd.f32 %v2478, %v2556
        %v2558 = vpop.f32.mrb[0].mxu0
        %2559 = vmatprep.mubr.f32.mxu0 0.0
        %2560 = vmatmul.mubr.f32.gmra.mrb[0].mxu0 %v2488
        %v2561 = vpop.f32.mrb[0].mxu0
        %v2562 = vadd.f32 %v2483, %v2561
        %v2563 = vpop.f32.mrb[0].mxu0
        %2564 = vdwg.mxu0
        %vm2565 = vcmask 1045504
        %v2566 = vrot.slane %v2397, 2
        %v2567 = vrot.slane %v2394, 2
        %v2568 = vsel %vm2565, %v2566, %v2567
        %v2569 = vrot.slane %v2398, 2
        %v2570 = vsel %vm2565, %v2567, %v2569
        %v2571 = vsel %vm826, %v2568, 0
        %v2573 = vsel %vm826, %v2570, 0
        %2575 = vmatprep.subr.mxu0 0.0
        %2576 = vmatpush1.msra.mxu0 %v2385
        %2577 = vmatprep.subr.mxu0 0.0
        %2578 = vmatpush1.msra.mxu0 %v2386
        %2579 = vmatprep.subr.mxu0 0.0
        %2580 = vmatpush1.msra.mxu0 %v2387
        %2581 = vmatprep.subr.mxu0 0.0
        %2582 = vmatpush1.msra.mxu0 %v2388
        %2583 = vmatprep.subr.mxu0 0.0
        %2584 = vmatpush1.msra.mxu0 0.0
        %2585 = vmatprep.subr.mxu0 0.0
        %2586 = vmatpush1.msra.mxu0 0.0
        %2587 = vmatprep.subr.mxu0 0.0
        %2588 = vmatpush1.msra.mxu0 0.0
        %2589 = vmatprep.subr.mxu0 0.0
        %2590 = vmatpush1.msra.mxu0 0.0
        %2591 = vmatprep.subr.mxu0 0.0
        %2592 = vmatpush1.msra.mxu0 0.0
        %2593 = vmatprep.subr.mxu0 0.0
        %2594 = vmatpush1.msra.mxu0 0.0
        %2595 = vmatprep.subr.mxu0 0.0
        %2596 = vmatpush1.msra.mxu0 0.0
        %2597 = vmatprep.subr.mxu0 0.0
        %2598 = vmatpush1.msra.mxu0 0.0
        %2599 = vmatprep.subr.mxu0 0.0
        %2600 = vmatpush1.msra.mxu0 0.0
        %2601 = vmatprep.subr.mxu0 0.0
        %2602 = vmatpush1.msra.mxu0 0.0
        %2603 = vmatprep.subr.mxu0 0.0
        %2604 = vmatpush1.msra.mxu0 0.0
        %2605 = vmatprep.subr.mxu0 0.0
        %2606 = vmatpush1.msra.mxu0 0.0
        %2607 = vmatprep.subr.mxu0 0.0
        %2608 = vmatpush1.msra.mxu0 0.0
        %2609 = vmatprep.subr.mxu0 0.0
        %2610 = vmatpush1.msra.mxu0 0.0
        %2611 = vmatprep.subr.mxu0 0.0
        %2612 = vmatpush1.msra.mxu0 0.0
        %2613 = vmatprep.subr.mxu0 0.0
        %2614 = vmatpush1.msra.mxu0 0.0
        %2615 = vmatprep.subr.mxu0 0.0
        %2616 = vmatpush1.msra.mxu0 0.0
        %2617 = vmatprep.subr.mxu0 0.0
        %2618 = vmatpush1.msra.mxu0 0.0
        %2619 = vmatprep.subr.mxu0 0.0
        %2620 = vmatpush1.msra.mxu0 0.0
        %2621 = vmatprep.subr.mxu0 0.0
        %2622 = vmatpush1.msra.mxu0 0.0
        %2623 = vmatprep.subr.mxu0 0.0
        %2624 = vmatpush1.msra.mxu0 0.0
        %2625 = vmatprep.subr.mxu0 0.0
        %2626 = vmatpush1.msra.mxu0 0.0
        %2627 = vmatprep.subr.mxu0 0.0
        %2628 = vmatpush1.msra.mxu0 0.0
        %2629 = vmatprep.subr.mxu0 0.0
        %2630 = vmatpush1.msra.mxu0 0.0
        %2631 = vmatprep.subr.mxu0 0.0
        %2632 = vmatpush1.msra.mxu0 0.0
        %2633 = vmatprep.subr.mxu0 0.0
        %2634 = vmatpush1.msra.mxu0 0.0
        %2635 = vmatprep.subr.mxu0 0.0
        %2636 = vmatpush1.msra.mxu0 0.0
        %2637 = vmatprep.subr.mxu0 0.0
        %2638 = vmatpush1.msra.mxu0 0.0
        %2639 = vmatprep.mubr.f32.mxu0 0.0
        %2640 = vmatmul.mubr.f32.gmra.mrb[0].mxu0 %v2571
        %v2641 = vpop.f32.mrb[0].mxu0
        %v2642 = vadd.f32 0.0, %v2641
        %v2643 = vpop.f32.mrb[0].mxu0
        %2644 = vmatprep.mubr.f32.mxu0 0.0
        %2645 = vmatmul.mubr.f32.gmra.mrb[0].mxu0 %v2573
        %v2646 = vpop.f32.mrb[0].mxu0
        %v2647 = vadd.f32 0.0, %v2646
        %v2648 = vpop.f32.mrb[0].mxu0
        %2649 = vdwg.mxu0
        %v2650 = vadd.f32 %v2557, %v2642
        %v2651 = vadd.f32 %v2562, %v2647
        %v2653 = vlaneseq
        %v2654 = vshrl.u32 %v2653, 7
        %v2655 = vsub.s32 0, %v2654
        %v2656 = vrot.slane %v2389, %v2655
        %v2658 = vadd.f32 %v2650, %v2656
        %v2659 = vadd.f32 %v2651, %v2656
        %v2660 = vmax.f32 %v2658, 0.0
        %v2661 = vmax.f32 %v2659, 0.0
        %v2662 = vmul.f32 %v2660, %v791
        %v2663 = vmul.f32 %v2661, %v796
        %v2664 = vld [vmem:[%s17] sm:$0xff]
        %v2665 = vld [vmem:[%s17 + $0x8] sm:$0xff]
        %v2666 = vld [vmem:[%s17 + $0x10] sm:$0xff]
        %v2667 = vld [vmem:[%s17 + $0x18] sm:$0xff]
        %v2668 = vld [vmem:[%s17 + $0x20] sm:$0xff]
        %v2669 = vld [vmem:[%s17 + $0x28] sm:$0xff]
        %v2670 = vld [vmem:[%s17 + $0x30] sm:$0xff]
        %v2671 = vld [vmem:[%s17 + $0x38] sm:$0xff]
        %v2672 = vld [vmem:[%s17 + $0x40] sm:$0xff]
        %v2673 = vld [vmem:[%s17 + $0x48] sm:$0xff]
        %v2674 = vld [vmem:[%s17 + $0x50] sm:$0xff]
        %v2675 = vld [vmem:[%s17 + $0x58] sm:$0xff]
        %v2676 = vld [vmem:[%s17 + $0x60] sm:$0xff]
        %v2677 = vld [vmem:[%s17 + $0x68] sm:$0xff]
        %v2678 = vld [vmem:[%s17 + $0x70] sm:$0xff]
        %v2679 = vld [vmem:[%s17 + $0x78] sm:$0xff]
        %v2680 = vld [vmem:[%s17 + $0x80] sm:$0xff]
        %v2681 = vld [vmem:[%s17 + $0x88] sm:$0xff]
        %v2682 = vld [vmem:[%s17 + $0x90] sm:$0xff]
        %v2683 = vld [vmem:[%s17 + $0x98] sm:$0xff]
        %v2684 = vld [vmem:[%s17 + $0xa0] sm:$0xff]
        %v2685 = vld [vmem:[%s17 + $0xa8] sm:$0xff]
        %v2686 = vld [vmem:[%s17 + $0xb0] sm:$0xff]
        %v2687 = vld [vmem:[%s17 + $0xb8] sm:$0xff]
        %v2688 = vld [vmem:[%s18] sm:$0x1]
        %v2691 = vrot.slane %v2662, 7
        %v2692 = vrot.slane %v2663, 7
        %v2693 = vsel %vm1510, %v2691, %v2692
        %v2696 = vsel %vm1510, 0.0, %v2691
        %v2697 = vsel %vm1510, %v2692, 0.0
        %v2700 = vrot.slane %v2696, 1
        %v2701 = vrot.slane %v2693, 1
        %v2702 = vsel %vm2401, %v2700, %v2701
        %v2703 = vrot.slane %v2697, 1
        %v2704 = vsel %vm2401, %v2701, %v2703
        %vm2705 = vcmask 523264
        %v2706 = vsel %vm2705, %v2702, 0
        %v2708 = vsel %vm2705, %v2704, 0
        %2710 = vmatprep.subr.mxu0 0.0
        %2711 = vmatpush1.msra.mxu0 %v2672
        %2712 = vmatprep.subr.mxu0 0.0
        %2713 = vmatpush1.msra.mxu0 %v2673
        %2714 = vmatprep.subr.mxu0 0.0
        %2715 = vmatpush1.msra.mxu0 %v2674
        %2716 = vmatprep.subr.mxu0 0.0
        %2717 = vmatpush1.msra.mxu0 %v2675
        %2718 = vmatprep.subr.mxu0 0.0
        %2719 = vmatpush1.msra.mxu0 %v2676
        %2720 = vmatprep.subr.mxu0 0.0
        %2721 = vmatpush1.msra.mxu0 %v2677
        %2722 = vmatprep.subr.mxu0 0.0
        %2723 = vmatpush1.msra.mxu0 %v2678
        %2724 = vmatprep.subr.mxu0 0.0
        %2725 = vmatpush1.msra.mxu0 %v2679
        %2726 = vmatprep.subr.mxu0 0.0
        %2727 = vmatpush1.msra.mxu0 0.0
        %2728 = vmatprep.subr.mxu0 0.0
        %2729 = vmatpush1.msra.mxu0 0.0
        %2730 = vmatprep.subr.mxu0 0.0
        %2731 = vmatpush1.msra.mxu0 0.0
        %2732 = vmatprep.subr.mxu0 0.0
        %2733 = vmatpush1.msra.mxu0 0.0
        %2734 = vmatprep.subr.mxu0 0.0
        %2735 = vmatpush1.msra.mxu0 0.0
        %2736 = vmatprep.subr.mxu0 0.0
        %2737 = vmatpush1.msra.mxu0 0.0
        %2738 = vmatprep.subr.mxu0 0.0
        %2739 = vmatpush1.msra.mxu0 0.0
        %2740 = vmatprep.subr.mxu0 0.0
        %2741 = vmatpush1.msra.mxu0 0.0
        %2742 = vmatprep.subr.mxu0 0.0
        %2743 = vmatpush1.msra.mxu0 0.0
        %2744 = vmatprep.subr.mxu0 0.0
        %2745 = vmatpush1.msra.mxu0 0.0
        %2746 = vmatprep.subr.mxu0 0.0
        %2747 = vmatpush1.msra.mxu0 0.0
        %2748 = vmatprep.subr.mxu0 0.0
        %2749 = vmatpush1.msra.mxu0 0.0
        %2750 = vmatprep.subr.mxu0 0.0
        %2751 = vmatpush1.msra.mxu0 0.0
        %2752 = vmatprep.subr.mxu0 0.0
        %2753 = vmatpush1.msra.mxu0 0.0
        %2754 = vmatprep.subr.mxu0 0.0
        %2755 = vmatpush1.msra.mxu0 0.0
        %2756 = vmatprep.subr.mxu0 0.0
        %2757 = vmatpush1.msra.mxu0 0.0
        %2758 = vmatprep.subr.mxu0 0.0
        %2759 = vmatpush1.msra.mxu0 0.0
        %2760 = vmatprep.subr.mxu0 0.0
        %2761 = vmatpush1.msra.mxu0 0.0
        %2762 = vmatprep.subr.mxu0 0.0
        %2763 = vmatpush1.msra.mxu0 0.0
        %2764 = vmatprep.subr.mxu0 0.0
        %2765 = vmatpush1.msra.mxu0 0.0
        %2766 = vmatprep.subr.mxu0 0.0
        %2767 = vmatpush1.msra.mxu0 0.0
        %2768 = vmatprep.subr.mxu0 0.0
        %2769 = vmatpush1.msra.mxu0 0.0
        %2770 = vmatprep.subr.mxu0 0.0
        %2771 = vmatpush1.msra.mxu0 0.0
        %2772 = vmatprep.subr.mxu0 0.0
        %2773 = vmatpush1.msra.mxu0 0.0
        %2774 = vmatprep.mubr.f32.mxu0 0.0
        %2775 = vmatmul.mubr.f32.gmra.mrb[0].mxu0 %v2706
        %v2776 = vpop.f32.mrb[0].mxu0
        %v2777 = vadd.f32 0.0, %v2776
        %v2778 = vpop.f32.mrb[0].mxu0
        %2779 = vmatprep.mubr.f32.mxu0 0.0
        %2780 = vmatmul.mubr.f32.gmra.mrb[0].mxu0 %v2708
        %v2781 = vpop.f32.mrb[0].mxu0
        %v2782 = vadd.f32 0.0, %v2781
        %v2783 = vpop.f32.mrb[0].mxu0
        %2784 = vdwg.mxu0
        %v2785 = vsel %vm2705, %v2696, 0
        %v2787 = vsel %vm2705, %v2693, 0
        %2789 = vmatprep.subr.mxu0 0.0
        %2790 = vmatpush1.msra.mxu0 %v2664
        %2791 = vmatprep.subr.mxu0 0.0
        %2792 = vmatpush1.msra.mxu0 %v2665
        %2793 = vmatprep.subr.mxu0 0.0
        %2794 = vmatpush1.msra.mxu0 %v2666
        %2795 = vmatprep.subr.mxu0 0.0
        %2796 = vmatpush1.msra.mxu0 %v2667
        %2797 = vmatprep.subr.mxu0 0.0
        %2798 = vmatpush1.msra.mxu0 %v2668
        %2799 = vmatprep.subr.mxu0 0.0
        %2800 = vmatpush1.msra.mxu0 %v2669
        %2801 = vmatprep.subr.mxu0 0.0
        %2802 = vmatpush1.msra.mxu0 %v2670
        %2803 = vmatprep.subr.mxu0 0.0
        %2804 = vmatpush1.msra.mxu0 %v2671
        %2805 = vmatprep.subr.mxu0 0.0
        %2806 = vmatpush1.msra.mxu0 0.0
        %2807 = vmatprep.subr.mxu0 0.0
        %2808 = vmatpush1.msra.mxu0 0.0
        %2809 = vmatprep.subr.mxu0 0.0
        %2810 = vmatpush1.msra.mxu0 0.0
        %2811 = vmatprep.subr.mxu0 0.0
        %2812 = vmatpush1.msra.mxu0 0.0
        %2813 = vmatprep.subr.mxu0 0.0
        %2814 = vmatpush1.msra.mxu0 0.0
        %2815 = vmatprep.subr.mxu0 0.0
        %2816 = vmatpush1.msra.mxu0 0.0
        %2817 = vmatprep.subr.mxu0 0.0
        %2818 = vmatpush1.msra.mxu0 0.0
        %2819 = vmatprep.subr.mxu0 0.0
        %2820 = vmatpush1.msra.mxu0 0.0
        %2821 = vmatprep.subr.mxu0 0.0
        %2822 = vmatpush1.msra.mxu0 0.0
        %2823 = vmatprep.subr.mxu0 0.0
        %2824 = vmatpush1.msra.mxu0 0.0
        %2825 = vmatprep.subr.mxu0 0.0
        %2826 = vmatpush1.msra.mxu0 0.0
        %2827 = vmatprep.subr.mxu0 0.0
        %2828 = vmatpush1.msra.mxu0 0.0
        %2829 = vmatprep.subr.mxu0 0.0
        %2830 = vmatpush1.msra.mxu0 0.0
        %2831 = vmatprep.subr.mxu0 0.0
        %2832 = vmatpush1.msra.mxu0 0.0
        %2833 = vmatprep.subr.mxu0 0.0
        %2834 = vmatpush1.msra.mxu0 0.0
        %2835 = vmatprep.subr.mxu0 0.0
        %2836 = vmatpush1.msra.mxu0 0.0
        %2837 = vmatprep.subr.mxu0 0.0
        %2838 = vmatpush1.msra.mxu0 0.0
        %2839 = vmatprep.subr.mxu0 0.0
        %2840 = vmatpush1.msra.mxu0 0.0
        %2841 = vmatprep.subr.mxu0 0.0
        %2842 = vmatpush1.msra.mxu0 0.0
        %2843 = vmatprep.subr.mxu0 0.0
        %2844 = vmatpush1.msra.mxu0 0.0
        %2845 = vmatprep.subr.mxu0 0.0
        %2846 = vmatpush1.msra.mxu0 0.0
        %2847 = vmatprep.subr.mxu0 0.0
        %2848 = vmatpush1.msra.mxu0 0.0
        %2849 = vmatprep.subr.mxu0 0.0
        %2850 = vmatpush1.msra.mxu0 0.0
        %2851 = vmatprep.subr.mxu0 0.0
        %2852 = vmatpush1.msra.mxu0 0.0
        %2853 = vmatprep.mubr.f32.mxu0 0.0
        %2854 = vmatmul.mubr.f32.gmra.mrb[0].mxu0 %v2785
        %v2855 = vpop.f32.mrb[0].mxu0
        %v2856 = vadd.f32 %v2777, %v2855
        %v2857 = vpop.f32.mrb[0].mxu0
        %2858 = vmatprep.mubr.f32.mxu0 0.0
        %2859 = vmatmul.mubr.f32.gmra.mrb[0].mxu0 %v2787
        %v2860 = vpop.f32.mrb[0].mxu0
        %v2861 = vadd.f32 %v2782, %v2860
        %v2862 = vpop.f32.mrb[0].mxu0
        %2863 = vdwg.mxu0
        %v2864 = vrot.slane %v2696, 2
        %v2865 = vrot.slane %v2693, 2
        %v2866 = vsel %vm2565, %v2864, %v2865
        %v2867 = vrot.slane %v2697, 2
        %v2868 = vsel %vm2565, %v2865, %v2867
        %v2869 = vsel %vm2705, %v2866, 0
        %v2871 = vsel %vm2705, %v2868, 0
        %2873 = vmatprep.subr.mxu0 0.0
        %2874 = vmatpush1.msra.mxu0 %v2680
        %2875 = vmatprep.subr.mxu0 0.0
        %2876 = vmatpush1.msra.mxu0 %v2681
        %2877 = vmatprep.subr.mxu0 0.0
        %2878 = vmatpush1.msra.mxu0 %v2682
        %2879 = vmatprep.subr.mxu0 0.0
        %2880 = vmatpush1.msra.mxu0 %v2683
        %2881 = vmatprep.subr.mxu0 0.0
        %2882 = vmatpush1.msra.mxu0 %v2684
        %2883 = vmatprep.subr.mxu0 0.0
        %2884 = vmatpush1.msra.mxu0 %v2685
        %2885 = vmatprep.subr.mxu0 0.0
        %2886 = vmatpush1.msra.mxu0 %v2686
        %2887 = vmatprep.subr.mxu0 0.0
        %2888 = vmatpush1.msra.mxu0 %v2687
        %2889 = vmatprep.subr.mxu0 0.0
        %2890 = vmatpush1.msra.mxu0 0.0
        %2891 = vmatprep.subr.mxu0 0.0
        %2892 = vmatpush1.msra.mxu0 0.0
        %2893 = vmatprep.subr.mxu0 0.0
        %2894 = vmatpush1.msra.mxu0 0.0
        %2895 = vmatprep.subr.mxu0 0.0
        %2896 = vmatpush1.msra.mxu0 0.0
        %2897 = vmatprep.subr.mxu0 0.0
        %2898 = vmatpush1.msra.mxu0 0.0
        %2899 = vmatprep.subr.mxu0 0.0
        %2900 = vmatpush1.msra.mxu0 0.0
        %2901 = vmatprep.subr.mxu0 0.0
        %2902 = vmatpush1.msra.mxu0 0.0
        %2903 = vmatprep.subr.mxu0 0.0
        %2904 = vmatpush1.msra.mxu0 0.0
        %2905 = vmatprep.subr.mxu0 0.0
        %2906 = vmatpush1.msra.mxu0 0.0
        %2907 = vmatprep.subr.mxu0 0.0
        %2908 = vmatpush1.msra.mxu0 0.0
        %2909 = vmatprep.subr.mxu0 0.0
        %2910 = vmatpush1.msra.mxu0 0.0
        %2911 = vmatprep.subr.mxu0 0.0
        %2912 = vmatpush1.msra.mxu0 0.0
        %2913 = vmatprep.subr.mxu0 0.0
        %2914 = vmatpush1.msra.mxu0 0.0
        %2915 = vmatprep.subr.mxu0 0.0
        %2916 = vmatpush1.msra.mxu0 0.0
        %2917 = vmatprep.subr.mxu0 0.0
        %2918 = vmatpush1.msra.mxu0 0.0
        %2919 = vmatprep.subr.mxu0 0.0
        %2920 = vmatpush1.msra.mxu0 0.0
        %2921 = vmatprep.subr.mxu0 0.0
        %2922 = vmatpush1.msra.mxu0 0.0
        %2923 = vmatprep.subr.mxu0 0.0
        %2924 = vmatpush1.msra.mxu0 0.0
        %2925 = vmatprep.subr.mxu0 0.0
        %2926 = vmatpush1.msra.mxu0 0.0
        %2927 = vmatprep.subr.mxu0 0.0
        %2928 = vmatpush1.msra.mxu0 0.0
        %2929 = vmatprep.subr.mxu0 0.0
        %2930 = vmatpush1.msra.mxu0 0.0
        %2931 = vmatprep.subr.mxu0 0.0
        %2932 = vmatpush1.msra.mxu0 0.0
        %2933 = vmatprep.subr.mxu0 0.0
        %2934 = vmatpush1.msra.mxu0 0.0
        %2935 = vmatprep.subr.mxu0 0.0
        %2936 = vmatpush1.msra.mxu0 0.0
        %2937 = vmatprep.mubr.f32.mxu0 0.0
        %2938 = vmatmul.mubr.f32.gmra.mrb[0].mxu0 %v2869
        %v2939 = vpop.f32.mrb[0].mxu0
        %v2940 = vadd.f32 0.0, %v2939
        %v2941 = vpop.f32.mrb[0].mxu0
        %2942 = vmatprep.mubr.f32.mxu0 0.0
        %2943 = vmatmul.mubr.f32.gmra.mrb[0].mxu0 %v2871
        %v2944 = vpop.f32.mrb[0].mxu0
        %v2945 = vadd.f32 0.0, %v2944
        %v2946 = vpop.f32.mrb[0].mxu0
        %2947 = vdwg.mxu0
        %v2948 = vadd.f32 %v2856, %v2940
        %v2949 = vadd.f32 %v2861, %v2945
        %v2951 = vlaneseq
        %v2952 = vshrl.u32 %v2951, 7
        %v2953 = vsub.s32 0, %v2952
        %v2954 = vrot.slane %v2688, %v2953
        %v2956 = vadd.f32 %v2948, %v2954
        %v2957 = vadd.f32 %v2949, %v2954
        %v2958 = vmul.f32 %v2956, %v791
        %v2959 = vmul.f32 %v2957, %v796
        %v2960 = vadd.f32 %v2373, %v2958
        %v2961 = vadd.f32 %v2374, %v2959
        %v2962 = vld [vmem:[%s19] sm:$0x1]
        %v2963 = vld [vmem:[%s20] sm:$0x1]
        %v2964 = vsel %vm826, %v2960, 0.0
        %2965 = vadd.xlane.f32.xlu0 %v2964
        %v2966 = vpop.xlane.xlu0 %2965
        %v2967 = vsel %vm826, %v2961, 0.0
        %2968 = vadd.xlane.f32.xlu0 %v2967
        %v2969 = vpop.xlane.xlu0 %2968
        %v2970 = vmul.f32 %v2966, %v2338
        %v2971 = vmul.f32 %v2969, %v2338
        %v2972 = vsub.f32 %v2960, %v2970
        %v2973 = vsub.f32 %v2961, %v2971
        %v2974 = vmul.f32 %v2972, %v2972
        %v2975 = vmul.f32 %v2973, %v2973
        %v2976 = vsel %vm826, %v2974, 0.0
        %2977 = vadd.xlane.f32.xlu0 %v2976
        %v2978 = vpop.xlane.xlu0 %2977
        %v2979 = vsel %vm826, %v2975, 0.0
        %2980 = vadd.xlane.f32.xlu0 %v2979
        %v2981 = vpop.xlane.xlu0 %2980
        %v2982 = vmul.f32 %v2978, %v2338
        %v2983 = vmul.f32 %v2981, %v2338
        %v2984 = vadd.f32 %v2982, 1e-05
        %v2985 = vadd.f32 %v2983, 1e-05
        %v2986 = vrsqrt.pop %v2984
        %v2987 = vrsqrt.pop %v2985
        %v2988 = vmul.f32 %v2972, %v2986
        %v2989 = vmul.f32 %v2973, %v2987
        %v2991 = vlaneseq
        %v2992 = vshrl.u32 %v2991, 7
        %v2993 = vsub.s32 0, %v2992
        %v2994 = vrot.slane %v2962, %v2993
        %v2996 = vmul.f32 %v2988, %v2994
        %v2997 = vmul.f32 %v2989, %v2994
        %v2999 = vlaneseq
        %v3000 = vshrl.u32 %v2999, 7
        %v3001 = vsub.s32 0, %v3000
        %v3002 = vrot.slane %v2963, %v3001
        %v3004 = vadd.f32 %v2996, %v3002
        %v3005 = vadd.f32 %v2997, %v3002
        %s3006 = scalar_lea.vmem %s3, 32
        %v3007 = vld [vmem:[%s3006] sm:$0xff]
        %v3008 = vld [vmem:[%s3006 + $0x8] sm:$0xff]
        %v3009 = vld [vmem:[%s3006 + $0x10] sm:$0xff]
        %v3010 = vld [vmem:[%s3006 + $0x18] sm:$0xff]
        %s3011 = scalar_lea.vmem %s4, 1
        %v3012 = vld [vmem:[%s3011] sm:$0x1]
        %v3014 = vlaneseq
        %v3015 = vshrl.u32 %v3014, 7
        %v3016 = vsub.s32 0, %v3015
        %v3017 = vrot.slane %v3012, %v3016
        %v3020 = vsel %vm826, %v3004, 0
        %v3023 = vsel %vm826, %v3005, 0
        %3025 = vmatprep.subr.mxu0 0.0
        %3026 = vmatpush1.msra.mxu0 %v3007
        %3027 = vmatprep.subr.mxu0 0.0
        %3028 = vmatpush1.msra.mxu0 %v3008
        %3029 = vmatprep.subr.mxu0 0.0
        %3030 = vmatpush1.msra.mxu0 %v3009
        %3031 = vmatprep.subr.mxu0 0.0
        %3032 = vmatpush1.msra.mxu0 %v3010
        %3033 = vmatprep.subr.mxu0 0.0
        %3034 = vmatpush1.msra.mxu0 0.0
        %3035 = vmatprep.subr.mxu0 0.0
        %3036 = vmatpush1.msra.mxu0 0.0
        %3037 = vmatprep.subr.mxu0 0.0
        %3038 = vmatpush1.msra.mxu0 0.0
        %3039 = vmatprep.subr.mxu0 0.0
        %3040 = vmatpush1.msra.mxu0 0.0
        %3041 = vmatprep.subr.mxu0 0.0
        %3042 = vmatpush1.msra.mxu0 0.0
        %3043 = vmatprep.subr.mxu0 0.0
        %3044 = vmatpush1.msra.mxu0 0.0
        %3045 = vmatprep.subr.mxu0 0.0
        %3046 = vmatpush1.msra.mxu0 0.0
        %3047 = vmatprep.subr.mxu0 0.0
        %3048 = vmatpush1.msra.mxu0 0.0
        %3049 = vmatprep.subr.mxu0 0.0
        %3050 = vmatpush1.msra.mxu0 0.0
        %3051 = vmatprep.subr.mxu0 0.0
        %3052 = vmatpush1.msra.mxu0 0.0
        %3053 = vmatprep.subr.mxu0 0.0
        %3054 = vmatpush1.msra.mxu0 0.0
        %3055 = vmatprep.subr.mxu0 0.0
        %3056 = vmatpush1.msra.mxu0 0.0
        %3057 = vmatprep.subr.mxu0 0.0
        %3058 = vmatpush1.msra.mxu0 0.0
        %3059 = vmatprep.subr.mxu0 0.0
        %3060 = vmatpush1.msra.mxu0 0.0
        %3061 = vmatprep.subr.mxu0 0.0
        %3062 = vmatpush1.msra.mxu0 0.0
        %3063 = vmatprep.subr.mxu0 0.0
        %3064 = vmatpush1.msra.mxu0 0.0
        %3065 = vmatprep.subr.mxu0 0.0
        %3066 = vmatpush1.msra.mxu0 0.0
        %3067 = vmatprep.subr.mxu0 0.0
        %3068 = vmatpush1.msra.mxu0 0.0
        %3069 = vmatprep.subr.mxu0 0.0
        %3070 = vmatpush1.msra.mxu0 0.0
        %3071 = vmatprep.subr.mxu0 0.0
        %3072 = vmatpush1.msra.mxu0 0.0
        %3073 = vmatprep.subr.mxu0 0.0
        %3074 = vmatpush1.msra.mxu0 0.0
        %3075 = vmatprep.subr.mxu0 0.0
        %3076 = vmatpush1.msra.mxu0 0.0
        %3077 = vmatprep.subr.mxu0 0.0
        %3078 = vmatpush1.msra.mxu0 0.0
        %3079 = vmatprep.subr.mxu0 0.0
        %3080 = vmatpush1.msra.mxu0 0.0
        %3081 = vmatprep.subr.mxu0 0.0
        %3082 = vmatpush1.msra.mxu0 0.0
        %3083 = vmatprep.subr.mxu0 0.0
        %3084 = vmatpush1.msra.mxu0 0.0
        %3085 = vmatprep.subr.mxu0 0.0
        %3086 = vmatpush1.msra.mxu0 0.0
        %3087 = vmatprep.subr.mxu0 0.0
        %3088 = vmatpush1.msra.mxu0 0.0
        %3089 = vmatprep.mubr.f32.mxu0 0.0
        %3090 = vmatmul.mubr.f32.gmra.mrb[0].mxu0 %v3020
        %v3091 = vpop.f32.mrb[0].mxu0
        %v3092 = vadd.f32 %v3017, %v3091
        %v3093 = vpop.f32.mrb[0].mxu0
        %3094 = vmatprep.mubr.f32.mxu0 0.0
        %3095 = vmatmul.mubr.f32.gmra.mrb[0].mxu0 %v3023
        %v3096 = vpop.f32.mrb[0].mxu0
        %v3097 = vadd.f32 %v3017, %v3096
        %v3098 = vpop.f32.mrb[0].mxu0
        %3099 = vdwg.mxu0
        %s3100 = scalar_lea.vmem %s5, 32
        %v3101 = vld [vmem:[%s3100] sm:$0xff]
        %v3102 = vld [vmem:[%s3100 + $0x8] sm:$0xff]
        %v3103 = vld [vmem:[%s3100 + $0x10] sm:$0xff]
        %v3104 = vld [vmem:[%s3100 + $0x18] sm:$0xff]
        %s3105 = scalar_lea.vmem %s6, 1
        %v3106 = vld [vmem:[%s3105] sm:$0x1]
        %v3108 = vlaneseq
        %v3109 = vshrl.u32 %v3108, 7
        %v3110 = vsub.s32 0, %v3109
        %v3111 = vrot.slane %v3106, %v3110
        %3113 = vmatprep.subr.mxu0 0.0
        %3114 = vmatpush1.msra.mxu0 %v3101
        %3115 = vmatprep.subr.mxu0 0.0
        %3116 = vmatpush1.msra.mxu0 %v3102
        %3117 = vmatprep.subr.mxu0 0.0
        %3118 = vmatpush1.msra.mxu0 %v3103
        %3119 = vmatprep.subr.mxu0 0.0
        %3120 = vmatpush1.msra.mxu0 %v3104
        %3121 = vmatprep.subr.mxu0 0.0
        %3122 = vmatpush1.msra.mxu0 0.0
        %3123 = vmatprep.subr.mxu0 0.0
        %3124 = vmatpush1.msra.mxu0 0.0
        %3125 = vmatprep.subr.mxu0 0.0
        %3126 = vmatpush1.msra.mxu0 0.0
        %3127 = vmatprep.subr.mxu0 0.0
        %3128 = vmatpush1.msra.mxu0 0.0
        %3129 = vmatprep.subr.mxu0 0.0
        %3130 = vmatpush1.msra.mxu0 0.0
        %3131 = vmatprep.subr.mxu0 0.0
        %3132 = vmatpush1.msra.mxu0 0.0
        %3133 = vmatprep.subr.mxu0 0.0
        %3134 = vmatpush1.msra.mxu0 0.0
        %3135 = vmatprep.subr.mxu0 0.0
        %3136 = vmatpush1.msra.mxu0 0.0
        %3137 = vmatprep.subr.mxu0 0.0
        %3138 = vmatpush1.msra.mxu0 0.0
        %3139 = vmatprep.subr.mxu0 0.0
        %3140 = vmatpush1.msra.mxu0 0.0
        %3141 = vmatprep.subr.mxu0 0.0
        %3142 = vmatpush1.msra.mxu0 0.0
        %3143 = vmatprep.subr.mxu0 0.0
        %3144 = vmatpush1.msra.mxu0 0.0
        %3145 = vmatprep.subr.mxu0 0.0
        %3146 = vmatpush1.msra.mxu0 0.0
        %3147 = vmatprep.subr.mxu0 0.0
        %3148 = vmatpush1.msra.mxu0 0.0
        %3149 = vmatprep.subr.mxu0 0.0
        %3150 = vmatpush1.msra.mxu0 0.0
        %3151 = vmatprep.subr.mxu0 0.0
        %3152 = vmatpush1.msra.mxu0 0.0
        %3153 = vmatprep.subr.mxu0 0.0
        %3154 = vmatpush1.msra.mxu0 0.0
        %3155 = vmatprep.subr.mxu0 0.0
        %3156 = vmatpush1.msra.mxu0 0.0
        %3157 = vmatprep.subr.mxu0 0.0
        %3158 = vmatpush1.msra.mxu0 0.0
        %3159 = vmatprep.subr.mxu0 0.0
        %3160 = vmatpush1.msra.mxu0 0.0
        %3161 = vmatprep.subr.mxu0 0.0
        %3162 = vmatpush1.msra.mxu0 0.0
        %3163 = vmatprep.subr.mxu0 0.0
        %3164 = vmatpush1.msra.mxu0 0.0
        %3165 = vmatprep.subr.mxu0 0.0
        %3166 = vmatpush1.msra.mxu0 0.0
        %3167 = vmatprep.subr.mxu0 0.0
        %3168 = vmatpush1.msra.mxu0 0.0
        %3169 = vmatprep.subr.mxu0 0.0
        %3170 = vmatpush1.msra.mxu0 0.0
        %3171 = vmatprep.subr.mxu0 0.0
        %3172 = vmatpush1.msra.mxu0 0.0
        %3173 = vmatprep.subr.mxu0 0.0
        %3174 = vmatpush1.msra.mxu0 0.0
        %3175 = vmatprep.subr.mxu0 0.0
        %3176 = vmatpush1.msra.mxu0 0.0
        %3177 = vmatprep.mubr.f32.mxu0 0.0
        %3178 = vmatmul.mubr.f32.gmra.mrb[0].mxu0 %v3020
        %v3179 = vpop.f32.mrb[0].mxu0
        %v3180 = vadd.f32 %v3111, %v3179
        %v3181 = vpop.f32.mrb[0].mxu0
        %3182 = vmatprep.mubr.f32.mxu0 0.0
        %3183 = vmatmul.mubr.f32.gmra.mrb[0].mxu0 %v3023
        %v3184 = vpop.f32.mrb[0].mxu0
        %v3185 = vadd.f32 %v3111, %v3184
        %v3186 = vpop.f32.mrb[0].mxu0
        %3187 = vdwg.mxu0
        %s3188 = scalar_lea.vmem %s7, 32
        %v3189 = vld [vmem:[%s3188] sm:$0xff]
        %v3190 = vld [vmem:[%s3188 + $0x8] sm:$0xff]
        %v3191 = vld [vmem:[%s3188 + $0x10] sm:$0xff]
        %v3192 = vld [vmem:[%s3188 + $0x18] sm:$0xff]
        %s3193 = scalar_lea.vmem %s8, 1
        %v3194 = vld [vmem:[%s3193] sm:$0x1]
        %v3196 = vlaneseq
        %v3197 = vshrl.u32 %v3196, 7
        %v3198 = vsub.s32 0, %v3197
        %v3199 = vrot.slane %v3194, %v3198
        %3201 = vmatprep.subr.mxu0 0.0
        %3202 = vmatpush1.msra.mxu0 %v3189
        %3203 = vmatprep.subr.mxu0 0.0
        %3204 = vmatpush1.msra.mxu0 %v3190
        %3205 = vmatprep.subr.mxu0 0.0
        %3206 = vmatpush1.msra.mxu0 %v3191
        %3207 = vmatprep.subr.mxu0 0.0
        %3208 = vmatpush1.msra.mxu0 %v3192
        %3209 = vmatprep.subr.mxu0 0.0
        %3210 = vmatpush1.msra.mxu0 0.0
        %3211 = vmatprep.subr.mxu0 0.0
        %3212 = vmatpush1.msra.mxu0 0.0
        %3213 = vmatprep.subr.mxu0 0.0
        %3214 = vmatpush1.msra.mxu0 0.0
        %3215 = vmatprep.subr.mxu0 0.0
        %3216 = vmatpush1.msra.mxu0 0.0
        %3217 = vmatprep.subr.mxu0 0.0
        %3218 = vmatpush1.msra.mxu0 0.0
        %3219 = vmatprep.subr.mxu0 0.0
        %3220 = vmatpush1.msra.mxu0 0.0
        %3221 = vmatprep.subr.mxu0 0.0
        %3222 = vmatpush1.msra.mxu0 0.0
        %3223 = vmatprep.subr.mxu0 0.0
        %3224 = vmatpush1.msra.mxu0 0.0
        %3225 = vmatprep.subr.mxu0 0.0
        %3226 = vmatpush1.msra.mxu0 0.0
        %3227 = vmatprep.subr.mxu0 0.0
        %3228 = vmatpush1.msra.mxu0 0.0
        %3229 = vmatprep.subr.mxu0 0.0
        %3230 = vmatpush1.msra.mxu0 0.0
        %3231 = vmatprep.subr.mxu0 0.0
        %3232 = vmatpush1.msra.mxu0 0.0
        %3233 = vmatprep.subr.mxu0 0.0
        %3234 = vmatpush1.msra.mxu0 0.0
        %3235 = vmatprep.subr.mxu0 0.0
        %3236 = vmatpush1.msra.mxu0 0.0
        %3237 = vmatprep.subr.mxu0 0.0
        %3238 = vmatpush1.msra.mxu0 0.0
        %3239 = vmatprep.subr.mxu0 0.0
        %3240 = vmatpush1.msra.mxu0 0.0
        %3241 = vmatprep.subr.mxu0 0.0
        %3242 = vmatpush1.msra.mxu0 0.0
        %3243 = vmatprep.subr.mxu0 0.0
        %3244 = vmatpush1.msra.mxu0 0.0
        %3245 = vmatprep.subr.mxu0 0.0
        %3246 = vmatpush1.msra.mxu0 0.0
        %3247 = vmatprep.subr.mxu0 0.0
        %3248 = vmatpush1.msra.mxu0 0.0
        %3249 = vmatprep.subr.mxu0 0.0
        %3250 = vmatpush1.msra.mxu0 0.0
        %3251 = vmatprep.subr.mxu0 0.0
        %3252 = vmatpush1.msra.mxu0 0.0
        %3253 = vmatprep.subr.mxu0 0.0
        %3254 = vmatpush1.msra.mxu0 0.0
        %3255 = vmatprep.subr.mxu0 0.0
        %3256 = vmatpush1.msra.mxu0 0.0
        %3257 = vmatprep.subr.mxu0 0.0
        %3258 = vmatpush1.msra.mxu0 0.0
        %3259 = vmatprep.subr.mxu0 0.0
        %3260 = vmatpush1.msra.mxu0 0.0
        %3261 = vmatprep.subr.mxu0 0.0
        %3262 = vmatpush1.msra.mxu0 0.0
        %3263 = vmatprep.subr.mxu0 0.0
        %3264 = vmatpush1.msra.mxu0 0.0
        %3265 = vmatprep.mubr.f32.mxu0 0.0
        %3266 = vmatmul.mubr.f32.gmra.mrb[0].mxu0 %v3020
        %v3267 = vpop.f32.mrb[0].mxu0
        %v3268 = vadd.f32 %v3199, %v3267
        %v3269 = vpop.f32.mrb[0].mxu0
        %3270 = vmatprep.mubr.f32.mxu0 0.0
        %3271 = vmatmul.mubr.f32.gmra.mrb[0].mxu0 %v3023
        %v3272 = vpop.f32.mrb[0].mxu0
        %v3273 = vadd.f32 %v3199, %v3272
        %v3274 = vpop.f32.mrb[0].mxu0
        %3275 = vdwg.mxu0
        %s3276 = scalar_lea.vmem %s11, 16
        %v3277 = vld [vmem:[%s3276] sm:$0xff]
        %v3278 = vld [vmem:[%s3276 + $0x8] sm:$0x1]
        %s3279 = scalar_lea.vmem %s12, 16
        %v3280 = vld [vmem:[%s3279] sm:$0xff]
        %v3281 = vld [vmem:[%s3279 + $0x8] sm:$0x1]
        %v3282 = vmul.f32 %v3092, 0.25
        %v3283 = vmul.f32 %v3097, 0.25
        %v3285 = vsel %vm1086, %v3282, 0
        %v3288 = vsel %vm1086, %v3283, 0
        %v3291 = vsel %vm1086, %v3277, 0
        %v3294 = vsel %vm1086, %v3278, 0
        %3296 = vmatprep.subr.mxu0 0.0
        %3297 = vmatpush1.xpose.msra.mxu0 %v3291
        %3298 = vmatprep.subr.mxu0 0.0
        %3299 = vmatpush1.xpose.msra.mxu0 %v3294
        %3300 = vmatprep.subr.mxu0 0.0
        %3301 = vmatpush1.xpose.msra.mxu0 0.0
        %3302 = vmatprep.subr.mxu0 0.0
        %3303 = vmatpush1.xpose.msra.mxu0 0.0
        %3304 = vmatprep.subr.mxu0 0.0
        %3305 = vmatpush1.xpose.msra.mxu0 0.0
        %3306 = vmatprep.subr.mxu0 0.0
        %3307 = vmatpush1.xpose.msra.mxu0 0.0
        %3308 = vmatprep.subr.mxu0 0.0
        %3309 = vmatpush1.xpose.msra.mxu0 0.0
        %3310 = vmatprep.subr.mxu0 0.0
        %3311 = vmatpush1.xpose.msra.mxu0 0.0
        %3312 = vmatprep.subr.mxu0 0.0
        %3313 = vmatpush1.xpose.msra.mxu0 0.0
        %3314 = vmatprep.subr.mxu0 0.0
        %3315 = vmatpush1.xpose.msra.mxu0 0.0
        %3316 = vmatprep.subr.mxu0 0.0
        %3317 = vmatpush1.xpose.msra.mxu0 0.0
        %3318 = vmatprep.subr.mxu0 0.0
        %3319 = vmatpush1.xpose.msra.mxu0 0.0
        %3320 = vmatprep.subr.mxu0 0.0
        %3321 = vmatpush1.xpose.msra.mxu0 0.0
        %3322 = vmatprep.subr.mxu0 0.0
        %3323 = vmatpush1.xpose.msra.mxu0 0.0
        %3324 = vmatprep.subr.mxu0 0.0
        %3325 = vmatpush1.xpose.msra.mxu0 0.0
        %3326 = vmatprep.subr.mxu0 0.0
        %3327 = vmatpush1.xpose.msra.mxu0 0.0
        %3328 = vmatprep.subr.mxu0 0.0
        %3329 = vmatpush1.xpose.msra.mxu0 0.0
        %3330 = vmatprep.subr.mxu0 0.0
        %3331 = vmatpush1.xpose.msra.mxu0 0.0
        %3332 = vmatprep.subr.mxu0 0.0
        %3333 = vmatpush1.xpose.msra.mxu0 0.0
        %3334 = vmatprep.subr.mxu0 0.0
        %3335 = vmatpush1.xpose.msra.mxu0 0.0
        %3336 = vmatprep.subr.mxu0 0.0
        %3337 = vmatpush1.xpose.msra.mxu0 0.0
        %3338 = vmatprep.subr.mxu0 0.0
        %3339 = vmatpush1.xpose.msra.mxu0 0.0
        %3340 = vmatprep.subr.mxu0 0.0
        %3341 = vmatpush1.xpose.msra.mxu0 0.0
        %3342 = vmatprep.subr.mxu0 0.0
        %3343 = vmatpush1.xpose.msra.mxu0 0.0
        %3344 = vmatprep.subr.mxu0 0.0
        %3345 = vmatpush1.xpose.msra.mxu0 0.0
        %3346 = vmatprep.subr.mxu0 0.0
        %3347 = vmatpush1.xpose.msra.mxu0 0.0
        %3348 = vmatprep.subr.mxu0 0.0
        %3349 = vmatpush1.xpose.msra.mxu0 0.0
        %3350 = vmatprep.subr.mxu0 0.0
        %3351 = vmatpush1.xpose.msra.mxu0 0.0
        %3352 = vmatprep.subr.mxu0 0.0
        %3353 = vmatpush1.xpose.msra.mxu0 0.0
        %3354 = vmatprep.subr.mxu0 0.0
        %3355 = vmatpush1.xpose.msra.mxu0 0.0
        %3356 = vmatprep.subr.mxu0 0.0
        %3357 = vmatpush1.xpose.msra.mxu0 0.0
        %3358 = vmatprep.subr.mxu0 0.0
        %3359 = vmatpush1.xpose.msra.mxu0 0.0
        %3360 = vmatprep.mubr.f32.mxu0 0.0
        %3361 = vmatmul.mubr.f32.gmra.mrb[0].mxu0 %v3285
        %v3362 = vpop.f32.mrb[0].mxu0
        %v3363 = vadd.f32 0.0, %v3362
        %v3364 = vpop.f32.mrb[0].mxu0
        %3365 = vmatprep.mubr.f32.mxu0 0.0
        %3366 = vmatmul.mubr.f32.gmra.mrb[0].mxu0 %v3288
        %v3367 = vpop.f32.mrb[0].mxu0
        %v3368 = vadd.f32 0.0, %v3367
        %v3369 = vpop.f32.mrb[0].mxu0
        %3370 = vdwg.mxu0
        %3372 = vset.pattern.permute.xlu0 0
        %3373 = vperm.xlu0 %3372, %v3363
        %v3374 = vpop.permute.xlu0 %3373
        %3377 = vset.pattern.permute.xlu0 0
        %3378 = vperm.xlu0 %3377, %v3368
        %v3379 = vpop.permute.xlu0 %3378
        %v3381 = vsel %vm1174, %v3374, 0.0
        %v3382 = vsel %vm1175, %v3379, 0.0
        %v3384 = vsel %vm1086, %v3180, 0
        %v3387 = vsel %vm1086, %v3185, 0
        %3389 = vmatprep.subr.mxu0 0.0
        %3390 = vmatpush1.xpose.msra.mxu0 %v3384
        %3391 = vmatprep.subr.mxu0 0.0
        %3392 = vmatpush1.xpose.msra.mxu0 %v3387
        %3393 = vmatprep.subr.mxu0 0.0
        %3394 = vmatpush1.xpose.msra.mxu0 0.0
        %3395 = vmatprep.subr.mxu0 0.0
        %3396 = vmatpush1.xpose.msra.mxu0 0.0
        %3397 = vmatprep.subr.mxu0 0.0
        %3398 = vmatpush1.xpose.msra.mxu0 0.0
        %3399 = vmatprep.subr.mxu0 0.0
        %3400 = vmatpush1.xpose.msra.mxu0 0.0
        %3401 = vmatprep.subr.mxu0 0.0
        %3402 = vmatpush1.xpose.msra.mxu0 0.0
        %3403 = vmatprep.subr.mxu0 0.0
        %3404 = vmatpush1.xpose.msra.mxu0 0.0
        %3405 = vmatprep.subr.mxu0 0.0
        %3406 = vmatpush1.xpose.msra.mxu0 0.0
        %3407 = vmatprep.subr.mxu0 0.0
        %3408 = vmatpush1.xpose.msra.mxu0 0.0
        %3409 = vmatprep.subr.mxu0 0.0
        %3410 = vmatpush1.xpose.msra.mxu0 0.0
        %3411 = vmatprep.subr.mxu0 0.0
        %3412 = vmatpush1.xpose.msra.mxu0 0.0
        %3413 = vmatprep.subr.mxu0 0.0
        %3414 = vmatpush1.xpose.msra.mxu0 0.0
        %3415 = vmatprep.subr.mxu0 0.0
        %3416 = vmatpush1.xpose.msra.mxu0 0.0
        %3417 = vmatprep.subr.mxu0 0.0
        %3418 = vmatpush1.xpose.msra.mxu0 0.0
        %3419 = vmatprep.subr.mxu0 0.0
        %3420 = vmatpush1.xpose.msra.mxu0 0.0
        %3421 = vmatprep.subr.mxu0 0.0
        %3422 = vmatpush1.xpose.msra.mxu0 0.0
        %3423 = vmatprep.subr.mxu0 0.0
        %3424 = vmatpush1.xpose.msra.mxu0 0.0
        %3425 = vmatprep.subr.mxu0 0.0
        %3426 = vmatpush1.xpose.msra.mxu0 0.0
        %3427 = vmatprep.subr.mxu0 0.0
        %3428 = vmatpush1.xpose.msra.mxu0 0.0
        %3429 = vmatprep.subr.mxu0 0.0
        %3430 = vmatpush1.xpose.msra.mxu0 0.0
        %3431 = vmatprep.subr.mxu0 0.0
        %3432 = vmatpush1.xpose.msra.mxu0 0.0
        %3433 = vmatprep.subr.mxu0 0.0
        %3434 = vmatpush1.xpose.msra.mxu0 0.0
        %3435 = vmatprep.subr.mxu0 0.0
        %3436 = vmatpush1.xpose.msra.mxu0 0.0
        %3437 = vmatprep.subr.mxu0 0.0
        %3438 = vmatpush1.xpose.msra.mxu0 0.0
        %3439 = vmatprep.subr.mxu0 0.0
        %3440 = vmatpush1.xpose.msra.mxu0 0.0
        %3441 = vmatprep.subr.mxu0 0.0
        %3442 = vmatpush1.xpose.msra.mxu0 0.0
        %3443 = vmatprep.subr.mxu0 0.0
        %3444 = vmatpush1.xpose.msra.mxu0 0.0
        %3445 = vmatprep.subr.mxu0 0.0
        %3446 = vmatpush1.xpose.msra.mxu0 0.0
        %3447 = vmatprep.subr.mxu0 0.0
        %3448 = vmatpush1.xpose.msra.mxu0 0.0
        %3449 = vmatprep.subr.mxu0 0.0
        %3450 = vmatpush1.xpose.msra.mxu0 0.0
        %3451 = vmatprep.subr.mxu0 0.0
        %3452 = vmatpush1.xpose.msra.mxu0 0.0
        %3453 = vmatprep.mubr.f32.mxu0 0.0
        %3454 = vmatmul.mubr.f32.gmra.mrb[0].mxu0 %v3285
        %v3455 = vpop.f32.mrb[0].mxu0
        %v3456 = vadd.f32 %v3381, %v3455
        %v3457 = vpop.f32.mrb[0].mxu0
        %3458 = vmatprep.mubr.f32.mxu0 0.0
        %3459 = vmatmul.mubr.f32.gmra.mrb[0].mxu0 %v3288
        %v3460 = vpop.f32.mrb[0].mxu0
        %v3461 = vadd.f32 %v3382, %v3460
        %v3462 = vpop.f32.mrb[0].mxu0
        %3463 = vdwg.mxu0
        %3464 = vset.pattern.permute.xlu0 1
        %3465 = vperm.xlu0 %3464, %v3363
        %v3466 = vpop.permute.xlu0 %3465
        %3468 = vset.pattern.permute.xlu0 1
        %3469 = vperm.xlu0 %3468, %v3368
        %v3470 = vpop.permute.xlu0 %3469
        %v3472 = vsel %vm1269, %v3466, 0.0
        %v3473 = vsel %vm1270, %v3470, 0.0
        %v3474 = vadd.f32 %v3456, %v3472
        %v3475 = vadd.f32 %v3461, %v3473
        %3476 = vset.pattern.permute.xlu0 2
        %3477 = vperm.xlu0 %3476, %v3363
        %v3478 = vpop.permute.xlu0 %3477
        %3480 = vset.pattern.permute.xlu0 2
        %3481 = vperm.xlu0 %3480, %v3368
        %v3482 = vpop.permute.xlu0 %3481
        %v3484 = vsel %vm1283, %v3478, 0.0
        %v3485 = vsel %vm1284, %v3482, 0.0
        %v3486 = vadd.f32 %v3474, %v3484
        %v3487 = vadd.f32 %v3475, %v3485
        %3488 = vset.pattern.permute.xlu0 3
        %3489 = vperm.xlu0 %3488, %v3363
        %v3490 = vpop.permute.xlu0 %3489
        %3492 = vset.pattern.permute.xlu0 3
        %3493 = vperm.xlu0 %3492, %v3368
        %v3494 = vpop.permute.xlu0 %3493
        %v3496 = vsel %vm1297, %v3490, 0.0
        %v3497 = vsel %vm1298, %v3494, 0.0
        %v3498 = vadd.f32 %v3486, %v3496
        %v3499 = vadd.f32 %v3487, %v3497
        %3500 = vset.pattern.permute.xlu0 4
        %3501 = vperm.xlu0 %3500, %v3363
        %v3502 = vpop.permute.xlu0 %3501
        %3504 = vset.pattern.permute.xlu0 4
        %3505 = vperm.xlu0 %3504, %v3368
        %v3506 = vpop.permute.xlu0 %3505
        %v3508 = vsel %vm1311, %v3502, 0.0
        %v3509 = vsel %vm1312, %v3506, 0.0
        %v3510 = vadd.f32 %v3498, %v3508
        %v3511 = vadd.f32 %v3499, %v3509
        %3512 = vset.pattern.permute.xlu0 5
        %3513 = vperm.xlu0 %3512, %v3363
        %v3514 = vpop.permute.xlu0 %3513
        %3516 = vset.pattern.permute.xlu0 5
        %3517 = vperm.xlu0 %3516, %v3368
        %v3518 = vpop.permute.xlu0 %3517
        %v3520 = vsel %vm1325, %v3514, 0.0
        %v3521 = vsel %vm1326, %v3518, 0.0
        %v3522 = vadd.f32 %v3510, %v3520
        %v3523 = vadd.f32 %v3511, %v3521
        %3524 = vset.pattern.permute.xlu0 6
        %3525 = vperm.xlu0 %3524, %v3363
        %v3526 = vpop.permute.xlu0 %3525
        %3528 = vset.pattern.permute.xlu0 6
        %3529 = vperm.xlu0 %3528, %v3368
        %v3530 = vpop.permute.xlu0 %3529
        %v3532 = vsel %vm1339, %v3526, 0.0
        %v3533 = vsel %vm1340, %v3530, 0.0
        %v3534 = vadd.f32 %v3522, %v3532
        %v3535 = vadd.f32 %v3523, %v3533
        %3536 = vset.pattern.permute.xlu0 7
        %3537 = vperm.xlu0 %3536, %v3363
        %v3538 = vpop.permute.xlu0 %3537
        %3540 = vset.pattern.permute.xlu0 7
        %3541 = vperm.xlu0 %3540, %v3368
        %v3542 = vpop.permute.xlu0 %3541
        %v3544 = vsel %vm1353, %v3538, 0.0
        %v3545 = vsel %vm1354, %v3542, 0.0
        %v3546 = vadd.f32 %v3534, %v3544
        %v3547 = vadd.f32 %v3535, %v3545
        %3548 = vset.pattern.permute.xlu0 8
        %3549 = vperm.xlu0 %3548, %v3363
        %v3550 = vpop.permute.xlu0 %3549
        %3552 = vset.pattern.permute.xlu0 8
        %3553 = vperm.xlu0 %3552, %v3368
        %v3554 = vpop.permute.xlu0 %3553
        %v3556 = vsel %vm1367, %v3550, 0.0
        %v3557 = vsel %vm1368, %v3554, 0.0
        %v3558 = vadd.f32 %v3546, %v3556
        %v3559 = vadd.f32 %v3547, %v3557
        %v3560 = vsel %vm1381, %v3558, -10000.0
        %v3561 = vsel %vm1382, %v3559, -10000.0
        %v3562 = vsel %vm1086, %v3560, -inf
        %3563 = vmax.xlane.f32.xlu0 %v3562
        %v3564 = vpop.xlane.xlu0 %3563
        %v3565 = vsel %vm1086, %v3561, -inf
        %3566 = vmax.xlane.f32.xlu0 %v3565
        %v3567 = vpop.xlane.xlu0 %3566
        %v3568 = vsub.f32 %v3560, %v3564
        %v3569 = vsub.f32 %v3561, %v3567
        %v3570 = vmul.f32 %v3568, 1.442695
        %v3571 = vpow.pop %v3570
        %v3572 = vmul.f32 %v3569, 1.442695
        %v3573 = vpow.pop %v3572
        %v3574 = vsel %vm1086, %v3571, 0.0
        %3575 = vadd.xlane.f32.xlu0 %v3574
        %v3576 = vpop.xlane.xlu0 %3575
        %v3577 = vsel %vm1086, %v3573, 0.0
        %3578 = vadd.xlane.f32.xlu0 %v3577
        %v3579 = vpop.xlane.xlu0 %3578
        %v3580 = vrcp.pop %v3576
        %v3581 = vmul.f32 %v3571, %v3580
        %v3582 = vrcp.pop %v3579
        %v3583 = vmul.f32 %v3573, %v3582
        %v3584 = vsel %vm1174, %v3581, 0.0
        %v3585 = vsel %vm1175, %v3583, 0.0
        %v3586 = vsel %vm1086, %v3584, 0.0
        %3587 = vadd.xlane.f32.xlu0 %v3586
        %v3588 = vpop.xlane.xlu0 %3587
        %v3589 = vsel %vm1086, %v3585, 0.0
        %3590 = vadd.xlane.f32.xlu0 %v3589
        %v3591 = vpop.xlane.xlu0 %3590
        %v3592 = vsel %vm1269, %v3581, 0.0
        %v3593 = vsel %vm1270, %v3583, 0.0
        %v3594 = vsel %vm1086, %v3592, 0.0
        %3595 = vadd.xlane.f32.xlu0 %v3594
        %v3596 = vpop.xlane.xlu0 %3595
        %v3597 = vsel %vm1086, %v3593, 0.0
        %3598 = vadd.xlane.f32.xlu0 %v3597
        %v3599 = vpop.xlane.xlu0 %3598
        %v3600 = vsel %vm1283, %v3581, 0.0
        %v3601 = vsel %vm1284, %v3583, 0.0
        %v3602 = vsel %vm1086, %v3600, 0.0
        %3603 = vadd.xlane.f32.xlu0 %v3602
        %v3604 = vpop.xlane.xlu0 %3603
        %v3605 = vsel %vm1086, %v3601, 0.0
        %3606 = vadd.xlane.f32.xlu0 %v3605
        %v3607 = vpop.xlane.xlu0 %3606
        %v3608 = vsel %vm1297, %v3581, 0.0
        %v3609 = vsel %vm1298, %v3583, 0.0
        %v3610 = vsel %vm1086, %v3608, 0.0
        %3611 = vadd.xlane.f32.xlu0 %v3610
        %v3612 = vpop.xlane.xlu0 %3611
        %v3613 = vsel %vm1086, %v3609, 0.0
        %3614 = vadd.xlane.f32.xlu0 %v3613
        %v3615 = vpop.xlane.xlu0 %3614
        %v3616 = vsel %vm1311, %v3581, 0.0
        %v3617 = vsel %vm1312, %v3583, 0.0
        %v3618 = vsel %vm1086, %v3616, 0.0
        %3619 = vadd.xlane.f32.xlu0 %v3618
        %v3620 = vpop.xlane.xlu0 %3619
        %v3621 = vsel %vm1086, %v3617, 0.0
        %3622 = vadd.xlane.f32.xlu0 %v3621
        %v3623 = vpop.xlane.xlu0 %3622
        %v3624 = vsel %vm1325, %v3581, 0.0
        %v3625 = vsel %vm1326, %v3583, 0.0
        %v3626 = vsel %vm1086, %v3624, 0.0
        %3627 = vadd.xlane.f32.xlu0 %v3626
        %v3628 = vpop.xlane.xlu0 %3627
        %v3629 = vsel %vm1086, %v3625, 0.0
        %3630 = vadd.xlane.f32.xlu0 %v3629
        %v3631 = vpop.xlane.xlu0 %3630
        %v3632 = vsel %vm1339, %v3581, 0.0
        %v3633 = vsel %vm1340, %v3583, 0.0
        %v3634 = vsel %vm1086, %v3632, 0.0
        %3635 = vadd.xlane.f32.xlu0 %v3634
        %v3636 = vpop.xlane.xlu0 %3635
        %v3637 = vsel %vm1086, %v3633, 0.0
        %3638 = vadd.xlane.f32.xlu0 %v3637
        %v3639 = vpop.xlane.xlu0 %3638
        %v3640 = vsel %vm1353, %v3581, 0.0
        %v3641 = vsel %vm1354, %v3583, 0.0
        %v3642 = vsel %vm1086, %v3640, 0.0
        %3643 = vadd.xlane.f32.xlu0 %v3642
        %v3644 = vpop.xlane.xlu0 %3643
        %v3645 = vsel %vm1086, %v3641, 0.0
        %3646 = vadd.xlane.f32.xlu0 %v3645
        %v3647 = vpop.xlane.xlu0 %3646
        %v3648 = vsel %vm1367, %v3581, 0.0
        %v3649 = vsel %vm1368, %v3583, 0.0
        %v3650 = vsel %vm1086, %v3648, 0.0
        %3651 = vadd.xlane.f32.xlu0 %v3650
        %v3652 = vpop.xlane.xlu0 %3651
        %v3653 = vsel %vm1086, %v3649, 0.0
        %3654 = vadd.xlane.f32.xlu0 %v3653
        %v3655 = vpop.xlane.xlu0 %3654
        %v3656 = vsel %vm1479, %v3588, %v3596
        %v3657 = vsel %vm1479, %v3591, %v3599
        %v3658 = vsel %vm1482, %v3656, %v3604
        %v3659 = vsel %vm1482, %v3657, %v3607
        %v3660 = vsel %vm1485, %v3658, %v3612
        %v3661 = vsel %vm1485, %v3659, %v3615
        %v3662 = vsel %vm1488, %v3660, %v3620
        %v3663 = vsel %vm1488, %v3661, %v3623
        %v3664 = vsel %vm1491, %v3662, %v3628
        %v3665 = vsel %vm1491, %v3663, %v3631
        %v3666 = vsel %vm1494, %v3664, %v3636
        %v3667 = vsel %vm1494, %v3665, %v3639
        %v3668 = vsel %vm1497, %v3666, %v3644
        %v3669 = vsel %vm1497, %v3667, %v3647
        %v3670 = vsel %vm1500, %v3668, %v3652
        %v3671 = vsel %vm1500, %v3669, %v3655
        %v3673 = vsel %vm1503, %v3670, 0
        %v3676 = vsel %vm1503, %v3671, 0
        %v3679 = vsel %vm1510, %v3281, 0
        %3681 = vmatprep.subr.mxu0 0.0
        %3682 = vmatpush1.msra.mxu0 %v3280
        %3683 = vmatprep.subr.mxu0 0.0
        %3684 = vmatpush1.msra.mxu0 %v3679
        %3685 = vmatprep.subr.mxu0 0.0
        %3686 = vmatpush1.msra.mxu0 0.0
        %3687 = vmatprep.subr.mxu0 0.0
        %3688 = vmatpush1.msra.mxu0 0.0
        %3689 = vmatprep.subr.mxu0 0.0
        %3690 = vmatpush1.msra.mxu0 0.0
        %3691 = vmatprep.subr.mxu0 0.0
        %3692 = vmatpush1.msra.mxu0 0.0
        %3693 = vmatprep.subr.mxu0 0.0
        %3694 = vmatpush1.msra.mxu0 0.0
        %3695 = vmatprep.subr.mxu0 0.0
        %3696 = vmatpush1.msra.mxu0 0.0
        %3697 = vmatprep.subr.mxu0 0.0
        %3698 = vmatpush1.msra.mxu0 0.0
        %3699 = vmatprep.subr.mxu0 0.0
        %3700 = vmatpush1.msra.mxu0 0.0
        %3701 = vmatprep.subr.mxu0 0.0
        %3702 = vmatpush1.msra.mxu0 0.0
        %3703 = vmatprep.subr.mxu0 0.0
        %3704 = vmatpush1.msra.mxu0 0.0
        %3705 = vmatprep.subr.mxu0 0.0
        %3706 = vmatpush1.msra.mxu0 0.0
        %3707 = vmatprep.subr.mxu0 0.0
        %3708 = vmatpush1.msra.mxu0 0.0
        %3709 = vmatprep.subr.mxu0 0.0
        %3710 = vmatpush1.msra.mxu0 0.0
        %3711 = vmatprep.subr.mxu0 0.0
        %3712 = vmatpush1.msra.mxu0 0.0
        %3713 = vmatprep.subr.mxu0 0.0
        %3714 = vmatpush1.msra.mxu0 0.0
        %3715 = vmatprep.subr.mxu0 0.0
        %3716 = vmatpush1.msra.mxu0 0.0
        %3717 = vmatprep.subr.mxu0 0.0
        %3718 = vmatpush1.msra.mxu0 0.0
        %3719 = vmatprep.subr.mxu0 0.0
        %3720 = vmatpush1.msra.mxu0 0.0
        %3721 = vmatprep.subr.mxu0 0.0
        %3722 = vmatpush1.msra.mxu0 0.0
        %3723 = vmatprep.subr.mxu0 0.0
        %3724 = vmatpush1.msra.mxu0 0.0
        %3725 = vmatprep.subr.mxu0 0.0
        %3726 = vmatpush1.msra.mxu0 0.0
        %3727 = vmatprep.subr.mxu0 0.0
        %3728 = vmatpush1.msra.mxu0 0.0
        %3729 = vmatprep.subr.mxu0 0.0
        %3730 = vmatpush1.msra.mxu0 0.0
        %3731 = vmatprep.subr.mxu0 0.0
        %3732 = vmatpush1.msra.mxu0 0.0
        %3733 = vmatprep.subr.mxu0 0.0
        %3734 = vmatpush1.msra.mxu0 0.0
        %3735 = vmatprep.subr.mxu0 0.0
        %3736 = vmatpush1.msra.mxu0 0.0
        %3737 = vmatprep.subr.mxu0 0.0
        %3738 = vmatpush1.msra.mxu0 0.0
        %3739 = vmatprep.subr.mxu0 0.0
        %3740 = vmatpush1.msra.mxu0 0.0
        %3741 = vmatprep.subr.mxu0 0.0
        %3742 = vmatpush1.msra.mxu0 0.0
        %3743 = vmatprep.subr.mxu0 0.0
        %3744 = vmatpush1.msra.mxu0 0.0
        %3745 = vmatprep.mubr.f32.mxu0 0.0
        %3746 = vmatmul.mubr.f32.gmra.mrb[0].mxu0 %v3673
        %v3747 = vpop.f32.mrb[0].mxu0
        %v3748 = vadd.f32 0.0, %v3747
        %v3749 = vpop.f32.mrb[0].mxu0
        %3750 = vmatprep.mubr.f32.mxu0 0.0
        %3751 = vmatmul.mubr.f32.gmra.mrb[0].mxu0 %v3676
        %v3752 = vpop.f32.mrb[0].mxu0
        %v3753 = vadd.f32 0.0, %v3752
        %v3754 = vpop.f32.mrb[0].mxu0
        %3755 = vdwg.mxu0
        %v3757 = vsel %vm1086, %v3581, 0
        %v3760 = vsel %vm1086, %v3583, 0
        %3762 = vmatprep.subr.mxu0 0.0
        %3763 = vmatpush1.msra.mxu0 %v3268
        %3764 = vmatprep.subr.mxu0 0.0
        %3765 = vmatpush1.msra.mxu0 %v3273
        %3766 = vmatprep.subr.mxu0 0.0
        %3767 = vmatpush1.msra.mxu0 0.0
        %3768 = vmatprep.subr.mxu0 0.0
        %3769 = vmatpush1.msra.mxu0 0.0
        %3770 = vmatprep.subr.mxu0 0.0
        %3771 = vmatpush1.msra.mxu0 0.0
        %3772 = vmatprep.subr.mxu0 0.0
        %3773 = vmatpush1.msra.mxu0 0.0
        %3774 = vmatprep.subr.mxu0 0.0
        %3775 = vmatpush1.msra.mxu0 0.0
        %3776 = vmatprep.subr.mxu0 0.0
        %3777 = vmatpush1.msra.mxu0 0.0
        %3778 = vmatprep.subr.mxu0 0.0
        %3779 = vmatpush1.msra.mxu0 0.0
        %3780 = vmatprep.subr.mxu0 0.0
        %3781 = vmatpush1.msra.mxu0 0.0
        %3782 = vmatprep.subr.mxu0 0.0
        %3783 = vmatpush1.msra.mxu0 0.0
        %3784 = vmatprep.subr.mxu0 0.0
        %3785 = vmatpush1.msra.mxu0 0.0
        %3786 = vmatprep.subr.mxu0 0.0
        %3787 = vmatpush1.msra.mxu0 0.0
        %3788 = vmatprep.subr.mxu0 0.0
        %3789 = vmatpush1.msra.mxu0 0.0
        %3790 = vmatprep.subr.mxu0 0.0
        %3791 = vmatpush1.msra.mxu0 0.0
        %3792 = vmatprep.subr.mxu0 0.0
        %3793 = vmatpush1.msra.mxu0 0.0
        %3794 = vmatprep.subr.mxu0 0.0
        %3795 = vmatpush1.msra.mxu0 0.0
        %3796 = vmatprep.subr.mxu0 0.0
        %3797 = vmatpush1.msra.mxu0 0.0
        %3798 = vmatprep.subr.mxu0 0.0
        %3799 = vmatpush1.msra.mxu0 0.0
        %3800 = vmatprep.subr.mxu0 0.0
        %3801 = vmatpush1.msra.mxu0 0.0
        %3802 = vmatprep.subr.mxu0 0.0
        %3803 = vmatpush1.msra.mxu0 0.0
        %3804 = vmatprep.subr.mxu0 0.0
        %3805 = vmatpush1.msra.mxu0 0.0
        %3806 = vmatprep.subr.mxu0 0.0
        %3807 = vmatpush1.msra.mxu0 0.0
        %3808 = vmatprep.subr.mxu0 0.0
        %3809 = vmatpush1.msra.mxu0 0.0
        %3810 = vmatprep.subr.mxu0 0.0
        %3811 = vmatpush1.msra.mxu0 0.0
        %3812 = vmatprep.subr.mxu0 0.0
        %3813 = vmatpush1.msra.mxu0 0.0
        %3814 = vmatprep.subr.mxu0 0.0
        %3815 = vmatpush1.msra.mxu0 0.0
        %3816 = vmatprep.subr.mxu0 0.0
        %3817 = vmatpush1.msra.mxu0 0.0
        %3818 = vmatprep.subr.mxu0 0.0
        %3819 = vmatpush1.msra.mxu0 0.0
        %3820 = vmatprep.subr.mxu0 0.0
        %3821 = vmatpush1.msra.mxu0 0.0
        %3822 = vmatprep.subr.mxu0 0.0
        %3823 = vmatpush1.msra.mxu0 0.0
        %3824 = vmatprep.subr.mxu0 0.0
        %3825 = vmatpush1.msra.mxu0 0.0
        %3826 = vmatprep.mubr.f32.mxu0 0.0
        %3827 = vmatmul.mubr.f32.gmra.mrb[0].mxu0 %v3757
        %v3828 = vpop.f32.mrb[0].mxu0
        %v3829 = vadd.f32 %v3748, %v3828
        %v3830 = vpop.f32.mrb[0].mxu0
        %3831 = vmatprep.mubr.f32.mxu0 0.0
        %3832 = vmatmul.mubr.f32.gmra.mrb[0].mxu0 %v3760
        %v3833 = vpop.f32.mrb[0].mxu0
        %v3834 = vadd.f32 %v3753, %v3833
        %v3835 = vpop.f32.mrb[0].mxu0
        %3836 = vdwg.mxu0
        %3837 = vrot.lane.b32.xlu0 %v3282, 112
        %v3838 = vpop.permute.xlu0 %3837
        %3839 = vrot.lane.b32.xlu0 %v3283, 112
        %v3840 = vpop.permute.xlu0 %3839
        %v3841 = vsel %vm1086, %v3838, 0
        %v3843 = vsel %vm1086, %v3840, 0
        %3845 = vmatprep.subr.mxu0 0.0
        %3846 = vmatpush1.xpose.msra.mxu0 %v3291
        %3847 = vmatprep.subr.mxu0 0.0
        %3848 = vmatpush1.xpose.msra.mxu0 %v3294
        %3849 = vmatprep.subr.mxu0 0.0
        %3850 = vmatpush1.xpose.msra.mxu0 0.0
        %3851 = vmatprep.subr.mxu0 0.0
        %3852 = vmatpush1.xpose.msra.mxu0 0.0
        %3853 = vmatprep.subr.mxu0 0.0
        %3854 = vmatpush1.xpose.msra.mxu0 0.0
        %3855 = vmatprep.subr.mxu0 0.0
        %3856 = vmatpush1.xpose.msra.mxu0 0.0
        %3857 = vmatprep.subr.mxu0 0.0
        %3858 = vmatpush1.xpose.msra.mxu0 0.0
        %3859 = vmatprep.subr.mxu0 0.0
        %3860 = vmatpush1.xpose.msra.mxu0 0.0
        %3861 = vmatprep.subr.mxu0 0.0
        %3862 = vmatpush1.xpose.msra.mxu0 0.0
        %3863 = vmatprep.subr.mxu0 0.0
        %3864 = vmatpush1.xpose.msra.mxu0 0.0
        %3865 = vmatprep.subr.mxu0 0.0
        %3866 = vmatpush1.xpose.msra.mxu0 0.0
        %3867 = vmatprep.subr.mxu0 0.0
        %3868 = vmatpush1.xpose.msra.mxu0 0.0
        %3869 = vmatprep.subr.mxu0 0.0
        %3870 = vmatpush1.xpose.msra.mxu0 0.0
        %3871 = vmatprep.subr.mxu0 0.0
        %3872 = vmatpush1.xpose.msra.mxu0 0.0
        %3873 = vmatprep.subr.mxu0 0.0
        %3874 = vmatpush1.xpose.msra.mxu0 0.0
        %3875 = vmatprep.subr.mxu0 0.0
        %3876 = vmatpush1.xpose.msra.mxu0 0.0
        %3877 = vmatprep.subr.mxu0 0.0
        %3878 = vmatpush1.xpose.msra.mxu0 0.0
        %3879 = vmatprep.subr.mxu0 0.0
        %3880 = vmatpush1.xpose.msra.mxu0 0.0
        %3881 = vmatprep.subr.mxu0 0.0
        %3882 = vmatpush1.xpose.msra.mxu0 0.0
        %3883 = vmatprep.subr.mxu0 0.0
        %3884 = vmatpush1.xpose.msra.mxu0 0.0
        %3885 = vmatprep.subr.mxu0 0.0
        %3886 = vmatpush1.xpose.msra.mxu0 0.0
        %3887 = vmatprep.subr.mxu0 0.0
        %3888 = vmatpush1.xpose.msra.mxu0 0.0
        %3889 = vmatprep.subr.mxu0 0.0
        %3890 = vmatpush1.xpose.msra.mxu0 0.0
        %3891 = vmatprep.subr.mxu0 0.0
        %3892 = vmatpush1.xpose.msra.mxu0 0.0
        %3893 = vmatprep.subr.mxu0 0.0
        %3894 = vmatpush1.xpose.msra.mxu0 0.0
        %3895 = vmatprep.subr.mxu0 0.0
        %3896 = vmatpush1.xpose.msra.mxu0 0.0
        %3897 = vmatprep.subr.mxu0 0.0
        %3898 = vmatpush1.xpose.msra.mxu0 0.0
        %3899 = vmatprep.subr.mxu0 0.0
        %3900 = vmatpush1.xpose.msra.mxu0 0.0
        %3901 = vmatprep.subr.mxu0 0.0
        %3902 = vmatpush1.xpose.msra.mxu0 0.0
        %3903 = vmatprep.subr.mxu0 0.0
        %3904 = vmatpush1.xpose.msra.mxu0 0.0
        %3905 = vmatprep.subr.mxu0 0.0
        %3906 = vmatpush1.xpose.msra.mxu0 0.0
        %3907 = vmatprep.subr.mxu0 0.0
        %3908 = vmatpush1.xpose.msra.mxu0 0.0
        %3909 = vmatprep.mubr.f32.mxu0 0.0
        %3910 = vmatmul.mubr.f32.gmra.mrb[0].mxu0 %v3841
        %v3911 = vpop.f32.mrb[0].mxu0
        %v3912 = vadd.f32 0.0, %v3911
        %v3913 = vpop.f32.mrb[0].mxu0
        %3914 = vmatprep.mubr.f32.mxu0 0.0
        %3915 = vmatmul.mubr.f32.gmra.mrb[0].mxu0 %v3843
        %v3916 = vpop.f32.mrb[0].mxu0
        %v3917 = vadd.f32 0.0, %v3916
        %v3918 = vpop.f32.mrb[0].mxu0
        %3919 = vdwg.mxu0
        %3921 = vset.pattern.permute.xlu0 0
        %3922 = vperm.xlu0 %3921, %v3912
        %v3923 = vpop.permute.xlu0 %3922
        %3926 = vset.pattern.permute.xlu0 0
        %3927 = vperm.xlu0 %3926, %v3917
        %v3928 = vpop.permute.xlu0 %3927
        %v3930 = vsel %vm1174, %v3923, 0.0
        %v3931 = vsel %vm1175, %v3928, 0.0
        %3932 = vrot.lane.b32.xlu0 %v3180, 112
        %v3933 = vpop.permute.xlu0 %3932
        %3934 = vrot.lane.b32.xlu0 %v3185, 112
        %v3935 = vpop.permute.xlu0 %3934
        %v3936 = vsel %vm1086, %v3933, 0
        %v3938 = vsel %vm1086, %v3935, 0
        %3940 = vmatprep.subr.mxu0 0.0
        %3941 = vmatpush1.xpose.msra.mxu0 %v3936
        %3942 = vmatprep.subr.mxu0 0.0
        %3943 = vmatpush1.xpose.msra.mxu0 %v3938
        %3944 = vmatprep.subr.mxu0 0.0
        %3945 = vmatpush1.xpose.msra.mxu0 0.0
        %3946 = vmatprep.subr.mxu0 0.0
        %3947 = vmatpush1.xpose.msra.mxu0 0.0
        %3948 = vmatprep.subr.mxu0 0.0
        %3949 = vmatpush1.xpose.msra.mxu0 0.0
        %3950 = vmatprep.subr.mxu0 0.0
        %3951 = vmatpush1.xpose.msra.mxu0 0.0
        %3952 = vmatprep.subr.mxu0 0.0
        %3953 = vmatpush1.xpose.msra.mxu0 0.0
        %3954 = vmatprep.subr.mxu0 0.0
        %3955 = vmatpush1.xpose.msra.mxu0 0.0
        %3956 = vmatprep.subr.mxu0 0.0
        %3957 = vmatpush1.xpose.msra.mxu0 0.0
        %3958 = vmatprep.subr.mxu0 0.0
        %3959 = vmatpush1.xpose.msra.mxu0 0.0
        %3960 = vmatprep.subr.mxu0 0.0
        %3961 = vmatpush1.xpose.msra.mxu0 0.0
        %3962 = vmatprep.subr.mxu0 0.0
        %3963 = vmatpush1.xpose.msra.mxu0 0.0
        %3964 = vmatprep.subr.mxu0 0.0
        %3965 = vmatpush1.xpose.msra.mxu0 0.0
        %3966 = vmatprep.subr.mxu0 0.0
        %3967 = vmatpush1.xpose.msra.mxu0 0.0
        %3968 = vmatprep.subr.mxu0 0.0
        %3969 = vmatpush1.xpose.msra.mxu0 0.0
        %3970 = vmatprep.subr.mxu0 0.0
        %3971 = vmatpush1.xpose.msra.mxu0 0.0
        %3972 = vmatprep.subr.mxu0 0.0
        %3973 = vmatpush1.xpose.msra.mxu0 0.0
        %3974 = vmatprep.subr.mxu0 0.0
        %3975 = vmatpush1.xpose.msra.mxu0 0.0
        %3976 = vmatprep.subr.mxu0 0.0
        %3977 = vmatpush1.xpose.msra.mxu0 0.0
        %3978 = vmatprep.subr.mxu0 0.0
        %3979 = vmatpush1.xpose.msra.mxu0 0.0
        %3980 = vmatprep.subr.mxu0 0.0
        %3981 = vmatpush1.xpose.msra.mxu0 0.0
        %3982 = vmatprep.subr.mxu0 0.0
        %3983 = vmatpush1.xpose.msra.mxu0 0.0
        %3984 = vmatprep.subr.mxu0 0.0
        %3985 = vmatpush1.xpose.msra.mxu0 0.0
        %3986 = vmatprep.subr.mxu0 0.0
        %3987 = vmatpush1.xpose.msra.mxu0 0.0
        %3988 = vmatprep.subr.mxu0 0.0
        %3989 = vmatpush1.xpose.msra.mxu0 0.0
        %3990 = vmatprep.subr.mxu0 0.0
        %3991 = vmatpush1.xpose.msra.mxu0 0.0
        %3992 = vmatprep.subr.mxu0 0.0
        %3993 = vmatpush1.xpose.msra.mxu0 0.0
        %3994 = vmatprep.subr.mxu0 0.0
        %3995 = vmatpush1.xpose.msra.mxu0 0.0
        %3996 = vmatprep.subr.mxu0 0.0
        %3997 = vmatpush1.xpose.msra.mxu0 0.0
        %3998 = vmatprep.subr.mxu0 0.0
        %3999 = vmatpush1.xpose.msra.mxu0 0.0
        %4000 = vmatprep.subr.mxu0 0.0
        %4001 = vmatpush1.xpose.msra.mxu0 0.0
        %4002 = vmatprep.subr.mxu0 0.0
        %4003 = vmatpush1.xpose.msra.mxu0 0.0
        %4004 = vmatprep.mubr.f32.mxu0 0.0
        %4005 = vmatmul.mubr.f32.gmra.mrb[0].mxu0 %v3841
        %v4006 = vpop.f32.mrb[0].mxu0
        %v4007 = vadd.f32 %v3930, %v4006
        %v4008 = vpop.f32.mrb[0].mxu0
        %4009 = vmatprep.mubr.f32.mxu0 0.0
        %4010 = vmatmul.mubr.f32.gmra.mrb[0].mxu0 %v3843
        %v4011 = vpop.f32.mrb[0].mxu0
        %v4012 = vadd.f32 %v3931, %v4011
        %v4013 = vpop.f32.mrb[0].mxu0
        %4014 = vdwg.mxu0
        %4015 = vset.pattern.permute.xlu0 1
        %4016 = vperm.xlu0 %4015, %v3912
        %v4017 = vpop.permute.xlu0 %4016
        %4019 = vset.pattern.permute.xlu0 1
        %4020 = vperm.xlu0 %4019, %v3917
        %v4021 = vpop.permute.xlu0 %4020
        %v4023 = vsel %vm1269, %v4017, 0.0
        %v4024 = vsel %vm1270, %v4021, 0.0
        %v4025 = vadd.f32 %v4007, %v4023
        %v4026 = vadd.f32 %v4012, %v4024
        %4027 = vset.pattern.permute.xlu0 2
        %4028 = vperm.xlu0 %4027, %v3912
        %v4029 = vpop.permute.xlu0 %4028
        %4031 = vset.pattern.permute.xlu0 2
        %4032 = vperm.xlu0 %4031, %v3917
        %v4033 = vpop.permute.xlu0 %4032
        %v4035 = vsel %vm1283, %v4029, 0.0
        %v4036 = vsel %vm1284, %v4033, 0.0
        %v4037 = vadd.f32 %v4025, %v4035
        %v4038 = vadd.f32 %v4026, %v4036
        %4039 = vset.pattern.permute.xlu0 3
        %4040 = vperm.xlu0 %4039, %v3912
        %v4041 = vpop.permute.xlu0 %4040
        %4043 = vset.pattern.permute.xlu0 3
        %4044 = vperm.xlu0 %4043, %v3917
        %v4045 = vpop.permute.xlu0 %4044
        %v4047 = vsel %vm1297, %v4041, 0.0
        %v4048 = vsel %vm1298, %v4045, 0.0
        %v4049 = vadd.f32 %v4037, %v4047
        %v4050 = vadd.f32 %v4038, %v4048
        %4051 = vset.pattern.permute.xlu0 4
        %4052 = vperm.xlu0 %4051, %v3912
        %v4053 = vpop.permute.xlu0 %4052
        %4055 = vset.pattern.permute.xlu0 4
        %4056 = vperm.xlu0 %4055, %v3917
        %v4057 = vpop.permute.xlu0 %4056
        %v4059 = vsel %vm1311, %v4053, 0.0
        %v4060 = vsel %vm1312, %v4057, 0.0
        %v4061 = vadd.f32 %v4049, %v4059
        %v4062 = vadd.f32 %v4050, %v4060
        %4063 = vset.pattern.permute.xlu0 5
        %4064 = vperm.xlu0 %4063, %v3912
        %v4065 = vpop.permute.xlu0 %4064
        %4067 = vset.pattern.permute.xlu0 5
        %4068 = vperm.xlu0 %4067, %v3917
        %v4069 = vpop.permute.xlu0 %4068
        %v4071 = vsel %vm1325, %v4065, 0.0
        %v4072 = vsel %vm1326, %v4069, 0.0
        %v4073 = vadd.f32 %v4061, %v4071
        %v4074 = vadd.f32 %v4062, %v4072
        %4075 = vset.pattern.permute.xlu0 6
        %4076 = vperm.xlu0 %4075, %v3912
        %v4077 = vpop.permute.xlu0 %4076
        %4079 = vset.pattern.permute.xlu0 6
        %4080 = vperm.xlu0 %4079, %v3917
        %v4081 = vpop.permute.xlu0 %4080
        %v4083 = vsel %vm1339, %v4077, 0.0
        %v4084 = vsel %vm1340, %v4081, 0.0
        %v4085 = vadd.f32 %v4073, %v4083
        %v4086 = vadd.f32 %v4074, %v4084
        %4087 = vset.pattern.permute.xlu0 7
        %4088 = vperm.xlu0 %4087, %v3912
        %v4089 = vpop.permute.xlu0 %4088
        %4091 = vset.pattern.permute.xlu0 7
        %4092 = vperm.xlu0 %4091, %v3917
        %v4093 = vpop.permute.xlu0 %4092
        %v4095 = vsel %vm1353, %v4089, 0.0
        %v4096 = vsel %vm1354, %v4093, 0.0
        %v4097 = vadd.f32 %v4085, %v4095
        %v4098 = vadd.f32 %v4086, %v4096
        %4099 = vset.pattern.permute.xlu0 8
        %4100 = vperm.xlu0 %4099, %v3912
        %v4101 = vpop.permute.xlu0 %4100
        %4103 = vset.pattern.permute.xlu0 8
        %4104 = vperm.xlu0 %4103, %v3917
        %v4105 = vpop.permute.xlu0 %4104
        %v4107 = vsel %vm1367, %v4101, 0.0
        %v4108 = vsel %vm1368, %v4105, 0.0
        %v4109 = vadd.f32 %v4097, %v4107
        %v4110 = vadd.f32 %v4098, %v4108
        %v4111 = vsel %vm1381, %v4109, -10000.0
        %v4112 = vsel %vm1382, %v4110, -10000.0
        %v4113 = vsel %vm1086, %v4111, -inf
        %4114 = vmax.xlane.f32.xlu0 %v4113
        %v4115 = vpop.xlane.xlu0 %4114
        %v4116 = vsel %vm1086, %v4112, -inf
        %4117 = vmax.xlane.f32.xlu0 %v4116
        %v4118 = vpop.xlane.xlu0 %4117
        %v4119 = vsub.f32 %v4111, %v4115
        %v4120 = vsub.f32 %v4112, %v4118
        %v4121 = vmul.f32 %v4119, 1.442695
        %v4122 = vpow.pop %v4121
        %v4123 = vmul.f32 %v4120, 1.442695
        %v4124 = vpow.pop %v4123
        %v4125 = vsel %vm1086, %v4122, 0.0
        %4126 = vadd.xlane.f32.xlu0 %v4125
        %v4127 = vpop.xlane.xlu0 %4126
        %v4128 = vsel %vm1086, %v4124, 0.0
        %4129 = vadd.xlane.f32.xlu0 %v4128
        %v4130 = vpop.xlane.xlu0 %4129
        %v4131 = vrcp.pop %v4127
        %v4132 = vmul.f32 %v4122, %v4131
        %v4133 = vrcp.pop %v4130
        %v4134 = vmul.f32 %v4124, %v4133
        %v4135 = vsel %vm1174, %v4132, 0.0
        %v4136 = vsel %vm1175, %v4134, 0.0
        %v4137 = vsel %vm1086, %v4135, 0.0
        %4138 = vadd.xlane.f32.xlu0 %v4137
        %v4139 = vpop.xlane.xlu0 %4138
        %v4140 = vsel %vm1086, %v4136, 0.0
        %4141 = vadd.xlane.f32.xlu0 %v4140
        %v4142 = vpop.xlane.xlu0 %4141
        %v4143 = vsel %vm1269, %v4132, 0.0
        %v4144 = vsel %vm1270, %v4134, 0.0
        %v4145 = vsel %vm1086, %v4143, 0.0
        %4146 = vadd.xlane.f32.xlu0 %v4145
        %v4147 = vpop.xlane.xlu0 %4146
        %v4148 = vsel %vm1086, %v4144, 0.0
        %4149 = vadd.xlane.f32.xlu0 %v4148
        %v4150 = vpop.xlane.xlu0 %4149
        %v4151 = vsel %vm1283, %v4132, 0.0
        %v4152 = vsel %vm1284, %v4134, 0.0
        %v4153 = vsel %vm1086, %v4151, 0.0
        %4154 = vadd.xlane.f32.xlu0 %v4153
        %v4155 = vpop.xlane.xlu0 %4154
        %v4156 = vsel %vm1086, %v4152, 0.0
        %4157 = vadd.xlane.f32.xlu0 %v4156
        %v4158 = vpop.xlane.xlu0 %4157
        %v4159 = vsel %vm1297, %v4132, 0.0
        %v4160 = vsel %vm1298, %v4134, 0.0
        %v4161 = vsel %vm1086, %v4159, 0.0
        %4162 = vadd.xlane.f32.xlu0 %v4161
        %v4163 = vpop.xlane.xlu0 %4162
        %v4164 = vsel %vm1086, %v4160, 0.0
        %4165 = vadd.xlane.f32.xlu0 %v4164
        %v4166 = vpop.xlane.xlu0 %4165
        %v4167 = vsel %vm1311, %v4132, 0.0
        %v4168 = vsel %vm1312, %v4134, 0.0
        %v4169 = vsel %vm1086, %v4167, 0.0
        %4170 = vadd.xlane.f32.xlu0 %v4169
        %v4171 = vpop.xlane.xlu0 %4170
        %v4172 = vsel %vm1086, %v4168, 0.0
        %4173 = vadd.xlane.f32.xlu0 %v4172
        %v4174 = vpop.xlane.xlu0 %4173
        %v4175 = vsel %vm1325, %v4132, 0.0
        %v4176 = vsel %vm1326, %v4134, 0.0
        %v4177 = vsel %vm1086, %v4175, 0.0
        %4178 = vadd.xlane.f32.xlu0 %v4177
        %v4179 = vpop.xlane.xlu0 %4178
        %v4180 = vsel %vm1086, %v4176, 0.0
        %4181 = vadd.xlane.f32.xlu0 %v4180
        %v4182 = vpop.xlane.xlu0 %4181
        %v4183 = vsel %vm1339, %v4132, 0.0
        %v4184 = vsel %vm1340, %v4134, 0.0
        %v4185 = vsel %vm1086, %v4183, 0.0
        %4186 = vadd.xlane.f32.xlu0 %v4185
        %v4187 = vpop.xlane.xlu0 %4186
        %v4188 = vsel %vm1086, %v4184, 0.0
        %4189 = vadd.xlane.f32.xlu0 %v4188
        %v4190 = vpop.xlane.xlu0 %4189
        %v4191 = vsel %vm1353, %v4132, 0.0
        %v4192 = vsel %vm1354, %v4134, 0.0
        %v4193 = vsel %vm1086, %v4191, 0.0
        %4194 = vadd.xlane.f32.xlu0 %v4193
        %v4195 = vpop.xlane.xlu0 %4194
        %v4196 = vsel %vm1086, %v4192, 0.0
        %4197 = vadd.xlane.f32.xlu0 %v4196
        %v4198 = vpop.xlane.xlu0 %4197
        %v4199 = vsel %vm1367, %v4132, 0.0
        %v4200 = vsel %vm1368, %v4134, 0.0
        %v4201 = vsel %vm1086, %v4199, 0.0
        %4202 = vadd.xlane.f32.xlu0 %v4201
        %v4203 = vpop.xlane.xlu0 %4202
        %v4204 = vsel %vm1086, %v4200, 0.0
        %4205 = vadd.xlane.f32.xlu0 %v4204
        %v4206 = vpop.xlane.xlu0 %4205
        %v4207 = vsel %vm1479, %v4139, %v4147
        %v4208 = vsel %vm1479, %v4142, %v4150
        %v4209 = vsel %vm1482, %v4207, %v4155
        %v4210 = vsel %vm1482, %v4208, %v4158
        %v4211 = vsel %vm1485, %v4209, %v4163
        %v4212 = vsel %vm1485, %v4210, %v4166
        %v4213 = vsel %vm1488, %v4211, %v4171
        %v4214 = vsel %vm1488, %v4212, %v4174
        %v4215 = vsel %vm1491, %v4213, %v4179
        %v4216 = vsel %vm1491, %v4214, %v4182
        %v4217 = vsel %vm1494, %v4215, %v4187
        %v4218 = vsel %vm1494, %v4216, %v4190
        %v4219 = vsel %vm1497, %v4217, %v4195
        %v4220 = vsel %vm1497, %v4218, %v4198
        %v4221 = vsel %vm1500, %v4219, %v4203
        %v4222 = vsel %vm1500, %v4220, %v4206
        %v4224 = vsel %vm1503, %v4221, 0
        %v4227 = vsel %vm1503, %v4222, 0
        %4229 = vmatprep.subr.mxu0 0.0
        %4230 = vmatpush1.msra.mxu0 %v3280
        %4231 = vmatprep.subr.mxu0 0.0
        %4232 = vmatpush1.msra.mxu0 %v3679
        %4233 = vmatprep.subr.mxu0 0.0
        %4234 = vmatpush1.msra.mxu0 0.0
        %4235 = vmatprep.subr.mxu0 0.0
        %4236 = vmatpush1.msra.mxu0 0.0
        %4237 = vmatprep.subr.mxu0 0.0
        %4238 = vmatpush1.msra.mxu0 0.0
        %4239 = vmatprep.subr.mxu0 0.0
        %4240 = vmatpush1.msra.mxu0 0.0
        %4241 = vmatprep.subr.mxu0 0.0
        %4242 = vmatpush1.msra.mxu0 0.0
        %4243 = vmatprep.subr.mxu0 0.0
        %4244 = vmatpush1.msra.mxu0 0.0
        %4245 = vmatprep.subr.mxu0 0.0
        %4246 = vmatpush1.msra.mxu0 0.0
        %4247 = vmatprep.subr.mxu0 0.0
        %4248 = vmatpush1.msra.mxu0 0.0
        %4249 = vmatprep.subr.mxu0 0.0
        %4250 = vmatpush1.msra.mxu0 0.0
        %4251 = vmatprep.subr.mxu0 0.0
        %4252 = vmatpush1.msra.mxu0 0.0
        %4253 = vmatprep.subr.mxu0 0.0
        %4254 = vmatpush1.msra.mxu0 0.0
        %4255 = vmatprep.subr.mxu0 0.0
        %4256 = vmatpush1.msra.mxu0 0.0
        %4257 = vmatprep.subr.mxu0 0.0
        %4258 = vmatpush1.msra.mxu0 0.0
        %4259 = vmatprep.subr.mxu0 0.0
        %4260 = vmatpush1.msra.mxu0 0.0
        %4261 = vmatprep.subr.mxu0 0.0
        %4262 = vmatpush1.msra.mxu0 0.0
        %4263 = vmatprep.subr.mxu0 0.0
        %4264 = vmatpush1.msra.mxu0 0.0
        %4265 = vmatprep.subr.mxu0 0.0
        %4266 = vmatpush1.msra.mxu0 0.0
        %4267 = vmatprep.subr.mxu0 0.0
        %4268 = vmatpush1.msra.mxu0 0.0
        %4269 = vmatprep.subr.mxu0 0.0
        %4270 = vmatpush1.msra.mxu0 0.0
        %4271 = vmatprep.subr.mxu0 0.0
        %4272 = vmatpush1.msra.mxu0 0.0
        %4273 = vmatprep.subr.mxu0 0.0
        %4274 = vmatpush1.msra.mxu0 0.0
        %4275 = vmatprep.subr.mxu0 0.0
        %4276 = vmatpush1.msra.mxu0 0.0
        %4277 = vmatprep.subr.mxu0 0.0
        %4278 = vmatpush1.msra.mxu0 0.0
        %4279 = vmatprep.subr.mxu0 0.0
        %4280 = vmatpush1.msra.mxu0 0.0
        %4281 = vmatprep.subr.mxu0 0.0
        %4282 = vmatpush1.msra.mxu0 0.0
        %4283 = vmatprep.subr.mxu0 0.0
        %4284 = vmatpush1.msra.mxu0 0.0
        %4285 = vmatprep.subr.mxu0 0.0
        %4286 = vmatpush1.msra.mxu0 0.0
        %4287 = vmatprep.subr.mxu0 0.0
        %4288 = vmatpush1.msra.mxu0 0.0
        %4289 = vmatprep.subr.mxu0 0.0
        %4290 = vmatpush1.msra.mxu0 0.0
        %4291 = vmatprep.subr.mxu0 0.0
        %4292 = vmatpush1.msra.mxu0 0.0
        %4293 = vmatprep.mubr.f32.mxu0 0.0
        %4294 = vmatmul.mubr.f32.gmra.mrb[0].mxu0 %v4224
        %v4295 = vpop.f32.mrb[0].mxu0
        %v4296 = vadd.f32 0.0, %v4295
        %v4297 = vpop.f32.mrb[0].mxu0
        %4298 = vmatprep.mubr.f32.mxu0 0.0
        %4299 = vmatmul.mubr.f32.gmra.mrb[0].mxu0 %v4227
        %v4300 = vpop.f32.mrb[0].mxu0
        %v4301 = vadd.f32 0.0, %v4300
        %v4302 = vpop.f32.mrb[0].mxu0
        %4303 = vdwg.mxu0
        %4306 = vrot.lane.b32.xlu0 %v3268, 112
        %v4307 = vpop.permute.xlu0 %4306
        %4308 = vrot.lane.b32.xlu0 %v3273, 112
        %v4309 = vpop.permute.xlu0 %4308
        %v4313 = vsel %vm1086, %v4132, 0
        %v4316 = vsel %vm1086, %v4134, 0
        %4318 = vmatprep.subr.mxu0 0.0
        %4319 = vmatpush1.msra.mxu0 %v4307
        %4320 = vmatprep.subr.mxu0 0.0
        %4321 = vmatpush1.msra.mxu0 %v4309
        %4322 = vmatprep.subr.mxu0 0.0
        %4323 = vmatpush1.msra.mxu0 0.0
        %4324 = vmatprep.subr.mxu0 0.0
        %4325 = vmatpush1.msra.mxu0 0.0
        %4326 = vmatprep.subr.mxu0 0.0
        %4327 = vmatpush1.msra.mxu0 0.0
        %4328 = vmatprep.subr.mxu0 0.0
        %4329 = vmatpush1.msra.mxu0 0.0
        %4330 = vmatprep.subr.mxu0 0.0
        %4331 = vmatpush1.msra.mxu0 0.0
        %4332 = vmatprep.subr.mxu0 0.0
        %4333 = vmatpush1.msra.mxu0 0.0
        %4334 = vmatprep.subr.mxu0 0.0
        %4335 = vmatpush1.msra.mxu0 0.0
        %4336 = vmatprep.subr.mxu0 0.0
        %4337 = vmatpush1.msra.mxu0 0.0
        %4338 = vmatprep.subr.mxu0 0.0
        %4339 = vmatpush1.msra.mxu0 0.0
        %4340 = vmatprep.subr.mxu0 0.0
        %4341 = vmatpush1.msra.mxu0 0.0
        %4342 = vmatprep.subr.mxu0 0.0
        %4343 = vmatpush1.msra.mxu0 0.0
        %4344 = vmatprep.subr.mxu0 0.0
        %4345 = vmatpush1.msra.mxu0 0.0
        %4346 = vmatprep.subr.mxu0 0.0
        %4347 = vmatpush1.msra.mxu0 0.0
        %4348 = vmatprep.subr.mxu0 0.0
        %4349 = vmatpush1.msra.mxu0 0.0
        %4350 = vmatprep.subr.mxu0 0.0
        %4351 = vmatpush1.msra.mxu0 0.0
        %4352 = vmatprep.subr.mxu0 0.0
        %4353 = vmatpush1.msra.mxu0 0.0
        %4354 = vmatprep.subr.mxu0 0.0
        %4355 = vmatpush1.msra.mxu0 0.0
        %4356 = vmatprep.subr.mxu0 0.0
        %4357 = vmatpush1.msra.mxu0 0.0
        %4358 = vmatprep.subr.mxu0 0.0
        %4359 = vmatpush1.msra.mxu0 0.0
        %4360 = vmatprep.subr.mxu0 0.0
        %4361 = vmatpush1.msra.mxu0 0.0
        %4362 = vmatprep.subr.mxu0 0.0
        %4363 = vmatpush1.msra.mxu0 0.0
        %4364 = vmatprep.subr.mxu0 0.0
        %4365 = vmatpush1.msra.mxu0 0.0
        %4366 = vmatprep.subr.mxu0 0.0
        %4367 = vmatpush1.msra.mxu0 0.0
        %4368 = vmatprep.subr.mxu0 0.0
        %4369 = vmatpush1.msra.mxu0 0.0
        %4370 = vmatprep.subr.mxu0 0.0
        %4371 = vmatpush1.msra.mxu0 0.0
        %4372 = vmatprep.subr.mxu0 0.0
        %4373 = vmatpush1.msra.mxu0 0.0
        %4374 = vmatprep.subr.mxu0 0.0
        %4375 = vmatpush1.msra.mxu0 0.0
        %4376 = vmatprep.subr.mxu0 0.0
        %4377 = vmatpush1.msra.mxu0 0.0
        %4378 = vmatprep.subr.mxu0 0.0
        %4379 = vmatpush1.msra.mxu0 0.0
        %4380 = vmatprep.subr.mxu0 0.0
        %4381 = vmatpush1.msra.mxu0 0.0
        %4382 = vmatprep.mubr.f32.mxu0 0.0
        %4383 = vmatmul.mubr.f32.gmra.mrb[0].mxu0 %v4313
        %v4384 = vpop.f32.mrb[0].mxu0
        %v4385 = vadd.f32 %v4296, %v4384
        %v4386 = vpop.f32.mrb[0].mxu0
        %4387 = vmatprep.mubr.f32.mxu0 0.0
        %4388 = vmatmul.mubr.f32.gmra.mrb[0].mxu0 %v4316
        %v4389 = vpop.f32.mrb[0].mxu0
        %v4390 = vadd.f32 %v4301, %v4389
        %v4391 = vpop.f32.mrb[0].mxu0
        %4392 = vdwg.mxu0
        %4395 = vrot.lane.b32.xlu0 %v4385, 16
        %v4396 = vpop.permute.xlu0 %4395
        %4397 = vrot.lane.b32.xlu0 %v4390, 16
        %v4398 = vpop.permute.xlu0 %4397
        %v4401 = vsel %vm1086, %v3829, %v4396
        %v4402 = vsel %vm1086, %v3834, %v4398
        %s4403 = scalar_lea.vmem %s9, 32
        %v4404 = vld [vmem:[%s4403] sm:$0xff]
        %v4405 = vld [vmem:[%s4403 + $0x8] sm:$0xff]
        %v4406 = vld [vmem:[%s4403 + $0x10] sm:$0xff]
        %v4407 = vld [vmem:[%s4403 + $0x18] sm:$0xff]
        %s4408 = scalar_lea.vmem %s10, 1
        %v4409 = vld [vmem:[%s4408] sm:$0x1]
        %v4411 = vlaneseq
        %v4412 = vshrl.u32 %v4411, 7
        %v4413 = vsub.s32 0, %v4412
        %v4414 = vrot.slane %v4409, %v4413
        %v4417 = vsel %vm826, %v4401, 0
        %v4420 = vsel %vm826, %v4402, 0
        %4422 = vmatprep.subr.mxu0 0.0
        %4423 = vmatpush1.msra.mxu0 %v4404
        %4424 = vmatprep.subr.mxu0 0.0
        %4425 = vmatpush1.msra.mxu0 %v4405
        %4426 = vmatprep.subr.mxu0 0.0
        %4427 = vmatpush1.msra.mxu0 %v4406
        %4428 = vmatprep.subr.mxu0 0.0
        %4429 = vmatpush1.msra.mxu0 %v4407
        %4430 = vmatprep.subr.mxu0 0.0
        %4431 = vmatpush1.msra.mxu0 0.0
        %4432 = vmatprep.subr.mxu0 0.0
        %4433 = vmatpush1.msra.mxu0 0.0
        %4434 = vmatprep.subr.mxu0 0.0
        %4435 = vmatpush1.msra.mxu0 0.0
        %4436 = vmatprep.subr.mxu0 0.0
        %4437 = vmatpush1.msra.mxu0 0.0
        %4438 = vmatprep.subr.mxu0 0.0
        %4439 = vmatpush1.msra.mxu0 0.0
        %4440 = vmatprep.subr.mxu0 0.0
        %4441 = vmatpush1.msra.mxu0 0.0
        %4442 = vmatprep.subr.mxu0 0.0
        %4443 = vmatpush1.msra.mxu0 0.0
        %4444 = vmatprep.subr.mxu0 0.0
        %4445 = vmatpush1.msra.mxu0 0.0
        %4446 = vmatprep.subr.mxu0 0.0
        %4447 = vmatpush1.msra.mxu0 0.0
        %4448 = vmatprep.subr.mxu0 0.0
        %4449 = vmatpush1.msra.mxu0 0.0
        %4450 = vmatprep.subr.mxu0 0.0
        %4451 = vmatpush1.msra.mxu0 0.0
        %4452 = vmatprep.subr.mxu0 0.0
        %4453 = vmatpush1.msra.mxu0 0.0
        %4454 = vmatprep.subr.mxu0 0.0
        %4455 = vmatpush1.msra.mxu0 0.0
        %4456 = vmatprep.subr.mxu0 0.0
        %4457 = vmatpush1.msra.mxu0 0.0
        %4458 = vmatprep.subr.mxu0 0.0
        %4459 = vmatpush1.msra.mxu0 0.0
        %4460 = vmatprep.subr.mxu0 0.0
        %4461 = vmatpush1.msra.mxu0 0.0
        %4462 = vmatprep.subr.mxu0 0.0
        %4463 = vmatpush1.msra.mxu0 0.0
        %4464 = vmatprep.subr.mxu0 0.0
        %4465 = vmatpush1.msra.mxu0 0.0
        %4466 = vmatprep.subr.mxu0 0.0
        %4467 = vmatpush1.msra.mxu0 0.0
        %4468 = vmatprep.subr.mxu0 0.0
        %4469 = vmatpush1.msra.mxu0 0.0
        %4470 = vmatprep.subr.mxu0 0.0
        %4471 = vmatpush1.msra.mxu0 0.0
        %4472 = vmatprep.subr.mxu0 0.0
        %4473 = vmatpush1.msra.mxu0 0.0
        %4474 = vmatprep.subr.mxu0 0.0
        %4475 = vmatpush1.msra.mxu0 0.0
        %4476 = vmatprep.subr.mxu0 0.0
        %4477 = vmatpush1.msra.mxu0 0.0
        %4478 = vmatprep.subr.mxu0 0.0
        %4479 = vmatpush1.msra.mxu0 0.0
        %4480 = vmatprep.subr.mxu0 0.0
        %4481 = vmatpush1.msra.mxu0 0.0
        %4482 = vmatprep.subr.mxu0 0.0
        %4483 = vmatpush1.msra.mxu0 0.0
        %4484 = vmatprep.subr.mxu0 0.0
        %4485 = vmatpush1.msra.mxu0 0.0
        %4486 = vmatprep.mubr.f32.mxu0 0.0
        %4487 = vmatmul.mubr.f32.gmra.mrb[0].mxu0 %v4417
        %v4488 = vpop.f32.mrb[0].mxu0
        %v4489 = vadd.f32 %v4414, %v4488
        %v4490 = vpop.f32.mrb[0].mxu0
        %4491 = vmatprep.mubr.f32.mxu0 0.0
        %4492 = vmatmul.mubr.f32.gmra.mrb[0].mxu0 %v4420
        %v4493 = vpop.f32.mrb[0].mxu0
        %v4494 = vadd.f32 %v4414, %v4493
        %v4495 = vpop.f32.mrb[0].mxu0
        %4496 = vdwg.mxu0
        %v4497 = vadd.f32 %v3004, %v4489
        %v4498 = vadd.f32 %v3005, %v4494
        %s4499 = scalar_lea.vmem %s13, 1
        %v4500 = vld [vmem:[%s4499] sm:$0x1]
        %s4501 = scalar_lea.vmem %s14, 1
        %v4502 = vld [vmem:[%s4501] sm:$0x1]
        %v4503 = vsel %vm826, %v4497, 0.0
        %4504 = vadd.xlane.f32.xlu0 %v4503
        %v4505 = vpop.xlane.xlu0 %4504
        %v4506 = vsel %vm826, %v4498, 0.0
        %4507 = vadd.xlane.f32.xlu0 %v4506
        %v4508 = vpop.xlane.xlu0 %4507
        %v4509 = vmul.f32 %v4505, %v2338
        %v4510 = vmul.f32 %v4508, %v2338
        %v4511 = vsub.f32 %v4497, %v4509
        %v4512 = vsub.f32 %v4498, %v4510
        %v4513 = vmul.f32 %v4511, %v4511
        %v4514 = vmul.f32 %v4512, %v4512
        %v4515 = vsel %vm826, %v4513, 0.0
        %4516 = vadd.xlane.f32.xlu0 %v4515
        %v4517 = vpop.xlane.xlu0 %4516
        %v4518 = vsel %vm826, %v4514, 0.0
        %4519 = vadd.xlane.f32.xlu0 %v4518
        %v4520 = vpop.xlane.xlu0 %4519
        %v4521 = vmul.f32 %v4517, %v2338
        %v4522 = vmul.f32 %v4520, %v2338
        %v4523 = vadd.f32 %v4521, 1e-05
        %v4524 = vadd.f32 %v4522, 1e-05
        %v4525 = vrsqrt.pop %v4523
        %v4526 = vrsqrt.pop %v4524
        %v4527 = vmul.f32 %v4511, %v4525
        %v4528 = vmul.f32 %v4512, %v4526
        %v4530 = vlaneseq
        %v4531 = vshrl.u32 %v4530, 7
        %v4532 = vsub.s32 0, %v4531
        %v4533 = vrot.slane %v4500, %v4532
        %v4535 = vmul.f32 %v4527, %v4533
        %v4536 = vmul.f32 %v4528, %v4533
        %v4538 = vlaneseq
        %v4539 = vshrl.u32 %v4538, 7
        %v4540 = vsub.s32 0, %v4539
        %v4541 = vrot.slane %v4502, %v4540
        %v4543 = vadd.f32 %v4535, %v4541
        %v4544 = vadd.f32 %v4536, %v4541
        %v4545 = vmul.f32 %v4543, %v791
        %v4546 = vmul.f32 %v4544, %v796
        %s4547 = scalar_lea.vmem %s15, 96
        %v4548 = vld [vmem:[%s4547] sm:$0xff]
        %v4549 = vld [vmem:[%s4547 + $0x8] sm:$0xff]
        %v4550 = vld [vmem:[%s4547 + $0x10] sm:$0xff]
        %v4551 = vld [vmem:[%s4547 + $0x18] sm:$0xff]
        %v4552 = vld [vmem:[%s4547 + $0x20] sm:$0xff]
        %v4553 = vld [vmem:[%s4547 + $0x28] sm:$0xff]
        %v4554 = vld [vmem:[%s4547 + $0x30] sm:$0xff]
        %v4555 = vld [vmem:[%s4547 + $0x38] sm:$0xff]
        %v4556 = vld [vmem:[%s4547 + $0x40] sm:$0xff]
        %v4557 = vld [vmem:[%s4547 + $0x48] sm:$0xff]
        %v4558 = vld [vmem:[%s4547 + $0x50] sm:$0xff]
        %v4559 = vld [vmem:[%s4547 + $0x58] sm:$0xff]
        %s4560 = scalar_lea.vmem %s16, 1
        %v4561 = vld [vmem:[%s4560] sm:$0x1]
        %v4564 = vrot.slane %v4545, 7
        %v4565 = vrot.slane %v4546, 7
        %v4566 = vsel %vm1510, %v4564, %v4565
        %v4569 = vsel %vm1510, 0.0, %v4564
        %v4570 = vsel %vm1510, %v4565, 0.0
        %v4573 = vrot.slane %v4569, 1
        %v4574 = vrot.slane %v4566, 1
        %v4575 = vsel %vm2401, %v4573, %v4574
        %v4576 = vrot.slane %v4570, 1
        %v4577 = vsel %vm2401, %v4574, %v4576
        %v4578 = vsel %vm826, %v4575, 0
        %v4580 = vsel %vm826, %v4577, 0
        %4582 = vmatprep.subr.mxu0 0.0
        %4583 = vmatpush1.msra.mxu0 %v4552
        %4584 = vmatprep.subr.mxu0 0.0
        %4585 = vmatpush1.msra.mxu0 %v4553
        %4586 = vmatprep.subr.mxu0 0.0
        %4587 = vmatpush1.msra.mxu0 %v4554
        %4588 = vmatprep.subr.mxu0 0.0
        %4589 = vmatpush1.msra.mxu0 %v4555
        %4590 = vmatprep.subr.mxu0 0.0
        %4591 = vmatpush1.msra.mxu0 0.0
        %4592 = vmatprep.subr.mxu0 0.0
        %4593 = vmatpush1.msra.mxu0 0.0
        %4594 = vmatprep.subr.mxu0 0.0
        %4595 = vmatpush1.msra.mxu0 0.0
        %4596 = vmatprep.subr.mxu0 0.0
        %4597 = vmatpush1.msra.mxu0 0.0
        %4598 = vmatprep.subr.mxu0 0.0
        %4599 = vmatpush1.msra.mxu0 0.0
        %4600 = vmatprep.subr.mxu0 0.0
        %4601 = vmatpush1.msra.mxu0 0.0
        %4602 = vmatprep.subr.mxu0 0.0
        %4603 = vmatpush1.msra.mxu0 0.0
        %4604 = vmatprep.subr.mxu0 0.0
        %4605 = vmatpush1.msra.mxu0 0.0
        %4606 = vmatprep.subr.mxu0 0.0
        %4607 = vmatpush1.msra.mxu0 0.0
        %4608 = vmatprep.subr.mxu0 0.0
        %4609 = vmatpush1.msra.mxu0 0.0
        %4610 = vmatprep.subr.mxu0 0.0
        %4611 = vmatpush1.msra.mxu0 0.0
        %4612 = vmatprep.subr.mxu0 0.0
        %4613 = vmatpush1.msra.mxu0 0.0
        %4614 = vmatprep.subr.mxu0 0.0
        %4615 = vmatpush1.msra.mxu0 0.0
        %4616 = vmatprep.subr.mxu0 0.0
        %4617 = vmatpush1.msra.mxu0 0.0
        %4618 = vmatprep.subr.mxu0 0.0
        %4619 = vmatpush1.msra.mxu0 0.0
        %4620 = vmatprep.subr.mxu0 0.0
        %4621 = vmatpush1.msra.mxu0 0.0
        %4622 = vmatprep.subr.mxu0 0.0
        %4623 = vmatpush1.msra.mxu0 0.0
        %4624 = vmatprep.subr.mxu0 0.0
        %4625 = vmatpush1.msra.mxu0 0.0
        %4626 = vmatprep.subr.mxu0 0.0
        %4627 = vmatpush1.msra.mxu0 0.0
        %4628 = vmatprep.subr.mxu0 0.0
        %4629 = vmatpush1.msra.mxu0 0.0
        %4630 = vmatprep.subr.mxu0 0.0
        %4631 = vmatpush1.msra.mxu0 0.0
        %4632 = vmatprep.subr.mxu0 0.0
        %4633 = vmatpush1.msra.mxu0 0.0
        %4634 = vmatprep.subr.mxu0 0.0
        %4635 = vmatpush1.msra.mxu0 0.0
        %4636 = vmatprep.subr.mxu0 0.0
        %4637 = vmatpush1.msra.mxu0 0.0
        %4638 = vmatprep.subr.mxu0 0.0
        %4639 = vmatpush1.msra.mxu0 0.0
        %4640 = vmatprep.subr.mxu0 0.0
        %4641 = vmatpush1.msra.mxu0 0.0
        %4642 = vmatprep.subr.mxu0 0.0
        %4643 = vmatpush1.msra.mxu0 0.0
        %4644 = vmatprep.subr.mxu0 0.0
        %4645 = vmatpush1.msra.mxu0 0.0
        %4646 = vmatprep.mubr.f32.mxu0 0.0
        %4647 = vmatmul.mubr.f32.gmra.mrb[0].mxu0 %v4578
        %v4648 = vpop.f32.mrb[0].mxu0
        %v4649 = vadd.f32 0.0, %v4648
        %v4650 = vpop.f32.mrb[0].mxu0
        %4651 = vmatprep.mubr.f32.mxu0 0.0
        %4652 = vmatmul.mubr.f32.gmra.mrb[0].mxu0 %v4580
        %v4653 = vpop.f32.mrb[0].mxu0
        %v4654 = vadd.f32 0.0, %v4653
        %v4655 = vpop.f32.mrb[0].mxu0
        %4656 = vdwg.mxu0
        %v4657 = vsel %vm826, %v4569, 0
        %v4659 = vsel %vm826, %v4566, 0
        %4661 = vmatprep.subr.mxu0 0.0
        %4662 = vmatpush1.msra.mxu0 %v4548
        %4663 = vmatprep.subr.mxu0 0.0
        %4664 = vmatpush1.msra.mxu0 %v4549
        %4665 = vmatprep.subr.mxu0 0.0
        %4666 = vmatpush1.msra.mxu0 %v4550
        %4667 = vmatprep.subr.mxu0 0.0
        %4668 = vmatpush1.msra.mxu0 %v4551
        %4669 = vmatprep.subr.mxu0 0.0
        %4670 = vmatpush1.msra.mxu0 0.0
        %4671 = vmatprep.subr.mxu0 0.0
        %4672 = vmatpush1.msra.mxu0 0.0
        %4673 = vmatprep.subr.mxu0 0.0
        %4674 = vmatpush1.msra.mxu0 0.0
        %4675 = vmatprep.subr.mxu0 0.0
        %4676 = vmatpush1.msra.mxu0 0.0
        %4677 = vmatprep.subr.mxu0 0.0
        %4678 = vmatpush1.msra.mxu0 0.0
        %4679 = vmatprep.subr.mxu0 0.0
        %4680 = vmatpush1.msra.mxu0 0.0
        %4681 = vmatprep.subr.mxu0 0.0
        %4682 = vmatpush1.msra.mxu0 0.0
        %4683 = vmatprep.subr.mxu0 0.0
        %4684 = vmatpush1.msra.mxu0 0.0
        %4685 = vmatprep.subr.mxu0 0.0
        %4686 = vmatpush1.msra.mxu0 0.0
        %4687 = vmatprep.subr.mxu0 0.0
        %4688 = vmatpush1.msra.mxu0 0.0
        %4689 = vmatprep.subr.mxu0 0.0
        %4690 = vmatpush1.msra.mxu0 0.0
        %4691 = vmatprep.subr.mxu0 0.0
        %4692 = vmatpush1.msra.mxu0 0.0
        %4693 = vmatprep.subr.mxu0 0.0
        %4694 = vmatpush1.msra.mxu0 0.0
        %4695 = vmatprep.subr.mxu0 0.0
        %4696 = vmatpush1.msra.mxu0 0.0
        %4697 = vmatprep.subr.mxu0 0.0
        %4698 = vmatpush1.msra.mxu0 0.0
        %4699 = vmatprep.subr.mxu0 0.0
        %4700 = vmatpush1.msra.mxu0 0.0
        %4701 = vmatprep.subr.mxu0 0.0
        %4702 = vmatpush1.msra.mxu0 0.0
        %4703 = vmatprep.subr.mxu0 0.0
        %4704 = vmatpush1.msra.mxu0 0.0
        %4705 = vmatprep.subr.mxu0 0.0
        %4706 = vmatpush1.msra.mxu0 0.0
        %4707 = vmatprep.subr.mxu0 0.0
        %4708 = vmatpush1.msra.mxu0 0.0
        %4709 = vmatprep.subr.mxu0 0.0
        %4710 = vmatpush1.msra.mxu0 0.0
        %4711 = vmatprep.subr.mxu0 0.0
        %4712 = vmatpush1.msra.mxu0 0.0
        %4713 = vmatprep.subr.mxu0 0.0
        %4714 = vmatpush1.msra.mxu0 0.0
        %4715 = vmatprep.subr.mxu0 0.0
        %4716 = vmatpush1.msra.mxu0 0.0
        %4717 = vmatprep.subr.mxu0 0.0
        %4718 = vmatpush1.msra.mxu0 0.0
        %4719 = vmatprep.subr.mxu0 0.0
        %4720 = vmatpush1.msra.mxu0 0.0
        %4721 = vmatprep.subr.mxu0 0.0
        %4722 = vmatpush1.msra.mxu0 0.0
        %4723 = vmatprep.subr.mxu0 0.0
        %4724 = vmatpush1.msra.mxu0 0.0
        %4725 = vmatprep.mubr.f32.mxu0 0.0
        %4726 = vmatmul.mubr.f32.gmra.mrb[0].mxu0 %v4657
        %v4727 = vpop.f32.mrb[0].mxu0
        %v4728 = vadd.f32 %v4649, %v4727
        %v4729 = vpop.f32.mrb[0].mxu0
        %4730 = vmatprep.mubr.f32.mxu0 0.0
        %4731 = vmatmul.mubr.f32.gmra.mrb[0].mxu0 %v4659
        %v4732 = vpop.f32.mrb[0].mxu0
        %v4733 = vadd.f32 %v4654, %v4732
        %v4734 = vpop.f32.mrb[0].mxu0
        %4735 = vdwg.mxu0
        %v4736 = vrot.slane %v4569, 2
        %v4737 = vrot.slane %v4566, 2
        %v4738 = vsel %vm2565, %v4736, %v4737
        %v4739 = vrot.slane %v4570, 2
        %v4740 = vsel %vm2565, %v4737, %v4739
        %v4741 = vsel %vm826, %v4738, 0
        %v4743 = vsel %vm826, %v4740, 0
        %4745 = vmatprep.subr.mxu0 0.0
        %4746 = vmatpush1.msra.mxu0 %v4556
        %4747 = vmatprep.subr.mxu0 0.0
        %4748 = vmatpush1.msra.mxu0 %v4557
        %4749 = vmatprep.subr.mxu0 0.0
        %4750 = vmatpush1.msra.mxu0 %v4558
        %4751 = vmatprep.subr.mxu0 0.0
        %4752 = vmatpush1.msra.mxu0 %v4559
        %4753 = vmatprep.subr.mxu0 0.0
        %4754 = vmatpush1.msra.mxu0 0.0
        %4755 = vmatprep.subr.mxu0 0.0
        %4756 = vmatpush1.msra.mxu0 0.0
        %4757 = vmatprep.subr.mxu0 0.0
        %4758 = vmatpush1.msra.mxu0 0.0
        %4759 = vmatprep.subr.mxu0 0.0
        %4760 = vmatpush1.msra.mxu0 0.0
        %4761 = vmatprep.subr.mxu0 0.0
        %4762 = vmatpush1.msra.mxu0 0.0
        %4763 = vmatprep.subr.mxu0 0.0
        %4764 = vmatpush1.msra.mxu0 0.0
        %4765 = vmatprep.subr.mxu0 0.0
        %4766 = vmatpush1.msra.mxu0 0.0
        %4767 = vmatprep.subr.mxu0 0.0
        %4768 = vmatpush1.msra.mxu0 0.0
        %4769 = vmatprep.subr.mxu0 0.0
        %4770 = vmatpush1.msra.mxu0 0.0
        %4771 = vmatprep.subr.mxu0 0.0
        %4772 = vmatpush1.msra.mxu0 0.0
        %4773 = vmatprep.subr.mxu0 0.0
        %4774 = vmatpush1.msra.mxu0 0.0
        %4775 = vmatprep.subr.mxu0 0.0
        %4776 = vmatpush1.msra.mxu0 0.0
        %4777 = vmatprep.subr.mxu0 0.0
        %4778 = vmatpush1.msra.mxu0 0.0
        %4779 = vmatprep.subr.mxu0 0.0
        %4780 = vmatpush1.msra.mxu0 0.0
        %4781 = vmatprep.subr.mxu0 0.0
        %4782 = vmatpush1.msra.mxu0 0.0
        %4783 = vmatprep.subr.mxu0 0.0
        %4784 = vmatpush1.msra.mxu0 0.0
        %4785 = vmatprep.subr.mxu0 0.0
        %4786 = vmatpush1.msra.mxu0 0.0
        %4787 = vmatprep.subr.mxu0 0.0
        %4788 = vmatpush1.msra.mxu0 0.0
        %4789 = vmatprep.subr.mxu0 0.0
        %4790 = vmatpush1.msra.mxu0 0.0
        %4791 = vmatprep.subr.mxu0 0.0
        %4792 = vmatpush1.msra.mxu0 0.0
        %4793 = vmatprep.subr.mxu0 0.0
        %4794 = vmatpush1.msra.mxu0 0.0
        %4795 = vmatprep.subr.mxu0 0.0
        %4796 = vmatpush1.msra.mxu0 0.0
        %4797 = vmatprep.subr.mxu0 0.0
        %4798 = vmatpush1.msra.mxu0 0.0
        %4799 = vmatprep.subr.mxu0 0.0
        %4800 = vmatpush1.msra.mxu0 0.0
        %4801 = vmatprep.subr.mxu0 0.0
        %4802 = vmatpush1.msra.mxu0 0.0
        %4803 = vmatprep.subr.mxu0 0.0
        %4804 = vmatpush1.msra.mxu0 0.0
        %4805 = vmatprep.subr.mxu0 0.0
        %4806 = vmatpush1.msra.mxu0 0.0
        %4807 = vmatprep.subr.mxu0 0.0
        %4808 = vmatpush1.msra.mxu0 0.0
        %4809 = vmatprep.mubr.f32.mxu0 0.0
        %4810 = vmatmul.mubr.f32.gmra.mrb[0].mxu0 %v4741
        %v4811 = vpop.f32.mrb[0].mxu0
        %v4812 = vadd.f32 0.0, %v4811
        %v4813 = vpop.f32.mrb[0].mxu0
        %4814 = vmatprep.mubr.f32.mxu0 0.0
        %4815 = vmatmul.mubr.f32.gmra.mrb[0].mxu0 %v4743
        %v4816 = vpop.f32.mrb[0].mxu0
        %v4817 = vadd.f32 0.0, %v4816
        %v4818 = vpop.f32.mrb[0].mxu0
        %4819 = vdwg.mxu0
        %v4820 = vadd.f32 %v4728, %v4812
        %v4821 = vadd.f32 %v4733, %v4817
        %v4823 = vlaneseq
        %v4824 = vshrl.u32 %v4823, 7
        %v4825 = vsub.s32 0, %v4824
        %v4826 = vrot.slane %v4561, %v4825
        %v4828 = vadd.f32 %v4820, %v4826
        %v4829 = vadd.f32 %v4821, %v4826
        %v4830 = vmax.f32 %v4828, 0.0
        %v4831 = vmax.f32 %v4829, 0.0
        %v4832 = vmul.f32 %v4830, %v791
        %v4833 = vmul.f32 %v4831, %v796
        %s4834 = scalar_lea.vmem %s17, 192
        %v4835 = vld [vmem:[%s4834] sm:$0xff]
        %v4836 = vld [vmem:[%s4834 + $0x8] sm:$0xff]
        %v4837 = vld [vmem:[%s4834 + $0x10] sm:$0xff]
        %v4838 = vld [vmem:[%s4834 + $0x18] sm:$0xff]
        %v4839 = vld [vmem:[%s4834 + $0x20] sm:$0xff]
        %v4840 = vld [vmem:[%s4834 + $0x28] sm:$0xff]
        %v4841 = vld [vmem:[%s4834 + $0x30] sm:$0xff]
        %v4842 = vld [vmem:[%s4834 + $0x38] sm:$0xff]
        %v4843 = vld [vmem:[%s4834 + $0x40] sm:$0xff]
        %v4844 = vld [vmem:[%s4834 + $0x48] sm:$0xff]
        %v4845 = vld [vmem:[%s4834 + $0x50] sm:$0xff]
        %v4846 = vld [vmem:[%s4834 + $0x58] sm:$0xff]
        %v4847 = vld [vmem:[%s4834 + $0x60] sm:$0xff]
        %v4848 = vld [vmem:[%s4834 + $0x68] sm:$0xff]
        %v4849 = vld [vmem:[%s4834 + $0x70] sm:$0xff]
        %v4850 = vld [vmem:[%s4834 + $0x78] sm:$0xff]
        %v4851 = vld [vmem:[%s4834 + $0x80] sm:$0xff]
        %v4852 = vld [vmem:[%s4834 + $0x88] sm:$0xff]
        %v4853 = vld [vmem:[%s4834 + $0x90] sm:$0xff]
        %v4854 = vld [vmem:[%s4834 + $0x98] sm:$0xff]
        %v4855 = vld [vmem:[%s4834 + $0xa0] sm:$0xff]
        %v4856 = vld [vmem:[%s4834 + $0xa8] sm:$0xff]
        %v4857 = vld [vmem:[%s4834 + $0xb0] sm:$0xff]
        %v4858 = vld [vmem:[%s4834 + $0xb8] sm:$0xff]
        %s4859 = scalar_lea.vmem %s18, 1
        %v4860 = vld [vmem:[%s4859] sm:$0x1]
        %v4863 = vrot.slane %v4832, 7
        %v4864 = vrot.slane %v4833, 7
        %v4865 = vsel %vm1510, %v4863, %v4864
        %v4868 = vsel %vm1510, 0.0, %v4863
        %v4869 = vsel %vm1510, %v4864, 0.0
        %v4872 = vrot.slane %v4868, 1
        %v4873 = vrot.slane %v4865, 1
        %v4874 = vsel %vm2401, %v4872, %v4873
        %v4875 = vrot.slane %v4869, 1
        %v4876 = vsel %vm2401, %v4873, %v4875
        %v4877 = vsel %vm2705, %v4874, 0
        %v4879 = vsel %vm2705, %v4876, 0
        %4881 = vmatprep.subr.mxu0 0.0
        %4882 = vmatpush1.msra.mxu0 %v4843
        %4883 = vmatprep.subr.mxu0 0.0
        %4884 = vmatpush1.msra.mxu0 %v4844
        %4885 = vmatprep.subr.mxu0 0.0
        %4886 = vmatpush1.msra.mxu0 %v4845
        %4887 = vmatprep.subr.mxu0 0.0
        %4888 = vmatpush1.msra.mxu0 %v4846
        %4889 = vmatprep.subr.mxu0 0.0
        %4890 = vmatpush1.msra.mxu0 %v4847
        %4891 = vmatprep.subr.mxu0 0.0
        %4892 = vmatpush1.msra.mxu0 %v4848
        %4893 = vmatprep.subr.mxu0 0.0
        %4894 = vmatpush1.msra.mxu0 %v4849
        %4895 = vmatprep.subr.mxu0 0.0
        %4896 = vmatpush1.msra.mxu0 %v4850
        %4897 = vmatprep.subr.mxu0 0.0
        %4898 = vmatpush1.msra.mxu0 0.0
        %4899 = vmatprep.subr.mxu0 0.0
        %4900 = vmatpush1.msra.mxu0 0.0
        %4901 = vmatprep.subr.mxu0 0.0
        %4902 = vmatpush1.msra.mxu0 0.0
        %4903 = vmatprep.subr.mxu0 0.0
        %4904 = vmatpush1.msra.mxu0 0.0
        %4905 = vmatprep.subr.mxu0 0.0
        %4906 = vmatpush1.msra.mxu0 0.0
        %4907 = vmatprep.subr.mxu0 0.0
        %4908 = vmatpush1.msra.mxu0 0.0
        %4909 = vmatprep.subr.mxu0 0.0
        %4910 = vmatpush1.msra.mxu0 0.0
        %4911 = vmatprep.subr.mxu0 0.0
        %4912 = vmatpush1.msra.mxu0 0.0
        %4913 = vmatprep.subr.mxu0 0.0
        %4914 = vmatpush1.msra.mxu0 0.0
        %4915 = vmatprep.subr.mxu0 0.0
        %4916 = vmatpush1.msra.mxu0 0.0
        %4917 = vmatprep.subr.mxu0 0.0
        %4918 = vmatpush1.msra.mxu0 0.0
        %4919 = vmatprep.subr.mxu0 0.0
        %4920 = vmatpush1.msra.mxu0 0.0
        %4921 = vmatprep.subr.mxu0 0.0
        %4922 = vmatpush1.msra.mxu0 0.0
        %4923 = vmatprep.subr.mxu0 0.0
        %4924 = vmatpush1.msra.mxu0 0.0
        %4925 = vmatprep.subr.mxu0 0.0
        %4926 = vmatpush1.msra.mxu0 0.0
        %4927 = vmatprep.subr.mxu0 0.0
        %4928 = vmatpush1.msra.mxu0 0.0
        %4929 = vmatprep.subr.mxu0 0.0
        %4930 = vmatpush1.msra.mxu0 0.0
        %4931 = vmatprep.subr.mxu0 0.0
        %4932 = vmatpush1.msra.mxu0 0.0
        %4933 = vmatprep.subr.mxu0 0.0
        %4934 = vmatpush1.msra.mxu0 0.0
        %4935 = vmatprep.subr.mxu0 0.0
        %4936 = vmatpush1.msra.mxu0 0.0
        %4937 = vmatprep.subr.mxu0 0.0
        %4938 = vmatpush1.msra.mxu0 0.0
        %4939 = vmatprep.subr.mxu0 0.0
        %4940 = vmatpush1.msra.mxu0 0.0
        %4941 = vmatprep.subr.mxu0 0.0
        %4942 = vmatpush1.msra.mxu0 0.0
        %4943 = vmatprep.subr.mxu0 0.0
        %4944 = vmatpush1.msra.mxu0 0.0
        %4945 = vmatprep.mubr.f32.mxu0 0.0
        %4946 = vmatmul.mubr.f32.gmra.mrb[0].mxu0 %v4877
        %v4947 = vpop.f32.mrb[0].mxu0
        %v4948 = vadd.f32 0.0, %v4947
        %v4949 = vpop.f32.mrb[0].mxu0
        %4950 = vmatprep.mubr.f32.mxu0 0.0
        %4951 = vmatmul.mubr.f32.gmra.mrb[0].mxu0 %v4879
        %v4952 = vpop.f32.mrb[0].mxu0
        %v4953 = vadd.f32 0.0, %v4952
        %v4954 = vpop.f32.mrb[0].mxu0
        %4955 = vdwg.mxu0
        %v4956 = vsel %vm2705, %v4868, 0
        %v4958 = vsel %vm2705, %v4865, 0
        %4960 = vmatprep.subr.mxu0 0.0
        %4961 = vmatpush1.msra.mxu0 %v4835
        %4962 = vmatprep.subr.mxu0 0.0
        %4963 = vmatpush1.msra.mxu0 %v4836
        %4964 = vmatprep.subr.mxu0 0.0
        %4965 = vmatpush1.msra.mxu0 %v4837
        %4966 = vmatprep.subr.mxu0 0.0
        %4967 = vmatpush1.msra.mxu0 %v4838
        %4968 = vmatprep.subr.mxu0 0.0
        %4969 = vmatpush1.msra.mxu0 %v4839
        %4970 = vmatprep.subr.mxu0 0.0
        %4971 = vmatpush1.msra.mxu0 %v4840
        %4972 = vmatprep.subr.mxu0 0.0
        %4973 = vmatpush1.msra.mxu0 %v4841
        %4974 = vmatprep.subr.mxu0 0.0
        %4975 = vmatpush1.msra.mxu0 %v4842
        %4976 = vmatprep.subr.mxu0 0.0
        %4977 = vmatpush1.msra.mxu0 0.0
        %4978 = vmatprep.subr.mxu0 0.0
        %4979 = vmatpush1.msra.mxu0 0.0
        %4980 = vmatprep.subr.mxu0 0.0
        %4981 = vmatpush1.msra.mxu0 0.0
        %4982 = vmatprep.subr.mxu0 0.0
        %4983 = vmatpush1.msra.mxu0 0.0
        %4984 = vmatprep.subr.mxu0 0.0
        %4985 = vmatpush1.msra.mxu0 0.0
        %4986 = vmatprep.subr.mxu0 0.0
        %4987 = vmatpush1.msra.mxu0 0.0
        %4988 = vmatprep.subr.mxu0 0.0
        %4989 = vmatpush1.msra.mxu0 0.0
        %4990 = vmatprep.subr.mxu0 0.0
        %4991 = vmatpush1.msra.mxu0 0.0
        %4992 = vmatprep.subr.mxu0 0.0
        %4993 = vmatpush1.msra.mxu0 0.0
        %4994 = vmatprep.subr.mxu0 0.0
        %4995 = vmatpush1.msra.mxu0 0.0
        %4996 = vmatprep.subr.mxu0 0.0
        %4997 = vmatpush1.msra.mxu0 0.0
        %4998 = vmatprep.subr.mxu0 0.0
        %4999 = vmatpush1.msra.mxu0 0.0
        %5000 = vmatprep.subr.mxu0 0.0
        %5001 = vmatpush1.msra.mxu0 0.0
        %5002 = vmatprep.subr.mxu0 0.0
        %5003 = vmatpush1.msra.mxu0 0.0
        %5004 = vmatprep.subr.mxu0 0.0
        %5005 = vmatpush1.msra.mxu0 0.0
        %5006 = vmatprep.subr.mxu0 0.0
        %5007 = vmatpush1.msra.mxu0 0.0
        %5008 = vmatprep.subr.mxu0 0.0
        %5009 = vmatpush1.msra.mxu0 0.0
        %5010 = vmatprep.subr.mxu0 0.0
        %5011 = vmatpush1.msra.mxu0 0.0
        %5012 = vmatprep.subr.mxu0 0.0
        %5013 = vmatpush1.msra.mxu0 0.0
        %5014 = vmatprep.subr.mxu0 0.0
        %5015 = vmatpush1.msra.mxu0 0.0
        %5016 = vmatprep.subr.mxu0 0.0
        %5017 = vmatpush1.msra.mxu0 0.0
        %5018 = vmatprep.subr.mxu0 0.0
        %5019 = vmatpush1.msra.mxu0 0.0
        %5020 = vmatprep.subr.mxu0 0.0
        %5021 = vmatpush1.msra.mxu0 0.0
        %5022 = vmatprep.subr.mxu0 0.0
        %5023 = vmatpush1.msra.mxu0 0.0
        %5024 = vmatprep.mubr.f32.mxu0 0.0
        %5025 = vmatmul.mubr.f32.gmra.mrb[0].mxu0 %v4956
        %v5026 = vpop.f32.mrb[0].mxu0
        %v5027 = vadd.f32 %v4948, %v5026
        %v5028 = vpop.f32.mrb[0].mxu0
        %5029 = vmatprep.mubr.f32.mxu0 0.0
        %5030 = vmatmul.mubr.f32.gmra.mrb[0].mxu0 %v4958
        %v5031 = vpop.f32.mrb[0].mxu0
        %v5032 = vadd.f32 %v4953, %v5031
        %v5033 = vpop.f32.mrb[0].mxu0
        %5034 = vdwg.mxu0
        %v5035 = vrot.slane %v4868, 2
        %v5036 = vrot.slane %v4865, 2
        %v5037 = vsel %vm2565, %v5035, %v5036
        %v5038 = vrot.slane %v4869, 2
        %v5039 = vsel %vm2565, %v5036, %v5038
        %v5040 = vsel %vm2705, %v5037, 0
        %v5042 = vsel %vm2705, %v5039, 0
        %5044 = vmatprep.subr.mxu0 0.0
        %5045 = vmatpush1.msra.mxu0 %v4851
        %5046 = vmatprep.subr.mxu0 0.0
        %5047 = vmatpush1.msra.mxu0 %v4852
        %5048 = vmatprep.subr.mxu0 0.0
        %5049 = vmatpush1.msra.mxu0 %v4853
        %5050 = vmatprep.subr.mxu0 0.0
        %5051 = vmatpush1.msra.mxu0 %v4854
        %5052 = vmatprep.subr.mxu0 0.0
        %5053 = vmatpush1.msra.mxu0 %v4855
        %5054 = vmatprep.subr.mxu0 0.0
        %5055 = vmatpush1.msra.mxu0 %v4856
        %5056 = vmatprep.subr.mxu0 0.0
        %5057 = vmatpush1.msra.mxu0 %v4857
        %5058 = vmatprep.subr.mxu0 0.0
        %5059 = vmatpush1.msra.mxu0 %v4858
        %5060 = vmatprep.subr.mxu0 0.0
        %5061 = vmatpush1.msra.mxu0 0.0
        %5062 = vmatprep.subr.mxu0 0.0
        %5063 = vmatpush1.msra.mxu0 0.0
        %5064 = vmatprep.subr.mxu0 0.0
        %5065 = vmatpush1.msra.mxu0 0.0
        %5066 = vmatprep.subr.mxu0 0.0
        %5067 = vmatpush1.msra.mxu0 0.0
        %5068 = vmatprep.subr.mxu0 0.0
        %5069 = vmatpush1.msra.mxu0 0.0
        %5070 = vmatprep.subr.mxu0 0.0
        %5071 = vmatpush1.msra.mxu0 0.0
        %5072 = vmatprep.subr.mxu0 0.0
        %5073 = vmatpush1.msra.mxu0 0.0
        %5074 = vmatprep.subr.mxu0 0.0
        %5075 = vmatpush1.msra.mxu0 0.0
        %5076 = vmatprep.subr.mxu0 0.0
        %5077 = vmatpush1.msra.mxu0 0.0
        %5078 = vmatprep.subr.mxu0 0.0
        %5079 = vmatpush1.msra.mxu0 0.0
        %5080 = vmatprep.subr.mxu0 0.0
        %5081 = vmatpush1.msra.mxu0 0.0
        %5082 = vmatprep.subr.mxu0 0.0
        %5083 = vmatpush1.msra.mxu0 0.0
        %5084 = vmatprep.subr.mxu0 0.0
        %5085 = vmatpush1.msra.mxu0 0.0
        %5086 = vmatprep.subr.mxu0 0.0
        %5087 = vmatpush1.msra.mxu0 0.0
        %5088 = vmatprep.subr.mxu0 0.0
        %5089 = vmatpush1.msra.mxu0 0.0
        %5090 = vmatprep.subr.mxu0 0.0
        %5091 = vmatpush1.msra.mxu0 0.0
        %5092 = vmatprep.subr.mxu0 0.0
        %5093 = vmatpush1.msra.mxu0 0.0
        %5094 = vmatprep.subr.mxu0 0.0
        %5095 = vmatpush1.msra.mxu0 0.0
        %5096 = vmatprep.subr.mxu0 0.0
        %5097 = vmatpush1.msra.mxu0 0.0
        %5098 = vmatprep.subr.mxu0 0.0
        %5099 = vmatpush1.msra.mxu0 0.0
        %5100 = vmatprep.subr.mxu0 0.0
        %5101 = vmatpush1.msra.mxu0 0.0
        %5102 = vmatprep.subr.mxu0 0.0
        %5103 = vmatpush1.msra.mxu0 0.0
        %5104 = vmatprep.subr.mxu0 0.0
        %5105 = vmatpush1.msra.mxu0 0.0
        %5106 = vmatprep.subr.mxu0 0.0
        %5107 = vmatpush1.msra.mxu0 0.0
        %5108 = vmatprep.mubr.f32.mxu0 0.0
        %5109 = vmatmul.mubr.f32.gmra.mrb[0].mxu0 %v5040
        %v5110 = vpop.f32.mrb[0].mxu0
        %v5111 = vadd.f32 0.0, %v5110
        %v5112 = vpop.f32.mrb[0].mxu0
        %5113 = vmatprep.mubr.f32.mxu0 0.0
        %5114 = vmatmul.mubr.f32.gmra.mrb[0].mxu0 %v5042
        %v5115 = vpop.f32.mrb[0].mxu0
        %v5116 = vadd.f32 0.0, %v5115
        %v5117 = vpop.f32.mrb[0].mxu0
        %5118 = vdwg.mxu0
        %v5119 = vadd.f32 %v5027, %v5111
        %v5120 = vadd.f32 %v5032, %v5116
        %v5122 = vlaneseq
        %v5123 = vshrl.u32 %v5122, 7
        %v5124 = vsub.s32 0, %v5123
        %v5125 = vrot.slane %v4860, %v5124
        %v5127 = vadd.f32 %v5119, %v5125
        %v5128 = vadd.f32 %v5120, %v5125
        %v5129 = vmul.f32 %v5127, %v791
        %v5130 = vmul.f32 %v5128, %v796
        %v5131 = vadd.f32 %v4543, %v5129
        %v5132 = vadd.f32 %v4544, %v5130
        %s5133 = scalar_lea.vmem %s19, 1
        %v5134 = vld [vmem:[%s5133] sm:$0x1]
        %s5135 = scalar_lea.vmem %s20, 1
        %v5136 = vld [vmem:[%s5135] sm:$0x1]
        %v5137 = vsel %vm826, %v5131, 0.0
        %5138 = vadd.xlane.f32.xlu0 %v5137
        %v5139 = vpop.xlane.xlu0 %5138
        %v5140 = vsel %vm826, %v5132, 0.0
        %5141 = vadd.xlane.f32.xlu0 %v5140
        %v5142 = vpop.xlane.xlu0 %5141
        %v5143 = vmul.f32 %v5139, %v2338
        %v5144 = vmul.f32 %v5142, %v2338
        %v5145 = vsub.f32 %v5131, %v5143
        %v5146 = vsub.f32 %v5132, %v5144
        %v5147 = vmul.f32 %v5145, %v5145
        %v5148 = vmul.f32 %v5146, %v5146
        %v5149 = vsel %vm826, %v5147, 0.0
        %5150 = vadd.xlane.f32.xlu0 %v5149
        %v5151 = vpop.xlane.xlu0 %5150
        %v5152 = vsel %vm826, %v5148, 0.0
        %5153 = vadd.xlane.f32.xlu0 %v5152
        %v5154 = vpop.xlane.xlu0 %5153
        %v5155 = vmul.f32 %v5151, %v2338
        %v5156 = vmul.f32 %v5154, %v2338
        %v5157 = vadd.f32 %v5155, 1e-05
        %v5158 = vadd.f32 %v5156, 1e-05
        %v5159 = vrsqrt.pop %v5157
        %v5160 = vrsqrt.pop %v5158
        %v5161 = vmul.f32 %v5145, %v5159
        %v5162 = vmul.f32 %v5146, %v5160
        %v5164 = vlaneseq
        %v5165 = vshrl.u32 %v5164, 7
        %v5166 = vsub.s32 0, %v5165
        %v5167 = vrot.slane %v5134, %v5166
        %v5169 = vmul.f32 %v5161, %v5167
        %v5170 = vmul.f32 %v5162, %v5167
        %v5172 = vlaneseq
        %v5173 = vshrl.u32 %v5172, 7
        %v5174 = vsub.s32 0, %v5173
        %v5175 = vrot.slane %v5136, %v5174
        %v5177 = vadd.f32 %v5169, %v5175
        %v5178 = vadd.f32 %v5170, %v5175
        %v5179 = vmul.f32 %v5177, %v791
        %v5180 = vmul.f32 %v5178, %v796
        %5181 = vst.msk [vmem:[%s757] sm:$0xff] %vm826, %v5179
        %5182 = vst.msk [vmem:[%s757 + $0x8] sm:$0xff] %vm826, %v5180
        %v5183 = vld [vmem:[%s21] sm:$0xff]
        %v5184 = vld [vmem:[%s21 + $0x8] sm:$0xff]
        %v5185 = vld [vmem:[%s21 + $0x10] sm:$0xff]
        %v5186 = vld [vmem:[%s21 + $0x18] sm:$0xff]
        %v5187 = vld [vmem:[%s22] sm:$0x1]
        %v5189 = vlaneseq
        %v5190 = vshrl.u32 %v5189, 7
        %v5191 = vsub.s32 0, %v5190
        %v5192 = vrot.slane %v5187, %v5191
        %v5195 = vsel %vm826, %v5179, 0
        %v5198 = vsel %vm826, %v5180, 0
        %5200 = vmatprep.subr.mxu0 0.0
        %5201 = vmatpush1.msra.mxu0 %v5183
        %5202 = vmatprep.subr.mxu0 0.0
        %5203 = vmatpush1.msra.mxu0 %v5184
        %5204 = vmatprep.subr.mxu0 0.0
        %5205 = vmatpush1.msra.mxu0 %v5185
        %5206 = vmatprep.subr.mxu0 0.0
        %5207 = vmatpush1.msra.mxu0 %v5186
        %5208 = vmatprep.subr.mxu0 0.0
        %5209 = vmatpush1.msra.mxu0 0.0
        %5210 = vmatprep.subr.mxu0 0.0
        %5211 = vmatpush1.msra.mxu0 0.0
        %5212 = vmatprep.subr.mxu0 0.0
        %5213 = vmatpush1.msra.mxu0 0.0
        %5214 = vmatprep.subr.mxu0 0.0
        %5215 = vmatpush1.msra.mxu0 0.0
        %5216 = vmatprep.subr.mxu0 0.0
        %5217 = vmatpush1.msra.mxu0 0.0
        %5218 = vmatprep.subr.mxu0 0.0
        %5219 = vmatpush1.msra.mxu0 0.0
        %5220 = vmatprep.subr.mxu0 0.0
        %5221 = vmatpush1.msra.mxu0 0.0
        %5222 = vmatprep.subr.mxu0 0.0
        %5223 = vmatpush1.msra.mxu0 0.0
        %5224 = vmatprep.subr.mxu0 0.0
        %5225 = vmatpush1.msra.mxu0 0.0
        %5226 = vmatprep.subr.mxu0 0.0
        %5227 = vmatpush1.msra.mxu0 0.0
        %5228 = vmatprep.subr.mxu0 0.0
        %5229 = vmatpush1.msra.mxu0 0.0
        %5230 = vmatprep.subr.mxu0 0.0
        %5231 = vmatpush1.msra.mxu0 0.0
        %5232 = vmatprep.subr.mxu0 0.0
        %5233 = vmatpush1.msra.mxu0 0.0
        %5234 = vmatprep.subr.mxu0 0.0
        %5235 = vmatpush1.msra.mxu0 0.0
        %5236 = vmatprep.subr.mxu0 0.0
        %5237 = vmatpush1.msra.mxu0 0.0
        %5238 = vmatprep.subr.mxu0 0.0
        %5239 = vmatpush1.msra.mxu0 0.0
        %5240 = vmatprep.subr.mxu0 0.0
        %5241 = vmatpush1.msra.mxu0 0.0
        %5242 = vmatprep.subr.mxu0 0.0
        %5243 = vmatpush1.msra.mxu0 0.0
        %5244 = vmatprep.subr.mxu0 0.0
        %5245 = vmatpush1.msra.mxu0 0.0
        %5246 = vmatprep.subr.mxu0 0.0
        %5247 = vmatpush1.msra.mxu0 0.0
        %5248 = vmatprep.subr.mxu0 0.0
        %5249 = vmatpush1.msra.mxu0 0.0
        %5250 = vmatprep.subr.mxu0 0.0
        %5251 = vmatpush1.msra.mxu0 0.0
        %5252 = vmatprep.subr.mxu0 0.0
        %5253 = vmatpush1.msra.mxu0 0.0
        %5254 = vmatprep.subr.mxu0 0.0
        %5255 = vmatpush1.msra.mxu0 0.0
        %5256 = vmatprep.subr.mxu0 0.0
        %5257 = vmatpush1.msra.mxu0 0.0
        %5258 = vmatprep.subr.mxu0 0.0
        %5259 = vmatpush1.msra.mxu0 0.0
        %5260 = vmatprep.subr.mxu0 0.0
        %5261 = vmatpush1.msra.mxu0 0.0
        %5262 = vmatprep.subr.mxu0 0.0
        %5263 = vmatpush1.msra.mxu0 0.0
        %5264 = vmatprep.mubr.f32.mxu0 0.0
        %5265 = vmatmul.mubr.f32.gmra.mrb[0].mxu0 %v5195
        %v5266 = vpop.f32.mrb[0].mxu0
        %v5267 = vadd.f32 %v5192, %v5266
        %v5268 = vpop.f32.mrb[0].mxu0
        %5269 = vmatprep.mubr.f32.mxu0 0.0
        %5270 = vmatmul.mubr.f32.gmra.mrb[0].mxu0 %v5198
        %v5271 = vpop.f32.mrb[0].mxu0
        %v5272 = vadd.f32 %v5192, %v5271
        %v5273 = vpop.f32.mrb[0].mxu0
        %5274 = vdwg.mxu0
        %v5275 = vmul.f32 %v5267, %v791
        %v5276 = vmul.f32 %v5272, %v796
        %5277 = vst.msk [vmem:[%s782] sm:$0xff] %vm1500, %v5275
        %5278 = vst.msk [vmem:[%s782 + $0x8] sm:$0xff] %vm1500, %v5276
        %s5279 = sand.u32 %s545, 1
        %s5280 = scalar_lea.sflag [#allocation3], %s5279
        %s5281 = sand.u32 %s545, 1
        %s5282 = smul.addr %s5281, 16
        %s5283 = scalar_lea.vmem [#allocation2], %s5282
        %p5284 = scmp.lt.s32.totalorder %s39, 1
        %s5285 = scalar_select %p5284, %s39, 1
        %s5286 = smul.addr %s5285, 2
        %s5287 = smul.addr %s5286, 8
        %s5288 = scalar_lea.vmem %s24, %s5287
        // Predicated region
        $region113: #{forward.1} parent=111 // pred_check
          %p5289 = pneg %p555
        $region114: #{forward.1} parent=111 // pred_check_branch
          %5291 = sbr.rel (%p5289) target = $region116
        $region115: #{forward.1} parent=111 // pred_region
          %s5293 = ssub.s32 256, 256
          %5294 = vsyncadd %s5280, %s5293
          %s5295 = smul.addr %s39, 2
          %s5296 = smul.addr %s5295, 128
          %s5297 = scalar_lea.hbm %s23, %s5296
          %s5298 = sshll.u32 %s5283, 4
          %s5299 = int_to_ptr.vmem [resolvable:$true] %s5298
          %5304 = dma.vmem_to_hbm [thread:$0]  %s5299, 256, %s5297, %s5280, 128, 128, 8
        $region116: #{forward.1} parent=111 // pred_fallthru
          _
        // Predicated region
        $region117: #{forward.1} parent=111 // pred_check
          %p5305 = pneg %p581
        $region118: #{forward.1} parent=111 // pred_check_branch
          %5307 = sbr.rel (%p5305) target = $region120
        $region119: #{forward.1} parent=111 // pred_region
          _
        $region120: #{forward.1} parent=111 // pred_fallthru
          _
      $region112: #{forward.1} parent=5 // pred_fallthru
        _
      %p5308 = scmp.le.s32.totalorder 2, %s34
      // Predicated region
      $region121: #{forward.1} parent=5 // pred_check
        %p5309 = pneg %p5308
      $region122: #{forward.1} parent=5 // pred_check_branch
        %5311 = sbr.rel (%p5309) target = $region124
      $region123: #{forward.1} parent=5 // pred_region
        %s5312 = ssub.s32 %s34, 2
        // Predicated region
        $region125: #{forward.1} parent=123 // pred_check
          %p5313 = pneg %p561
        $region126: #{forward.1} parent=123 // pred_check_branch
          %5315 = sbr.rel (%p5313) target = $region128
        $region127: #{forward.1} parent=123 // pred_region
          %s5316 = sand.u32 %s546, 1
          %s5317 = scalar_lea.sflag [#allocation3], %s5316
          %s5318 = sand.u32 %s546, 1
          %s5319 = smul.addr %s5318, 16
          %s5320 = scalar_lea.vmem [#allocation2], %s5319
          %5321 = dma.done %s5317, 256
        $region128: #{forward.1} parent=123 // pred_fallthru
          _
        // Predicated region
        $region129: #{forward.1} parent=123 // pred_check
          %p5322 = pneg %p587
        $region130: #{forward.1} parent=123 // pred_check_branch
          %5324 = sbr.rel (%p5322) target = $region132
        $region131: #{forward.1} parent=123 // pred_region
          %p5325 = scmp.lt.s32.totalorder %s40, 1
          %s5326 = scalar_select %p5325, %s40, 1
          %s5327 = smul.addr %s5326, 2
          %s5328 = smul.addr %s5327, 8
          %s5329 = scalar_lea.vmem %s24, %s5328
        $region132: #{forward.1} parent=123 // pred_fallthru
          _
      $region124: #{forward.1} parent=5 // pred_fallthru
        _
    $region6: #{forward.1} parent=1 // loop_footer
      %s38 = sadd.s32 1, %s34
    $region7: #{forward.1} parent=1 // loop_footer_branch
      %33 = sbr.rel target = $region3
    $region8: #{forward.1} parent=1 // loop_exit
      _
    %5330 = vsyncpa [#allocation3], 1
    %s5331 = scalar_lea.sflag [#allocation3], 1
    %5332 = vsyncpa %s5331, 1

</llo_original>
